<compile_context>
chip_gen: v7x
topology: tpu7x:2x2x1
jax: 0.10.0
libtpu: 0.0.40
codegen_flags: <defaults>
</compile_context>

<pallas_src>
import functools
import math

import jax
import jax.numpy as jnp
from jax.experimental import pallas as pl
from jax.experimental.pallas import tpu as pltpu


# ----------------------------------------------------------------------------
# Fused Pallas kernel: one grid step == one batch block, full layer.
# ----------------------------------------------------------------------------

def _rgbt_layer_kernel(
    xv_ref, xi_ref,
    # CFM (shared across both token sets)
    cw1_ref, cb1_ref, cw2_ref, cb2_ref,
    # GIM1 (template tokens) / GIM2 (search tokens), lane-stacked
    g1v_ref, g1i_ref, g1b_ref,
    g2v_ref, g2i_ref, g2b_ref,
    # SFM (shared): q weight, fused k|v weight, output projection
    wq_ref, bq_ref, wkv_ref, bkv_ref, wo_ref, bo_ref,
    # packed output (v | i along lanes)
    out_ref,
    *, num_heads, n_template,
):
    f32 = jnp.float32
    cdt = xv_ref.dtype                      # MXU operand dtype (bf16 stays bf16)

    Bt, Ntot, C = xv_ref.shape
    Nz = n_template
    Nx = Ntot - Nz
    D = wq_ref.shape[1]
    H = num_heads
    dh = D // H
    scale = 1.0 / math.sqrt(dh)

    # ---- read both token sets once (small; stays in VMEM / vregs) ----------
    zv0, zi0 = xv_ref[:, 0:Nz, :], xi_ref[:, 0:Nz, :]          # (Bt, 64,  C)
    sv0, si0 = xv_ref[:, Nz:Ntot, :], xi_ref[:, Nz:Ntot, :]    # (Bt, 256, C)

    # ---- CFM channel gate: both token sets x all Bt batches in ONE tiny MLP
    pool = jnp.concatenate(
        [jnp.mean(zv0.astype(f32) + zi0.astype(f32), axis=1),
         jnp.mean(sv0.astype(f32) + si0.astype(f32), axis=1)], axis=0)  # (2Bt, C)
    h = jnp.maximum(
        jnp.dot(pool.astype(cdt), cw1_ref[...], preferred_element_type=f32)
        + cb1_ref[...].astype(f32), 0.0)
    g = jax.nn.sigmoid(
        jnp.dot(h.astype(cdt), cw2_ref[...], preferred_element_type=f32)
        + cb2_ref[...].astype(f32))                                      # (2Bt, C)
    gz, gx = g[0:Bt], g[Bt:2 * Bt]

    # ---- shared SFM weights, loaded once ------------------------------------
    wq, bq = wq_ref[...], bq_ref[...].astype(f32)
    wkv, bkv = wkv_ref[...], bkv_ref[...].astype(f32)
    wo, bo = wo_ref[...], bo_ref[...].astype(f32)

    def fuse_set(v0, i0, gate, gv, gi, gb, lo, n):
        """CFM gate -> GIM -> SFM -> residuals for one token set (all Bt batches)."""
        rows = Bt * n

        # CFM gate (v*g + v), flattened to (Bt*n, C) for tall projections.
        v = (v0.astype(f32) * gate[:, None, :] + v0.astype(f32)).reshape(rows, C)
        i = (i0.astype(f32) * gate[:, None, :] + i0.astype(f32)).reshape(rows, C)

        # GIM: concat([v, i]) @ W folded into two dots against lane-stacked
        # (C, 2C) weights; lanes [:C] drive the v-update, lanes [C:] the i-update.
        upd = (jnp.dot(v.astype(cdt), gv, preferred_element_type=f32)
               + jnp.dot(i.astype(cdt), gi, preferred_element_type=f32)
               + gb.astype(f32))
        # TODO(synk): PyTorch nn.GELU() default is exact-erf; tanh approx used here.
        upd = jax.nn.gelu(upd, approximate=True)
        v = upd[:, 0:C] + v
        i = upd[:, C:2 * C] + i

        # SFM projections: q from v (1/sqrt(dh) folded in); k|v from i fused
        # into a single (C, 2D) dot.
        q = (jnp.dot(v.astype(cdt), wq, preferred_element_type=f32) + bq) * scale
        kv = jnp.dot(i.astype(cdt), wkv, preferred_element_type=f32) + bkv
        k, vv = kv[:, 0:D], kv[:, D:2 * D]

        for b in range(Bt):                      # static, unrolled
            rs, re = b * n, (b + 1) * n
            qb, vb = q[rs:re], vv[rs:re]
            kbT = k[rs:re].T                     # ONE (n, D) transpose per batch-set
            heads = []
            for hh in range(H):
                sl = slice(hh * dh, (hh + 1) * dh)
                sc = jnp.dot(qb[:, sl].astype(cdt), kbT[sl, :].astype(cdt),
                             preferred_element_type=f32)            # (n, n)
                sc = sc - jnp.max(sc, axis=-1, keepdims=True)
                p = jnp.exp(sc)
                l = jnp.sum(p, axis=-1, keepdims=True)
                oh = jnp.dot(p.astype(cdt), vb[:, sl].astype(cdt),
                             preferred_element_type=f32)            # (n, dh)
                # normalize the small (n, dh) output, not the (n, n) matrix
                heads.append(oh * pl.reciprocal(l, approx=True))
            o = jnp.concatenate(heads, axis=-1)                      # (n, D)
            # single K=D output projection instead of H tiny K=dh ones
            fused = (jnp.dot(o.astype(cdt), wo, preferred_element_type=f32)
                     + bo + 0.5 * (v[rs:re] + i[rs:re]))
            # final residuals against the ORIGINAL inputs of this token set,
            # stored straight into lane-slices of the packed (.., 2C) output.
            out_ref[b, lo:lo + n, 0:C] = (
                fused + v0[b].astype(f32)).astype(out_ref.dtype)
            out_ref[b, lo:lo + n, C:2 * C] = (
                fused + i0[b].astype(f32)).astype(out_ref.dtype)

    fuse_set(zv0, zi0, gz, g1v_ref[...], g1i_ref[...], g1b_ref[...], 0, Nz)
    fuse_set(sv0, si0, gx, g2v_ref[...], g2i_ref[...], g2b_ref[...], Nz, Nx)


# ----------------------------------------------------------------------------
# Wrapper: pre-fuse / pre-transpose weights once, launch a single pallas_call.
# ----------------------------------------------------------------------------

def _pick_batch_block(batch):
    # Largest power-of-two block that still leaves >= 2 grid steps, so the
    # BlockSpec pipeline can overlap DMA with compute and each v7x TensorCore
    # gets at least one step.  Falls back to the whole batch.
    for bt in (8, 4, 2, 1):
        if batch % bt == 0 and batch // bt >= 2:
            return bt
    return batch


def rgbt_layer_forward(params, x_v, x_i, num_heads=4, n_template=64,
                       batch_block=None):
    """x_v, x_i: (B, 320, C) token tensors (64 template + 256 search)."""
    B, Ntot, C = x_v.shape
    dtype = x_v.dtype
    cfm, g1p, g2p, sfm = (params["cfm"], params["gim1"],
                          params["gim2"], params["sfm"])
    Cr = cfm["w1"].shape[0]
    D = sfm["wq"].shape[0]

    def stack_gim(p):
        # gelu(concat([v, i]) @ W.T + b): concat folded into two dots against
        # lane-stacked weights so one (rows, 2C) result feeds both updates.
        w_from_v = jnp.concatenate([p["wv"][:, :C].T, p["wi"][:, :C].T], axis=1)
        w_from_i = jnp.concatenate([p["wv"][:, C:].T, p["wi"][:, C:].T], axis=1)
        bias = jnp.concatenate([p["bv"], p["bi"]]).reshape(1, 2 * C)
        return w_from_v, w_from_i, bias                       # (C,2C),(C,2C),(1,2C)

    weights = [
        cfm["w1"].T, cfm["b1"].reshape(1, Cr),
        cfm["w2"].T, cfm["b2"].reshape(1, C),
        *stack_gim(g1p),
        *stack_gim(g2p),
        sfm["wq"].T, sfm["bq"].reshape(1, D),
        jnp.concatenate([sfm["wk"].T, sfm["wv"].T], axis=1),           # (C, 2D)
        jnp.concatenate([sfm["bk"], sfm["bv"]]).reshape(1, 2 * D),
        sfm["wo"].T, sfm["bo"].reshape(1, C),
    ]
    weights = [w.astype(dtype) for w in weights]   # feed MXU in the input dtype

    Bt = batch_block or _pick_batch_block(B)
    assert B % Bt == 0, (B, Bt)

    tok_spec = pl.BlockSpec((Bt, Ntot, C), lambda b: (b, 0, 0))
    w_specs = [pl.BlockSpec(w.shape, lambda b: (0, 0)) for w in weights]
    out_spec = pl.BlockSpec((Bt, Ntot, 2 * C), lambda b: (b, 0, 0))

    # Keep 2x(input+output blocks) + weights well under v7x's 64 MiB VMEM.
    itemsize = jnp.dtype(dtype).itemsize
    blk_bytes = Bt * Ntot * 4 * C * itemsize
    vmem_limit = int(min(max(6 * blk_bytes, 16 << 20), 48 << 20))

    kernel = functools.partial(_rgbt_layer_kernel,
                               num_heads=num_heads, n_template=n_template)
    packed = pl.pallas_call(
        kernel,
        out_shape=jax.ShapeDtypeStruct((B, Ntot, 2 * C), dtype),
        grid=(B // Bt,),
        in_specs=[tok_spec, tok_spec] + w_specs,
        out_specs=out_spec,
        compiler_params=pltpu.CompilerParams(
            dimension_semantics=("parallel",),
            vmem_limit_bytes=vmem_limit),
    )(x_v, x_i, *weights)

    # lane-dense packed output (v | i) -> split back outside the kernel
    return packed[..., :C], packed[..., C:]


# ----------------------------------------------------------------------------
# Deterministic parameter init (synthetic; no checkpoint load)
# ----------------------------------------------------------------------------

def init_params(key, dim, num_heads=4, reduction=1):
    keys = iter(jax.random.split(key, 32))

    def w(shape):
        return jax.random.normal(next(keys), shape, jnp.float32) * 0.02

    def b(n):
        return jnp.zeros((n,), jnp.float32)

    d = dim // reduction
    cr = max(dim // 4, 1)
    return {
        "cfm": {"w1": w((cr, dim)), "b1": b(cr),
                "w2": w((dim, cr)), "b2": b(dim)},
        "gim1": {"wv": w((dim, 2 * dim)), "bv": b(dim),
                 "wi": w((dim, 2 * dim)), "bi": b(dim)},
        "gim2": {"wv": w((dim, 2 * dim)), "bv": b(dim),
                 "wi": w((dim, 2 * dim)), "bi": b(dim)},
        "sfm": {"wq": w((d, dim)), "bq": b(d),
                "wk": w((d, dim)), "bk": b(d),
                "wv": w((d, dim)), "bv": b(d),
                "wo": w((dim, d)), "bo": b(dim)},
    }


if __name__ == "__main__":
    B, dim = 2, 32                      # small synthetic hidden size
    key = jax.random.PRNGKey(0)
    k_v, k_i, k_p = jax.random.split(key, 3)
    x_v = jax.random.normal(k_v, (B, 320, dim), jnp.float32)   # 64 + 256 tokens
    x_i = jax.random.normal(k_i, (B, 320, dim), jnp.float32)
    params = init_params(k_p, dim)

    fwd = jax.jit(rgbt_layer_forward)
    out_v, out_i = fwd(params, x_v, x_i)
    jax.block_until_ready((out_v, out_i))

    assert out_v.shape == (B, 320, dim), out_v.shape
    assert out_i.shape == (B, 320, dim), out_i.shape
    assert jnp.all(jnp.isfinite(out_v)) and jnp.all(jnp.isfinite(out_i))
    print("KERNEL_OK")
</pallas_src>

<mosaic_0001>
module attributes {stable_mosaic.version = 11 : i64} {
  func.func @_rgbt_layer_kernel(%arg0: i32, %arg1: memref<1x320x32xf32, #tpu.memory_space<vmem>>, %arg2: memref<1x320x32xf32, #tpu.memory_space<vmem>>, %arg3: memref<32x8xf32, #tpu.memory_space<vmem>>, %arg4: memref<1x8xf32, #tpu.memory_space<vmem>>, %arg5: memref<8x32xf32, #tpu.memory_space<vmem>>, %arg6: memref<1x32xf32, #tpu.memory_space<vmem>>, %arg7: memref<32x64xf32, #tpu.memory_space<vmem>>, %arg8: memref<32x64xf32, #tpu.memory_space<vmem>>, %arg9: memref<1x64xf32, #tpu.memory_space<vmem>>, %arg10: memref<32x64xf32, #tpu.memory_space<vmem>>, %arg11: memref<32x64xf32, #tpu.memory_space<vmem>>, %arg12: memref<1x64xf32, #tpu.memory_space<vmem>>, %arg13: memref<32x32xf32, #tpu.memory_space<vmem>>, %arg14: memref<1x32xf32, #tpu.memory_space<vmem>>, %arg15: memref<32x64xf32, #tpu.memory_space<vmem>>, %arg16: memref<1x64xf32, #tpu.memory_space<vmem>>, %arg17: memref<32x32xf32, #tpu.memory_space<vmem>>, %arg18: memref<1x32xf32, #tpu.memory_space<vmem>>, %arg19: memref<1x320x64xf32, #tpu.memory_space<vmem>>) attributes {dimension_semantics = [#tpu.dimension_semantics<parallel>], iteration_bounds = array<i64: 2>, scalar_prefetch = 0 : i64, scratch_operands = 0 : i64, tpu.core_type = #tpu.core_type<tc>, window_params = [{transform_indices = @transform_0, window_bounds = array<i64: 1, 320, 32>}, {transform_indices = @transform_1, window_bounds = array<i64: 1, 320, 32>}, {pipeline_mode = #tpu.pipeline_mode<synchronous>, transform_indices = @transform_2, window_bounds = array<i64: 32, 8>}, {pipeline_mode = #tpu.pipeline_mode<synchronous>, transform_indices = @transform_3, window_bounds = array<i64: 1, 8>}, {pipeline_mode = #tpu.pipeline_mode<synchronous>, transform_indices = @transform_4, window_bounds = array<i64: 8, 32>}, {pipeline_mode = #tpu.pipeline_mode<synchronous>, transform_indices = @transform_5, window_bounds = array<i64: 1, 32>}, {pipeline_mode = #tpu.pipeline_mode<synchronous>, transform_indices = @transform_6, window_bounds = array<i64: 32, 64>}, {pipeline_mode = #tpu.pipeline_mode<synchronous>, transform_indices = @transform_7, window_bounds = array<i64: 32, 64>}, {pipeline_mode = #tpu.pipeline_mode<synchronous>, transform_indices = @transform_8, window_bounds = array<i64: 1, 64>}, {pipeline_mode = #tpu.pipeline_mode<synchronous>, transform_indices = @transform_9, window_bounds = array<i64: 32, 64>}, {pipeline_mode = #tpu.pipeline_mode<synchronous>, transform_indices = @transform_10, window_bounds = array<i64: 32, 64>}, {pipeline_mode = #tpu.pipeline_mode<synchronous>, transform_indices = @transform_11, window_bounds = array<i64: 1, 64>}, {pipeline_mode = #tpu.pipeline_mode<synchronous>, transform_indices = @transform_12, window_bounds = array<i64: 32, 32>}, {pipeline_mode = #tpu.pipeline_mode<synchronous>, transform_indices = @transform_13, window_bounds = array<i64: 1, 32>}, {pipeline_mode = #tpu.pipeline_mode<synchronous>, transform_indices = @transform_14, window_bounds = array<i64: 32, 64>}, {pipeline_mode = #tpu.pipeline_mode<synchronous>, transform_indices = @transform_15, window_bounds = array<i64: 1, 64>}, {pipeline_mode = #tpu.pipeline_mode<synchronous>, transform_indices = @transform_16, window_bounds = array<i64: 32, 32>}, {pipeline_mode = #tpu.pipeline_mode<synchronous>, transform_indices = @transform_17, window_bounds = array<i64: 1, 32>}, {transform_indices = @transform_18, window_bounds = array<i64: 1, 320, 64>}]} {
    %c0 = arith.constant 0 : index
    %c0_0 = arith.constant 0 : index
    %c0_1 = arith.constant 0 : index
    %0 = vector.load %arg1[%c0, %c0_0, %c0_1] : memref<1x320x32xf32, #tpu.memory_space<vmem>>, vector<1x64x32xf32>
    %c0_2 = arith.constant 0 : index
    %c0_3 = arith.constant 0 : index
    %c0_4 = arith.constant 0 : index
    %1 = vector.load %arg2[%c0_2, %c0_3, %c0_4] : memref<1x320x32xf32, #tpu.memory_space<vmem>>, vector<1x64x32xf32>
    %c0_5 = arith.constant 0 : index
    %c64 = arith.constant 64 : index
    %c0_6 = arith.constant 0 : index
    %2 = vector.load %arg1[%c0_5, %c64, %c0_6] : memref<1x320x32xf32, #tpu.memory_space<vmem>>, vector<1x256x32xf32>
    %c0_7 = arith.constant 0 : index
    %c64_8 = arith.constant 64 : index
    %c0_9 = arith.constant 0 : index
    %3 = vector.load %arg2[%c0_7, %c64_8, %c0_9] : memref<1x320x32xf32, #tpu.memory_space<vmem>>, vector<1x256x32xf32>
    %4 = arith.addf %0, %1 : vector<1x64x32xf32>
    %cst = arith.constant dense<0.000000e+00> : vector<1x32xf32>
    %5 = vector.multi_reduction <add>, %4, %cst [1] : vector<1x64x32xf32> to vector<1x32xf32>
    %cst_10 = arith.constant 6.400000e+01 : f32
    %6 = vector.broadcast %cst_10 : f32 to vector<1x32xf32>
    %7 = arith.divf %5, %6 : vector<1x32xf32>
    %8 = arith.addf %2, %3 : vector<1x256x32xf32>
    %cst_11 = arith.constant dense<0.000000e+00> : vector<1x32xf32>
    %9 = vector.multi_reduction <add>, %8, %cst_11 [1] : vector<1x256x32xf32> to vector<1x32xf32>
    %cst_12 = arith.constant 2.560000e+02 : f32
    %10 = vector.broadcast %cst_12 : f32 to vector<1x32xf32>
    %11 = arith.divf %9, %10 : vector<1x32xf32>
    %12 = tpu.concatenate %7, %11 in 0 : vector<1x32xf32>, vector<1x32xf32> -> vector<2x32xf32>
    %c0_13 = arith.constant 0 : index
    %c0_14 = arith.constant 0 : index
    %13 = vector.load %arg3[%c0_13, %c0_14] : memref<32x8xf32, #tpu.memory_space<vmem>>, vector<32x8xf32>
    %cst_15 = arith.constant dense<0.000000e+00> : vector<2x8xf32>
    %14 = tpu.matmul %12, %13, %cst_15 {dimension_numbers = #tpu.dot_dimension_numbers<[1], [0], [0], [1], [0, 0, 1, 1], [], []>} : vector<2x32xf32>, vector<32x8xf32>, vector<2x8xf32> -> vector<2x8xf32>
    %c0_16 = arith.constant 0 : index
    %c0_17 = arith.constant 0 : index
    %15 = vector.load %arg4[%c0_16, %c0_17] : memref<1x8xf32, #tpu.memory_space<vmem>>, vector<1x8xf32>
    %16 = vector.broadcast %15 : vector<1x8xf32> to vector<2x8xf32>
    %17 = arith.addf %14, %16 : vector<2x8xf32>
    %cst_18 = arith.constant 0.000000e+00 : f32
    %18 = vector.broadcast %cst_18 : f32 to vector<2x8xf32>
    %19 = arith.maximumf %17, %18 : vector<2x8xf32>
    %c0_19 = arith.constant 0 : index
    %c0_20 = arith.constant 0 : index
    %20 = vector.load %arg5[%c0_19, %c0_20] : memref<8x32xf32, #tpu.memory_space<vmem>>, vector<8x32xf32>
    %cst_21 = arith.constant dense<0.000000e+00> : vector<2x32xf32>
    %21 = tpu.matmul %19, %20, %cst_21 {dimension_numbers = #tpu.dot_dimension_numbers<[1], [0], [0], [1], [0, 0, 1, 1], [], []>} : vector<2x8xf32>, vector<8x32xf32>, vector<2x32xf32> -> vector<2x32xf32>
    %c0_22 = arith.constant 0 : index
    %c0_23 = arith.constant 0 : index
    %22 = vector.load %arg6[%c0_22, %c0_23] : memref<1x32xf32, #tpu.memory_space<vmem>>, vector<1x32xf32>
    %23 = vector.broadcast %22 : vector<1x32xf32> to vector<2x32xf32>
    %24 = arith.addf %21, %23 : vector<2x32xf32>
    %25 = arith.negf %24 : vector<2x32xf32>
    %26 = math.exp %25 : vector<2x32xf32>
    %cst_24 = arith.constant 1.000000e+00 : f32
    %27 = vector.broadcast %cst_24 : f32 to vector<2x32xf32>
    %28 = arith.addf %27, %26 : vector<2x32xf32>
    %29 = arith.divf %27, %28 : vector<2x32xf32>
    %30 = vector.extract_strided_slice %29 {offsets = [0, 0], sizes = [1, 32], strides = [1, 1]} : vector<2x32xf32> to vector<1x32xf32>
    %31 = vector.extract_strided_slice %29 {offsets = [1, 0], sizes = [1, 32], strides = [1, 1]} : vector<2x32xf32> to vector<1x32xf32>
    %c0_25 = arith.constant 0 : index
    %c0_26 = arith.constant 0 : index
    %32 = vector.load %arg13[%c0_25, %c0_26] : memref<32x32xf32, #tpu.memory_space<vmem>>, vector<32x32xf32>
    %c0_27 = arith.constant 0 : index
    %c0_28 = arith.constant 0 : index
    %33 = vector.load %arg14[%c0_27, %c0_28] : memref<1x32xf32, #tpu.memory_space<vmem>>, vector<1x32xf32>
    %c0_29 = arith.constant 0 : index
    %c0_30 = arith.constant 0 : index
    %34 = vector.load %arg15[%c0_29, %c0_30] : memref<32x64xf32, #tpu.memory_space<vmem>>, vector<32x64xf32>
    %c0_31 = arith.constant 0 : index
    %c0_32 = arith.constant 0 : index
    %35 = vector.load %arg16[%c0_31, %c0_32] : memref<1x64xf32, #tpu.memory_space<vmem>>, vector<1x64xf32>
    %c0_33 = arith.constant 0 : index
    %c0_34 = arith.constant 0 : index
    %36 = vector.load %arg17[%c0_33, %c0_34] : memref<32x32xf32, #tpu.memory_space<vmem>>, vector<32x32xf32>
    %c0_35 = arith.constant 0 : index
    %c0_36 = arith.constant 0 : index
    %37 = vector.load %arg18[%c0_35, %c0_36] : memref<1x32xf32, #tpu.memory_space<vmem>>, vector<1x32xf32>
    %c0_37 = arith.constant 0 : index
    %c0_38 = arith.constant 0 : index
    %38 = vector.load %arg7[%c0_37, %c0_38] : memref<32x64xf32, #tpu.memory_space<vmem>>, vector<32x64xf32>
    %c0_39 = arith.constant 0 : index
    %c0_40 = arith.constant 0 : index
    %39 = vector.load %arg8[%c0_39, %c0_40] : memref<32x64xf32, #tpu.memory_space<vmem>>, vector<32x64xf32>
    %c0_41 = arith.constant 0 : index
    %c0_42 = arith.constant 0 : index
    %40 = vector.load %arg9[%c0_41, %c0_42] : memref<1x64xf32, #tpu.memory_space<vmem>>, vector<1x64xf32>
    %41 = vector.shape_cast %30 : vector<1x32xf32> to vector<1x1x32xf32>
    %42 = vector.broadcast %41 : vector<1x1x32xf32> to vector<1x64x32xf32>
    %43 = arith.mulf %0, %42 : vector<1x64x32xf32>
    %44 = arith.addf %43, %0 : vector<1x64x32xf32>
    %45 = vector.shape_cast %44 : vector<1x64x32xf32> to vector<64x32xf32>
    %46 = vector.shape_cast %30 : vector<1x32xf32> to vector<1x1x32xf32>
    %47 = vector.broadcast %46 : vector<1x1x32xf32> to vector<1x64x32xf32>
    %48 = arith.mulf %1, %47 : vector<1x64x32xf32>
    %49 = arith.addf %48, %1 : vector<1x64x32xf32>
    %50 = vector.shape_cast %49 : vector<1x64x32xf32> to vector<64x32xf32>
    %cst_43 = arith.constant dense<0.000000e+00> : vector<64x64xf32>
    %51 = tpu.matmul %45, %38, %cst_43 {dimension_numbers = #tpu.dot_dimension_numbers<[1], [0], [0], [1], [0, 0, 1, 1], [], []>} : vector<64x32xf32>, vector<32x64xf32>, vector<64x64xf32> -> vector<64x64xf32>
    %cst_44 = arith.constant dense<0.000000e+00> : vector<64x64xf32>
    %52 = tpu.matmul %50, %39, %cst_44 {dimension_numbers = #tpu.dot_dimension_numbers<[1], [0], [0], [1], [0, 0, 1, 1], [], []>} : vector<64x32xf32>, vector<32x64xf32>, vector<64x64xf32> -> vector<64x64xf32>
    %53 = arith.addf %51, %52 : vector<64x64xf32>
    %54 = vector.broadcast %40 : vector<1x64xf32> to vector<64x64xf32>
    %55 = arith.addf %53, %54 : vector<64x64xf32>
    %56 = arith.mulf %55, %55 : vector<64x64xf32>
    %57 = arith.mulf %55, %56 : vector<64x64xf32>
    %cst_45 = arith.constant 4.471500e-02 : f32
    %58 = vector.broadcast %cst_45 : f32 to vector<64x64xf32>
    %59 = arith.mulf %58, %57 : vector<64x64xf32>
    %60 = arith.addf %55, %59 : vector<64x64xf32>
    %cst_46 = arith.constant 0.797884583 : f32
    %61 = vector.broadcast %cst_46 : f32 to vector<64x64xf32>
    %62 = arith.mulf %61, %60 : vector<64x64xf32>
    %63 = math.tanh %62 : vector<64x64xf32>
    %cst_47 = arith.constant 1.000000e+00 : f32
    %64 = vector.broadcast %cst_47 : f32 to vector<64x64xf32>
    %65 = arith.addf %64, %63 : vector<64x64xf32>
    %cst_48 = arith.constant 5.000000e-01 : f32
    %66 = vector.broadcast %cst_48 : f32 to vector<64x64xf32>
    %67 = arith.mulf %66, %65 : vector<64x64xf32>
    %68 = arith.mulf %55, %67 : vector<64x64xf32>
    %69 = vector.extract_strided_slice %68 {offsets = [0, 0], sizes = [64, 32], strides = [1, 1]} : vector<64x64xf32> to vector<64x32xf32>
    %70 = arith.addf %69, %45 : vector<64x32xf32>
    %71 = vector.extract_strided_slice %68 {offsets = [0, 32], sizes = [64, 32], strides = [1, 1]} : vector<64x64xf32> to vector<64x32xf32>
    %72 = arith.addf %71, %50 : vector<64x32xf32>
    %cst_49 = arith.constant dense<0.000000e+00> : vector<64x32xf32>
    %73 = tpu.matmul %70, %32, %cst_49 {dimension_numbers = #tpu.dot_dimension_numbers<[1], [0], [0], [1], [0, 0, 1, 1], [], []>} : vector<64x32xf32>, vector<32x32xf32>, vector<64x32xf32> -> vector<64x32xf32>
    %74 = vector.broadcast %33 : vector<1x32xf32> to vector<64x32xf32>
    %75 = arith.addf %73, %74 : vector<64x32xf32>
    %cst_50 = arith.constant 0.353553385 : f32
    %76 = vector.broadcast %cst_50 : f32 to vector<64x32xf32>
    %77 = arith.mulf %75, %76 : vector<64x32xf32>
    %cst_51 = arith.constant dense<0.000000e+00> : vector<64x64xf32>
    %78 = tpu.matmul %72, %34, %cst_51 {dimension_numbers = #tpu.dot_dimension_numbers<[1], [0], [0], [1], [0, 0, 1, 1], [], []>} : vector<64x32xf32>, vector<32x64xf32>, vector<64x64xf32> -> vector<64x64xf32>
    %79 = vector.broadcast %35 : vector<1x64xf32> to vector<64x64xf32>
    %80 = arith.addf %78, %79 : vector<64x64xf32>
    %81 = vector.extract_strided_slice %80 {offsets = [0, 0], sizes = [64, 32], strides = [1, 1]} : vector<64x64xf32> to vector<64x32xf32>
    %82 = vector.extract_strided_slice %80 {offsets = [0, 32], sizes = [64, 32], strides = [1, 1]} : vector<64x64xf32> to vector<64x32xf32>
    %83 = tpu.transpose %81, [1, 0] : vector<64x32xf32> -> vector<32x64xf32>
    %84 = vector.extract_strided_slice %77 {offsets = [0, 0], sizes = [64, 8], strides = [1, 1]} : vector<64x32xf32> to vector<64x8xf32>
    %85 = vector.extract_strided_slice %83 {offsets = [0, 0], sizes = [8, 64], strides = [1, 1]} : vector<32x64xf32> to vector<8x64xf32>
    %cst_52 = arith.constant dense<0.000000e+00> : vector<64x64xf32>
    %86 = tpu.matmul %84, %85, %cst_52 {dimension_numbers = #tpu.dot_dimension_numbers<[1], [0], [0], [1], [0, 0, 1, 1], [], []>} : vector<64x8xf32>, vector<8x64xf32>, vector<64x64xf32> -> vector<64x64xf32>
    %cst_53 = arith.constant dense<0xFF800000> : vector<64xf32>
    %87 = vector.multi_reduction <maximumf>, %86, %cst_53 [1] : vector<64x64xf32> to vector<64xf32>
    %88 = vector.shape_cast %87 : vector<64xf32> to vector<64x1xf32>
    %89 = vector.broadcast %88 : vector<64x1xf32> to vector<64x64xf32>
    %90 = arith.subf %86, %89 : vector<64x64xf32>
    %91 = math.exp %90 : vector<64x64xf32>
    %cst_54 = arith.constant dense<0.000000e+00> : vector<64xf32>
    %92 = vector.multi_reduction <add>, %91, %cst_54 [1] : vector<64x64xf32> to vector<64xf32>
    %93 = vector.shape_cast %92 : vector<64xf32> to vector<64x1xf32>
    %94 = vector.extract_strided_slice %82 {offsets = [0, 0], sizes = [64, 8], strides = [1, 1]} : vector<64x32xf32> to vector<64x8xf32>
    %cst_55 = arith.constant dense<0.000000e+00> : vector<64x8xf32>
    %95 = tpu.matmul %91, %94, %cst_55 {dimension_numbers = #tpu.dot_dimension_numbers<[1], [0], [0], [1], [0, 0, 1, 1], [], []>} : vector<64x64xf32>, vector<64x8xf32>, vector<64x8xf32> -> vector<64x8xf32>
    %96 = tpu.reciprocal %93 {approx = true} : vector<64x1xf32> -> vector<64x1xf32>
    %97 = vector.broadcast %96 : vector<64x1xf32> to vector<64x8xf32>
    %98 = arith.mulf %95, %97 : vector<64x8xf32>
    %99 = vector.extract_strided_slice %77 {offsets = [0, 8], sizes = [64, 8], strides = [1, 1]} : vector<64x32xf32> to vector<64x8xf32>
    %100 = vector.extract_strided_slice %83 {offsets = [8, 0], sizes = [8, 64], strides = [1, 1]} : vector<32x64xf32> to vector<8x64xf32>
    %cst_56 = arith.constant dense<0.000000e+00> : vector<64x64xf32>
    %101 = tpu.matmul %99, %100, %cst_56 {dimension_numbers = #tpu.dot_dimension_numbers<[1], [0], [0], [1], [0, 0, 1, 1], [], []>} : vector<64x8xf32>, vector<8x64xf32>, vector<64x64xf32> -> vector<64x64xf32>
    %cst_57 = arith.constant dense<0xFF800000> : vector<64xf32>
    %102 = vector.multi_reduction <maximumf>, %101, %cst_57 [1] : vector<64x64xf32> to vector<64xf32>
    %103 = vector.shape_cast %102 : vector<64xf32> to vector<64x1xf32>
    %104 = vector.broadcast %103 : vector<64x1xf32> to vector<64x64xf32>
    %105 = arith.subf %101, %104 : vector<64x64xf32>
    %106 = math.exp %105 : vector<64x64xf32>
    %cst_58 = arith.constant dense<0.000000e+00> : vector<64xf32>
    %107 = vector.multi_reduction <add>, %106, %cst_58 [1] : vector<64x64xf32> to vector<64xf32>
    %108 = vector.shape_cast %107 : vector<64xf32> to vector<64x1xf32>
    %109 = vector.extract_strided_slice %82 {offsets = [0, 8], sizes = [64, 8], strides = [1, 1]} : vector<64x32xf32> to vector<64x8xf32>
    %cst_59 = arith.constant dense<0.000000e+00> : vector<64x8xf32>
    %110 = tpu.matmul %106, %109, %cst_59 {dimension_numbers = #tpu.dot_dimension_numbers<[1], [0], [0], [1], [0, 0, 1, 1], [], []>} : vector<64x64xf32>, vector<64x8xf32>, vector<64x8xf32> -> vector<64x8xf32>
    %111 = tpu.reciprocal %108 {approx = true} : vector<64x1xf32> -> vector<64x1xf32>
    %112 = vector.broadcast %111 : vector<64x1xf32> to vector<64x8xf32>
    %113 = arith.mulf %110, %112 : vector<64x8xf32>
    %114 = vector.extract_strided_slice %77 {offsets = [0, 16], sizes = [64, 8], strides = [1, 1]} : vector<64x32xf32> to vector<64x8xf32>
    %115 = vector.extract_strided_slice %83 {offsets = [16, 0], sizes = [8, 64], strides = [1, 1]} : vector<32x64xf32> to vector<8x64xf32>
    %cst_60 = arith.constant dense<0.000000e+00> : vector<64x64xf32>
    %116 = tpu.matmul %114, %115, %cst_60 {dimension_numbers = #tpu.dot_dimension_numbers<[1], [0], [0], [1], [0, 0, 1, 1], [], []>} : vector<64x8xf32>, vector<8x64xf32>, vector<64x64xf32> -> vector<64x64xf32>
    %cst_61 = arith.constant dense<0xFF800000> : vector<64xf32>
    %117 = vector.multi_reduction <maximumf>, %116, %cst_61 [1] : vector<64x64xf32> to vector<64xf32>
    %118 = vector.shape_cast %117 : vector<64xf32> to vector<64x1xf32>
    %119 = vector.broadcast %118 : vector<64x1xf32> to vector<64x64xf32>
    %120 = arith.subf %116, %119 : vector<64x64xf32>
    %121 = math.exp %120 : vector<64x64xf32>
    %cst_62 = arith.constant dense<0.000000e+00> : vector<64xf32>
    %122 = vector.multi_reduction <add>, %121, %cst_62 [1] : vector<64x64xf32> to vector<64xf32>
    %123 = vector.shape_cast %122 : vector<64xf32> to vector<64x1xf32>
    %124 = vector.extract_strided_slice %82 {offsets = [0, 16], sizes = [64, 8], strides = [1, 1]} : vector<64x32xf32> to vector<64x8xf32>
    %cst_63 = arith.constant dense<0.000000e+00> : vector<64x8xf32>
    %125 = tpu.matmul %121, %124, %cst_63 {dimension_numbers = #tpu.dot_dimension_numbers<[1], [0], [0], [1], [0, 0, 1, 1], [], []>} : vector<64x64xf32>, vector<64x8xf32>, vector<64x8xf32> -> vector<64x8xf32>
    %126 = tpu.reciprocal %123 {approx = true} : vector<64x1xf32> -> vector<64x1xf32>
    %127 = vector.broadcast %126 : vector<64x1xf32> to vector<64x8xf32>
    %128 = arith.mulf %125, %127 : vector<64x8xf32>
    %129 = vector.extract_strided_slice %77 {offsets = [0, 24], sizes = [64, 8], strides = [1, 1]} : vector<64x32xf32> to vector<64x8xf32>
    %130 = vector.extract_strided_slice %83 {offsets = [24, 0], sizes = [8, 64], strides = [1, 1]} : vector<32x64xf32> to vector<8x64xf32>
    %cst_64 = arith.constant dense<0.000000e+00> : vector<64x64xf32>
    %131 = tpu.matmul %129, %130, %cst_64 {dimension_numbers = #tpu.dot_dimension_numbers<[1], [0], [0], [1], [0, 0, 1, 1], [], []>} : vector<64x8xf32>, vector<8x64xf32>, vector<64x64xf32> -> vector<64x64xf32>
    %cst_65 = arith.constant dense<0xFF800000> : vector<64xf32>
    %132 = vector.multi_reduction <maximumf>, %131, %cst_65 [1] : vector<64x64xf32> to vector<64xf32>
    %133 = vector.shape_cast %132 : vector<64xf32> to vector<64x1xf32>
    %134 = vector.broadcast %133 : vector<64x1xf32> to vector<64x64xf32>
    %135 = arith.subf %131, %134 : vector<64x64xf32>
    %136 = math.exp %135 : vector<64x64xf32>
    %cst_66 = arith.constant dense<0.000000e+00> : vector<64xf32>
    %137 = vector.multi_reduction <add>, %136, %cst_66 [1] : vector<64x64xf32> to vector<64xf32>
    %138 = vector.shape_cast %137 : vector<64xf32> to vector<64x1xf32>
    %139 = vector.extract_strided_slice %82 {offsets = [0, 24], sizes = [64, 8], strides = [1, 1]} : vector<64x32xf32> to vector<64x8xf32>
    %cst_67 = arith.constant dense<0.000000e+00> : vector<64x8xf32>
    %140 = tpu.matmul %136, %139, %cst_67 {dimension_numbers = #tpu.dot_dimension_numbers<[1], [0], [0], [1], [0, 0, 1, 1], [], []>} : vector<64x64xf32>, vector<64x8xf32>, vector<64x8xf32> -> vector<64x8xf32>
    %141 = tpu.reciprocal %138 {approx = true} : vector<64x1xf32> -> vector<64x1xf32>
    %142 = vector.broadcast %141 : vector<64x1xf32> to vector<64x8xf32>
    %143 = arith.mulf %140, %142 : vector<64x8xf32>
    %144 = tpu.concatenate %98, %113, %128, %143 in 1 : vector<64x8xf32>, vector<64x8xf32>, vector<64x8xf32>, vector<64x8xf32> -> vector<64x32xf32>
    %cst_68 = arith.constant dense<0.000000e+00> : vector<64x32xf32>
    %145 = tpu.matmul %144, %36, %cst_68 {dimension_numbers = #tpu.dot_dimension_numbers<[1], [0], [0], [1], [0, 0, 1, 1], [], []>} : vector<64x32xf32>, vector<32x32xf32>, vector<64x32xf32> -> vector<64x32xf32>
    %146 = vector.broadcast %37 : vector<1x32xf32> to vector<64x32xf32>
    %147 = arith.addf %145, %146 : vector<64x32xf32>
    %148 = arith.addf %70, %72 : vector<64x32xf32>
    %cst_69 = arith.constant 5.000000e-01 : f32
    %149 = vector.broadcast %cst_69 : f32 to vector<64x32xf32>
    %150 = arith.mulf %149, %148 : vector<64x32xf32>
    %151 = arith.addf %147, %150 : vector<64x32xf32>
    %152 = vector.shape_cast %0 : vector<1x64x32xf32> to vector<64x32xf32>
    %153 = arith.addf %151, %152 : vector<64x32xf32>
    %c0_70 = arith.constant 0 : index
    %c0_71 = arith.constant 0 : index
    %c0_72 = arith.constant 0 : index
    %154 = vector.load %arg19[%c0_70, %c0_71, %c0_72] : memref<1x320x64xf32, #tpu.memory_space<vmem>>, vector<1x64x32xf32>
    %155 = vector.shape_cast %154 : vector<1x64x32xf32> to vector<64x32xf32>
    %156 = vector.shape_cast %153 : vector<64x32xf32> to vector<1x64x32xf32>
    tpu.vector_store %arg19[%c0_70, %c0_71, %c0_72], %156 {strides = array<i32>} : memref<1x320x64xf32, #tpu.memory_space<vmem>>, vector<1x64x32xf32>,
    %157 = vector.shape_cast %1 : vector<1x64x32xf32> to vector<64x32xf32>
    %158 = arith.addf %151, %157 : vector<64x32xf32>
    %c0_73 = arith.constant 0 : index
    %c0_74 = arith.constant 0 : index
    %c32 = arith.constant 32 : index
    %159 = vector.load %arg19[%c0_73, %c0_74, %c32] : memref<1x320x64xf32, #tpu.memory_space<vmem>>, vector<1x64x32xf32>
    %160 = vector.shape_cast %159 : vector<1x64x32xf32> to vector<64x32xf32>
    %161 = vector.shape_cast %158 : vector<64x32xf32> to vector<1x64x32xf32>
    tpu.vector_store %arg19[%c0_73, %c0_74, %c32], %161 {strides = array<i32>} : memref<1x320x64xf32, #tpu.memory_space<vmem>>, vector<1x64x32xf32>,
    %c0_75 = arith.constant 0 : index
    %c0_76 = arith.constant 0 : index
    %162 = vector.load %arg10[%c0_75, %c0_76] : memref<32x64xf32, #tpu.memory_space<vmem>>, vector<32x64xf32>
    %c0_77 = arith.constant 0 : index
    %c0_78 = arith.constant 0 : index
    %163 = vector.load %arg11[%c0_77, %c0_78] : memref<32x64xf32, #tpu.memory_space<vmem>>, vector<32x64xf32>
    %c0_79 = arith.constant 0 : index
    %c0_80 = arith.constant 0 : index
    %164 = vector.load %arg12[%c0_79, %c0_80] : memref<1x64xf32, #tpu.memory_space<vmem>>, vector<1x64xf32>
    %165 = vector.shape_cast %31 : vector<1x32xf32> to vector<1x1x32xf32>
    %166 = vector.broadcast %165 : vector<1x1x32xf32> to vector<1x256x32xf32>
    %167 = arith.mulf %2, %166 : vector<1x256x32xf32>
    %168 = arith.addf %167, %2 : vector<1x256x32xf32>
    %169 = vector.shape_cast %168 : vector<1x256x32xf32> to vector<256x32xf32>
    %170 = vector.shape_cast %31 : vector<1x32xf32> to vector<1x1x32xf32>
    %171 = vector.broadcast %170 : vector<1x1x32xf32> to vector<1x256x32xf32>
    %172 = arith.mulf %3, %171 : vector<1x256x32xf32>
    %173 = arith.addf %172, %3 : vector<1x256x32xf32>
    %174 = vector.shape_cast %173 : vector<1x256x32xf32> to vector<256x32xf32>
    %cst_81 = arith.constant dense<0.000000e+00> : vector<256x64xf32>
    %175 = tpu.matmul %169, %162, %cst_81 {dimension_numbers = #tpu.dot_dimension_numbers<[1], [0], [0], [1], [0, 0, 1, 1], [], []>} : vector<256x32xf32>, vector<32x64xf32>, vector<256x64xf32> -> vector<256x64xf32>
    %cst_82 = arith.constant dense<0.000000e+00> : vector<256x64xf32>
    %176 = tpu.matmul %174, %163, %cst_82 {dimension_numbers = #tpu.dot_dimension_numbers<[1], [0], [0], [1], [0, 0, 1, 1], [], []>} : vector<256x32xf32>, vector<32x64xf32>, vector<256x64xf32> -> vector<256x64xf32>
    %177 = arith.addf %175, %176 : vector<256x64xf32>
    %178 = vector.broadcast %164 : vector<1x64xf32> to vector<256x64xf32>
    %179 = arith.addf %177, %178 : vector<256x64xf32>
    %180 = arith.mulf %179, %179 : vector<256x64xf32>
    %181 = arith.mulf %179, %180 : vector<256x64xf32>
    %cst_83 = arith.constant 4.471500e-02 : f32
    %182 = vector.broadcast %cst_83 : f32 to vector<256x64xf32>
    %183 = arith.mulf %182, %181 : vector<256x64xf32>
    %184 = arith.addf %179, %183 : vector<256x64xf32>
    %cst_84 = arith.constant 0.797884583 : f32
    %185 = vector.broadcast %cst_84 : f32 to vector<256x64xf32>
    %186 = arith.mulf %185, %184 : vector<256x64xf32>
    %187 = math.tanh %186 : vector<256x64xf32>
    %cst_85 = arith.constant 1.000000e+00 : f32
    %188 = vector.broadcast %cst_85 : f32 to vector<256x64xf32>
    %189 = arith.addf %188, %187 : vector<256x64xf32>
    %cst_86 = arith.constant 5.000000e-01 : f32
    %190 = vector.broadcast %cst_86 : f32 to vector<256x64xf32>
    %191 = arith.mulf %190, %189 : vector<256x64xf32>
    %192 = arith.mulf %179, %191 : vector<256x64xf32>
    %193 = vector.extract_strided_slice %192 {offsets = [0, 0], sizes = [256, 32], strides = [1, 1]} : vector<256x64xf32> to vector<256x32xf32>
    %194 = arith.addf %193, %169 : vector<256x32xf32>
    %195 = vector.extract_strided_slice %192 {offsets = [0, 32], sizes = [256, 32], strides = [1, 1]} : vector<256x64xf32> to vector<256x32xf32>
    %196 = arith.addf %195, %174 : vector<256x32xf32>
    %cst_87 = arith.constant dense<0.000000e+00> : vector<256x32xf32>
    %197 = tpu.matmul %194, %32, %cst_87 {dimension_numbers = #tpu.dot_dimension_numbers<[1], [0], [0], [1], [0, 0, 1, 1], [], []>} : vector<256x32xf32>, vector<32x32xf32>, vector<256x32xf32> -> vector<256x32xf32>
    %198 = vector.broadcast %33 : vector<1x32xf32> to vector<256x32xf32>
    %199 = arith.addf %197, %198 : vector<256x32xf32>
    %cst_88 = arith.constant 0.353553385 : f32
    %200 = vector.broadcast %cst_88 : f32 to vector<256x32xf32>
    %201 = arith.mulf %199, %200 : vector<256x32xf32>
    %cst_89 = arith.constant dense<0.000000e+00> : vector<256x64xf32>
    %202 = tpu.matmul %196, %34, %cst_89 {dimension_numbers = #tpu.dot_dimension_numbers<[1], [0], [0], [1], [0, 0, 1, 1], [], []>} : vector<256x32xf32>, vector<32x64xf32>, vector<256x64xf32> -> vector<256x64xf32>
    %203 = vector.broadcast %35 : vector<1x64xf32> to vector<256x64xf32>
    %204 = arith.addf %202, %203 : vector<256x64xf32>
    %205 = vector.extract_strided_slice %204 {offsets = [0, 0], sizes = [256, 32], strides = [1, 1]} : vector<256x64xf32> to vector<256x32xf32>
    %206 = vector.extract_strided_slice %204 {offsets = [0, 32], sizes = [256, 32], strides = [1, 1]} : vector<256x64xf32> to vector<256x32xf32>
    %207 = tpu.transpose %205, [1, 0] : vector<256x32xf32> -> vector<32x256xf32>
    %208 = vector.extract_strided_slice %201 {offsets = [0, 0], sizes = [256, 8], strides = [1, 1]} : vector<256x32xf32> to vector<256x8xf32>
    %209 = vector.extract_strided_slice %207 {offsets = [0, 0], sizes = [8, 256], strides = [1, 1]} : vector<32x256xf32> to vector<8x256xf32>
    %cst_90 = arith.constant dense<0.000000e+00> : vector<256x256xf32>
    %210 = tpu.matmul %208, %209, %cst_90 {dimension_numbers = #tpu.dot_dimension_numbers<[1], [0], [0], [1], [0, 0, 1, 1], [], []>} : vector<256x8xf32>, vector<8x256xf32>, vector<256x256xf32> -> vector<256x256xf32>
    %cst_91 = arith.constant dense<0xFF800000> : vector<256xf32>
    %211 = vector.multi_reduction <maximumf>, %210, %cst_91 [1] : vector<256x256xf32> to vector<256xf32>
    %212 = vector.shape_cast %211 : vector<256xf32> to vector<256x1xf32>
    %213 = vector.broadcast %212 : vector<256x1xf32> to vector<256x256xf32>
    %214 = arith.subf %210, %213 : vector<256x256xf32>
    %215 = math.exp %214 : vector<256x256xf32>
    %cst_92 = arith.constant dense<0.000000e+00> : vector<256xf32>
    %216 = vector.multi_reduction <add>, %215, %cst_92 [1] : vector<256x256xf32> to vector<256xf32>
    %217 = vector.shape_cast %216 : vector<256xf32> to vector<256x1xf32>
    %218 = vector.extract_strided_slice %206 {offsets = [0, 0], sizes = [256, 8], strides = [1, 1]} : vector<256x32xf32> to vector<256x8xf32>
    %cst_93 = arith.constant dense<0.000000e+00> : vector<256x8xf32>
    %219 = tpu.matmul %215, %218, %cst_93 {dimension_numbers = #tpu.dot_dimension_numbers<[1], [0], [0], [1], [0, 0, 1, 1], [], []>} : vector<256x256xf32>, vector<256x8xf32>, vector<256x8xf32> -> vector<256x8xf32>
    %220 = tpu.reciprocal %217 {approx = true} : vector<256x1xf32> -> vector<256x1xf32>
    %221 = vector.broadcast %220 : vector<256x1xf32> to vector<256x8xf32>
    %222 = arith.mulf %219, %221 : vector<256x8xf32>
    %223 = vector.extract_strided_slice %201 {offsets = [0, 8], sizes = [256, 8], strides = [1, 1]} : vector<256x32xf32> to vector<256x8xf32>
    %224 = vector.extract_strided_slice %207 {offsets = [8, 0], sizes = [8, 256], strides = [1, 1]} : vector<32x256xf32> to vector<8x256xf32>
    %cst_94 = arith.constant dense<0.000000e+00> : vector<256x256xf32>
    %225 = tpu.matmul %223, %224, %cst_94 {dimension_numbers = #tpu.dot_dimension_numbers<[1], [0], [0], [1], [0, 0, 1, 1], [], []>} : vector<256x8xf32>, vector<8x256xf32>, vector<256x256xf32> -> vector<256x256xf32>
    %cst_95 = arith.constant dense<0xFF800000> : vector<256xf32>
    %226 = vector.multi_reduction <maximumf>, %225, %cst_95 [1] : vector<256x256xf32> to vector<256xf32>
    %227 = vector.shape_cast %226 : vector<256xf32> to vector<256x1xf32>
    %228 = vector.broadcast %227 : vector<256x1xf32> to vector<256x256xf32>
    %229 = arith.subf %225, %228 : vector<256x256xf32>
    %230 = math.exp %229 : vector<256x256xf32>
    %cst_96 = arith.constant dense<0.000000e+00> : vector<256xf32>
    %231 = vector.multi_reduction <add>, %230, %cst_96 [1] : vector<256x256xf32> to vector<256xf32>
    %232 = vector.shape_cast %231 : vector<256xf32> to vector<256x1xf32>
    %233 = vector.extract_strided_slice %206 {offsets = [0, 8], sizes = [256, 8], strides = [1, 1]} : vector<256x32xf32> to vector<256x8xf32>
    %cst_97 = arith.constant dense<0.000000e+00> : vector<256x8xf32>
    %234 = tpu.matmul %230, %233, %cst_97 {dimension_numbers = #tpu.dot_dimension_numbers<[1], [0], [0], [1], [0, 0, 1, 1], [], []>} : vector<256x256xf32>, vector<256x8xf32>, vector<256x8xf32> -> vector<256x8xf32>
    %235 = tpu.reciprocal %232 {approx = true} : vector<256x1xf32> -> vector<256x1xf32>
    %236 = vector.broadcast %235 : vector<256x1xf32> to vector<256x8xf32>
    %237 = arith.mulf %234, %236 : vector<256x8xf32>
    %238 = vector.extract_strided_slice %201 {offsets = [0, 16], sizes = [256, 8], strides = [1, 1]} : vector<256x32xf32> to vector<256x8xf32>
    %239 = vector.extract_strided_slice %207 {offsets = [16, 0], sizes = [8, 256], strides = [1, 1]} : vector<32x256xf32> to vector<8x256xf32>
    %cst_98 = arith.constant dense<0.000000e+00> : vector<256x256xf32>
    %240 = tpu.matmul %238, %239, %cst_98 {dimension_numbers = #tpu.dot_dimension_numbers<[1], [0], [0], [1], [0, 0, 1, 1], [], []>} : vector<256x8xf32>, vector<8x256xf32>, vector<256x256xf32> -> vector<256x256xf32>
    %cst_99 = arith.constant dense<0xFF800000> : vector<256xf32>
    %241 = vector.multi_reduction <maximumf>, %240, %cst_99 [1] : vector<256x256xf32> to vector<256xf32>
    %242 = vector.shape_cast %241 : vector<256xf32> to vector<256x1xf32>
    %243 = vector.broadcast %242 : vector<256x1xf32> to vector<256x256xf32>
    %244 = arith.subf %240, %243 : vector<256x256xf32>
    %245 = math.exp %244 : vector<256x256xf32>
    %cst_100 = arith.constant dense<0.000000e+00> : vector<256xf32>
    %246 = vector.multi_reduction <add>, %245, %cst_100 [1] : vector<256x256xf32> to vector<256xf32>
    %247 = vector.shape_cast %246 : vector<256xf32> to vector<256x1xf32>
    %248 = vector.extract_strided_slice %206 {offsets = [0, 16], sizes = [256, 8], strides = [1, 1]} : vector<256x32xf32> to vector<256x8xf32>
    %cst_101 = arith.constant dense<0.000000e+00> : vector<256x8xf32>
    %249 = tpu.matmul %245, %248, %cst_101 {dimension_numbers = #tpu.dot_dimension_numbers<[1], [0], [0], [1], [0, 0, 1, 1], [], []>} : vector<256x256xf32>, vector<256x8xf32>, vector<256x8xf32> -> vector<256x8xf32>
    %250 = tpu.reciprocal %247 {approx = true} : vector<256x1xf32> -> vector<256x1xf32>
    %251 = vector.broadcast %250 : vector<256x1xf32> to vector<256x8xf32>
    %252 = arith.mulf %249, %251 : vector<256x8xf32>
    %253 = vector.extract_strided_slice %201 {offsets = [0, 24], sizes = [256, 8], strides = [1, 1]} : vector<256x32xf32> to vector<256x8xf32>
    %254 = vector.extract_strided_slice %207 {offsets = [24, 0], sizes = [8, 256], strides = [1, 1]} : vector<32x256xf32> to vector<8x256xf32>
    %cst_102 = arith.constant dense<0.000000e+00> : vector<256x256xf32>
    %255 = tpu.matmul %253, %254, %cst_102 {dimension_numbers = #tpu.dot_dimension_numbers<[1], [0], [0], [1], [0, 0, 1, 1], [], []>} : vector<256x8xf32>, vector<8x256xf32>, vector<256x256xf32> -> vector<256x256xf32>
    %cst_103 = arith.constant dense<0xFF800000> : vector<256xf32>
    %256 = vector.multi_reduction <maximumf>, %255, %cst_103 [1] : vector<256x256xf32> to vector<256xf32>
    %257 = vector.shape_cast %256 : vector<256xf32> to vector<256x1xf32>
    %258 = vector.broadcast %257 : vector<256x1xf32> to vector<256x256xf32>
    %259 = arith.subf %255, %258 : vector<256x256xf32>
    %260 = math.exp %259 : vector<256x256xf32>
    %cst_104 = arith.constant dense<0.000000e+00> : vector<256xf32>
    %261 = vector.multi_reduction <add>, %260, %cst_104 [1] : vector<256x256xf32> to vector<256xf32>
    %262 = vector.shape_cast %261 : vector<256xf32> to vector<256x1xf32>
    %263 = vector.extract_strided_slice %206 {offsets = [0, 24], sizes = [256, 8], strides = [1, 1]} : vector<256x32xf32> to vector<256x8xf32>
    %cst_105 = arith.constant dense<0.000000e+00> : vector<256x8xf32>
    %264 = tpu.matmul %260, %263, %cst_105 {dimension_numbers = #tpu.dot_dimension_numbers<[1], [0], [0], [1], [0, 0, 1, 1], [], []>} : vector<256x256xf32>, vector<256x8xf32>, vector<256x8xf32> -> vector<256x8xf32>
    %265 = tpu.reciprocal %262 {approx = true} : vector<256x1xf32> -> vector<256x1xf32>
    %266 = vector.broadcast %265 : vector<256x1xf32> to vector<256x8xf32>
    %267 = arith.mulf %264, %266 : vector<256x8xf32>
    %268 = tpu.concatenate %222, %237, %252, %267 in 1 : vector<256x8xf32>, vector<256x8xf32>, vector<256x8xf32>, vector<256x8xf32> -> vector<256x32xf32>
    %cst_106 = arith.constant dense<0.000000e+00> : vector<256x32xf32>
    %269 = tpu.matmul %268, %36, %cst_106 {dimension_numbers = #tpu.dot_dimension_numbers<[1], [0], [0], [1], [0, 0, 1, 1], [], []>} : vector<256x32xf32>, vector<32x32xf32>, vector<256x32xf32> -> vector<256x32xf32>
    %270 = vector.broadcast %37 : vector<1x32xf32> to vector<256x32xf32>
    %271 = arith.addf %269, %270 : vector<256x32xf32>
    %272 = arith.addf %194, %196 : vector<256x32xf32>
    %cst_107 = arith.constant 5.000000e-01 : f32
    %273 = vector.broadcast %cst_107 : f32 to vector<256x32xf32>
    %274 = arith.mulf %273, %272 : vector<256x32xf32>
    %275 = arith.addf %271, %274 : vector<256x32xf32>
    %276 = vector.shape_cast %2 : vector<1x256x32xf32> to vector<256x32xf32>
    %277 = arith.addf %275, %276 : vector<256x32xf32>
    %c0_108 = arith.constant 0 : index
    %c64_109 = arith.constant 64 : index
    %c0_110 = arith.constant 0 : index
    %278 = vector.load %arg19[%c0_108, %c64_109, %c0_110] : memref<1x320x64xf32, #tpu.memory_space<vmem>>, vector<1x256x32xf32>
    %279 = vector.shape_cast %278 : vector<1x256x32xf32> to vector<256x32xf32>
    %280 = vector.shape_cast %277 : vector<256x32xf32> to vector<1x256x32xf32>
    tpu.vector_store %arg19[%c0_108, %c64_109, %c0_110], %280 {strides = array<i32>} : memref<1x320x64xf32, #tpu.memory_space<vmem>>, vector<1x256x32xf32>,
    %281 = vector.shape_cast %3 : vector<1x256x32xf32> to vector<256x32xf32>
    %282 = arith.addf %275, %281 : vector<256x32xf32>
    %c0_111 = arith.constant 0 : index
    %c64_112 = arith.constant 64 : index
    %c32_113 = arith.constant 32 : index
    %283 = vector.load %arg19[%c0_111, %c64_112, %c32_113] : memref<1x320x64xf32, #tpu.memory_space<vmem>>, vector<1x256x32xf32>
    %284 = vector.shape_cast %283 : vector<1x256x32xf32> to vector<256x32xf32>
    %285 = vector.shape_cast %282 : vector<256x32xf32> to vector<1x256x32xf32>
    tpu.vector_store %arg19[%c0_111, %c64_112, %c32_113], %285 {strides = array<i32>} : memref<1x320x64xf32, #tpu.memory_space<vmem>>, vector<1x256x32xf32>,
    return
  }
  func.func @transform_0(%arg0: i32) -> (i32, i32, i32) {
    %c0_i32 = arith.constant 0 : i32
    %c0_i32_0 = arith.constant 0 : i32
    %c0_i32_1 = arith.constant 0 : i32
    return %arg0, %c0_i32, %c0_i32_0 : i32, i32, i32
  }
  func.func @transform_1(%arg0: i32) -> (i32, i32, i32) {
    %c0_i32 = arith.constant 0 : i32
    %c0_i32_0 = arith.constant 0 : i32
    %c0_i32_1 = arith.constant 0 : i32
    return %arg0, %c0_i32, %c0_i32_0 : i32, i32, i32
  }
  func.func @transform_2(%arg0: i32) -> (i32, i32) {
    %c0_i32 = arith.constant 0 : i32
    %c0_i32_0 = arith.constant 0 : i32
    %c0_i32_1 = arith.constant 0 : i32
    return %c0_i32, %c0_i32_0 : i32, i32
  }
  func.func @transform_3(%arg0: i32) -> (i32, i32) {
    %c0_i32 = arith.constant 0 : i32
    %c0_i32_0 = arith.constant 0 : i32
    %c0_i32_1 = arith.constant 0 : i32
    return %c0_i32, %c0_i32_0 : i32, i32
  }
  func.func @transform_4(%arg0: i32) -> (i32, i32) {
    %c0_i32 = arith.constant 0 : i32
    %c0_i32_0 = arith.constant 0 : i32
    %c0_i32_1 = arith.constant 0 : i32
    return %c0_i32, %c0_i32_0 : i32, i32
  }
  func.func @transform_5(%arg0: i32) -> (i32, i32) {
    %c0_i32 = arith.constant 0 : i32
    %c0_i32_0 = arith.constant 0 : i32
    %c0_i32_1 = arith.constant 0 : i32
    return %c0_i32, %c0_i32_0 : i32, i32
  }
  func.func @transform_6(%arg0: i32) -> (i32, i32) {
    %c0_i32 = arith.constant 0 : i32
    %c0_i32_0 = arith.constant 0 : i32
    %c0_i32_1 = arith.constant 0 : i32
    return %c0_i32, %c0_i32_0 : i32, i32
  }
  func.func @transform_7(%arg0: i32) -> (i32, i32) {
    %c0_i32 = arith.constant 0 : i32
    %c0_i32_0 = arith.constant 0 : i32
    %c0_i32_1 = arith.constant 0 : i32
    return %c0_i32, %c0_i32_0 : i32, i32
  }
  func.func @transform_8(%arg0: i32) -> (i32, i32) {
    %c0_i32 = arith.constant 0 : i32
    %c0_i32_0 = arith.constant 0 : i32
    %c0_i32_1 = arith.constant 0 : i32
    return %c0_i32, %c0_i32_0 : i32, i32
  }
  func.func @transform_9(%arg0: i32) -> (i32, i32) {
    %c0_i32 = arith.constant 0 : i32
    %c0_i32_0 = arith.constant 0 : i32
    %c0_i32_1 = arith.constant 0 : i32
    return %c0_i32, %c0_i32_0 : i32, i32
  }
  func.func @transform_10(%arg0: i32) -> (i32, i32) {
    %c0_i32 = arith.constant 0 : i32
    %c0_i32_0 = arith.constant 0 : i32
    %c0_i32_1 = arith.constant 0 : i32
    return %c0_i32, %c0_i32_0 : i32, i32
  }
  func.func @transform_11(%arg0: i32) -> (i32, i32) {
    %c0_i32 = arith.constant 0 : i32
    %c0_i32_0 = arith.constant 0 : i32
    %c0_i32_1 = arith.constant 0 : i32
    return %c0_i32, %c0_i32_0 : i32, i32
  }
  func.func @transform_12(%arg0: i32) -> (i32, i32) {
    %c0_i32 = arith.constant 0 : i32
    %c0_i32_0 = arith.constant 0 : i32
    %c0_i32_1 = arith.constant 0 : i32
    return %c0_i32, %c0_i32_0 : i32, i32
  }
  func.func @transform_13(%arg0: i32) -> (i32, i32) {
    %c0_i32 = arith.constant 0 : i32
    %c0_i32_0 = arith.constant 0 : i32
    %c0_i32_1 = arith.constant 0 : i32
    return %c0_i32, %c0_i32_0 : i32, i32
  }
  func.func @transform_14(%arg0: i32) -> (i32, i32) {
    %c0_i32 = arith.constant 0 : i32
    %c0_i32_0 = arith.constant 0 : i32
    %c0_i32_1 = arith.constant 0 : i32
    return %c0_i32, %c0_i32_0 : i32, i32
  }
  func.func @transform_15(%arg0: i32) -> (i32, i32) {
    %c0_i32 = arith.constant 0 : i32
    %c0_i32_0 = arith.constant 0 : i32
    %c0_i32_1 = arith.constant 0 : i32
    return %c0_i32, %c0_i32_0 : i32, i32
  }
  func.func @transform_16(%arg0: i32) -> (i32, i32) {
    %c0_i32 = arith.constant 0 : i32
    %c0_i32_0 = arith.constant 0 : i32
    %c0_i32_1 = arith.constant 0 : i32
    return %c0_i32, %c0_i32_0 : i32, i32
  }
  func.func @transform_17(%arg0: i32) -> (i32, i32) {
    %c0_i32 = arith.constant 0 : i32
    %c0_i32_0 = arith.constant 0 : i32
    %c0_i32_1 = arith.constant 0 : i32
    return %c0_i32, %c0_i32_0 : i32, i32
  }
  func.func @transform_18(%arg0: i32) -> (i32, i32, i32) {
    %c0_i32 = arith.constant 0 : i32
    %c0_i32_0 = arith.constant 0 : i32
    %c0_i32_1 = arith.constant 0 : i32
    return %arg0, %c0_i32, %c0_i32_0 : i32, i32, i32
  }
}

</mosaic_0001>

<llo_original>
// kernel: rgbt_layer_forward.1
$region0: #{rgbt_layer_forward.1}
  #allocation0 [shape = 'u32[]', space=smem, size = 0x4, offset = 0x4, fixed_abs, tag = 'smem constant byte address 0x4 - core index']
  #allocation1 [shape = 'u32[144,128]{1,0:T(1,128)}', space=vmem, size = 0x12000, scoped, tag = 'internal scratch']
  %s0 = inlined_call_operand.vmem [shape: f32[2,320,32], index: 0, kind: input, shape index: {}]
  %s1 = inlined_call_operand.vmem [shape: f32[2,320,32], index: 1, kind: input, shape index: {}]
  %s2 = inlined_call_operand.vmem [shape: f32[32,8], index: 2, kind: input, shape index: {}]
  %s3 = inlined_call_operand.vmem [shape: f32[1,8], index: 3, kind: input, shape index: {}]
  %s4 = inlined_call_operand.vmem [shape: f32[8,32], index: 4, kind: input, shape index: {}]
  %s5 = inlined_call_operand.vmem [shape: f32[1,32], index: 5, kind: input, shape index: {}]
  %s6 = inlined_call_operand.vmem [shape: f32[32,64], index: 6, kind: input, shape index: {}]
  %s7 = inlined_call_operand.vmem [shape: f32[32,64], index: 7, kind: input, shape index: {}]
  %s8 = inlined_call_operand.vmem [shape: f32[1,64], index: 8, kind: input, shape index: {}]
  %s9 = inlined_call_operand.vmem [shape: f32[32,64], index: 9, kind: input, shape index: {}]
  %s10 = inlined_call_operand.vmem [shape: f32[32,64], index: 10, kind: input, shape index: {}]
  %s11 = inlined_call_operand.vmem [shape: f32[1,64], index: 11, kind: input, shape index: {}]
  %s12 = inlined_call_operand.vmem [shape: f32[32,32], index: 12, kind: input, shape index: {}]
  %s13 = inlined_call_operand.vmem [shape: f32[1,32], index: 13, kind: input, shape index: {}]
  %s14 = inlined_call_operand.vmem [shape: f32[32,64], index: 14, kind: input, shape index: {}]
  %s15 = inlined_call_operand.vmem [shape: f32[1,64], index: 15, kind: input, shape index: {}]
  %s16 = inlined_call_operand.vmem [shape: f32[32,32], index: 16, kind: input, shape index: {}]
  %s17 = inlined_call_operand.vmem [shape: f32[1,32], index: 17, kind: input, shape index: {}]
  %s18 = inlined_call_operand.vmem [shape: f32[2,320,64], index: 18, kind: output, shape index: {}]
  %s19 = sld [smem:[#allocation0]]
  $region105: #{rgbt_layer_forward.1} parent=0
    _
  %s21 = ssub.s32 1, %s19
  %s22 = scalar_select 0, %s21, %s19
  loop: start=0, step=1, limit=4
  $region2: #{rgbt_layer_forward.1} parent=0 // loop_pre_header
    _
  $region3: #{rgbt_layer_forward.1} parent=0 // loop_header
    %s24 = sphi 0, %s28
    %p25 = scmp.ge.s32.totalorder %s24, 4
    %s34 = sphi 0, %s36
    %s37 = sphi 0, %s34
    %s38 = sphi 0, %s37
    %s54 = sphi 0, %s38
    %s60 = sphi 0, %s62
    %s63 = sphi 0, %s60
    %s64 = sphi 0, %s63
    %s80 = sphi 0, %s64
    %s84 = sphi 0, %s84
    %s86 = sphi 0, %s84
    %s87 = sphi 0, %s86
    %s101 = sphi 0, %s87
    %s105 = sphi 0, %s105
    %s107 = sphi 0, %s105
    %s108 = sphi 0, %s107
    %s122 = sphi 0, %s108
    %s126 = sphi 0, %s126
    %s128 = sphi 0, %s126
    %s129 = sphi 0, %s128
    %s143 = sphi 0, %s129
    %s147 = sphi 0, %s147
    %s149 = sphi 0, %s147
    %s150 = sphi 0, %s149
    %s164 = sphi 0, %s150
    %s168 = sphi 0, %s168
    %s170 = sphi 0, %s168
    %s171 = sphi 0, %s170
    %s185 = sphi 0, %s171
    %s189 = sphi 0, %s189
    %s191 = sphi 0, %s189
    %s192 = sphi 0, %s191
    %s206 = sphi 0, %s192
    %s210 = sphi 0, %s210
    %s212 = sphi 0, %s210
    %s213 = sphi 0, %s212
    %s227 = sphi 0, %s213
    %s231 = sphi 0, %s231
    %s233 = sphi 0, %s231
    %s234 = sphi 0, %s233
    %s248 = sphi 0, %s234
    %s252 = sphi 0, %s252
    %s254 = sphi 0, %s252
    %s255 = sphi 0, %s254
    %s269 = sphi 0, %s255
    %s273 = sphi 0, %s273
    %s275 = sphi 0, %s273
    %s276 = sphi 0, %s275
    %s290 = sphi 0, %s276
    %s294 = sphi 0, %s294
    %s296 = sphi 0, %s294
    %s297 = sphi 0, %s296
    %s311 = sphi 0, %s297
    %s315 = sphi 0, %s315
    %s317 = sphi 0, %s315
    %s318 = sphi 0, %s317
    %s332 = sphi 0, %s318
    %s336 = sphi 0, %s336
    %s338 = sphi 0, %s336
    %s339 = sphi 0, %s338
    %s353 = sphi 0, %s339
    %s357 = sphi 0, %s357
    %s359 = sphi 0, %s357
    %s360 = sphi 0, %s359
    %s374 = sphi 0, %s360
    %s378 = sphi 0, %s378
    %s380 = sphi 0, %s378
    %s381 = sphi 0, %s380
    %s395 = sphi 0, %s381
    %s399 = sphi 0, %s399
    %s401 = sphi 0, %s399
    %s402 = sphi 0, %s401
    %s416 = sphi 0, %s402
    %s422 = sphi 0, %s424
    %s425 = sphi 0, %s422
    %s426 = sphi 0, %s425
    %s442 = sphi 0, %s426
  $region4: #{rgbt_layer_forward.1} parent=0 // loop_header_branch
    %27 = sbr.rel (%p25) target = $region8
  $region5: #{rgbt_layer_forward.1} parent=0 // loop_body
    %s29 = ssub.s32 %s24, 1
    %s30 = ssub.s32 %s24, 2
    %s31 = sadd.s32 %s24, 1
    %s32 = ssub.s32 %s24, %s31
    %p33 = scmp.eq.s32.totalorder %s32, 0
    %s35 = sadd.s32 %s34, 1
    %s36 = scalar_select %p33, %s34, %s35
    %p39 = pneg %p33
    %p40 = scmp.eq.s32.totalorder %s24, 1
    %p41 = por %p39, %p40
    %p42 = scmp.ne.s32.totalorder %s34, %s37
    %p43 = scmp.eq.s32.totalorder %s24, 0
    %p44 = por %p42, %p43
    %p45 = scmp.ne.s32.totalorder %s34, %s37
    %p46 = scmp.eq.s32.totalorder %s29, 1
    %p47 = por %p45, %p46
    %p48 = scmp.ne.s32.totalorder %s37, %s38
    %p49 = scmp.eq.s32.totalorder %s29, 0
    %p50 = por %p48, %p49
    %p51 = scmp.ne.s32.totalorder %s37, %s38
    %p52 = scmp.eq.s32.totalorder %s30, 1
    %p53 = por %p51, %p52
    %p55 = scmp.ne.s32.totalorder %s38, %s54
    %p56 = scmp.eq.s32.totalorder %s30, 0
    %p57 = por %p55, %p56
    %s58 = ssub.s32 %s24, %s31
    %p59 = scmp.eq.s32.totalorder %s58, 0
    %s61 = sadd.s32 %s60, 1
    %s62 = scalar_select %p59, %s60, %s61
    %p65 = pneg %p59
    %p66 = scmp.eq.s32.totalorder %s24, 1
    %p67 = por %p65, %p66
    %p68 = scmp.ne.s32.totalorder %s60, %s63
    %p69 = scmp.eq.s32.totalorder %s24, 0
    %p70 = por %p68, %p69
    %p71 = scmp.ne.s32.totalorder %s60, %s63
    %p72 = scmp.eq.s32.totalorder %s29, 1
    %p73 = por %p71, %p72
    %p74 = scmp.ne.s32.totalorder %s63, %s64
    %p75 = scmp.eq.s32.totalorder %s29, 0
    %p76 = por %p74, %p75
    %p77 = scmp.ne.s32.totalorder %s63, %s64
    %p78 = scmp.eq.s32.totalorder %s30, 1
    %p79 = por %p77, %p78
    %p81 = scmp.ne.s32.totalorder %s64, %s80
    %p82 = scmp.eq.s32.totalorder %s30, 0
    %p83 = por %p81, %p82
    %s85 = sadd.s32 %s84, 1
    %p88 = scmp.eq.s32.totalorder %s24, 1
    %p89 = scmp.ne.s32.totalorder %s84, %s86
    %p90 = scmp.eq.s32.totalorder %s24, 0
    %p91 = por %p89, %p90
    %p92 = scmp.ne.s32.totalorder %s84, %s86
    %p93 = scmp.eq.s32.totalorder %s29, 1
    %p94 = por %p92, %p93
    %p95 = scmp.ne.s32.totalorder %s86, %s87
    %p96 = scmp.eq.s32.totalorder %s29, 0
    %p97 = por %p95, %p96
    %p98 = scmp.ne.s32.totalorder %s86, %s87
    %p99 = scmp.eq.s32.totalorder %s30, 1
    %p100 = por %p98, %p99
    %p102 = scmp.ne.s32.totalorder %s87, %s101
    %p103 = scmp.eq.s32.totalorder %s30, 0
    %p104 = por %p102, %p103
    %s106 = sadd.s32 %s105, 1
    %p109 = scmp.eq.s32.totalorder %s24, 1
    %p110 = scmp.ne.s32.totalorder %s105, %s107
    %p111 = scmp.eq.s32.totalorder %s24, 0
    %p112 = por %p110, %p111
    %p113 = scmp.ne.s32.totalorder %s105, %s107
    %p114 = scmp.eq.s32.totalorder %s29, 1
    %p115 = por %p113, %p114
    %p116 = scmp.ne.s32.totalorder %s107, %s108
    %p117 = scmp.eq.s32.totalorder %s29, 0
    %p118 = por %p116, %p117
    %p119 = scmp.ne.s32.totalorder %s107, %s108
    %p120 = scmp.eq.s32.totalorder %s30, 1
    %p121 = por %p119, %p120
    %p123 = scmp.ne.s32.totalorder %s108, %s122
    %p124 = scmp.eq.s32.totalorder %s30, 0
    %p125 = por %p123, %p124
    %s127 = sadd.s32 %s126, 1
    %p130 = scmp.eq.s32.totalorder %s24, 1
    %p131 = scmp.ne.s32.totalorder %s126, %s128
    %p132 = scmp.eq.s32.totalorder %s24, 0
    %p133 = por %p131, %p132
    %p134 = scmp.ne.s32.totalorder %s126, %s128
    %p135 = scmp.eq.s32.totalorder %s29, 1
    %p136 = por %p134, %p135
    %p137 = scmp.ne.s32.totalorder %s128, %s129
    %p138 = scmp.eq.s32.totalorder %s29, 0
    %p139 = por %p137, %p138
    %p140 = scmp.ne.s32.totalorder %s128, %s129
    %p141 = scmp.eq.s32.totalorder %s30, 1
    %p142 = por %p140, %p141
    %p144 = scmp.ne.s32.totalorder %s129, %s143
    %p145 = scmp.eq.s32.totalorder %s30, 0
    %p146 = por %p144, %p145
    %s148 = sadd.s32 %s147, 1
    %p151 = scmp.eq.s32.totalorder %s24, 1
    %p152 = scmp.ne.s32.totalorder %s147, %s149
    %p153 = scmp.eq.s32.totalorder %s24, 0
    %p154 = por %p152, %p153
    %p155 = scmp.ne.s32.totalorder %s147, %s149
    %p156 = scmp.eq.s32.totalorder %s29, 1
    %p157 = por %p155, %p156
    %p158 = scmp.ne.s32.totalorder %s149, %s150
    %p159 = scmp.eq.s32.totalorder %s29, 0
    %p160 = por %p158, %p159
    %p161 = scmp.ne.s32.totalorder %s149, %s150
    %p162 = scmp.eq.s32.totalorder %s30, 1
    %p163 = por %p161, %p162
    %p165 = scmp.ne.s32.totalorder %s150, %s164
    %p166 = scmp.eq.s32.totalorder %s30, 0
    %p167 = por %p165, %p166
    %s169 = sadd.s32 %s168, 1
    %p172 = scmp.eq.s32.totalorder %s24, 1
    %p173 = scmp.ne.s32.totalorder %s168, %s170
    %p174 = scmp.eq.s32.totalorder %s24, 0
    %p175 = por %p173, %p174
    %p176 = scmp.ne.s32.totalorder %s168, %s170
    %p177 = scmp.eq.s32.totalorder %s29, 1
    %p178 = por %p176, %p177
    %p179 = scmp.ne.s32.totalorder %s170, %s171
    %p180 = scmp.eq.s32.totalorder %s29, 0
    %p181 = por %p179, %p180
    %p182 = scmp.ne.s32.totalorder %s170, %s171
    %p183 = scmp.eq.s32.totalorder %s30, 1
    %p184 = por %p182, %p183
    %p186 = scmp.ne.s32.totalorder %s171, %s185
    %p187 = scmp.eq.s32.totalorder %s30, 0
    %p188 = por %p186, %p187
    %s190 = sadd.s32 %s189, 1
    %p193 = scmp.eq.s32.totalorder %s24, 1
    %p194 = scmp.ne.s32.totalorder %s189, %s191
    %p195 = scmp.eq.s32.totalorder %s24, 0
    %p196 = por %p194, %p195
    %p197 = scmp.ne.s32.totalorder %s189, %s191
    %p198 = scmp.eq.s32.totalorder %s29, 1
    %p199 = por %p197, %p198
    %p200 = scmp.ne.s32.totalorder %s191, %s192
    %p201 = scmp.eq.s32.totalorder %s29, 0
    %p202 = por %p200, %p201
    %p203 = scmp.ne.s32.totalorder %s191, %s192
    %p204 = scmp.eq.s32.totalorder %s30, 1
    %p205 = por %p203, %p204
    %p207 = scmp.ne.s32.totalorder %s192, %s206
    %p208 = scmp.eq.s32.totalorder %s30, 0
    %p209 = por %p207, %p208
    %s211 = sadd.s32 %s210, 1
    %p214 = scmp.eq.s32.totalorder %s24, 1
    %p215 = scmp.ne.s32.totalorder %s210, %s212
    %p216 = scmp.eq.s32.totalorder %s24, 0
    %p217 = por %p215, %p216
    %p218 = scmp.ne.s32.totalorder %s210, %s212
    %p219 = scmp.eq.s32.totalorder %s29, 1
    %p220 = por %p218, %p219
    %p221 = scmp.ne.s32.totalorder %s212, %s213
    %p222 = scmp.eq.s32.totalorder %s29, 0
    %p223 = por %p221, %p222
    %p224 = scmp.ne.s32.totalorder %s212, %s213
    %p225 = scmp.eq.s32.totalorder %s30, 1
    %p226 = por %p224, %p225
    %p228 = scmp.ne.s32.totalorder %s213, %s227
    %p229 = scmp.eq.s32.totalorder %s30, 0
    %p230 = por %p228, %p229
    %s232 = sadd.s32 %s231, 1
    %p235 = scmp.eq.s32.totalorder %s24, 1
    %p236 = scmp.ne.s32.totalorder %s231, %s233
    %p237 = scmp.eq.s32.totalorder %s24, 0
    %p238 = por %p236, %p237
    %p239 = scmp.ne.s32.totalorder %s231, %s233
    %p240 = scmp.eq.s32.totalorder %s29, 1
    %p241 = por %p239, %p240
    %p242 = scmp.ne.s32.totalorder %s233, %s234
    %p243 = scmp.eq.s32.totalorder %s29, 0
    %p244 = por %p242, %p243
    %p245 = scmp.ne.s32.totalorder %s233, %s234
    %p246 = scmp.eq.s32.totalorder %s30, 1
    %p247 = por %p245, %p246
    %p249 = scmp.ne.s32.totalorder %s234, %s248
    %p250 = scmp.eq.s32.totalorder %s30, 0
    %p251 = por %p249, %p250
    %s253 = sadd.s32 %s252, 1
    %p256 = scmp.eq.s32.totalorder %s24, 1
    %p257 = scmp.ne.s32.totalorder %s252, %s254
    %p258 = scmp.eq.s32.totalorder %s24, 0
    %p259 = por %p257, %p258
    %p260 = scmp.ne.s32.totalorder %s252, %s254
    %p261 = scmp.eq.s32.totalorder %s29, 1
    %p262 = por %p260, %p261
    %p263 = scmp.ne.s32.totalorder %s254, %s255
    %p264 = scmp.eq.s32.totalorder %s29, 0
    %p265 = por %p263, %p264
    %p266 = scmp.ne.s32.totalorder %s254, %s255
    %p267 = scmp.eq.s32.totalorder %s30, 1
    %p268 = por %p266, %p267
    %p270 = scmp.ne.s32.totalorder %s255, %s269
    %p271 = scmp.eq.s32.totalorder %s30, 0
    %p272 = por %p270, %p271
    %s274 = sadd.s32 %s273, 1
    %p277 = scmp.eq.s32.totalorder %s24, 1
    %p278 = scmp.ne.s32.totalorder %s273, %s275
    %p279 = scmp.eq.s32.totalorder %s24, 0
    %p280 = por %p278, %p279
    %p281 = scmp.ne.s32.totalorder %s273, %s275
    %p282 = scmp.eq.s32.totalorder %s29, 1
    %p283 = por %p281, %p282
    %p284 = scmp.ne.s32.totalorder %s275, %s276
    %p285 = scmp.eq.s32.totalorder %s29, 0
    %p286 = por %p284, %p285
    %p287 = scmp.ne.s32.totalorder %s275, %s276
    %p288 = scmp.eq.s32.totalorder %s30, 1
    %p289 = por %p287, %p288
    %p291 = scmp.ne.s32.totalorder %s276, %s290
    %p292 = scmp.eq.s32.totalorder %s30, 0
    %p293 = por %p291, %p292
    %s295 = sadd.s32 %s294, 1
    %p298 = scmp.eq.s32.totalorder %s24, 1
    %p299 = scmp.ne.s32.totalorder %s294, %s296
    %p300 = scmp.eq.s32.totalorder %s24, 0
    %p301 = por %p299, %p300
    %p302 = scmp.ne.s32.totalorder %s294, %s296
    %p303 = scmp.eq.s32.totalorder %s29, 1
    %p304 = por %p302, %p303
    %p305 = scmp.ne.s32.totalorder %s296, %s297
    %p306 = scmp.eq.s32.totalorder %s29, 0
    %p307 = por %p305, %p306
    %p308 = scmp.ne.s32.totalorder %s296, %s297
    %p309 = scmp.eq.s32.totalorder %s30, 1
    %p310 = por %p308, %p309
    %p312 = scmp.ne.s32.totalorder %s297, %s311
    %p313 = scmp.eq.s32.totalorder %s30, 0
    %p314 = por %p312, %p313
    %s316 = sadd.s32 %s315, 1
    %p319 = scmp.eq.s32.totalorder %s24, 1
    %p320 = scmp.ne.s32.totalorder %s315, %s317
    %p321 = scmp.eq.s32.totalorder %s24, 0
    %p322 = por %p320, %p321
    %p323 = scmp.ne.s32.totalorder %s315, %s317
    %p324 = scmp.eq.s32.totalorder %s29, 1
    %p325 = por %p323, %p324
    %p326 = scmp.ne.s32.totalorder %s317, %s318
    %p327 = scmp.eq.s32.totalorder %s29, 0
    %p328 = por %p326, %p327
    %p329 = scmp.ne.s32.totalorder %s317, %s318
    %p330 = scmp.eq.s32.totalorder %s30, 1
    %p331 = por %p329, %p330
    %p333 = scmp.ne.s32.totalorder %s318, %s332
    %p334 = scmp.eq.s32.totalorder %s30, 0
    %p335 = por %p333, %p334
    %s337 = sadd.s32 %s336, 1
    %p340 = scmp.eq.s32.totalorder %s24, 1
    %p341 = scmp.ne.s32.totalorder %s336, %s338
    %p342 = scmp.eq.s32.totalorder %s24, 0
    %p343 = por %p341, %p342
    %p344 = scmp.ne.s32.totalorder %s336, %s338
    %p345 = scmp.eq.s32.totalorder %s29, 1
    %p346 = por %p344, %p345
    %p347 = scmp.ne.s32.totalorder %s338, %s339
    %p348 = scmp.eq.s32.totalorder %s29, 0
    %p349 = por %p347, %p348
    %p350 = scmp.ne.s32.totalorder %s338, %s339
    %p351 = scmp.eq.s32.totalorder %s30, 1
    %p352 = por %p350, %p351
    %p354 = scmp.ne.s32.totalorder %s339, %s353
    %p355 = scmp.eq.s32.totalorder %s30, 0
    %p356 = por %p354, %p355
    %s358 = sadd.s32 %s357, 1
    %p361 = scmp.eq.s32.totalorder %s24, 1
    %p362 = scmp.ne.s32.totalorder %s357, %s359
    %p363 = scmp.eq.s32.totalorder %s24, 0
    %p364 = por %p362, %p363
    %p365 = scmp.ne.s32.totalorder %s357, %s359
    %p366 = scmp.eq.s32.totalorder %s29, 1
    %p367 = por %p365, %p366
    %p368 = scmp.ne.s32.totalorder %s359, %s360
    %p369 = scmp.eq.s32.totalorder %s29, 0
    %p370 = por %p368, %p369
    %p371 = scmp.ne.s32.totalorder %s359, %s360
    %p372 = scmp.eq.s32.totalorder %s30, 1
    %p373 = por %p371, %p372
    %p375 = scmp.ne.s32.totalorder %s360, %s374
    %p376 = scmp.eq.s32.totalorder %s30, 0
    %p377 = por %p375, %p376
    %s379 = sadd.s32 %s378, 1
    %p382 = scmp.eq.s32.totalorder %s24, 1
    %p383 = scmp.ne.s32.totalorder %s378, %s380
    %p384 = scmp.eq.s32.totalorder %s24, 0
    %p385 = por %p383, %p384
    %p386 = scmp.ne.s32.totalorder %s378, %s380
    %p387 = scmp.eq.s32.totalorder %s29, 1
    %p388 = por %p386, %p387
    %p389 = scmp.ne.s32.totalorder %s380, %s381
    %p390 = scmp.eq.s32.totalorder %s29, 0
    %p391 = por %p389, %p390
    %p392 = scmp.ne.s32.totalorder %s380, %s381
    %p393 = scmp.eq.s32.totalorder %s30, 1
    %p394 = por %p392, %p393
    %p396 = scmp.ne.s32.totalorder %s381, %s395
    %p397 = scmp.eq.s32.totalorder %s30, 0
    %p398 = por %p396, %p397
    %s400 = sadd.s32 %s399, 1
    %p403 = scmp.eq.s32.totalorder %s24, 1
    %p404 = scmp.ne.s32.totalorder %s399, %s401
    %p405 = scmp.eq.s32.totalorder %s24, 0
    %p406 = por %p404, %p405
    %p407 = scmp.ne.s32.totalorder %s399, %s401
    %p408 = scmp.eq.s32.totalorder %s29, 1
    %p409 = por %p407, %p408
    %p410 = scmp.ne.s32.totalorder %s401, %s402
    %p411 = scmp.eq.s32.totalorder %s29, 0
    %p412 = por %p410, %p411
    %p413 = scmp.ne.s32.totalorder %s401, %s402
    %p414 = scmp.eq.s32.totalorder %s30, 1
    %p415 = por %p413, %p414
    %p417 = scmp.ne.s32.totalorder %s402, %s416
    %p418 = scmp.eq.s32.totalorder %s30, 0
    %p419 = por %p417, %p418
    %s420 = ssub.s32 %s24, %s31
    %p421 = scmp.eq.s32.totalorder %s420, 0
    %s423 = sadd.s32 %s422, 1
    %s424 = scalar_select %p421, %s422, %s423
    %p427 = pneg %p421
    %p428 = scmp.eq.s32.totalorder %s24, 1
    %p429 = por %p427, %p428
    %p430 = scmp.ne.s32.totalorder %s422, %s425
    %p431 = scmp.eq.s32.totalorder %s24, 0
    %p432 = por %p430, %p431
    %p433 = scmp.ne.s32.totalorder %s422, %s425
    %p434 = scmp.eq.s32.totalorder %s29, 1
    %p435 = por %p433, %p434
    %p436 = scmp.ne.s32.totalorder %s425, %s426
    %p437 = scmp.eq.s32.totalorder %s29, 0
    %p438 = por %p436, %p437
    %p439 = scmp.ne.s32.totalorder %s425, %s426
    %p440 = scmp.eq.s32.totalorder %s30, 1
    %p441 = por %p439, %p440
    %p443 = scmp.ne.s32.totalorder %s426, %s442
    %p444 = scmp.eq.s32.totalorder %s30, 0
    %p445 = por %p443, %p444
    %p446 = scmp.le.s32.totalorder 1, %s24
    %p447 = scmp.lt.s32.totalorder %s24, 3
    %p448 = pnand %p446, %p447
    %p449 = pneg %p448
    // Predicated region
    $region9: #{rgbt_layer_forward.1} parent=5 // pred_check
      _
    $region10: #{rgbt_layer_forward.1} parent=5 // pred_check_branch
      %451 = sbr.rel (%p448) target = $region12
    $region11: #{rgbt_layer_forward.1} parent=5 // pred_region
      %s452 = ssub.s32 %s24, 1
      // Predicated region
      $region13: #{rgbt_layer_forward.1} parent=11 // pred_check
        %p453 = pneg %p97
      $region14: #{rgbt_layer_forward.1} parent=11 // pred_check_branch
        %455 = sbr.rel (%p453) target = $region16
      $region15: #{rgbt_layer_forward.1} parent=11 // pred_region
        _
      $region16: #{rgbt_layer_forward.1} parent=11 // pred_fallthru
        _
      // Predicated region
      $region17: #{rgbt_layer_forward.1} parent=11 // pred_check
        %p456 = pneg %p118
      $region18: #{rgbt_layer_forward.1} parent=11 // pred_check_branch
        %458 = sbr.rel (%p456) target = $region20
      $region19: #{rgbt_layer_forward.1} parent=11 // pred_region
        _
      $region20: #{rgbt_layer_forward.1} parent=11 // pred_fallthru
        _
      // Predicated region
      $region21: #{rgbt_layer_forward.1} parent=11 // pred_check
        %p459 = pneg %p139
      $region22: #{rgbt_layer_forward.1} parent=11 // pred_check_branch
        %461 = sbr.rel (%p459) target = $region24
      $region23: #{rgbt_layer_forward.1} parent=11 // pred_region
        _
      $region24: #{rgbt_layer_forward.1} parent=11 // pred_fallthru
        _
      // Predicated region
      $region25: #{rgbt_layer_forward.1} parent=11 // pred_check
        %p462 = pneg %p160
      $region26: #{rgbt_layer_forward.1} parent=11 // pred_check_branch
        %464 = sbr.rel (%p462) target = $region28
      $region27: #{rgbt_layer_forward.1} parent=11 // pred_region
        _
      $region28: #{rgbt_layer_forward.1} parent=11 // pred_fallthru
        _
      // Predicated region
      $region29: #{rgbt_layer_forward.1} parent=11 // pred_check
        %p465 = pneg %p181
      $region30: #{rgbt_layer_forward.1} parent=11 // pred_check_branch
        %467 = sbr.rel (%p465) target = $region32
      $region31: #{rgbt_layer_forward.1} parent=11 // pred_region
        _
      $region32: #{rgbt_layer_forward.1} parent=11 // pred_fallthru
        _
      // Predicated region
      $region33: #{rgbt_layer_forward.1} parent=11 // pred_check
        %p468 = pneg %p202
      $region34: #{rgbt_layer_forward.1} parent=11 // pred_check_branch
        %470 = sbr.rel (%p468) target = $region36
      $region35: #{rgbt_layer_forward.1} parent=11 // pred_region
        _
      $region36: #{rgbt_layer_forward.1} parent=11 // pred_fallthru
        _
      // Predicated region
      $region37: #{rgbt_layer_forward.1} parent=11 // pred_check
        %p471 = pneg %p223
      $region38: #{rgbt_layer_forward.1} parent=11 // pred_check_branch
        %473 = sbr.rel (%p471) target = $region40
      $region39: #{rgbt_layer_forward.1} parent=11 // pred_region
        _
      $region40: #{rgbt_layer_forward.1} parent=11 // pred_fallthru
        _
      // Predicated region
      $region41: #{rgbt_layer_forward.1} parent=11 // pred_check
        %p474 = pneg %p244
      $region42: #{rgbt_layer_forward.1} parent=11 // pred_check_branch
        %476 = sbr.rel (%p474) target = $region44
      $region43: #{rgbt_layer_forward.1} parent=11 // pred_region
        _
      $region44: #{rgbt_layer_forward.1} parent=11 // pred_fallthru
        _
      // Predicated region
      $region45: #{rgbt_layer_forward.1} parent=11 // pred_check
        %p477 = pneg %p265
      $region46: #{rgbt_layer_forward.1} parent=11 // pred_check_branch
        %479 = sbr.rel (%p477) target = $region48
      $region47: #{rgbt_layer_forward.1} parent=11 // pred_region
        _
      $region48: #{rgbt_layer_forward.1} parent=11 // pred_fallthru
        _
      // Predicated region
      $region49: #{rgbt_layer_forward.1} parent=11 // pred_check
        %p480 = pneg %p286
      $region50: #{rgbt_layer_forward.1} parent=11 // pred_check_branch
        %482 = sbr.rel (%p480) target = $region52
      $region51: #{rgbt_layer_forward.1} parent=11 // pred_region
        _
      $region52: #{rgbt_layer_forward.1} parent=11 // pred_fallthru
        _
      // Predicated region
      $region53: #{rgbt_layer_forward.1} parent=11 // pred_check
        %p483 = pneg %p307
      $region54: #{rgbt_layer_forward.1} parent=11 // pred_check_branch
        %485 = sbr.rel (%p483) target = $region56
      $region55: #{rgbt_layer_forward.1} parent=11 // pred_region
        _
      $region56: #{rgbt_layer_forward.1} parent=11 // pred_fallthru
        _
      // Predicated region
      $region57: #{rgbt_layer_forward.1} parent=11 // pred_check
        %p486 = pneg %p328
      $region58: #{rgbt_layer_forward.1} parent=11 // pred_check_branch
        %488 = sbr.rel (%p486) target = $region60
      $region59: #{rgbt_layer_forward.1} parent=11 // pred_region
        _
      $region60: #{rgbt_layer_forward.1} parent=11 // pred_fallthru
        _
      // Predicated region
      $region61: #{rgbt_layer_forward.1} parent=11 // pred_check
        %p489 = pneg %p349
      $region62: #{rgbt_layer_forward.1} parent=11 // pred_check_branch
        %491 = sbr.rel (%p489) target = $region64
      $region63: #{rgbt_layer_forward.1} parent=11 // pred_region
        _
      $region64: #{rgbt_layer_forward.1} parent=11 // pred_fallthru
        _
      // Predicated region
      $region65: #{rgbt_layer_forward.1} parent=11 // pred_check
        %p492 = pneg %p370
      $region66: #{rgbt_layer_forward.1} parent=11 // pred_check_branch
        %494 = sbr.rel (%p492) target = $region68
      $region67: #{rgbt_layer_forward.1} parent=11 // pred_region
        _
      $region68: #{rgbt_layer_forward.1} parent=11 // pred_fallthru
        _
      // Predicated region
      $region69: #{rgbt_layer_forward.1} parent=11 // pred_check
        %p495 = pneg %p391
      $region70: #{rgbt_layer_forward.1} parent=11 // pred_check_branch
        %497 = sbr.rel (%p495) target = $region72
      $region71: #{rgbt_layer_forward.1} parent=11 // pred_region
        _
      $region72: #{rgbt_layer_forward.1} parent=11 // pred_fallthru
        _
      // Predicated region
      $region73: #{rgbt_layer_forward.1} parent=11 // pred_check
        %p498 = pneg %p412
      $region74: #{rgbt_layer_forward.1} parent=11 // pred_check_branch
        %500 = sbr.rel (%p498) target = $region76
      $region75: #{rgbt_layer_forward.1} parent=11 // pred_region
        _
      $region76: #{rgbt_layer_forward.1} parent=11 // pred_fallthru
        _
    $region12: #{rgbt_layer_forward.1} parent=5 // pred_fallthru
      _
    %p501 = scmp.lt.s32.totalorder %s24, 2
    // Predicated region
    $region77: #{rgbt_layer_forward.1} parent=5 // pred_check
      %p502 = pneg %p501
    $region78: #{rgbt_layer_forward.1} parent=5 // pred_check_branch
      %504 = sbr.rel (%p502) target = $region80
    $region79: #{rgbt_layer_forward.1} parent=5 // pred_region
      // Predicated region
      $region81: #{rgbt_layer_forward.1} parent=79 // pred_check
        %p505 = pneg %p44
      $region82: #{rgbt_layer_forward.1} parent=79 // pred_check_branch
        %507 = sbr.rel (%p505) target = $region84
      $region83: #{rgbt_layer_forward.1} parent=79 // pred_region
        %p508 = scmp.lt.s32.totalorder %s24, 1
        %s509 = scalar_select %p508, %s24, 1
        %s510 = smul.addr %s509, 40
        %s511 = smul.addr %s510, 8
        %s512 = scalar_lea.vmem %s0, %s511
      $region84: #{rgbt_layer_forward.1} parent=79 // pred_fallthru
        _
      // Predicated region
      $region85: #{rgbt_layer_forward.1} parent=79 // pred_check
        %p513 = pneg %p70
      $region86: #{rgbt_layer_forward.1} parent=79 // pred_check_branch
        %515 = sbr.rel (%p513) target = $region88
      $region87: #{rgbt_layer_forward.1} parent=79 // pred_region
        %p516 = scmp.lt.s32.totalorder %s24, 1
        %s517 = scalar_select %p516, %s24, 1
        %s518 = smul.addr %s517, 40
        %s519 = smul.addr %s518, 8
        %s520 = scalar_lea.vmem %s1, %s519
      $region88: #{rgbt_layer_forward.1} parent=79 // pred_fallthru
        _
    $region80: #{rgbt_layer_forward.1} parent=5 // pred_fallthru
      _
    %p521 = scmp.le.s32.totalorder 1, %s24
    %p522 = scmp.lt.s32.totalorder %s24, 3
    %p523 = pnand %p521, %p522
    %p524 = pneg %p523
    // Predicated region
    $region89: #{rgbt_layer_forward.1} parent=5 // pred_check
      _
    $region90: #{rgbt_layer_forward.1} parent=5 // pred_check_branch
      %526 = sbr.rel (%p523) target = $region92
    $region91: #{rgbt_layer_forward.1} parent=5 // pred_region
      %s527 = ssub.s32 %s24, 1
      %p528 = scmp.lt.s32.totalorder %s29, 1
      %s529 = scalar_select %p528, %s29, 1
      %s530 = smul.addr %s529, 40
      %s531 = smul.addr %s530, 8
      %s532 = scalar_lea.vmem %s0, %s531
      %p533 = pneg %p50
      %p534 = pneg %p47
      %p535 = scmp.lt.s32.totalorder %s29, 1
      %s536 = scalar_select %p535, %s29, 1
      %s537 = smul.addr %s536, 40
      %s538 = smul.addr %s537, 8
      %s539 = scalar_lea.vmem %s1, %s538
      %p540 = pneg %p76
      %p541 = pneg %p73
      %p542 = pneg %p97
      %p543 = pneg %p94
      %p544 = pneg %p118
      %p545 = pneg %p115
      %p546 = pneg %p139
      %p547 = pneg %p136
      %p548 = pneg %p160
      %p549 = pneg %p157
      %p550 = pneg %p181
      %p551 = pneg %p178
      %p552 = pneg %p202
      %p553 = pneg %p199
      %p554 = pneg %p223
      %p555 = pneg %p220
      %p556 = pneg %p244
      %p557 = pneg %p241
      %p558 = pneg %p265
      %p559 = pneg %p262
      %p560 = pneg %p286
      %p561 = pneg %p283
      %p562 = pneg %p307
      %p563 = pneg %p304
      %p564 = pneg %p328
      %p565 = pneg %p325
      %p566 = pneg %p349
      %p567 = pneg %p346
      %p568 = pneg %p370
      %p569 = pneg %p367
      %p570 = pneg %p391
      %p571 = pneg %p388
      %p572 = pneg %p412
      %p573 = pneg %p409
      %p574 = pneg %p438
      %p575 = pneg %p435
      %p576 = scmp.lt.s32.totalorder %s29, 1
      %s577 = scalar_select %p576, %s29, 1
      %s578 = smul.addr %s577, 40
      %s579 = smul.addr %s578, 8
      %s580 = scalar_lea.vmem %s18, %s579
      %p581 = scmp.lt.s32.totalorder %s29, 1
      %s582 = scalar_select %p581, %s29, 1
      %s583 = smul.addr %s582, 40
      %s584 = smul.addr %s583, 8
      %s585 = scalar_lea.vmem %s0, %s584
      %p586 = scmp.lt.s32.totalorder %s29, 1
      %s587 = scalar_select %p586, %s29, 1
      %s588 = smul.addr %s587, 40
      %s589 = smul.addr %s588, 8
      %s590 = scalar_lea.vmem %s1, %s589
      %p591 = scmp.lt.s32.totalorder %s29, 1
      %s592 = scalar_select %p591, %s29, 1
      %s593 = smul.addr %s592, 40
      %s594 = smul.addr %s593, 8
      %s595 = scalar_lea.vmem %s18, %s594
      %v596 = vld [vmem:[%s585] sm:$0xff]
      %v597 = vld [vmem:[%s585 + $0x8] sm:$0xff]
      %v598 = vld [vmem:[%s585 + $0x10] sm:$0xff]
      %v599 = vld [vmem:[%s585 + $0x18] sm:$0xff]
      %v600 = vld [vmem:[%s585 + $0x20] sm:$0xff]
      %v601 = vld [vmem:[%s585 + $0x28] sm:$0xff]
      %v602 = vld [vmem:[%s585 + $0x30] sm:$0xff]
      %v603 = vld [vmem:[%s585 + $0x38] sm:$0xff]
      %v604 = vld [vmem:[%s590] sm:$0xff]
      %v605 = vld [vmem:[%s590 + $0x8] sm:$0xff]
      %v606 = vld [vmem:[%s590 + $0x10] sm:$0xff]
      %v607 = vld [vmem:[%s590 + $0x18] sm:$0xff]
      %v608 = vld [vmem:[%s590 + $0x20] sm:$0xff]
      %v609 = vld [vmem:[%s590 + $0x28] sm:$0xff]
      %v610 = vld [vmem:[%s590 + $0x30] sm:$0xff]
      %v611 = vld [vmem:[%s590 + $0x38] sm:$0xff]
      %v612 = vld [vmem:[%s585 + $0x40] sm:$0xff]
      %v613 = vld [vmem:[%s585 + $0x48] sm:$0xff]
      %v614 = vld [vmem:[%s585 + $0x50] sm:$0xff]
      %v615 = vld [vmem:[%s585 + $0x58] sm:$0xff]
      %v616 = vld [vmem:[%s585 + $0x60] sm:$0xff]
      %v617 = vld [vmem:[%s585 + $0x68] sm:$0xff]
      %v618 = vld [vmem:[%s585 + $0x70] sm:$0xff]
      %v619 = vld [vmem:[%s585 + $0x78] sm:$0xff]
      %v620 = vld [vmem:[%s585 + $0x80] sm:$0xff]
      %v621 = vld [vmem:[%s585 + $0x88] sm:$0xff]
      %v622 = vld [vmem:[%s585 + $0x90] sm:$0xff]
      %v623 = vld [vmem:[%s585 + $0x98] sm:$0xff]
      %v624 = vld [vmem:[%s585 + $0xa0] sm:$0xff]
      %v625 = vld [vmem:[%s585 + $0xa8] sm:$0xff]
      %v626 = vld [vmem:[%s585 + $0xb0] sm:$0xff]
      %v627 = vld [vmem:[%s585 + $0xb8] sm:$0xff]
      %v628 = vld [vmem:[%s585 + $0xc0] sm:$0xff]
      %v629 = vld [vmem:[%s585 + $0xc8] sm:$0xff]
      %v630 = vld [vmem:[%s585 + $0xd0] sm:$0xff]
      %v631 = vld [vmem:[%s585 + $0xd8] sm:$0xff]
      %v632 = vld [vmem:[%s585 + $0xe0] sm:$0xff]
      %v633 = vld [vmem:[%s585 + $0xe8] sm:$0xff]
      %v634 = vld [vmem:[%s585 + $0xf0] sm:$0xff]
      %v635 = vld [vmem:[%s585 + $0xf8] sm:$0xff]
      %v636 = vld [vmem:[%s585 + $0x100] sm:$0xff]
      %v637 = vld [vmem:[%s585 + $0x108] sm:$0xff]
      %v638 = vld [vmem:[%s585 + $0x110] sm:$0xff]
      %v639 = vld [vmem:[%s585 + $0x118] sm:$0xff]
      %v640 = vld [vmem:[%s585 + $0x120] sm:$0xff]
      %v641 = vld [vmem:[%s585 + $0x128] sm:$0xff]
      %v642 = vld [vmem:[%s585 + $0x130] sm:$0xff]
      %v643 = vld [vmem:[%s585 + $0x138] sm:$0xff]
      %v644 = vld [vmem:[%s590 + $0x40] sm:$0xff]
      %v645 = vld [vmem:[%s590 + $0x48] sm:$0xff]
      %v646 = vld [vmem:[%s590 + $0x50] sm:$0xff]
      %v647 = vld [vmem:[%s590 + $0x58] sm:$0xff]
      %v648 = vld [vmem:[%s590 + $0x60] sm:$0xff]
      %v649 = vld [vmem:[%s590 + $0x68] sm:$0xff]
      %v650 = vld [vmem:[%s590 + $0x70] sm:$0xff]
      %v651 = vld [vmem:[%s590 + $0x78] sm:$0xff]
      %v652 = vld [vmem:[%s590 + $0x80] sm:$0xff]
      %v653 = vld [vmem:[%s590 + $0x88] sm:$0xff]
      %v654 = vld [vmem:[%s590 + $0x90] sm:$0xff]
      %v655 = vld [vmem:[%s590 + $0x98] sm:$0xff]
      %v656 = vld [vmem:[%s590 + $0xa0] sm:$0xff]
      %v657 = vld [vmem:[%s590 + $0xa8] sm:$0xff]
      %v658 = vld [vmem:[%s590 + $0xb0] sm:$0xff]
      %v659 = vld [vmem:[%s590 + $0xb8] sm:$0xff]
      %v660 = vld [vmem:[%s590 + $0xc0] sm:$0xff]
      %v661 = vld [vmem:[%s590 + $0xc8] sm:$0xff]
      %v662 = vld [vmem:[%s590 + $0xd0] sm:$0xff]
      %v663 = vld [vmem:[%s590 + $0xd8] sm:$0xff]
      %v664 = vld [vmem:[%s590 + $0xe0] sm:$0xff]
      %v665 = vld [vmem:[%s590 + $0xe8] sm:$0xff]
      %v666 = vld [vmem:[%s590 + $0xf0] sm:$0xff]
      %v667 = vld [vmem:[%s590 + $0xf8] sm:$0xff]
      %v668 = vld [vmem:[%s590 + $0x100] sm:$0xff]
      %v669 = vld [vmem:[%s590 + $0x108] sm:$0xff]
      %v670 = vld [vmem:[%s590 + $0x110] sm:$0xff]
      %v671 = vld [vmem:[%s590 + $0x118] sm:$0xff]
      %v672 = vld [vmem:[%s590 + $0x120] sm:$0xff]
      %v673 = vld [vmem:[%s590 + $0x128] sm:$0xff]
      %v674 = vld [vmem:[%s590 + $0x130] sm:$0xff]
      %v675 = vld [vmem:[%s590 + $0x138] sm:$0xff]
      %v676 = vadd.f32 %v596, %v604
      %v677 = vadd.f32 %v597, %v605
      %v678 = vadd.f32 %v598, %v606
      %v679 = vadd.f32 %v599, %v607
      %v680 = vadd.f32 %v600, %v608
      %v681 = vadd.f32 %v601, %v609
      %v682 = vadd.f32 %v602, %v610
      %v683 = vadd.f32 %v603, %v611
      %vm684 = vcmask 261120
      %v685 = vsel %vm684, %v676, 0.0
      %v686 = vsel %vm684, %v677, 0.0
      %v687 = vadd.f32 %v685, %v686
      %v688 = vsel %vm684, %v678, 0.0
      %v689 = vadd.f32 %v687, %v688
      %v690 = vsel %vm684, %v679, 0.0
      %v691 = vadd.f32 %v689, %v690
      %v692 = vsel %vm684, %v680, 0.0
      %v693 = vadd.f32 %v691, %v692
      %v694 = vsel %vm684, %v681, 0.0
      %v695 = vadd.f32 %v693, %v694
      %v696 = vsel %vm684, %v682, 0.0
      %v697 = vadd.f32 %v695, %v696
      %v698 = vsel %vm684, %v683, 0.0
      %v699 = vadd.f32 %v697, %v698
      %v700 = vrot.slane %v699, 4
      %v701 = vadd.f32 %v699, %v700
      %v702 = vrot.slane %v701, 2
      %v703 = vadd.f32 %v701, %v702
      %v704 = vrot.slane %v703, 1
      %v705 = vadd.f32 %v703, %v704
      %v706 = vrcp.pop 64.0
      %v707 = vmul.f32 %v705, %v706
      %v708 = vadd.f32 %v612, %v644
      %v709 = vadd.f32 %v613, %v645
      %v710 = vadd.f32 %v614, %v646
      %v711 = vadd.f32 %v615, %v647
      %v712 = vadd.f32 %v616, %v648
      %v713 = vadd.f32 %v617, %v649
      %v714 = vadd.f32 %v618, %v650
      %v715 = vadd.f32 %v619, %v651
      %v716 = vadd.f32 %v620, %v652
      %v717 = vadd.f32 %v621, %v653
      %v718 = vadd.f32 %v622, %v654
      %v719 = vadd.f32 %v623, %v655
      %v720 = vadd.f32 %v624, %v656
      %v721 = vadd.f32 %v625, %v657
      %v722 = vadd.f32 %v626, %v658
      %v723 = vadd.f32 %v627, %v659
      %v724 = vadd.f32 %v628, %v660
      %v725 = vadd.f32 %v629, %v661
      %v726 = vadd.f32 %v630, %v662
      %v727 = vadd.f32 %v631, %v663
      %v728 = vadd.f32 %v632, %v664
      %v729 = vadd.f32 %v633, %v665
      %v730 = vadd.f32 %v634, %v666
      %v731 = vadd.f32 %v635, %v667
      %v732 = vadd.f32 %v636, %v668
      %v733 = vadd.f32 %v637, %v669
      %v734 = vadd.f32 %v638, %v670
      %v735 = vadd.f32 %v639, %v671
      %v736 = vadd.f32 %v640, %v672
      %v737 = vadd.f32 %v641, %v673
      %v738 = vadd.f32 %v642, %v674
      %v739 = vadd.f32 %v643, %v675
      %v740 = vsel %vm684, %v708, 0.0
      %v741 = vsel %vm684, %v709, 0.0
      %v742 = vadd.f32 %v740, %v741
      %v743 = vsel %vm684, %v710, 0.0
      %v744 = vadd.f32 %v742, %v743
      %v745 = vsel %vm684, %v711, 0.0
      %v746 = vadd.f32 %v744, %v745
      %v747 = vsel %vm684, %v712, 0.0
      %v748 = vadd.f32 %v746, %v747
      %v749 = vsel %vm684, %v713, 0.0
      %v750 = vadd.f32 %v748, %v749
      %v751 = vsel %vm684, %v714, 0.0
      %v752 = vadd.f32 %v750, %v751
      %v753 = vsel %vm684, %v715, 0.0
      %v754 = vadd.f32 %v752, %v753
      %v755 = vsel %vm684, %v716, 0.0
      %v756 = vadd.f32 %v754, %v755
      %v757 = vsel %vm684, %v717, 0.0
      %v758 = vadd.f32 %v756, %v757
      %v759 = vsel %vm684, %v718, 0.0
      %v760 = vadd.f32 %v758, %v759
      %v761 = vsel %vm684, %v719, 0.0
      %v762 = vadd.f32 %v760, %v761
      %v763 = vsel %vm684, %v720, 0.0
      %v764 = vadd.f32 %v762, %v763
      %v765 = vsel %vm684, %v721, 0.0
      %v766 = vadd.f32 %v764, %v765
      %v767 = vsel %vm684, %v722, 0.0
      %v768 = vadd.f32 %v766, %v767
      %v769 = vsel %vm684, %v723, 0.0
      %v770 = vadd.f32 %v768, %v769
      %v771 = vsel %vm684, %v724, 0.0
      %v772 = vadd.f32 %v770, %v771
      %v773 = vsel %vm684, %v725, 0.0
      %v774 = vadd.f32 %v772, %v773
      %v775 = vsel %vm684, %v726, 0.0
      %v776 = vadd.f32 %v774, %v775
      %v777 = vsel %vm684, %v727, 0.0
      %v778 = vadd.f32 %v776, %v777
      %v779 = vsel %vm684, %v728, 0.0
      %v780 = vadd.f32 %v778, %v779
      %v781 = vsel %vm684, %v729, 0.0
      %v782 = vadd.f32 %v780, %v781
      %v783 = vsel %vm684, %v730, 0.0
      %v784 = vadd.f32 %v782, %v783
      %v785 = vsel %vm684, %v731, 0.0
      %v786 = vadd.f32 %v784, %v785
      %v787 = vsel %vm684, %v732, 0.0
      %v788 = vadd.f32 %v786, %v787
      %v789 = vsel %vm684, %v733, 0.0
      %v790 = vadd.f32 %v788, %v789
      %v791 = vsel %vm684, %v734, 0.0
      %v792 = vadd.f32 %v790, %v791
      %v793 = vsel %vm684, %v735, 0.0
      %v794 = vadd.f32 %v792, %v793
      %v795 = vsel %vm684, %v736, 0.0
      %v796 = vadd.f32 %v794, %v795
      %v797 = vsel %vm684, %v737, 0.0
      %v798 = vadd.f32 %v796, %v797
      %v799 = vsel %vm684, %v738, 0.0
      %v800 = vadd.f32 %v798, %v799
      %v801 = vsel %vm684, %v739, 0.0
      %v802 = vadd.f32 %v800, %v801
      %v803 = vrot.slane %v802, 4
      %v804 = vadd.f32 %v802, %v803
      %v805 = vrot.slane %v804, 2
      %v806 = vadd.f32 %v804, %v805
      %v807 = vrot.slane %v806, 1
      %v808 = vadd.f32 %v806, %v807
      %v809 = vrcp.pop 256.0
      %v810 = vmul.f32 %v808, %v809
      %vm811 = vcmask 1040384
      %v812 = vsel %vm811, %v707, %v810
      %v813 = vld [vmem:[%s2] sm:$0xff]
      %v814 = vld [vmem:[%s2 + $0x8] sm:$0xff]
      %v815 = vld [vmem:[%s2 + $0x10] sm:$0xff]
      %v816 = vld [vmem:[%s2 + $0x18] sm:$0xff]
      %v817 = vld [vmem:[%s3] sm:$0x1]
      %v819 = vlaneseq
      %v820 = vshrl.u32 %v819, 7
      %v821 = vsub.s32 0, %v820
      %v822 = vrot.slane %v817, %v821
      %v825 = vsel %vm684, %v812, 0
      %827 = vmatprep.subr.mxu0 0.0
      %828 = vmatpush1.msra.mxu0 %v813
      %829 = vmatprep.subr.mxu0 0.0
      %830 = vmatpush1.msra.mxu0 %v814
      %831 = vmatprep.subr.mxu0 0.0
      %832 = vmatpush1.msra.mxu0 %v815
      %833 = vmatprep.subr.mxu0 0.0
      %834 = vmatpush1.msra.mxu0 %v816
      %835 = vmatprep.subr.mxu0 0.0
      %836 = vmatpush1.msra.mxu0 0.0
      %837 = vmatprep.subr.mxu0 0.0
      %838 = vmatpush1.msra.mxu0 0.0
      %839 = vmatprep.subr.mxu0 0.0
      %840 = vmatpush1.msra.mxu0 0.0
      %841 = vmatprep.subr.mxu0 0.0
      %842 = vmatpush1.msra.mxu0 0.0
      %843 = vmatprep.subr.mxu0 0.0
      %844 = vmatpush1.msra.mxu0 0.0
      %845 = vmatprep.subr.mxu0 0.0
      %846 = vmatpush1.msra.mxu0 0.0
      %847 = vmatprep.subr.mxu0 0.0
      %848 = vmatpush1.msra.mxu0 0.0
      %849 = vmatprep.subr.mxu0 0.0
      %850 = vmatpush1.msra.mxu0 0.0
      %851 = vmatprep.subr.mxu0 0.0
      %852 = vmatpush1.msra.mxu0 0.0
      %853 = vmatprep.subr.mxu0 0.0
      %854 = vmatpush1.msra.mxu0 0.0
      %855 = vmatprep.subr.mxu0 0.0
      %856 = vmatpush1.msra.mxu0 0.0
      %857 = vmatprep.subr.mxu0 0.0
      %858 = vmatpush1.msra.mxu0 0.0
      %859 = vmatprep.subr.mxu0 0.0
      %860 = vmatpush1.msra.mxu0 0.0
      %861 = vmatprep.subr.mxu0 0.0
      %862 = vmatpush1.msra.mxu0 0.0
      %863 = vmatprep.subr.mxu0 0.0
      %864 = vmatpush1.msra.mxu0 0.0
      %865 = vmatprep.subr.mxu0 0.0
      %866 = vmatpush1.msra.mxu0 0.0
      %867 = vmatprep.subr.mxu0 0.0
      %868 = vmatpush1.msra.mxu0 0.0
      %869 = vmatprep.subr.mxu0 0.0
      %870 = vmatpush1.msra.mxu0 0.0
      %871 = vmatprep.subr.mxu0 0.0
      %872 = vmatpush1.msra.mxu0 0.0
      %873 = vmatprep.subr.mxu0 0.0
      %874 = vmatpush1.msra.mxu0 0.0
      %875 = vmatprep.subr.mxu0 0.0
      %876 = vmatpush1.msra.mxu0 0.0
      %877 = vmatprep.subr.mxu0 0.0
      %878 = vmatpush1.msra.mxu0 0.0
      %879 = vmatprep.subr.mxu0 0.0
      %880 = vmatpush1.msra.mxu0 0.0
      %881 = vmatprep.subr.mxu0 0.0
      %882 = vmatpush1.msra.mxu0 0.0
      %883 = vmatprep.subr.mxu0 0.0
      %884 = vmatpush1.msra.mxu0 0.0
      %885 = vmatprep.subr.mxu0 0.0
      %886 = vmatpush1.msra.mxu0 0.0
      %887 = vmatprep.subr.mxu0 0.0
      %888 = vmatpush1.msra.mxu0 0.0
      %889 = vmatprep.subr.mxu0 0.0
      %890 = vmatpush1.msra.mxu0 0.0
      %891 = vmatprep.mubr.f32.mxu0 0.0
      %892 = vmatmul.mubr.f32.gmra.mrb[0].mxu0 %v825
      %v893 = vpop.f32.mrb[0].mxu0
      %v894 = vadd.f32 %v822, %v893
      %v895 = vpop.f32.mrb[0].mxu0
      %896 = vdwg.mxu0
      %v897 = vmax.f32 %v894, 0.0
      %v898 = vld [vmem:[%s4] sm:$0xff]
      %v899 = vld [vmem:[%s5] sm:$0x1]
      %v901 = vlaneseq
      %v902 = vshrl.u32 %v901, 7
      %v903 = vsub.s32 0, %v902
      %v904 = vrot.slane %v899, %v903
      %vm906 = vcmask 64512
      %v908 = vsel %vm906, %v897, 0
      %910 = vmatprep.subr.mxu0 0.0
      %911 = vmatpush1.msra.mxu0 %v898
      %912 = vmatprep.subr.mxu0 0.0
      %913 = vmatpush1.msra.mxu0 0.0
      %914 = vmatprep.subr.mxu0 0.0
      %915 = vmatpush1.msra.mxu0 0.0
      %916 = vmatprep.subr.mxu0 0.0
      %917 = vmatpush1.msra.mxu0 0.0
      %918 = vmatprep.subr.mxu0 0.0
      %919 = vmatpush1.msra.mxu0 0.0
      %920 = vmatprep.subr.mxu0 0.0
      %921 = vmatpush1.msra.mxu0 0.0
      %922 = vmatprep.subr.mxu0 0.0
      %923 = vmatpush1.msra.mxu0 0.0
      %924 = vmatprep.subr.mxu0 0.0
      %925 = vmatpush1.msra.mxu0 0.0
      %926 = vmatprep.subr.mxu0 0.0
      %927 = vmatpush1.msra.mxu0 0.0
      %928 = vmatprep.subr.mxu0 0.0
      %929 = vmatpush1.msra.mxu0 0.0
      %930 = vmatprep.subr.mxu0 0.0
      %931 = vmatpush1.msra.mxu0 0.0
      %932 = vmatprep.subr.mxu0 0.0
      %933 = vmatpush1.msra.mxu0 0.0
      %934 = vmatprep.subr.mxu0 0.0
      %935 = vmatpush1.msra.mxu0 0.0
      %936 = vmatprep.subr.mxu0 0.0
      %937 = vmatpush1.msra.mxu0 0.0
      %938 = vmatprep.subr.mxu0 0.0
      %939 = vmatpush1.msra.mxu0 0.0
      %940 = vmatprep.subr.mxu0 0.0
      %941 = vmatpush1.msra.mxu0 0.0
      %942 = vmatprep.subr.mxu0 0.0
      %943 = vmatpush1.msra.mxu0 0.0
      %944 = vmatprep.subr.mxu0 0.0
      %945 = vmatpush1.msra.mxu0 0.0
      %946 = vmatprep.subr.mxu0 0.0
      %947 = vmatpush1.msra.mxu0 0.0
      %948 = vmatprep.subr.mxu0 0.0
      %949 = vmatpush1.msra.mxu0 0.0
      %950 = vmatprep.subr.mxu0 0.0
      %951 = vmatpush1.msra.mxu0 0.0
      %952 = vmatprep.subr.mxu0 0.0
      %953 = vmatpush1.msra.mxu0 0.0
      %954 = vmatprep.subr.mxu0 0.0
      %955 = vmatpush1.msra.mxu0 0.0
      %956 = vmatprep.subr.mxu0 0.0
      %957 = vmatpush1.msra.mxu0 0.0
      %958 = vmatprep.subr.mxu0 0.0
      %959 = vmatpush1.msra.mxu0 0.0
      %960 = vmatprep.subr.mxu0 0.0
      %961 = vmatpush1.msra.mxu0 0.0
      %962 = vmatprep.subr.mxu0 0.0
      %963 = vmatpush1.msra.mxu0 0.0
      %964 = vmatprep.subr.mxu0 0.0
      %965 = vmatpush1.msra.mxu0 0.0
      %966 = vmatprep.subr.mxu0 0.0
      %967 = vmatpush1.msra.mxu0 0.0
      %968 = vmatprep.subr.mxu0 0.0
      %969 = vmatpush1.msra.mxu0 0.0
      %970 = vmatprep.subr.mxu0 0.0
      %971 = vmatpush1.msra.mxu0 0.0
      %972 = vmatprep.subr.mxu0 0.0
      %973 = vmatpush1.msra.mxu0 0.0
      %974 = vmatprep.mubr.f32.mxu0 0.0
      %975 = vmatmul.mubr.f32.gmra.mrb[0].mxu0 %v908
      %v976 = vpop.f32.mrb[0].mxu0
      %v977 = vadd.f32 %v904, %v976
      %v978 = vpop.f32.mrb[0].mxu0
      %979 = vdwg.mxu0
      %v980 = vxor.u32 %v977, 2147483648
      %v981 = vmul.f32 %v980, 1.442695
      %v982 = vpow.pop %v981
      %v983 = vadd.f32 %v982, 1.0
      %v984 = vrcp.pop %v983
      %v985 = vmul.f32 1.0, %v984
      %v986 = vld [vmem:[%s12] sm:$0xff]
      %v987 = vld [vmem:[%s12 + $0x8] sm:$0xff]
      %v988 = vld [vmem:[%s12 + $0x10] sm:$0xff]
      %v989 = vld [vmem:[%s12 + $0x18] sm:$0xff]
      %v990 = vld [vmem:[%s13] sm:$0x1]
      %v991 = vld [vmem:[%s14] sm:$0xff]
      %v992 = vld [vmem:[%s14 + $0x8] sm:$0xff]
      %v993 = vld [vmem:[%s14 + $0x10] sm:$0xff]
      %v994 = vld [vmem:[%s14 + $0x18] sm:$0xff]
      %v995 = vld [vmem:[%s15] sm:$0x1]
      %v996 = vld [vmem:[%s16] sm:$0xff]
      %v997 = vld [vmem:[%s16 + $0x8] sm:$0xff]
      %v998 = vld [vmem:[%s16 + $0x10] sm:$0xff]
      %v999 = vld [vmem:[%s16 + $0x18] sm:$0xff]
      %v1000 = vld [vmem:[%s17] sm:$0x1]
      %v1001 = vld [vmem:[%s6] sm:$0xff]
      %v1002 = vld [vmem:[%s6 + $0x8] sm:$0xff]
      %v1003 = vld [vmem:[%s6 + $0x10] sm:$0xff]
      %v1004 = vld [vmem:[%s6 + $0x18] sm:$0xff]
      %v1005 = vld [vmem:[%s7] sm:$0xff]
      %v1006 = vld [vmem:[%s7 + $0x8] sm:$0xff]
      %v1007 = vld [vmem:[%s7 + $0x10] sm:$0xff]
      %v1008 = vld [vmem:[%s7 + $0x18] sm:$0xff]
      %v1009 = vld [vmem:[%s8] sm:$0x1]
      %v1010 = vlaneseq
      %v1011 = vshrl.u32 %v1010, 7
      %v1012 = vsub.s32 0, %v1011
      %v1013 = vrot.slane %v985, %v1012
      %v1014 = vmul.f32 %v596, %v1013
      %v1015 = vmul.f32 %v597, %v1013
      %v1016 = vmul.f32 %v598, %v1013
      %v1017 = vmul.f32 %v599, %v1013
      %v1018 = vmul.f32 %v600, %v1013
      %v1019 = vmul.f32 %v601, %v1013
      %v1020 = vmul.f32 %v602, %v1013
      %v1021 = vmul.f32 %v603, %v1013
      %v1022 = vadd.f32 %v1014, %v596
      %v1023 = vadd.f32 %v1015, %v597
      %v1024 = vadd.f32 %v1016, %v598
      %v1025 = vadd.f32 %v1017, %v599
      %v1026 = vadd.f32 %v1018, %v600
      %v1027 = vadd.f32 %v1019, %v601
      %v1028 = vadd.f32 %v1020, %v602
      %v1029 = vadd.f32 %v1021, %v603
      %v1030 = vmul.f32 %v604, %v1013
      %v1031 = vmul.f32 %v605, %v1013
      %v1032 = vmul.f32 %v606, %v1013
      %v1033 = vmul.f32 %v607, %v1013
      %v1034 = vmul.f32 %v608, %v1013
      %v1035 = vmul.f32 %v609, %v1013
      %v1036 = vmul.f32 %v610, %v1013
      %v1037 = vmul.f32 %v611, %v1013
      %v1038 = vadd.f32 %v1030, %v604
      %v1039 = vadd.f32 %v1031, %v605
      %v1040 = vadd.f32 %v1032, %v606
      %v1041 = vadd.f32 %v1033, %v607
      %v1042 = vadd.f32 %v1034, %v608
      %v1043 = vadd.f32 %v1035, %v609
      %v1044 = vadd.f32 %v1036, %v610
      %v1045 = vadd.f32 %v1037, %v611
      %v1047 = vsel %vm684, %v1038, 0
      %v1050 = vsel %vm684, %v1039, 0
      %v1053 = vsel %vm684, %v1040, 0
      %v1056 = vsel %vm684, %v1041, 0
      %v1059 = vsel %vm684, %v1042, 0
      %v1062 = vsel %vm684, %v1043, 0
      %v1065 = vsel %vm684, %v1044, 0
      %v1068 = vsel %vm684, %v1045, 0
      %1070 = vmatprep.subr.mxu0 0.0
      %1071 = vmatpush1.msra.mxu0 %v1005
      %1072 = vmatprep.subr.mxu0 0.0
      %1073 = vmatpush1.msra.mxu0 %v1006
      %1074 = vmatprep.subr.mxu0 0.0
      %1075 = vmatpush1.msra.mxu0 %v1007
      %1076 = vmatprep.subr.mxu0 0.0
      %1077 = vmatpush1.msra.mxu0 %v1008
      %1078 = vmatprep.subr.mxu0 0.0
      %1079 = vmatpush1.msra.mxu0 0.0
      %1080 = vmatprep.subr.mxu0 0.0
      %1081 = vmatpush1.msra.mxu0 0.0
      %1082 = vmatprep.subr.mxu0 0.0
      %1083 = vmatpush1.msra.mxu0 0.0
      %1084 = vmatprep.subr.mxu0 0.0
      %1085 = vmatpush1.msra.mxu0 0.0
      %1086 = vmatprep.subr.mxu0 0.0
      %1087 = vmatpush1.msra.mxu0 0.0
      %1088 = vmatprep.subr.mxu0 0.0
      %1089 = vmatpush1.msra.mxu0 0.0
      %1090 = vmatprep.subr.mxu0 0.0
      %1091 = vmatpush1.msra.mxu0 0.0
      %1092 = vmatprep.subr.mxu0 0.0
      %1093 = vmatpush1.msra.mxu0 0.0
      %1094 = vmatprep.subr.mxu0 0.0
      %1095 = vmatpush1.msra.mxu0 0.0
      %1096 = vmatprep.subr.mxu0 0.0
      %1097 = vmatpush1.msra.mxu0 0.0
      %1098 = vmatprep.subr.mxu0 0.0
      %1099 = vmatpush1.msra.mxu0 0.0
      %1100 = vmatprep.subr.mxu0 0.0
      %1101 = vmatpush1.msra.mxu0 0.0
      %1102 = vmatprep.subr.mxu0 0.0
      %1103 = vmatpush1.msra.mxu0 0.0
      %1104 = vmatprep.subr.mxu0 0.0
      %1105 = vmatpush1.msra.mxu0 0.0
      %1106 = vmatprep.subr.mxu0 0.0
      %1107 = vmatpush1.msra.mxu0 0.0
      %1108 = vmatprep.subr.mxu0 0.0
      %1109 = vmatpush1.msra.mxu0 0.0
      %1110 = vmatprep.subr.mxu0 0.0
      %1111 = vmatpush1.msra.mxu0 0.0
      %1112 = vmatprep.subr.mxu0 0.0
      %1113 = vmatpush1.msra.mxu0 0.0
      %1114 = vmatprep.subr.mxu0 0.0
      %1115 = vmatpush1.msra.mxu0 0.0
      %1116 = vmatprep.subr.mxu0 0.0
      %1117 = vmatpush1.msra.mxu0 0.0
      %1118 = vmatprep.subr.mxu0 0.0
      %1119 = vmatpush1.msra.mxu0 0.0
      %1120 = vmatprep.subr.mxu0 0.0
      %1121 = vmatpush1.msra.mxu0 0.0
      %1122 = vmatprep.subr.mxu0 0.0
      %1123 = vmatpush1.msra.mxu0 0.0
      %1124 = vmatprep.subr.mxu0 0.0
      %1125 = vmatpush1.msra.mxu0 0.0
      %1126 = vmatprep.subr.mxu0 0.0
      %1127 = vmatpush1.msra.mxu0 0.0
      %1128 = vmatprep.subr.mxu0 0.0
      %1129 = vmatpush1.msra.mxu0 0.0
      %1130 = vmatprep.subr.mxu0 0.0
      %1131 = vmatpush1.msra.mxu0 0.0
      %1132 = vmatprep.subr.mxu0 0.0
      %1133 = vmatpush1.msra.mxu0 0.0
      %1134 = vmatprep.mubr.f32.mxu0 0.0
      %1135 = vmatmul.mubr.f32.gmra.mrb[0].mxu0 %v1047
      %v1136 = vpop.f32.mrb[0].mxu0
      %v1137 = vadd.f32 0.0, %v1136
      %v1138 = vpop.f32.mrb[0].mxu0
      %1139 = vmatprep.mubr.f32.mxu0 0.0
      %1140 = vmatmul.mubr.f32.gmra.mrb[0].mxu0 %v1050
      %v1141 = vpop.f32.mrb[0].mxu0
      %v1142 = vadd.f32 0.0, %v1141
      %v1143 = vpop.f32.mrb[0].mxu0
      %1144 = vmatprep.mubr.f32.mxu0 0.0
      %1145 = vmatmul.mubr.f32.gmra.mrb[0].mxu0 %v1053
      %v1146 = vpop.f32.mrb[0].mxu0
      %v1147 = vadd.f32 0.0, %v1146
      %v1148 = vpop.f32.mrb[0].mxu0
      %1149 = vmatprep.mubr.f32.mxu0 0.0
      %1150 = vmatmul.mubr.f32.gmra.mrb[0].mxu0 %v1056
      %v1151 = vpop.f32.mrb[0].mxu0
      %v1152 = vadd.f32 0.0, %v1151
      %v1153 = vpop.f32.mrb[0].mxu0
      %1154 = vmatprep.mubr.f32.mxu0 0.0
      %1155 = vmatmul.mubr.f32.gmra.mrb[0].mxu0 %v1059
      %v1156 = vpop.f32.mrb[0].mxu0
      %v1157 = vadd.f32 0.0, %v1156
      %v1158 = vpop.f32.mrb[0].mxu0
      %1159 = vmatprep.mubr.f32.mxu0 0.0
      %1160 = vmatmul.mubr.f32.gmra.mrb[0].mxu0 %v1062
      %v1161 = vpop.f32.mrb[0].mxu0
      %v1162 = vadd.f32 0.0, %v1161
      %v1163 = vpop.f32.mrb[0].mxu0
      %1164 = vmatprep.mubr.f32.mxu0 0.0
      %1165 = vmatmul.mubr.f32.gmra.mrb[0].mxu0 %v1065
      %v1166 = vpop.f32.mrb[0].mxu0
      %v1167 = vadd.f32 0.0, %v1166
      %v1168 = vpop.f32.mrb[0].mxu0
      %1169 = vmatprep.mubr.f32.mxu0 0.0
      %1170 = vmatmul.mubr.f32.gmra.mrb[0].mxu0 %v1068
      %v1171 = vpop.f32.mrb[0].mxu0
      %v1172 = vadd.f32 0.0, %v1171
      %v1173 = vpop.f32.mrb[0].mxu0
      %1174 = vdwg.mxu0
      %v1176 = vsel %vm684, %v1022, 0
      %v1179 = vsel %vm684, %v1023, 0
      %v1182 = vsel %vm684, %v1024, 0
      %v1185 = vsel %vm684, %v1025, 0
      %v1188 = vsel %vm684, %v1026, 0
      %v1191 = vsel %vm684, %v1027, 0
      %v1194 = vsel %vm684, %v1028, 0
      %v1197 = vsel %vm684, %v1029, 0
      %1199 = vmatprep.subr.mxu0 0.0
      %1200 = vmatpush1.msra.mxu0 %v1001
      %1201 = vmatprep.subr.mxu0 0.0
      %1202 = vmatpush1.msra.mxu0 %v1002
      %1203 = vmatprep.subr.mxu0 0.0
      %1204 = vmatpush1.msra.mxu0 %v1003
      %1205 = vmatprep.subr.mxu0 0.0
      %1206 = vmatpush1.msra.mxu0 %v1004
      %1207 = vmatprep.subr.mxu0 0.0
      %1208 = vmatpush1.msra.mxu0 0.0
      %1209 = vmatprep.subr.mxu0 0.0
      %1210 = vmatpush1.msra.mxu0 0.0
      %1211 = vmatprep.subr.mxu0 0.0
      %1212 = vmatpush1.msra.mxu0 0.0
      %1213 = vmatprep.subr.mxu0 0.0
      %1214 = vmatpush1.msra.mxu0 0.0
      %1215 = vmatprep.subr.mxu0 0.0
      %1216 = vmatpush1.msra.mxu0 0.0
      %1217 = vmatprep.subr.mxu0 0.0
      %1218 = vmatpush1.msra.mxu0 0.0
      %1219 = vmatprep.subr.mxu0 0.0
      %1220 = vmatpush1.msra.mxu0 0.0
      %1221 = vmatprep.subr.mxu0 0.0
      %1222 = vmatpush1.msra.mxu0 0.0
      %1223 = vmatprep.subr.mxu0 0.0
      %1224 = vmatpush1.msra.mxu0 0.0
      %1225 = vmatprep.subr.mxu0 0.0
      %1226 = vmatpush1.msra.mxu0 0.0
      %1227 = vmatprep.subr.mxu0 0.0
      %1228 = vmatpush1.msra.mxu0 0.0
      %1229 = vmatprep.subr.mxu0 0.0
      %1230 = vmatpush1.msra.mxu0 0.0
      %1231 = vmatprep.subr.mxu0 0.0
      %1232 = vmatpush1.msra.mxu0 0.0
      %1233 = vmatprep.subr.mxu0 0.0
      %1234 = vmatpush1.msra.mxu0 0.0
      %1235 = vmatprep.subr.mxu0 0.0
      %1236 = vmatpush1.msra.mxu0 0.0
      %1237 = vmatprep.subr.mxu0 0.0
      %1238 = vmatpush1.msra.mxu0 0.0
      %1239 = vmatprep.subr.mxu0 0.0
      %1240 = vmatpush1.msra.mxu0 0.0
      %1241 = vmatprep.subr.mxu0 0.0
      %1242 = vmatpush1.msra.mxu0 0.0
      %1243 = vmatprep.subr.mxu0 0.0
      %1244 = vmatpush1.msra.mxu0 0.0
      %1245 = vmatprep.subr.mxu0 0.0
      %1246 = vmatpush1.msra.mxu0 0.0
      %1247 = vmatprep.subr.mxu0 0.0
      %1248 = vmatpush1.msra.mxu0 0.0
      %1249 = vmatprep.subr.mxu0 0.0
      %1250 = vmatpush1.msra.mxu0 0.0
      %1251 = vmatprep.subr.mxu0 0.0
      %1252 = vmatpush1.msra.mxu0 0.0
      %1253 = vmatprep.subr.mxu0 0.0
      %1254 = vmatpush1.msra.mxu0 0.0
      %1255 = vmatprep.subr.mxu0 0.0
      %1256 = vmatpush1.msra.mxu0 0.0
      %1257 = vmatprep.subr.mxu0 0.0
      %1258 = vmatpush1.msra.mxu0 0.0
      %1259 = vmatprep.subr.mxu0 0.0
      %1260 = vmatpush1.msra.mxu0 0.0
      %1261 = vmatprep.subr.mxu0 0.0
      %1262 = vmatpush1.msra.mxu0 0.0
      %1263 = vmatprep.mubr.f32.mxu0 0.0
      %1264 = vmatmul.mubr.f32.gmra.mrb[0].mxu0 %v1176
      %v1265 = vpop.f32.mrb[0].mxu0
      %v1266 = vadd.f32 %v1137, %v1265
      %v1267 = vpop.f32.mrb[0].mxu0
      %1268 = vmatprep.mubr.f32.mxu0 0.0
      %1269 = vmatmul.mubr.f32.gmra.mrb[0].mxu0 %v1179
      %v1270 = vpop.f32.mrb[0].mxu0
      %v1271 = vadd.f32 %v1142, %v1270
      %v1272 = vpop.f32.mrb[0].mxu0
      %1273 = vmatprep.mubr.f32.mxu0 0.0
      %1274 = vmatmul.mubr.f32.gmra.mrb[0].mxu0 %v1182
      %v1275 = vpop.f32.mrb[0].mxu0
      %v1276 = vadd.f32 %v1147, %v1275
      %v1277 = vpop.f32.mrb[0].mxu0
      %1278 = vmatprep.mubr.f32.mxu0 0.0
      %1279 = vmatmul.mubr.f32.gmra.mrb[0].mxu0 %v1185
      %v1280 = vpop.f32.mrb[0].mxu0
      %v1281 = vadd.f32 %v1152, %v1280
      %v1282 = vpop.f32.mrb[0].mxu0
      %1283 = vmatprep.mubr.f32.mxu0 0.0
      %1284 = vmatmul.mubr.f32.gmra.mrb[0].mxu0 %v1188
      %v1285 = vpop.f32.mrb[0].mxu0
      %v1286 = vadd.f32 %v1157, %v1285
      %v1287 = vpop.f32.mrb[0].mxu0
      %1288 = vmatprep.mubr.f32.mxu0 0.0
      %1289 = vmatmul.mubr.f32.gmra.mrb[0].mxu0 %v1191
      %v1290 = vpop.f32.mrb[0].mxu0
      %v1291 = vadd.f32 %v1162, %v1290
      %v1292 = vpop.f32.mrb[0].mxu0
      %1293 = vmatprep.mubr.f32.mxu0 0.0
      %1294 = vmatmul.mubr.f32.gmra.mrb[0].mxu0 %v1194
      %v1295 = vpop.f32.mrb[0].mxu0
      %v1296 = vadd.f32 %v1167, %v1295
      %v1297 = vpop.f32.mrb[0].mxu0
      %1298 = vmatprep.mubr.f32.mxu0 0.0
      %1299 = vmatmul.mubr.f32.gmra.mrb[0].mxu0 %v1197
      %v1300 = vpop.f32.mrb[0].mxu0
      %v1301 = vadd.f32 %v1172, %v1300
      %v1302 = vpop.f32.mrb[0].mxu0
      %1303 = vdwg.mxu0
      %v1305 = vlaneseq
      %v1306 = vshrl.u32 %v1305, 7
      %v1307 = vsub.s32 0, %v1306
      %v1308 = vrot.slane %v1009, %v1307
      %v1310 = vadd.f32 %v1266, %v1308
      %v1311 = vadd.f32 %v1271, %v1308
      %v1312 = vadd.f32 %v1276, %v1308
      %v1313 = vadd.f32 %v1281, %v1308
      %v1314 = vadd.f32 %v1286, %v1308
      %v1315 = vadd.f32 %v1291, %v1308
      %v1316 = vadd.f32 %v1296, %v1308
      %v1317 = vadd.f32 %v1301, %v1308
      %v1318 = vmul.f32 %v1310, %v1310
      %v1319 = vmul.f32 %v1311, %v1311
      %v1320 = vmul.f32 %v1312, %v1312
      %v1321 = vmul.f32 %v1313, %v1313
      %v1322 = vmul.f32 %v1314, %v1314
      %v1323 = vmul.f32 %v1315, %v1315
      %v1324 = vmul.f32 %v1316, %v1316
      %v1325 = vmul.f32 %v1317, %v1317
      %v1326 = vmul.f32 %v1310, %v1318
      %v1327 = vmul.f32 %v1311, %v1319
      %v1328 = vmul.f32 %v1312, %v1320
      %v1329 = vmul.f32 %v1313, %v1321
      %v1330 = vmul.f32 %v1314, %v1322
      %v1331 = vmul.f32 %v1315, %v1323
      %v1332 = vmul.f32 %v1316, %v1324
      %v1333 = vmul.f32 %v1317, %v1325
      %v1334 = vmul.f32 %v1326, 0.044715
      %v1335 = vmul.f32 %v1327, 0.044715
      %v1336 = vmul.f32 %v1328, 0.044715
      %v1337 = vmul.f32 %v1329, 0.044715
      %v1338 = vmul.f32 %v1330, 0.044715
      %v1339 = vmul.f32 %v1331, 0.044715
      %v1340 = vmul.f32 %v1332, 0.044715
      %v1341 = vmul.f32 %v1333, 0.044715
      %v1342 = vadd.f32 %v1310, %v1334
      %v1343 = vadd.f32 %v1311, %v1335
      %v1344 = vadd.f32 %v1312, %v1336
      %v1345 = vadd.f32 %v1313, %v1337
      %v1346 = vadd.f32 %v1314, %v1338
      %v1347 = vadd.f32 %v1315, %v1339
      %v1348 = vadd.f32 %v1316, %v1340
      %v1349 = vadd.f32 %v1317, %v1341
      %v1350 = vmul.f32 %v1342, 0.7978846
      %v1351 = vmul.f32 %v1343, 0.7978846
      %v1352 = vmul.f32 %v1344, 0.7978846
      %v1353 = vmul.f32 %v1345, 0.7978846
      %v1354 = vmul.f32 %v1346, 0.7978846
      %v1355 = vmul.f32 %v1347, 0.7978846
      %v1356 = vmul.f32 %v1348, 0.7978846
      %v1357 = vmul.f32 %v1349, 0.7978846
      %v1358 = vtanh.pop %v1350
      %v1359 = vtanh.pop %v1351
      %v1360 = vtanh.pop %v1352
      %v1361 = vtanh.pop %v1353
      %v1362 = vtanh.pop %v1354
      %v1363 = vtanh.pop %v1355
      %v1364 = vtanh.pop %v1356
      %v1365 = vtanh.pop %v1357
      %v1366 = vadd.f32 %v1358, 1.0
      %v1367 = vadd.f32 %v1359, 1.0
      %v1368 = vadd.f32 %v1360, 1.0
      %v1369 = vadd.f32 %v1361, 1.0
      %v1370 = vadd.f32 %v1362, 1.0
      %v1371 = vadd.f32 %v1363, 1.0
      %v1372 = vadd.f32 %v1364, 1.0
      %v1373 = vadd.f32 %v1365, 1.0
      %v1374 = vmul.f32 %v1366, 0.5
      %v1375 = vmul.f32 %v1367, 0.5
      %v1376 = vmul.f32 %v1368, 0.5
      %v1377 = vmul.f32 %v1369, 0.5
      %v1378 = vmul.f32 %v1370, 0.5
      %v1379 = vmul.f32 %v1371, 0.5
      %v1380 = vmul.f32 %v1372, 0.5
      %v1381 = vmul.f32 %v1373, 0.5
      %v1382 = vmul.f32 %v1310, %v1374
      %v1383 = vmul.f32 %v1311, %v1375
      %v1384 = vmul.f32 %v1312, %v1376
      %v1385 = vmul.f32 %v1313, %v1377
      %v1386 = vmul.f32 %v1314, %v1378
      %v1387 = vmul.f32 %v1315, %v1379
      %v1388 = vmul.f32 %v1316, %v1380
      %v1389 = vmul.f32 %v1317, %v1381
      %v1390 = vadd.f32 %v1382, %v1022
      %v1391 = vadd.f32 %v1383, %v1023
      %v1392 = vadd.f32 %v1384, %v1024
      %v1393 = vadd.f32 %v1385, %v1025
      %v1394 = vadd.f32 %v1386, %v1026
      %v1395 = vadd.f32 %v1387, %v1027
      %v1396 = vadd.f32 %v1388, %v1028
      %v1397 = vadd.f32 %v1389, %v1029
      %1398 = vrot.lane.b32.xlu0 %v1038, 32
      %v1399 = vpop.permute.xlu0 %1398
      %1400 = vrot.lane.b32.xlu0 %v1039, 32
      %v1401 = vpop.permute.xlu0 %1400
      %1402 = vrot.lane.b32.xlu0 %v1040, 32
      %v1403 = vpop.permute.xlu0 %1402
      %1404 = vrot.lane.b32.xlu0 %v1041, 32
      %v1405 = vpop.permute.xlu0 %1404
      %1406 = vrot.lane.b32.xlu0 %v1042, 32
      %v1407 = vpop.permute.xlu0 %1406
      %1408 = vrot.lane.b32.xlu0 %v1043, 32
      %v1409 = vpop.permute.xlu0 %1408
      %1410 = vrot.lane.b32.xlu0 %v1044, 32
      %v1411 = vpop.permute.xlu0 %1410
      %1412 = vrot.lane.b32.xlu0 %v1045, 32
      %v1413 = vpop.permute.xlu0 %1412
      %v1422 = vadd.f32 %v1382, %v1399
      %v1423 = vadd.f32 %v1383, %v1401
      %v1424 = vadd.f32 %v1384, %v1403
      %v1425 = vadd.f32 %v1385, %v1405
      %v1426 = vadd.f32 %v1386, %v1407
      %v1427 = vadd.f32 %v1387, %v1409
      %v1428 = vadd.f32 %v1388, %v1411
      %v1429 = vadd.f32 %v1389, %v1413
      %v1431 = vlaneseq
      %v1432 = vshrl.u32 %v1431, 7
      %v1433 = vsub.s32 0, %v1432
      %v1434 = vrot.slane %v990, %v1433
      %v1437 = vsel %vm684, %v1390, 0
      %v1440 = vsel %vm684, %v1391, 0
      %v1443 = vsel %vm684, %v1392, 0
      %v1446 = vsel %vm684, %v1393, 0
      %v1449 = vsel %vm684, %v1394, 0
      %v1452 = vsel %vm684, %v1395, 0
      %v1455 = vsel %vm684, %v1396, 0
      %v1458 = vsel %vm684, %v1397, 0
      %1460 = vmatprep.subr.mxu0 0.0
      %1461 = vmatpush1.msra.mxu0 %v986
      %1462 = vmatprep.subr.mxu0 0.0
      %1463 = vmatpush1.msra.mxu0 %v987
      %1464 = vmatprep.subr.mxu0 0.0
      %1465 = vmatpush1.msra.mxu0 %v988
      %1466 = vmatprep.subr.mxu0 0.0
      %1467 = vmatpush1.msra.mxu0 %v989
      %1468 = vmatprep.subr.mxu0 0.0
      %1469 = vmatpush1.msra.mxu0 0.0
      %1470 = vmatprep.subr.mxu0 0.0
      %1471 = vmatpush1.msra.mxu0 0.0
      %1472 = vmatprep.subr.mxu0 0.0
      %1473 = vmatpush1.msra.mxu0 0.0
      %1474 = vmatprep.subr.mxu0 0.0
      %1475 = vmatpush1.msra.mxu0 0.0
      %1476 = vmatprep.subr.mxu0 0.0
      %1477 = vmatpush1.msra.mxu0 0.0
      %1478 = vmatprep.subr.mxu0 0.0
      %1479 = vmatpush1.msra.mxu0 0.0
      %1480 = vmatprep.subr.mxu0 0.0
      %1481 = vmatpush1.msra.mxu0 0.0
      %1482 = vmatprep.subr.mxu0 0.0
      %1483 = vmatpush1.msra.mxu0 0.0
      %1484 = vmatprep.subr.mxu0 0.0
      %1485 = vmatpush1.msra.mxu0 0.0
      %1486 = vmatprep.subr.mxu0 0.0
      %1487 = vmatpush1.msra.mxu0 0.0
      %1488 = vmatprep.subr.mxu0 0.0
      %1489 = vmatpush1.msra.mxu0 0.0
      %1490 = vmatprep.subr.mxu0 0.0
      %1491 = vmatpush1.msra.mxu0 0.0
      %1492 = vmatprep.subr.mxu0 0.0
      %1493 = vmatpush1.msra.mxu0 0.0
      %1494 = vmatprep.subr.mxu0 0.0
      %1495 = vmatpush1.msra.mxu0 0.0
      %1496 = vmatprep.subr.mxu0 0.0
      %1497 = vmatpush1.msra.mxu0 0.0
      %1498 = vmatprep.subr.mxu0 0.0
      %1499 = vmatpush1.msra.mxu0 0.0
      %1500 = vmatprep.subr.mxu0 0.0
      %1501 = vmatpush1.msra.mxu0 0.0
      %1502 = vmatprep.subr.mxu0 0.0
      %1503 = vmatpush1.msra.mxu0 0.0
      %1504 = vmatprep.subr.mxu0 0.0
      %1505 = vmatpush1.msra.mxu0 0.0
      %1506 = vmatprep.subr.mxu0 0.0
      %1507 = vmatpush1.msra.mxu0 0.0
      %1508 = vmatprep.subr.mxu0 0.0
      %1509 = vmatpush1.msra.mxu0 0.0
      %1510 = vmatprep.subr.mxu0 0.0
      %1511 = vmatpush1.msra.mxu0 0.0
      %1512 = vmatprep.subr.mxu0 0.0
      %1513 = vmatpush1.msra.mxu0 0.0
      %1514 = vmatprep.subr.mxu0 0.0
      %1515 = vmatpush1.msra.mxu0 0.0
      %1516 = vmatprep.subr.mxu0 0.0
      %1517 = vmatpush1.msra.mxu0 0.0
      %1518 = vmatprep.subr.mxu0 0.0
      %1519 = vmatpush1.msra.mxu0 0.0
      %1520 = vmatprep.subr.mxu0 0.0
      %1521 = vmatpush1.msra.mxu0 0.0
      %1522 = vmatprep.subr.mxu0 0.0
      %1523 = vmatpush1.msra.mxu0 0.0
      %1524 = vmatprep.mubr.f32.mxu0 0.0
      %1525 = vmatmul.mubr.f32.gmra.mrb[0].mxu0 %v1437
      %v1526 = vpop.f32.mrb[0].mxu0
      %v1527 = vadd.f32 %v1434, %v1526
      %v1528 = vpop.f32.mrb[0].mxu0
      %1529 = vmatprep.mubr.f32.mxu0 0.0
      %1530 = vmatmul.mubr.f32.gmra.mrb[0].mxu0 %v1440
      %v1531 = vpop.f32.mrb[0].mxu0
      %v1532 = vadd.f32 %v1434, %v1531
      %v1533 = vpop.f32.mrb[0].mxu0
      %1534 = vmatprep.mubr.f32.mxu0 0.0
      %1535 = vmatmul.mubr.f32.gmra.mrb[0].mxu0 %v1443
      %v1536 = vpop.f32.mrb[0].mxu0
      %v1537 = vadd.f32 %v1434, %v1536
      %v1538 = vpop.f32.mrb[0].mxu0
      %1539 = vmatprep.mubr.f32.mxu0 0.0
      %1540 = vmatmul.mubr.f32.gmra.mrb[0].mxu0 %v1446
      %v1541 = vpop.f32.mrb[0].mxu0
      %v1542 = vadd.f32 %v1434, %v1541
      %v1543 = vpop.f32.mrb[0].mxu0
      %1544 = vmatprep.mubr.f32.mxu0 0.0
      %1545 = vmatmul.mubr.f32.gmra.mrb[0].mxu0 %v1449
      %v1546 = vpop.f32.mrb[0].mxu0
      %v1547 = vadd.f32 %v1434, %v1546
      %v1548 = vpop.f32.mrb[0].mxu0
      %1549 = vmatprep.mubr.f32.mxu0 0.0
      %1550 = vmatmul.mubr.f32.gmra.mrb[0].mxu0 %v1452
      %v1551 = vpop.f32.mrb[0].mxu0
      %v1552 = vadd.f32 %v1434, %v1551
      %v1553 = vpop.f32.mrb[0].mxu0
      %1554 = vmatprep.mubr.f32.mxu0 0.0
      %1555 = vmatmul.mubr.f32.gmra.mrb[0].mxu0 %v1455
      %v1556 = vpop.f32.mrb[0].mxu0
      %v1557 = vadd.f32 %v1434, %v1556
      %v1558 = vpop.f32.mrb[0].mxu0
      %1559 = vmatprep.mubr.f32.mxu0 0.0
      %1560 = vmatmul.mubr.f32.gmra.mrb[0].mxu0 %v1458
      %v1561 = vpop.f32.mrb[0].mxu0
      %v1562 = vadd.f32 %v1434, %v1561
      %v1563 = vpop.f32.mrb[0].mxu0
      %1564 = vdwg.mxu0
      %v1565 = vmul.f32 %v1527, 0.35355338
      %v1566 = vmul.f32 %v1532, 0.35355338
      %v1567 = vmul.f32 %v1537, 0.35355338
      %v1568 = vmul.f32 %v1542, 0.35355338
      %v1569 = vmul.f32 %v1547, 0.35355338
      %v1570 = vmul.f32 %v1552, 0.35355338
      %v1571 = vmul.f32 %v1557, 0.35355338
      %v1572 = vmul.f32 %v1562, 0.35355338
      %v1574 = vlaneseq
      %v1575 = vshrl.u32 %v1574, 7
      %v1576 = vsub.s32 0, %v1575
      %v1577 = vrot.slane %v995, %v1576
      %1587 = vrot.lane.b32.xlu0 %v1422, 96
      %v1588 = vpop.permute.xlu0 %1587
      %1589 = vrot.lane.b32.xlu0 %v1423, 96
      %v1590 = vpop.permute.xlu0 %1589
      %1591 = vrot.lane.b32.xlu0 %v1424, 96
      %v1592 = vpop.permute.xlu0 %1591
      %1593 = vrot.lane.b32.xlu0 %v1425, 96
      %v1594 = vpop.permute.xlu0 %1593
      %1595 = vrot.lane.b32.xlu0 %v1426, 96
      %v1596 = vpop.permute.xlu0 %1595
      %1597 = vrot.lane.b32.xlu0 %v1427, 96
      %v1598 = vpop.permute.xlu0 %1597
      %1599 = vrot.lane.b32.xlu0 %v1428, 96
      %v1600 = vpop.permute.xlu0 %1599
      %1601 = vrot.lane.b32.xlu0 %v1429, 96
      %v1602 = vpop.permute.xlu0 %1601
      %v1603 = vsel %vm684, %v1588, 0
      %v1605 = vsel %vm684, %v1590, 0
      %v1607 = vsel %vm684, %v1592, 0
      %v1609 = vsel %vm684, %v1594, 0
      %v1611 = vsel %vm684, %v1596, 0
      %v1613 = vsel %vm684, %v1598, 0
      %v1615 = vsel %vm684, %v1600, 0
      %v1617 = vsel %vm684, %v1602, 0
      %1619 = vmatprep.subr.mxu0 0.0
      %1620 = vmatpush1.msra.mxu0 %v991
      %1621 = vmatprep.subr.mxu0 0.0
      %1622 = vmatpush1.msra.mxu0 %v992
      %1623 = vmatprep.subr.mxu0 0.0
      %1624 = vmatpush1.msra.mxu0 %v993
      %1625 = vmatprep.subr.mxu0 0.0
      %1626 = vmatpush1.msra.mxu0 %v994
      %1627 = vmatprep.subr.mxu0 0.0
      %1628 = vmatpush1.msra.mxu0 0.0
      %1629 = vmatprep.subr.mxu0 0.0
      %1630 = vmatpush1.msra.mxu0 0.0
      %1631 = vmatprep.subr.mxu0 0.0
      %1632 = vmatpush1.msra.mxu0 0.0
      %1633 = vmatprep.subr.mxu0 0.0
      %1634 = vmatpush1.msra.mxu0 0.0
      %1635 = vmatprep.subr.mxu0 0.0
      %1636 = vmatpush1.msra.mxu0 0.0
      %1637 = vmatprep.subr.mxu0 0.0
      %1638 = vmatpush1.msra.mxu0 0.0
      %1639 = vmatprep.subr.mxu0 0.0
      %1640 = vmatpush1.msra.mxu0 0.0
      %1641 = vmatprep.subr.mxu0 0.0
      %1642 = vmatpush1.msra.mxu0 0.0
      %1643 = vmatprep.subr.mxu0 0.0
      %1644 = vmatpush1.msra.mxu0 0.0
      %1645 = vmatprep.subr.mxu0 0.0
      %1646 = vmatpush1.msra.mxu0 0.0
      %1647 = vmatprep.subr.mxu0 0.0
      %1648 = vmatpush1.msra.mxu0 0.0
      %1649 = vmatprep.subr.mxu0 0.0
      %1650 = vmatpush1.msra.mxu0 0.0
      %1651 = vmatprep.subr.mxu0 0.0
      %1652 = vmatpush1.msra.mxu0 0.0
      %1653 = vmatprep.subr.mxu0 0.0
      %1654 = vmatpush1.msra.mxu0 0.0
      %1655 = vmatprep.subr.mxu0 0.0
      %1656 = vmatpush1.msra.mxu0 0.0
      %1657 = vmatprep.subr.mxu0 0.0
      %1658 = vmatpush1.msra.mxu0 0.0
      %1659 = vmatprep.subr.mxu0 0.0
      %1660 = vmatpush1.msra.mxu0 0.0
      %1661 = vmatprep.subr.mxu0 0.0
      %1662 = vmatpush1.msra.mxu0 0.0
      %1663 = vmatprep.subr.mxu0 0.0
      %1664 = vmatpush1.msra.mxu0 0.0
      %1665 = vmatprep.subr.mxu0 0.0
      %1666 = vmatpush1.msra.mxu0 0.0
      %1667 = vmatprep.subr.mxu0 0.0
      %1668 = vmatpush1.msra.mxu0 0.0
      %1669 = vmatprep.subr.mxu0 0.0
      %1670 = vmatpush1.msra.mxu0 0.0
      %1671 = vmatprep.subr.mxu0 0.0
      %1672 = vmatpush1.msra.mxu0 0.0
      %1673 = vmatprep.subr.mxu0 0.0
      %1674 = vmatpush1.msra.mxu0 0.0
      %1675 = vmatprep.subr.mxu0 0.0
      %1676 = vmatpush1.msra.mxu0 0.0
      %1677 = vmatprep.subr.mxu0 0.0
      %1678 = vmatpush1.msra.mxu0 0.0
      %1679 = vmatprep.subr.mxu0 0.0
      %1680 = vmatpush1.msra.mxu0 0.0
      %1681 = vmatprep.subr.mxu0 0.0
      %1682 = vmatpush1.msra.mxu0 0.0
      %1683 = vmatprep.mubr.f32.mxu0 0.0
      %1684 = vmatmul.mubr.f32.gmra.mrb[0].mxu0 %v1603
      %v1685 = vpop.f32.mrb[0].mxu0
      %v1686 = vadd.f32 %v1577, %v1685
      %v1687 = vpop.f32.mrb[0].mxu0
      %1688 = vmatprep.mubr.f32.mxu0 0.0
      %1689 = vmatmul.mubr.f32.gmra.mrb[0].mxu0 %v1605
      %v1690 = vpop.f32.mrb[0].mxu0
      %v1691 = vadd.f32 %v1577, %v1690
      %v1692 = vpop.f32.mrb[0].mxu0
      %1693 = vmatprep.mubr.f32.mxu0 0.0
      %1694 = vmatmul.mubr.f32.gmra.mrb[0].mxu0 %v1607
      %v1695 = vpop.f32.mrb[0].mxu0
      %v1696 = vadd.f32 %v1577, %v1695
      %v1697 = vpop.f32.mrb[0].mxu0
      %1698 = vmatprep.mubr.f32.mxu0 0.0
      %1699 = vmatmul.mubr.f32.gmra.mrb[0].mxu0 %v1609
      %v1700 = vpop.f32.mrb[0].mxu0
      %v1701 = vadd.f32 %v1577, %v1700
      %v1702 = vpop.f32.mrb[0].mxu0
      %1703 = vmatprep.mubr.f32.mxu0 0.0
      %1704 = vmatmul.mubr.f32.gmra.mrb[0].mxu0 %v1611
      %v1705 = vpop.f32.mrb[0].mxu0
      %v1706 = vadd.f32 %v1577, %v1705
      %v1707 = vpop.f32.mrb[0].mxu0
      %1708 = vmatprep.mubr.f32.mxu0 0.0
      %1709 = vmatmul.mubr.f32.gmra.mrb[0].mxu0 %v1613
      %v1710 = vpop.f32.mrb[0].mxu0
      %v1711 = vadd.f32 %v1577, %v1710
      %v1712 = vpop.f32.mrb[0].mxu0
      %1713 = vmatprep.mubr.f32.mxu0 0.0
      %1714 = vmatmul.mubr.f32.gmra.mrb[0].mxu0 %v1615
      %v1715 = vpop.f32.mrb[0].mxu0
      %v1716 = vadd.f32 %v1577, %v1715
      %v1717 = vpop.f32.mrb[0].mxu0
      %1718 = vmatprep.mubr.f32.mxu0 0.0
      %1719 = vmatmul.mubr.f32.gmra.mrb[0].mxu0 %v1617
      %v1720 = vpop.f32.mrb[0].mxu0
      %v1721 = vadd.f32 %v1577, %v1720
      %v1722 = vpop.f32.mrb[0].mxu0
      %1723 = vdwg.mxu0
      %v1725 = vsel %vm906, %v1565, 0
      %v1728 = vsel %vm906, %v1566, 0
      %v1731 = vsel %vm906, %v1567, 0
      %v1734 = vsel %vm906, %v1568, 0
      %v1737 = vsel %vm906, %v1569, 0
      %v1740 = vsel %vm906, %v1570, 0
      %v1743 = vsel %vm906, %v1571, 0
      %v1746 = vsel %vm906, %v1572, 0
      %v1749 = vsel %vm906, %v1686, 0
      %v1752 = vsel %vm906, %v1691, 0
      %v1755 = vsel %vm906, %v1696, 0
      %v1758 = vsel %vm906, %v1701, 0
      %v1761 = vsel %vm906, %v1706, 0
      %v1764 = vsel %vm906, %v1711, 0
      %v1767 = vsel %vm906, %v1716, 0
      %v1770 = vsel %vm906, %v1721, 0
      %1772 = vmatprep.subr.mxu0 0.0
      %1773 = vmatpush1.xpose.msra.mxu0 %v1749
      %1774 = vmatprep.subr.mxu0 0.0
      %1775 = vmatpush1.xpose.msra.mxu0 %v1752
      %1776 = vmatprep.subr.mxu0 0.0
      %1777 = vmatpush1.xpose.msra.mxu0 %v1755
      %1778 = vmatprep.subr.mxu0 0.0
      %1779 = vmatpush1.xpose.msra.mxu0 %v1758
      %1780 = vmatprep.subr.mxu0 0.0
      %1781 = vmatpush1.xpose.msra.mxu0 %v1761
      %1782 = vmatprep.subr.mxu0 0.0
      %1783 = vmatpush1.xpose.msra.mxu0 %v1764
      %1784 = vmatprep.subr.mxu0 0.0
      %1785 = vmatpush1.xpose.msra.mxu0 %v1767
      %1786 = vmatprep.subr.mxu0 0.0
      %1787 = vmatpush1.xpose.msra.mxu0 %v1770
      %1788 = vmatprep.subr.mxu0 0.0
      %1789 = vmatpush1.xpose.msra.mxu0 0.0
      %1790 = vmatprep.subr.mxu0 0.0
      %1791 = vmatpush1.xpose.msra.mxu0 0.0
      %1792 = vmatprep.subr.mxu0 0.0
      %1793 = vmatpush1.xpose.msra.mxu0 0.0
      %1794 = vmatprep.subr.mxu0 0.0
      %1795 = vmatpush1.xpose.msra.mxu0 0.0
      %1796 = vmatprep.subr.mxu0 0.0
      %1797 = vmatpush1.xpose.msra.mxu0 0.0
      %1798 = vmatprep.subr.mxu0 0.0
      %1799 = vmatpush1.xpose.msra.mxu0 0.0
      %1800 = vmatprep.subr.mxu0 0.0
      %1801 = vmatpush1.xpose.msra.mxu0 0.0
      %1802 = vmatprep.subr.mxu0 0.0
      %1803 = vmatpush1.xpose.msra.mxu0 0.0
      %1804 = vmatprep.subr.mxu0 0.0
      %1805 = vmatpush1.xpose.msra.mxu0 0.0
      %1806 = vmatprep.subr.mxu0 0.0
      %1807 = vmatpush1.xpose.msra.mxu0 0.0
      %1808 = vmatprep.subr.mxu0 0.0
      %1809 = vmatpush1.xpose.msra.mxu0 0.0
      %1810 = vmatprep.subr.mxu0 0.0
      %1811 = vmatpush1.xpose.msra.mxu0 0.0
      %1812 = vmatprep.subr.mxu0 0.0
      %1813 = vmatpush1.xpose.msra.mxu0 0.0
      %1814 = vmatprep.subr.mxu0 0.0
      %1815 = vmatpush1.xpose.msra.mxu0 0.0
      %1816 = vmatprep.subr.mxu0 0.0
      %1817 = vmatpush1.xpose.msra.mxu0 0.0
      %1818 = vmatprep.subr.mxu0 0.0
      %1819 = vmatpush1.xpose.msra.mxu0 0.0
      %1820 = vmatprep.subr.mxu0 0.0
      %1821 = vmatpush1.xpose.msra.mxu0 0.0
      %1822 = vmatprep.subr.mxu0 0.0
      %1823 = vmatpush1.xpose.msra.mxu0 0.0
      %1824 = vmatprep.subr.mxu0 0.0
      %1825 = vmatpush1.xpose.msra.mxu0 0.0
      %1826 = vmatprep.subr.mxu0 0.0
      %1827 = vmatpush1.xpose.msra.mxu0 0.0
      %1828 = vmatprep.subr.mxu0 0.0
      %1829 = vmatpush1.xpose.msra.mxu0 0.0
      %1830 = vmatprep.subr.mxu0 0.0
      %1831 = vmatpush1.xpose.msra.mxu0 0.0
      %1832 = vmatprep.subr.mxu0 0.0
      %1833 = vmatpush1.xpose.msra.mxu0 0.0
      %1834 = vmatprep.subr.mxu0 0.0
      %1835 = vmatpush1.xpose.msra.mxu0 0.0
      %1836 = vmatprep.mubr.f32.mxu0 0.0
      %1837 = vmatmul.mubr.f32.gmra.mrb[0].mxu0 %v1725
      %v1838 = vpop.f32.mrb[0].mxu0
      %v1839 = vadd.f32 0.0, %v1838
      %v1840 = vpop.f32.mrb[0].mxu0
      %1841 = vmatprep.mubr.f32.mxu0 0.0
      %1842 = vmatmul.mubr.f32.gmra.mrb[0].mxu0 %v1728
      %v1843 = vpop.f32.mrb[0].mxu0
      %v1844 = vadd.f32 0.0, %v1843
      %v1845 = vpop.f32.mrb[0].mxu0
      %1846 = vmatprep.mubr.f32.mxu0 0.0
      %1847 = vmatmul.mubr.f32.gmra.mrb[0].mxu0 %v1731
      %v1848 = vpop.f32.mrb[0].mxu0
      %v1849 = vadd.f32 0.0, %v1848
      %v1850 = vpop.f32.mrb[0].mxu0
      %1851 = vmatprep.mubr.f32.mxu0 0.0
      %1852 = vmatmul.mubr.f32.gmra.mrb[0].mxu0 %v1734
      %v1853 = vpop.f32.mrb[0].mxu0
      %v1854 = vadd.f32 0.0, %v1853
      %v1855 = vpop.f32.mrb[0].mxu0
      %1856 = vmatprep.mubr.f32.mxu0 0.0
      %1857 = vmatmul.mubr.f32.gmra.mrb[0].mxu0 %v1737
      %v1858 = vpop.f32.mrb[0].mxu0
      %v1859 = vadd.f32 0.0, %v1858
      %v1860 = vpop.f32.mrb[0].mxu0
      %1861 = vmatprep.mubr.f32.mxu0 0.0
      %1862 = vmatmul.mubr.f32.gmra.mrb[0].mxu0 %v1740
      %v1863 = vpop.f32.mrb[0].mxu0
      %v1864 = vadd.f32 0.0, %v1863
      %v1865 = vpop.f32.mrb[0].mxu0
      %1866 = vmatprep.mubr.f32.mxu0 0.0
      %1867 = vmatmul.mubr.f32.gmra.mrb[0].mxu0 %v1743
      %v1868 = vpop.f32.mrb[0].mxu0
      %v1869 = vadd.f32 0.0, %v1868
      %v1870 = vpop.f32.mrb[0].mxu0
      %1871 = vmatprep.mubr.f32.mxu0 0.0
      %1872 = vmatmul.mubr.f32.gmra.mrb[0].mxu0 %v1746
      %v1873 = vpop.f32.mrb[0].mxu0
      %v1874 = vadd.f32 0.0, %v1873
      %v1875 = vpop.f32.mrb[0].mxu0
      %1876 = vdwg.mxu0
      %vm1877 = vcmask 523264
      %v1878 = vsel %vm1877, %v1839, -inf
      %1879 = vmax.xlane.f32.xlu0 %v1878
      %v1880 = vpop.xlane.xlu0 %1879
      %v1881 = vsel %vm1877, %v1844, -inf
      %1882 = vmax.xlane.f32.xlu0 %v1881
      %v1883 = vpop.xlane.xlu0 %1882
      %v1884 = vsel %vm1877, %v1849, -inf
      %1885 = vmax.xlane.f32.xlu0 %v1884
      %v1886 = vpop.xlane.xlu0 %1885
      %v1887 = vsel %vm1877, %v1854, -inf
      %1888 = vmax.xlane.f32.xlu0 %v1887
      %v1889 = vpop.xlane.xlu0 %1888
      %v1890 = vsel %vm1877, %v1859, -inf
      %1891 = vmax.xlane.f32.xlu0 %v1890
      %v1892 = vpop.xlane.xlu0 %1891
      %v1893 = vsel %vm1877, %v1864, -inf
      %1894 = vmax.xlane.f32.xlu0 %v1893
      %v1895 = vpop.xlane.xlu0 %1894
      %v1896 = vsel %vm1877, %v1869, -inf
      %1897 = vmax.xlane.f32.xlu0 %v1896
      %v1898 = vpop.xlane.xlu0 %1897
      %v1899 = vsel %vm1877, %v1874, -inf
      %1900 = vmax.xlane.f32.xlu0 %v1899
      %v1901 = vpop.xlane.xlu0 %1900
      %v1902 = vsub.f32 %v1839, %v1880
      %v1903 = vsub.f32 %v1844, %v1883
      %v1904 = vsub.f32 %v1849, %v1886
      %v1905 = vsub.f32 %v1854, %v1889
      %v1906 = vsub.f32 %v1859, %v1892
      %v1907 = vsub.f32 %v1864, %v1895
      %v1908 = vsub.f32 %v1869, %v1898
      %v1909 = vsub.f32 %v1874, %v1901
      %v1910 = vmul.f32 %v1902, 1.442695
      %v1911 = vpow.pop %v1910
      %v1912 = vmul.f32 %v1903, 1.442695
      %v1913 = vpow.pop %v1912
      %v1914 = vmul.f32 %v1904, 1.442695
      %v1915 = vpow.pop %v1914
      %v1916 = vmul.f32 %v1905, 1.442695
      %v1917 = vpow.pop %v1916
      %v1918 = vmul.f32 %v1906, 1.442695
      %v1919 = vpow.pop %v1918
      %v1920 = vmul.f32 %v1907, 1.442695
      %v1921 = vpow.pop %v1920
      %v1922 = vmul.f32 %v1908, 1.442695
      %v1923 = vpow.pop %v1922
      %v1924 = vmul.f32 %v1909, 1.442695
      %v1925 = vpow.pop %v1924
      %v1926 = vsel %vm1877, %v1911, 0.0
      %1927 = vadd.xlane.f32.xlu0 %v1926
      %v1928 = vpop.xlane.xlu0 %1927
      %v1929 = vsel %vm1877, %v1913, 0.0
      %1930 = vadd.xlane.f32.xlu0 %v1929
      %v1931 = vpop.xlane.xlu0 %1930
      %v1932 = vsel %vm1877, %v1915, 0.0
      %1933 = vadd.xlane.f32.xlu0 %v1932
      %v1934 = vpop.xlane.xlu0 %1933
      %v1935 = vsel %vm1877, %v1917, 0.0
      %1936 = vadd.xlane.f32.xlu0 %v1935
      %v1937 = vpop.xlane.xlu0 %1936
      %v1938 = vsel %vm1877, %v1919, 0.0
      %1939 = vadd.xlane.f32.xlu0 %v1938
      %v1940 = vpop.xlane.xlu0 %1939
      %v1941 = vsel %vm1877, %v1921, 0.0
      %1942 = vadd.xlane.f32.xlu0 %v1941
      %v1943 = vpop.xlane.xlu0 %1942
      %v1944 = vsel %vm1877, %v1923, 0.0
      %1945 = vadd.xlane.f32.xlu0 %v1944
      %v1946 = vpop.xlane.xlu0 %1945
      %v1947 = vsel %vm1877, %v1925, 0.0
      %1948 = vadd.xlane.f32.xlu0 %v1947
      %v1949 = vpop.xlane.xlu0 %1948
      %1950 = vrot.lane.b32.xlu0 %v1686, 96
      %v1951 = vpop.permute.xlu0 %1950
      %1952 = vrot.lane.b32.xlu0 %v1691, 96
      %v1953 = vpop.permute.xlu0 %1952
      %1954 = vrot.lane.b32.xlu0 %v1696, 96
      %v1955 = vpop.permute.xlu0 %1954
      %1956 = vrot.lane.b32.xlu0 %v1701, 96
      %v1957 = vpop.permute.xlu0 %1956
      %1958 = vrot.lane.b32.xlu0 %v1706, 96
      %v1959 = vpop.permute.xlu0 %1958
      %1960 = vrot.lane.b32.xlu0 %v1711, 96
      %v1961 = vpop.permute.xlu0 %1960
      %1962 = vrot.lane.b32.xlu0 %v1716, 96
      %v1963 = vpop.permute.xlu0 %1962
      %1964 = vrot.lane.b32.xlu0 %v1721, 96
      %v1965 = vpop.permute.xlu0 %1964
      %v1975 = vsel %vm1877, %v1911, 0
      %v1978 = vsel %vm1877, %v1913, 0
      %v1981 = vsel %vm1877, %v1915, 0
      %v1984 = vsel %vm1877, %v1917, 0
      %v1987 = vsel %vm1877, %v1919, 0
      %v1990 = vsel %vm1877, %v1921, 0
      %v1993 = vsel %vm1877, %v1923, 0
      %v1996 = vsel %vm1877, %v1925, 0
      %1998 = vmatprep.subr.mxu0 0.0
      %1999 = vmatpush1.msra.mxu0 %v1951
      %2000 = vmatprep.subr.mxu0 0.0
      %2001 = vmatpush1.msra.mxu0 %v1953
      %2002 = vmatprep.subr.mxu0 0.0
      %2003 = vmatpush1.msra.mxu0 %v1955
      %2004 = vmatprep.subr.mxu0 0.0
      %2005 = vmatpush1.msra.mxu0 %v1957
      %2006 = vmatprep.subr.mxu0 0.0
      %2007 = vmatpush1.msra.mxu0 %v1959
      %2008 = vmatprep.subr.mxu0 0.0
      %2009 = vmatpush1.msra.mxu0 %v1961
      %2010 = vmatprep.subr.mxu0 0.0
      %2011 = vmatpush1.msra.mxu0 %v1963
      %2012 = vmatprep.subr.mxu0 0.0
      %2013 = vmatpush1.msra.mxu0 %v1965
      %2014 = vmatprep.subr.mxu0 0.0
      %2015 = vmatpush1.msra.mxu0 0.0
      %2016 = vmatprep.subr.mxu0 0.0
      %2017 = vmatpush1.msra.mxu0 0.0
      %2018 = vmatprep.subr.mxu0 0.0
      %2019 = vmatpush1.msra.mxu0 0.0
      %2020 = vmatprep.subr.mxu0 0.0
      %2021 = vmatpush1.msra.mxu0 0.0
      %2022 = vmatprep.subr.mxu0 0.0
      %2023 = vmatpush1.msra.mxu0 0.0
      %2024 = vmatprep.subr.mxu0 0.0
      %2025 = vmatpush1.msra.mxu0 0.0
      %2026 = vmatprep.subr.mxu0 0.0
      %2027 = vmatpush1.msra.mxu0 0.0
      %2028 = vmatprep.subr.mxu0 0.0
      %2029 = vmatpush1.msra.mxu0 0.0
      %2030 = vmatprep.subr.mxu0 0.0
      %2031 = vmatpush1.msra.mxu0 0.0
      %2032 = vmatprep.subr.mxu0 0.0
      %2033 = vmatpush1.msra.mxu0 0.0
      %2034 = vmatprep.subr.mxu0 0.0
      %2035 = vmatpush1.msra.mxu0 0.0
      %2036 = vmatprep.subr.mxu0 0.0
      %2037 = vmatpush1.msra.mxu0 0.0
      %2038 = vmatprep.subr.mxu0 0.0
      %2039 = vmatpush1.msra.mxu0 0.0
      %2040 = vmatprep.subr.mxu0 0.0
      %2041 = vmatpush1.msra.mxu0 0.0
      %2042 = vmatprep.subr.mxu0 0.0
      %2043 = vmatpush1.msra.mxu0 0.0
      %2044 = vmatprep.subr.mxu0 0.0
      %2045 = vmatpush1.msra.mxu0 0.0
      %2046 = vmatprep.subr.mxu0 0.0
      %2047 = vmatpush1.msra.mxu0 0.0
      %2048 = vmatprep.subr.mxu0 0.0
      %2049 = vmatpush1.msra.mxu0 0.0
      %2050 = vmatprep.subr.mxu0 0.0
      %2051 = vmatpush1.msra.mxu0 0.0
      %2052 = vmatprep.subr.mxu0 0.0
      %2053 = vmatpush1.msra.mxu0 0.0
      %2054 = vmatprep.subr.mxu0 0.0
      %2055 = vmatpush1.msra.mxu0 0.0
      %2056 = vmatprep.subr.mxu0 0.0
      %2057 = vmatpush1.msra.mxu0 0.0
      %2058 = vmatprep.subr.mxu0 0.0
      %2059 = vmatpush1.msra.mxu0 0.0
      %2060 = vmatprep.subr.mxu0 0.0
      %2061 = vmatpush1.msra.mxu0 0.0
      %2062 = vmatprep.mubr.f32.mxu0 0.0
      %2063 = vmatmul.mubr.f32.gmra.mrb[0].mxu0 %v1975
      %v2064 = vpop.f32.mrb[0].mxu0
      %v2065 = vadd.f32 0.0, %v2064
      %v2066 = vpop.f32.mrb[0].mxu0
      %2067 = vmatprep.mubr.f32.mxu0 0.0
      %2068 = vmatmul.mubr.f32.gmra.mrb[0].mxu0 %v1978
      %v2069 = vpop.f32.mrb[0].mxu0
      %v2070 = vadd.f32 0.0, %v2069
      %v2071 = vpop.f32.mrb[0].mxu0
      %2072 = vmatprep.mubr.f32.mxu0 0.0
      %2073 = vmatmul.mubr.f32.gmra.mrb[0].mxu0 %v1981
      %v2074 = vpop.f32.mrb[0].mxu0
      %v2075 = vadd.f32 0.0, %v2074
      %v2076 = vpop.f32.mrb[0].mxu0
      %2077 = vmatprep.mubr.f32.mxu0 0.0
      %2078 = vmatmul.mubr.f32.gmra.mrb[0].mxu0 %v1984
      %v2079 = vpop.f32.mrb[0].mxu0
      %v2080 = vadd.f32 0.0, %v2079
      %v2081 = vpop.f32.mrb[0].mxu0
      %2082 = vmatprep.mubr.f32.mxu0 0.0
      %2083 = vmatmul.mubr.f32.gmra.mrb[0].mxu0 %v1987
      %v2084 = vpop.f32.mrb[0].mxu0
      %v2085 = vadd.f32 0.0, %v2084
      %v2086 = vpop.f32.mrb[0].mxu0
      %2087 = vmatprep.mubr.f32.mxu0 0.0
      %2088 = vmatmul.mubr.f32.gmra.mrb[0].mxu0 %v1990
      %v2089 = vpop.f32.mrb[0].mxu0
      %v2090 = vadd.f32 0.0, %v2089
      %v2091 = vpop.f32.mrb[0].mxu0
      %2092 = vmatprep.mubr.f32.mxu0 0.0
      %2093 = vmatmul.mubr.f32.gmra.mrb[0].mxu0 %v1993
      %v2094 = vpop.f32.mrb[0].mxu0
      %v2095 = vadd.f32 0.0, %v2094
      %v2096 = vpop.f32.mrb[0].mxu0
      %2097 = vmatprep.mubr.f32.mxu0 0.0
      %2098 = vmatmul.mubr.f32.gmra.mrb[0].mxu0 %v1996
      %v2099 = vpop.f32.mrb[0].mxu0
      %v2100 = vadd.f32 0.0, %v2099
      %v2101 = vpop.f32.mrb[0].mxu0
      %2102 = vdwg.mxu0
      %v2103 = vrcp.pop %v1928
      %v2104 = vrcp.pop %v1931
      %v2105 = vrcp.pop %v1934
      %v2106 = vrcp.pop %v1937
      %v2107 = vrcp.pop %v1940
      %v2108 = vrcp.pop %v1943
      %v2109 = vrcp.pop %v1946
      %v2110 = vrcp.pop %v1949
      %v2111 = vmul.f32 %v2065, %v2103
      %v2112 = vmul.f32 %v2070, %v2104
      %v2113 = vmul.f32 %v2075, %v2105
      %v2114 = vmul.f32 %v2080, %v2106
      %v2115 = vmul.f32 %v2085, %v2107
      %v2116 = vmul.f32 %v2090, %v2108
      %v2117 = vmul.f32 %v2095, %v2109
      %v2118 = vmul.f32 %v2100, %v2110
      %2119 = vrot.lane.b32.xlu0 %v1565, 120
      %v2120 = vpop.permute.xlu0 %2119
      %2121 = vrot.lane.b32.xlu0 %v1566, 120
      %v2122 = vpop.permute.xlu0 %2121
      %2123 = vrot.lane.b32.xlu0 %v1567, 120
      %v2124 = vpop.permute.xlu0 %2123
      %2125 = vrot.lane.b32.xlu0 %v1568, 120
      %v2126 = vpop.permute.xlu0 %2125
      %2127 = vrot.lane.b32.xlu0 %v1569, 120
      %v2128 = vpop.permute.xlu0 %2127
      %2129 = vrot.lane.b32.xlu0 %v1570, 120
      %v2130 = vpop.permute.xlu0 %2129
      %2131 = vrot.lane.b32.xlu0 %v1571, 120
      %v2132 = vpop.permute.xlu0 %2131
      %2133 = vrot.lane.b32.xlu0 %v1572, 120
      %v2134 = vpop.permute.xlu0 %2133
      %2135 = vrot.lane.b32.xlu0 %v1686, 120
      %v2136 = vpop.permute.xlu0 %2135
      %2137 = vrot.lane.b32.xlu0 %v1691, 120
      %v2138 = vpop.permute.xlu0 %2137
      %2139 = vrot.lane.b32.xlu0 %v1696, 120
      %v2140 = vpop.permute.xlu0 %2139
      %2141 = vrot.lane.b32.xlu0 %v1701, 120
      %v2142 = vpop.permute.xlu0 %2141
      %2143 = vrot.lane.b32.xlu0 %v1706, 120
      %v2144 = vpop.permute.xlu0 %2143
      %2145 = vrot.lane.b32.xlu0 %v1711, 120
      %v2146 = vpop.permute.xlu0 %2145
      %2147 = vrot.lane.b32.xlu0 %v1716, 120
      %v2148 = vpop.permute.xlu0 %2147
      %2149 = vrot.lane.b32.xlu0 %v1721, 120
      %v2150 = vpop.permute.xlu0 %2149
      %v2151 = vsel %vm906, %v2120, 0
      %v2153 = vsel %vm906, %v2122, 0
      %v2155 = vsel %vm906, %v2124, 0
      %v2157 = vsel %vm906, %v2126, 0
      %v2159 = vsel %vm906, %v2128, 0
      %v2161 = vsel %vm906, %v2130, 0
      %v2163 = vsel %vm906, %v2132, 0
      %v2165 = vsel %vm906, %v2134, 0
      %v2167 = vsel %vm906, %v2136, 0
      %v2169 = vsel %vm906, %v2138, 0
      %v2171 = vsel %vm906, %v2140, 0
      %v2173 = vsel %vm906, %v2142, 0
      %v2175 = vsel %vm906, %v2144, 0
      %v2177 = vsel %vm906, %v2146, 0
      %v2179 = vsel %vm906, %v2148, 0
      %v2181 = vsel %vm906, %v2150, 0
      %2183 = vmatprep.subr.mxu0 0.0
      %2184 = vmatpush1.xpose.msra.mxu0 %v2167
      %2185 = vmatprep.subr.mxu0 0.0
      %2186 = vmatpush1.xpose.msra.mxu0 %v2169
      %2187 = vmatprep.subr.mxu0 0.0
      %2188 = vmatpush1.xpose.msra.mxu0 %v2171
      %2189 = vmatprep.subr.mxu0 0.0
      %2190 = vmatpush1.xpose.msra.mxu0 %v2173
      %2191 = vmatprep.subr.mxu0 0.0
      %2192 = vmatpush1.xpose.msra.mxu0 %v2175
      %2193 = vmatprep.subr.mxu0 0.0
      %2194 = vmatpush1.xpose.msra.mxu0 %v2177
      %2195 = vmatprep.subr.mxu0 0.0
      %2196 = vmatpush1.xpose.msra.mxu0 %v2179
      %2197 = vmatprep.subr.mxu0 0.0
      %2198 = vmatpush1.xpose.msra.mxu0 %v2181
      %2199 = vmatprep.subr.mxu0 0.0
      %2200 = vmatpush1.xpose.msra.mxu0 0.0
      %2201 = vmatprep.subr.mxu0 0.0
      %2202 = vmatpush1.xpose.msra.mxu0 0.0
      %2203 = vmatprep.subr.mxu0 0.0
      %2204 = vmatpush1.xpose.msra.mxu0 0.0
      %2205 = vmatprep.subr.mxu0 0.0
      %2206 = vmatpush1.xpose.msra.mxu0 0.0
      %2207 = vmatprep.subr.mxu0 0.0
      %2208 = vmatpush1.xpose.msra.mxu0 0.0
      %2209 = vmatprep.subr.mxu0 0.0
      %2210 = vmatpush1.xpose.msra.mxu0 0.0
      %2211 = vmatprep.subr.mxu0 0.0
      %2212 = vmatpush1.xpose.msra.mxu0 0.0
      %2213 = vmatprep.subr.mxu0 0.0
      %2214 = vmatpush1.xpose.msra.mxu0 0.0
      %2215 = vmatprep.subr.mxu0 0.0
      %2216 = vmatpush1.xpose.msra.mxu0 0.0
      %2217 = vmatprep.subr.mxu0 0.0
      %2218 = vmatpush1.xpose.msra.mxu0 0.0
      %2219 = vmatprep.subr.mxu0 0.0
      %2220 = vmatpush1.xpose.msra.mxu0 0.0
      %2221 = vmatprep.subr.mxu0 0.0
      %2222 = vmatpush1.xpose.msra.mxu0 0.0
      %2223 = vmatprep.subr.mxu0 0.0
      %2224 = vmatpush1.xpose.msra.mxu0 0.0
      %2225 = vmatprep.subr.mxu0 0.0
      %2226 = vmatpush1.xpose.msra.mxu0 0.0
      %2227 = vmatprep.subr.mxu0 0.0
      %2228 = vmatpush1.xpose.msra.mxu0 0.0
      %2229 = vmatprep.subr.mxu0 0.0
      %2230 = vmatpush1.xpose.msra.mxu0 0.0
      %2231 = vmatprep.subr.mxu0 0.0
      %2232 = vmatpush1.xpose.msra.mxu0 0.0
      %2233 = vmatprep.subr.mxu0 0.0
      %2234 = vmatpush1.xpose.msra.mxu0 0.0
      %2235 = vmatprep.subr.mxu0 0.0
      %2236 = vmatpush1.xpose.msra.mxu0 0.0
      %2237 = vmatprep.subr.mxu0 0.0
      %2238 = vmatpush1.xpose.msra.mxu0 0.0
      %2239 = vmatprep.subr.mxu0 0.0
      %2240 = vmatpush1.xpose.msra.mxu0 0.0
      %2241 = vmatprep.subr.mxu0 0.0
      %2242 = vmatpush1.xpose.msra.mxu0 0.0
      %2243 = vmatprep.subr.mxu0 0.0
      %2244 = vmatpush1.xpose.msra.mxu0 0.0
      %2245 = vmatprep.subr.mxu0 0.0
      %2246 = vmatpush1.xpose.msra.mxu0 0.0
      %2247 = vmatprep.mubr.f32.mxu0 0.0
      %2248 = vmatmul.mubr.f32.gmra.mrb[0].mxu0 %v2151
      %v2249 = vpop.f32.mrb[0].mxu0
      %v2250 = vadd.f32 0.0, %v2249
      %v2251 = vpop.f32.mrb[0].mxu0
      %2252 = vmatprep.mubr.f32.mxu0 0.0
      %2253 = vmatmul.mubr.f32.gmra.mrb[0].mxu0 %v2153
      %v2254 = vpop.f32.mrb[0].mxu0
      %v2255 = vadd.f32 0.0, %v2254
      %v2256 = vpop.f32.mrb[0].mxu0
      %2257 = vmatprep.mubr.f32.mxu0 0.0
      %2258 = vmatmul.mubr.f32.gmra.mrb[0].mxu0 %v2155
      %v2259 = vpop.f32.mrb[0].mxu0
      %v2260 = vadd.f32 0.0, %v2259
      %v2261 = vpop.f32.mrb[0].mxu0
      %2262 = vmatprep.mubr.f32.mxu0 0.0
      %2263 = vmatmul.mubr.f32.gmra.mrb[0].mxu0 %v2157
      %v2264 = vpop.f32.mrb[0].mxu0
      %v2265 = vadd.f32 0.0, %v2264
      %v2266 = vpop.f32.mrb[0].mxu0
      %2267 = vmatprep.mubr.f32.mxu0 0.0
      %2268 = vmatmul.mubr.f32.gmra.mrb[0].mxu0 %v2159
      %v2269 = vpop.f32.mrb[0].mxu0
      %v2270 = vadd.f32 0.0, %v2269
      %v2271 = vpop.f32.mrb[0].mxu0
      %2272 = vmatprep.mubr.f32.mxu0 0.0
      %2273 = vmatmul.mubr.f32.gmra.mrb[0].mxu0 %v2161
      %v2274 = vpop.f32.mrb[0].mxu0
      %v2275 = vadd.f32 0.0, %v2274
      %v2276 = vpop.f32.mrb[0].mxu0
      %2277 = vmatprep.mubr.f32.mxu0 0.0
      %2278 = vmatmul.mubr.f32.gmra.mrb[0].mxu0 %v2163
      %v2279 = vpop.f32.mrb[0].mxu0
      %v2280 = vadd.f32 0.0, %v2279
      %v2281 = vpop.f32.mrb[0].mxu0
      %2282 = vmatprep.mubr.f32.mxu0 0.0
      %2283 = vmatmul.mubr.f32.gmra.mrb[0].mxu0 %v2165
      %v2284 = vpop.f32.mrb[0].mxu0
      %v2285 = vadd.f32 0.0, %v2284
      %v2286 = vpop.f32.mrb[0].mxu0
      %2287 = vdwg.mxu0
      %v2288 = vsel %vm1877, %v2250, -inf
      %2289 = vmax.xlane.f32.xlu0 %v2288
      %v2290 = vpop.xlane.xlu0 %2289
      %v2291 = vsel %vm1877, %v2255, -inf
      %2292 = vmax.xlane.f32.xlu0 %v2291
      %v2293 = vpop.xlane.xlu0 %2292
      %v2294 = vsel %vm1877, %v2260, -inf
      %2295 = vmax.xlane.f32.xlu0 %v2294
      %v2296 = vpop.xlane.xlu0 %2295
      %v2297 = vsel %vm1877, %v2265, -inf
      %2298 = vmax.xlane.f32.xlu0 %v2297
      %v2299 = vpop.xlane.xlu0 %2298
      %v2300 = vsel %vm1877, %v2270, -inf
      %2301 = vmax.xlane.f32.xlu0 %v2300
      %v2302 = vpop.xlane.xlu0 %2301
      %v2303 = vsel %vm1877, %v2275, -inf
      %2304 = vmax.xlane.f32.xlu0 %v2303
      %v2305 = vpop.xlane.xlu0 %2304
      %v2306 = vsel %vm1877, %v2280, -inf
      %2307 = vmax.xlane.f32.xlu0 %v2306
      %v2308 = vpop.xlane.xlu0 %2307
      %v2309 = vsel %vm1877, %v2285, -inf
      %2310 = vmax.xlane.f32.xlu0 %v2309
      %v2311 = vpop.xlane.xlu0 %2310
      %v2312 = vsub.f32 %v2250, %v2290
      %v2313 = vsub.f32 %v2255, %v2293
      %v2314 = vsub.f32 %v2260, %v2296
      %v2315 = vsub.f32 %v2265, %v2299
      %v2316 = vsub.f32 %v2270, %v2302
      %v2317 = vsub.f32 %v2275, %v2305
      %v2318 = vsub.f32 %v2280, %v2308
      %v2319 = vsub.f32 %v2285, %v2311
      %v2320 = vmul.f32 %v2312, 1.442695
      %v2321 = vpow.pop %v2320
      %v2322 = vmul.f32 %v2313, 1.442695
      %v2323 = vpow.pop %v2322
      %v2324 = vmul.f32 %v2314, 1.442695
      %v2325 = vpow.pop %v2324
      %v2326 = vmul.f32 %v2315, 1.442695
      %v2327 = vpow.pop %v2326
      %v2328 = vmul.f32 %v2316, 1.442695
      %v2329 = vpow.pop %v2328
      %v2330 = vmul.f32 %v2317, 1.442695
      %v2331 = vpow.pop %v2330
      %v2332 = vmul.f32 %v2318, 1.442695
      %v2333 = vpow.pop %v2332
      %v2334 = vmul.f32 %v2319, 1.442695
      %v2335 = vpow.pop %v2334
      %v2336 = vsel %vm1877, %v2321, 0.0
      %2337 = vadd.xlane.f32.xlu0 %v2336
      %v2338 = vpop.xlane.xlu0 %2337
      %v2339 = vsel %vm1877, %v2323, 0.0
      %2340 = vadd.xlane.f32.xlu0 %v2339
      %v2341 = vpop.xlane.xlu0 %2340
      %v2342 = vsel %vm1877, %v2325, 0.0
      %2343 = vadd.xlane.f32.xlu0 %v2342
      %v2344 = vpop.xlane.xlu0 %2343
      %v2345 = vsel %vm1877, %v2327, 0.0
      %2346 = vadd.xlane.f32.xlu0 %v2345
      %v2347 = vpop.xlane.xlu0 %2346
      %v2348 = vsel %vm1877, %v2329, 0.0
      %2349 = vadd.xlane.f32.xlu0 %v2348
      %v2350 = vpop.xlane.xlu0 %2349
      %v2351 = vsel %vm1877, %v2331, 0.0
      %2352 = vadd.xlane.f32.xlu0 %v2351
      %v2353 = vpop.xlane.xlu0 %2352
      %v2354 = vsel %vm1877, %v2333, 0.0
      %2355 = vadd.xlane.f32.xlu0 %v2354
      %v2356 = vpop.xlane.xlu0 %2355
      %v2357 = vsel %vm1877, %v2335, 0.0
      %2358 = vadd.xlane.f32.xlu0 %v2357
      %v2359 = vpop.xlane.xlu0 %2358
      %2360 = vrot.lane.b32.xlu0 %v1686, 88
      %v2361 = vpop.permute.xlu0 %2360
      %2362 = vrot.lane.b32.xlu0 %v1691, 88
      %v2363 = vpop.permute.xlu0 %2362
      %2364 = vrot.lane.b32.xlu0 %v1696, 88
      %v2365 = vpop.permute.xlu0 %2364
      %2366 = vrot.lane.b32.xlu0 %v1701, 88
      %v2367 = vpop.permute.xlu0 %2366
      %2368 = vrot.lane.b32.xlu0 %v1706, 88
      %v2369 = vpop.permute.xlu0 %2368
      %2370 = vrot.lane.b32.xlu0 %v1711, 88
      %v2371 = vpop.permute.xlu0 %2370
      %2372 = vrot.lane.b32.xlu0 %v1716, 88
      %v2373 = vpop.permute.xlu0 %2372
      %2374 = vrot.lane.b32.xlu0 %v1721, 88
      %v2375 = vpop.permute.xlu0 %2374
      %v2385 = vsel %vm1877, %v2321, 0
      %v2388 = vsel %vm1877, %v2323, 0
      %v2391 = vsel %vm1877, %v2325, 0
      %v2394 = vsel %vm1877, %v2327, 0
      %v2397 = vsel %vm1877, %v2329, 0
      %v2400 = vsel %vm1877, %v2331, 0
      %v2403 = vsel %vm1877, %v2333, 0
      %v2406 = vsel %vm1877, %v2335, 0
      %2408 = vmatprep.subr.mxu0 0.0
      %2409 = vmatpush1.msra.mxu0 %v2361
      %2410 = vmatprep.subr.mxu0 0.0
      %2411 = vmatpush1.msra.mxu0 %v2363
      %2412 = vmatprep.subr.mxu0 0.0
      %2413 = vmatpush1.msra.mxu0 %v2365
      %2414 = vmatprep.subr.mxu0 0.0
      %2415 = vmatpush1.msra.mxu0 %v2367
      %2416 = vmatprep.subr.mxu0 0.0
      %2417 = vmatpush1.msra.mxu0 %v2369
      %2418 = vmatprep.subr.mxu0 0.0
      %2419 = vmatpush1.msra.mxu0 %v2371
      %2420 = vmatprep.subr.mxu0 0.0
      %2421 = vmatpush1.msra.mxu0 %v2373
      %2422 = vmatprep.subr.mxu0 0.0
      %2423 = vmatpush1.msra.mxu0 %v2375
      %2424 = vmatprep.subr.mxu0 0.0
      %2425 = vmatpush1.msra.mxu0 0.0
      %2426 = vmatprep.subr.mxu0 0.0
      %2427 = vmatpush1.msra.mxu0 0.0
      %2428 = vmatprep.subr.mxu0 0.0
      %2429 = vmatpush1.msra.mxu0 0.0
      %2430 = vmatprep.subr.mxu0 0.0
      %2431 = vmatpush1.msra.mxu0 0.0
      %2432 = vmatprep.subr.mxu0 0.0
      %2433 = vmatpush1.msra.mxu0 0.0
      %2434 = vmatprep.subr.mxu0 0.0
      %2435 = vmatpush1.msra.mxu0 0.0
      %2436 = vmatprep.subr.mxu0 0.0
      %2437 = vmatpush1.msra.mxu0 0.0
      %2438 = vmatprep.subr.mxu0 0.0
      %2439 = vmatpush1.msra.mxu0 0.0
      %2440 = vmatprep.subr.mxu0 0.0
      %2441 = vmatpush1.msra.mxu0 0.0
      %2442 = vmatprep.subr.mxu0 0.0
      %2443 = vmatpush1.msra.mxu0 0.0
      %2444 = vmatprep.subr.mxu0 0.0
      %2445 = vmatpush1.msra.mxu0 0.0
      %2446 = vmatprep.subr.mxu0 0.0
      %2447 = vmatpush1.msra.mxu0 0.0
      %2448 = vmatprep.subr.mxu0 0.0
      %2449 = vmatpush1.msra.mxu0 0.0
      %2450 = vmatprep.subr.mxu0 0.0
      %2451 = vmatpush1.msra.mxu0 0.0
      %2452 = vmatprep.subr.mxu0 0.0
      %2453 = vmatpush1.msra.mxu0 0.0
      %2454 = vmatprep.subr.mxu0 0.0
      %2455 = vmatpush1.msra.mxu0 0.0
      %2456 = vmatprep.subr.mxu0 0.0
      %2457 = vmatpush1.msra.mxu0 0.0
      %2458 = vmatprep.subr.mxu0 0.0
      %2459 = vmatpush1.msra.mxu0 0.0
      %2460 = vmatprep.subr.mxu0 0.0
      %2461 = vmatpush1.msra.mxu0 0.0
      %2462 = vmatprep.subr.mxu0 0.0
      %2463 = vmatpush1.msra.mxu0 0.0
      %2464 = vmatprep.subr.mxu0 0.0
      %2465 = vmatpush1.msra.mxu0 0.0
      %2466 = vmatprep.subr.mxu0 0.0
      %2467 = vmatpush1.msra.mxu0 0.0
      %2468 = vmatprep.subr.mxu0 0.0
      %2469 = vmatpush1.msra.mxu0 0.0
      %2470 = vmatprep.subr.mxu0 0.0
      %2471 = vmatpush1.msra.mxu0 0.0
      %2472 = vmatprep.mubr.f32.mxu0 0.0
      %2473 = vmatmul.mubr.f32.gmra.mrb[0].mxu0 %v2385
      %v2474 = vpop.f32.mrb[0].mxu0
      %v2475 = vadd.f32 0.0, %v2474
      %v2476 = vpop.f32.mrb[0].mxu0
      %2477 = vmatprep.mubr.f32.mxu0 0.0
      %2478 = vmatmul.mubr.f32.gmra.mrb[0].mxu0 %v2388
      %v2479 = vpop.f32.mrb[0].mxu0
      %v2480 = vadd.f32 0.0, %v2479
      %v2481 = vpop.f32.mrb[0].mxu0
      %2482 = vmatprep.mubr.f32.mxu0 0.0
      %2483 = vmatmul.mubr.f32.gmra.mrb[0].mxu0 %v2391
      %v2484 = vpop.f32.mrb[0].mxu0
      %v2485 = vadd.f32 0.0, %v2484
      %v2486 = vpop.f32.mrb[0].mxu0
      %2487 = vmatprep.mubr.f32.mxu0 0.0
      %2488 = vmatmul.mubr.f32.gmra.mrb[0].mxu0 %v2394
      %v2489 = vpop.f32.mrb[0].mxu0
      %v2490 = vadd.f32 0.0, %v2489
      %v2491 = vpop.f32.mrb[0].mxu0
      %2492 = vmatprep.mubr.f32.mxu0 0.0
      %2493 = vmatmul.mubr.f32.gmra.mrb[0].mxu0 %v2397
      %v2494 = vpop.f32.mrb[0].mxu0
      %v2495 = vadd.f32 0.0, %v2494
      %v2496 = vpop.f32.mrb[0].mxu0
      %2497 = vmatprep.mubr.f32.mxu0 0.0
      %2498 = vmatmul.mubr.f32.gmra.mrb[0].mxu0 %v2400
      %v2499 = vpop.f32.mrb[0].mxu0
      %v2500 = vadd.f32 0.0, %v2499
      %v2501 = vpop.f32.mrb[0].mxu0
      %2502 = vmatprep.mubr.f32.mxu0 0.0
      %2503 = vmatmul.mubr.f32.gmra.mrb[0].mxu0 %v2403
      %v2504 = vpop.f32.mrb[0].mxu0
      %v2505 = vadd.f32 0.0, %v2504
      %v2506 = vpop.f32.mrb[0].mxu0
      %2507 = vmatprep.mubr.f32.mxu0 0.0
      %2508 = vmatmul.mubr.f32.gmra.mrb[0].mxu0 %v2406
      %v2509 = vpop.f32.mrb[0].mxu0
      %v2510 = vadd.f32 0.0, %v2509
      %v2511 = vpop.f32.mrb[0].mxu0
      %2512 = vdwg.mxu0
      %v2513 = vrcp.pop %v2338
      %v2514 = vrcp.pop %v2341
      %v2515 = vrcp.pop %v2344
      %v2516 = vrcp.pop %v2347
      %v2517 = vrcp.pop %v2350
      %v2518 = vrcp.pop %v2353
      %v2519 = vrcp.pop %v2356
      %v2520 = vrcp.pop %v2359
      %v2521 = vmul.f32 %v2475, %v2513
      %v2522 = vmul.f32 %v2480, %v2514
      %v2523 = vmul.f32 %v2485, %v2515
      %v2524 = vmul.f32 %v2490, %v2516
      %v2525 = vmul.f32 %v2495, %v2517
      %v2526 = vmul.f32 %v2500, %v2518
      %v2527 = vmul.f32 %v2505, %v2519
      %v2528 = vmul.f32 %v2510, %v2520
      %2529 = vrot.lane.b32.xlu0 %v1565, 112
      %v2530 = vpop.permute.xlu0 %2529
      %2531 = vrot.lane.b32.xlu0 %v1566, 112
      %v2532 = vpop.permute.xlu0 %2531
      %2533 = vrot.lane.b32.xlu0 %v1567, 112
      %v2534 = vpop.permute.xlu0 %2533
      %2535 = vrot.lane.b32.xlu0 %v1568, 112
      %v2536 = vpop.permute.xlu0 %2535
      %2537 = vrot.lane.b32.xlu0 %v1569, 112
      %v2538 = vpop.permute.xlu0 %2537
      %2539 = vrot.lane.b32.xlu0 %v1570, 112
      %v2540 = vpop.permute.xlu0 %2539
      %2541 = vrot.lane.b32.xlu0 %v1571, 112
      %v2542 = vpop.permute.xlu0 %2541
      %2543 = vrot.lane.b32.xlu0 %v1572, 112
      %v2544 = vpop.permute.xlu0 %2543
      %2545 = vrot.lane.b32.xlu0 %v1686, 112
      %v2546 = vpop.permute.xlu0 %2545
      %2547 = vrot.lane.b32.xlu0 %v1691, 112
      %v2548 = vpop.permute.xlu0 %2547
      %2549 = vrot.lane.b32.xlu0 %v1696, 112
      %v2550 = vpop.permute.xlu0 %2549
      %2551 = vrot.lane.b32.xlu0 %v1701, 112
      %v2552 = vpop.permute.xlu0 %2551
      %2553 = vrot.lane.b32.xlu0 %v1706, 112
      %v2554 = vpop.permute.xlu0 %2553
      %2555 = vrot.lane.b32.xlu0 %v1711, 112
      %v2556 = vpop.permute.xlu0 %2555
      %2557 = vrot.lane.b32.xlu0 %v1716, 112
      %v2558 = vpop.permute.xlu0 %2557
      %2559 = vrot.lane.b32.xlu0 %v1721, 112
      %v2560 = vpop.permute.xlu0 %2559
      %v2561 = vsel %vm906, %v2530, 0
      %v2563 = vsel %vm906, %v2532, 0
      %v2565 = vsel %vm906, %v2534, 0
      %v2567 = vsel %vm906, %v2536, 0
      %v2569 = vsel %vm906, %v2538, 0
      %v2571 = vsel %vm906, %v2540, 0
      %v2573 = vsel %vm906, %v2542, 0
      %v2575 = vsel %vm906, %v2544, 0
      %v2577 = vsel %vm906, %v2546, 0
      %v2579 = vsel %vm906, %v2548, 0
      %v2581 = vsel %vm906, %v2550, 0
      %v2583 = vsel %vm906, %v2552, 0
      %v2585 = vsel %vm906, %v2554, 0
      %v2587 = vsel %vm906, %v2556, 0
      %v2589 = vsel %vm906, %v2558, 0
      %v2591 = vsel %vm906, %v2560, 0
      %2593 = vmatprep.subr.mxu0 0.0
      %2594 = vmatpush1.xpose.msra.mxu0 %v2577
      %2595 = vmatprep.subr.mxu0 0.0
      %2596 = vmatpush1.xpose.msra.mxu0 %v2579
      %2597 = vmatprep.subr.mxu0 0.0
      %2598 = vmatpush1.xpose.msra.mxu0 %v2581
      %2599 = vmatprep.subr.mxu0 0.0
      %2600 = vmatpush1.xpose.msra.mxu0 %v2583
      %2601 = vmatprep.subr.mxu0 0.0
      %2602 = vmatpush1.xpose.msra.mxu0 %v2585
      %2603 = vmatprep.subr.mxu0 0.0
      %2604 = vmatpush1.xpose.msra.mxu0 %v2587
      %2605 = vmatprep.subr.mxu0 0.0
      %2606 = vmatpush1.xpose.msra.mxu0 %v2589
      %2607 = vmatprep.subr.mxu0 0.0
      %2608 = vmatpush1.xpose.msra.mxu0 %v2591
      %2609 = vmatprep.subr.mxu0 0.0
      %2610 = vmatpush1.xpose.msra.mxu0 0.0
      %2611 = vmatprep.subr.mxu0 0.0
      %2612 = vmatpush1.xpose.msra.mxu0 0.0
      %2613 = vmatprep.subr.mxu0 0.0
      %2614 = vmatpush1.xpose.msra.mxu0 0.0
      %2615 = vmatprep.subr.mxu0 0.0
      %2616 = vmatpush1.xpose.msra.mxu0 0.0
      %2617 = vmatprep.subr.mxu0 0.0
      %2618 = vmatpush1.xpose.msra.mxu0 0.0
      %2619 = vmatprep.subr.mxu0 0.0
      %2620 = vmatpush1.xpose.msra.mxu0 0.0
      %2621 = vmatprep.subr.mxu0 0.0
      %2622 = vmatpush1.xpose.msra.mxu0 0.0
      %2623 = vmatprep.subr.mxu0 0.0
      %2624 = vmatpush1.xpose.msra.mxu0 0.0
      %2625 = vmatprep.subr.mxu0 0.0
      %2626 = vmatpush1.xpose.msra.mxu0 0.0
      %2627 = vmatprep.subr.mxu0 0.0
      %2628 = vmatpush1.xpose.msra.mxu0 0.0
      %2629 = vmatprep.subr.mxu0 0.0
      %2630 = vmatpush1.xpose.msra.mxu0 0.0
      %2631 = vmatprep.subr.mxu0 0.0
      %2632 = vmatpush1.xpose.msra.mxu0 0.0
      %2633 = vmatprep.subr.mxu0 0.0
      %2634 = vmatpush1.xpose.msra.mxu0 0.0
      %2635 = vmatprep.subr.mxu0 0.0
      %2636 = vmatpush1.xpose.msra.mxu0 0.0
      %2637 = vmatprep.subr.mxu0 0.0
      %2638 = vmatpush1.xpose.msra.mxu0 0.0
      %2639 = vmatprep.subr.mxu0 0.0
      %2640 = vmatpush1.xpose.msra.mxu0 0.0
      %2641 = vmatprep.subr.mxu0 0.0
      %2642 = vmatpush1.xpose.msra.mxu0 0.0
      %2643 = vmatprep.subr.mxu0 0.0
      %2644 = vmatpush1.xpose.msra.mxu0 0.0
      %2645 = vmatprep.subr.mxu0 0.0
      %2646 = vmatpush1.xpose.msra.mxu0 0.0
      %2647 = vmatprep.subr.mxu0 0.0
      %2648 = vmatpush1.xpose.msra.mxu0 0.0
      %2649 = vmatprep.subr.mxu0 0.0
      %2650 = vmatpush1.xpose.msra.mxu0 0.0
      %2651 = vmatprep.subr.mxu0 0.0
      %2652 = vmatpush1.xpose.msra.mxu0 0.0
      %2653 = vmatprep.subr.mxu0 0.0
      %2654 = vmatpush1.xpose.msra.mxu0 0.0
      %2655 = vmatprep.subr.mxu0 0.0
      %2656 = vmatpush1.xpose.msra.mxu0 0.0
      %2657 = vmatprep.mubr.f32.mxu0 0.0
      %2658 = vmatmul.mubr.f32.gmra.mrb[0].mxu0 %v2561
      %v2659 = vpop.f32.mrb[0].mxu0
      %v2660 = vadd.f32 0.0, %v2659
      %v2661 = vpop.f32.mrb[0].mxu0
      %2662 = vmatprep.mubr.f32.mxu0 0.0
      %2663 = vmatmul.mubr.f32.gmra.mrb[0].mxu0 %v2563
      %v2664 = vpop.f32.mrb[0].mxu0
      %v2665 = vadd.f32 0.0, %v2664
      %v2666 = vpop.f32.mrb[0].mxu0
      %2667 = vmatprep.mubr.f32.mxu0 0.0
      %2668 = vmatmul.mubr.f32.gmra.mrb[0].mxu0 %v2565
      %v2669 = vpop.f32.mrb[0].mxu0
      %v2670 = vadd.f32 0.0, %v2669
      %v2671 = vpop.f32.mrb[0].mxu0
      %2672 = vmatprep.mubr.f32.mxu0 0.0
      %2673 = vmatmul.mubr.f32.gmra.mrb[0].mxu0 %v2567
      %v2674 = vpop.f32.mrb[0].mxu0
      %v2675 = vadd.f32 0.0, %v2674
      %v2676 = vpop.f32.mrb[0].mxu0
      %2677 = vmatprep.mubr.f32.mxu0 0.0
      %2678 = vmatmul.mubr.f32.gmra.mrb[0].mxu0 %v2569
      %v2679 = vpop.f32.mrb[0].mxu0
      %v2680 = vadd.f32 0.0, %v2679
      %v2681 = vpop.f32.mrb[0].mxu0
      %2682 = vmatprep.mubr.f32.mxu0 0.0
      %2683 = vmatmul.mubr.f32.gmra.mrb[0].mxu0 %v2571
      %v2684 = vpop.f32.mrb[0].mxu0
      %v2685 = vadd.f32 0.0, %v2684
      %v2686 = vpop.f32.mrb[0].mxu0
      %2687 = vmatprep.mubr.f32.mxu0 0.0
      %2688 = vmatmul.mubr.f32.gmra.mrb[0].mxu0 %v2573
      %v2689 = vpop.f32.mrb[0].mxu0
      %v2690 = vadd.f32 0.0, %v2689
      %v2691 = vpop.f32.mrb[0].mxu0
      %2692 = vmatprep.mubr.f32.mxu0 0.0
      %2693 = vmatmul.mubr.f32.gmra.mrb[0].mxu0 %v2575
      %v2694 = vpop.f32.mrb[0].mxu0
      %v2695 = vadd.f32 0.0, %v2694
      %v2696 = vpop.f32.mrb[0].mxu0
      %2697 = vdwg.mxu0
      %v2698 = vsel %vm1877, %v2660, -inf
      %2699 = vmax.xlane.f32.xlu0 %v2698
      %v2700 = vpop.xlane.xlu0 %2699
      %v2701 = vsel %vm1877, %v2665, -inf
      %2702 = vmax.xlane.f32.xlu0 %v2701
      %v2703 = vpop.xlane.xlu0 %2702
      %v2704 = vsel %vm1877, %v2670, -inf
      %2705 = vmax.xlane.f32.xlu0 %v2704
      %v2706 = vpop.xlane.xlu0 %2705
      %v2707 = vsel %vm1877, %v2675, -inf
      %2708 = vmax.xlane.f32.xlu0 %v2707
      %v2709 = vpop.xlane.xlu0 %2708
      %v2710 = vsel %vm1877, %v2680, -inf
      %2711 = vmax.xlane.f32.xlu0 %v2710
      %v2712 = vpop.xlane.xlu0 %2711
      %v2713 = vsel %vm1877, %v2685, -inf
      %2714 = vmax.xlane.f32.xlu0 %v2713
      %v2715 = vpop.xlane.xlu0 %2714
      %v2716 = vsel %vm1877, %v2690, -inf
      %2717 = vmax.xlane.f32.xlu0 %v2716
      %v2718 = vpop.xlane.xlu0 %2717
      %v2719 = vsel %vm1877, %v2695, -inf
      %2720 = vmax.xlane.f32.xlu0 %v2719
      %v2721 = vpop.xlane.xlu0 %2720
      %v2722 = vsub.f32 %v2660, %v2700
      %v2723 = vsub.f32 %v2665, %v2703
      %v2724 = vsub.f32 %v2670, %v2706
      %v2725 = vsub.f32 %v2675, %v2709
      %v2726 = vsub.f32 %v2680, %v2712
      %v2727 = vsub.f32 %v2685, %v2715
      %v2728 = vsub.f32 %v2690, %v2718
      %v2729 = vsub.f32 %v2695, %v2721
      %v2730 = vmul.f32 %v2722, 1.442695
      %v2731 = vpow.pop %v2730
      %v2732 = vmul.f32 %v2723, 1.442695
      %v2733 = vpow.pop %v2732
      %v2734 = vmul.f32 %v2724, 1.442695
      %v2735 = vpow.pop %v2734
      %v2736 = vmul.f32 %v2725, 1.442695
      %v2737 = vpow.pop %v2736
      %v2738 = vmul.f32 %v2726, 1.442695
      %v2739 = vpow.pop %v2738
      %v2740 = vmul.f32 %v2727, 1.442695
      %v2741 = vpow.pop %v2740
      %v2742 = vmul.f32 %v2728, 1.442695
      %v2743 = vpow.pop %v2742
      %v2744 = vmul.f32 %v2729, 1.442695
      %v2745 = vpow.pop %v2744
      %v2746 = vsel %vm1877, %v2731, 0.0
      %2747 = vadd.xlane.f32.xlu0 %v2746
      %v2748 = vpop.xlane.xlu0 %2747
      %v2749 = vsel %vm1877, %v2733, 0.0
      %2750 = vadd.xlane.f32.xlu0 %v2749
      %v2751 = vpop.xlane.xlu0 %2750
      %v2752 = vsel %vm1877, %v2735, 0.0
      %2753 = vadd.xlane.f32.xlu0 %v2752
      %v2754 = vpop.xlane.xlu0 %2753
      %v2755 = vsel %vm1877, %v2737, 0.0
      %2756 = vadd.xlane.f32.xlu0 %v2755
      %v2757 = vpop.xlane.xlu0 %2756
      %v2758 = vsel %vm1877, %v2739, 0.0
      %2759 = vadd.xlane.f32.xlu0 %v2758
      %v2760 = vpop.xlane.xlu0 %2759
      %v2761 = vsel %vm1877, %v2741, 0.0
      %2762 = vadd.xlane.f32.xlu0 %v2761
      %v2763 = vpop.xlane.xlu0 %2762
      %v2764 = vsel %vm1877, %v2743, 0.0
      %2765 = vadd.xlane.f32.xlu0 %v2764
      %v2766 = vpop.xlane.xlu0 %2765
      %v2767 = vsel %vm1877, %v2745, 0.0
      %2768 = vadd.xlane.f32.xlu0 %v2767
      %v2769 = vpop.xlane.xlu0 %2768
      %2770 = vrot.lane.b32.xlu0 %v1686, 80
      %v2771 = vpop.permute.xlu0 %2770
      %2772 = vrot.lane.b32.xlu0 %v1691, 80
      %v2773 = vpop.permute.xlu0 %2772
      %2774 = vrot.lane.b32.xlu0 %v1696, 80
      %v2775 = vpop.permute.xlu0 %2774
      %2776 = vrot.lane.b32.xlu0 %v1701, 80
      %v2777 = vpop.permute.xlu0 %2776
      %2778 = vrot.lane.b32.xlu0 %v1706, 80
      %v2779 = vpop.permute.xlu0 %2778
      %2780 = vrot.lane.b32.xlu0 %v1711, 80
      %v2781 = vpop.permute.xlu0 %2780
      %2782 = vrot.lane.b32.xlu0 %v1716, 80
      %v2783 = vpop.permute.xlu0 %2782
      %2784 = vrot.lane.b32.xlu0 %v1721, 80
      %v2785 = vpop.permute.xlu0 %2784
      %v2795 = vsel %vm1877, %v2731, 0
      %v2798 = vsel %vm1877, %v2733, 0
      %v2801 = vsel %vm1877, %v2735, 0
      %v2804 = vsel %vm1877, %v2737, 0
      %v2807 = vsel %vm1877, %v2739, 0
      %v2810 = vsel %vm1877, %v2741, 0
      %v2813 = vsel %vm1877, %v2743, 0
      %v2816 = vsel %vm1877, %v2745, 0
      %2818 = vmatprep.subr.mxu0 0.0
      %2819 = vmatpush1.msra.mxu0 %v2771
      %2820 = vmatprep.subr.mxu0 0.0
      %2821 = vmatpush1.msra.mxu0 %v2773
      %2822 = vmatprep.subr.mxu0 0.0
      %2823 = vmatpush1.msra.mxu0 %v2775
      %2824 = vmatprep.subr.mxu0 0.0
      %2825 = vmatpush1.msra.mxu0 %v2777
      %2826 = vmatprep.subr.mxu0 0.0
      %2827 = vmatpush1.msra.mxu0 %v2779
      %2828 = vmatprep.subr.mxu0 0.0
      %2829 = vmatpush1.msra.mxu0 %v2781
      %2830 = vmatprep.subr.mxu0 0.0
      %2831 = vmatpush1.msra.mxu0 %v2783
      %2832 = vmatprep.subr.mxu0 0.0
      %2833 = vmatpush1.msra.mxu0 %v2785
      %2834 = vmatprep.subr.mxu0 0.0
      %2835 = vmatpush1.msra.mxu0 0.0
      %2836 = vmatprep.subr.mxu0 0.0
      %2837 = vmatpush1.msra.mxu0 0.0
      %2838 = vmatprep.subr.mxu0 0.0
      %2839 = vmatpush1.msra.mxu0 0.0
      %2840 = vmatprep.subr.mxu0 0.0
      %2841 = vmatpush1.msra.mxu0 0.0
      %2842 = vmatprep.subr.mxu0 0.0
      %2843 = vmatpush1.msra.mxu0 0.0
      %2844 = vmatprep.subr.mxu0 0.0
      %2845 = vmatpush1.msra.mxu0 0.0
      %2846 = vmatprep.subr.mxu0 0.0
      %2847 = vmatpush1.msra.mxu0 0.0
      %2848 = vmatprep.subr.mxu0 0.0
      %2849 = vmatpush1.msra.mxu0 0.0
      %2850 = vmatprep.subr.mxu0 0.0
      %2851 = vmatpush1.msra.mxu0 0.0
      %2852 = vmatprep.subr.mxu0 0.0
      %2853 = vmatpush1.msra.mxu0 0.0
      %2854 = vmatprep.subr.mxu0 0.0
      %2855 = vmatpush1.msra.mxu0 0.0
      %2856 = vmatprep.subr.mxu0 0.0
      %2857 = vmatpush1.msra.mxu0 0.0
      %2858 = vmatprep.subr.mxu0 0.0
      %2859 = vmatpush1.msra.mxu0 0.0
      %2860 = vmatprep.subr.mxu0 0.0
      %2861 = vmatpush1.msra.mxu0 0.0
      %2862 = vmatprep.subr.mxu0 0.0
      %2863 = vmatpush1.msra.mxu0 0.0
      %2864 = vmatprep.subr.mxu0 0.0
      %2865 = vmatpush1.msra.mxu0 0.0
      %2866 = vmatprep.subr.mxu0 0.0
      %2867 = vmatpush1.msra.mxu0 0.0
      %2868 = vmatprep.subr.mxu0 0.0
      %2869 = vmatpush1.msra.mxu0 0.0
      %2870 = vmatprep.subr.mxu0 0.0
      %2871 = vmatpush1.msra.mxu0 0.0
      %2872 = vmatprep.subr.mxu0 0.0
      %2873 = vmatpush1.msra.mxu0 0.0
      %2874 = vmatprep.subr.mxu0 0.0
      %2875 = vmatpush1.msra.mxu0 0.0
      %2876 = vmatprep.subr.mxu0 0.0
      %2877 = vmatpush1.msra.mxu0 0.0
      %2878 = vmatprep.subr.mxu0 0.0
      %2879 = vmatpush1.msra.mxu0 0.0
      %2880 = vmatprep.subr.mxu0 0.0
      %2881 = vmatpush1.msra.mxu0 0.0
      %2882 = vmatprep.mubr.f32.mxu0 0.0
      %2883 = vmatmul.mubr.f32.gmra.mrb[0].mxu0 %v2795
      %v2884 = vpop.f32.mrb[0].mxu0
      %v2885 = vadd.f32 0.0, %v2884
      %v2886 = vpop.f32.mrb[0].mxu0
      %2887 = vmatprep.mubr.f32.mxu0 0.0
      %2888 = vmatmul.mubr.f32.gmra.mrb[0].mxu0 %v2798
      %v2889 = vpop.f32.mrb[0].mxu0
      %v2890 = vadd.f32 0.0, %v2889
      %v2891 = vpop.f32.mrb[0].mxu0
      %2892 = vmatprep.mubr.f32.mxu0 0.0
      %2893 = vmatmul.mubr.f32.gmra.mrb[0].mxu0 %v2801
      %v2894 = vpop.f32.mrb[0].mxu0
      %v2895 = vadd.f32 0.0, %v2894
      %v2896 = vpop.f32.mrb[0].mxu0
      %2897 = vmatprep.mubr.f32.mxu0 0.0
      %2898 = vmatmul.mubr.f32.gmra.mrb[0].mxu0 %v2804
      %v2899 = vpop.f32.mrb[0].mxu0
      %v2900 = vadd.f32 0.0, %v2899
      %v2901 = vpop.f32.mrb[0].mxu0
      %2902 = vmatprep.mubr.f32.mxu0 0.0
      %2903 = vmatmul.mubr.f32.gmra.mrb[0].mxu0 %v2807
      %v2904 = vpop.f32.mrb[0].mxu0
      %v2905 = vadd.f32 0.0, %v2904
      %v2906 = vpop.f32.mrb[0].mxu0
      %2907 = vmatprep.mubr.f32.mxu0 0.0
      %2908 = vmatmul.mubr.f32.gmra.mrb[0].mxu0 %v2810
      %v2909 = vpop.f32.mrb[0].mxu0
      %v2910 = vadd.f32 0.0, %v2909
      %v2911 = vpop.f32.mrb[0].mxu0
      %2912 = vmatprep.mubr.f32.mxu0 0.0
      %2913 = vmatmul.mubr.f32.gmra.mrb[0].mxu0 %v2813
      %v2914 = vpop.f32.mrb[0].mxu0
      %v2915 = vadd.f32 0.0, %v2914
      %v2916 = vpop.f32.mrb[0].mxu0
      %2917 = vmatprep.mubr.f32.mxu0 0.0
      %2918 = vmatmul.mubr.f32.gmra.mrb[0].mxu0 %v2816
      %v2919 = vpop.f32.mrb[0].mxu0
      %v2920 = vadd.f32 0.0, %v2919
      %v2921 = vpop.f32.mrb[0].mxu0
      %2922 = vdwg.mxu0
      %v2923 = vrcp.pop %v2748
      %v2924 = vrcp.pop %v2751
      %v2925 = vrcp.pop %v2754
      %v2926 = vrcp.pop %v2757
      %v2927 = vrcp.pop %v2760
      %v2928 = vrcp.pop %v2763
      %v2929 = vrcp.pop %v2766
      %v2930 = vrcp.pop %v2769
      %v2931 = vmul.f32 %v2885, %v2923
      %v2932 = vmul.f32 %v2890, %v2924
      %v2933 = vmul.f32 %v2895, %v2925
      %v2934 = vmul.f32 %v2900, %v2926
      %v2935 = vmul.f32 %v2905, %v2927
      %v2936 = vmul.f32 %v2910, %v2928
      %v2937 = vmul.f32 %v2915, %v2929
      %v2938 = vmul.f32 %v2920, %v2930
      %2939 = vrot.lane.b32.xlu0 %v1565, 104
      %v2940 = vpop.permute.xlu0 %2939
      %2941 = vrot.lane.b32.xlu0 %v1566, 104
      %v2942 = vpop.permute.xlu0 %2941
      %2943 = vrot.lane.b32.xlu0 %v1567, 104
      %v2944 = vpop.permute.xlu0 %2943
      %2945 = vrot.lane.b32.xlu0 %v1568, 104
      %v2946 = vpop.permute.xlu0 %2945
      %2947 = vrot.lane.b32.xlu0 %v1569, 104
      %v2948 = vpop.permute.xlu0 %2947
      %2949 = vrot.lane.b32.xlu0 %v1570, 104
      %v2950 = vpop.permute.xlu0 %2949
      %2951 = vrot.lane.b32.xlu0 %v1571, 104
      %v2952 = vpop.permute.xlu0 %2951
      %2953 = vrot.lane.b32.xlu0 %v1572, 104
      %v2954 = vpop.permute.xlu0 %2953
      %2955 = vrot.lane.b32.xlu0 %v1686, 104
      %v2956 = vpop.permute.xlu0 %2955
      %2957 = vrot.lane.b32.xlu0 %v1691, 104
      %v2958 = vpop.permute.xlu0 %2957
      %2959 = vrot.lane.b32.xlu0 %v1696, 104
      %v2960 = vpop.permute.xlu0 %2959
      %2961 = vrot.lane.b32.xlu0 %v1701, 104
      %v2962 = vpop.permute.xlu0 %2961
      %2963 = vrot.lane.b32.xlu0 %v1706, 104
      %v2964 = vpop.permute.xlu0 %2963
      %2965 = vrot.lane.b32.xlu0 %v1711, 104
      %v2966 = vpop.permute.xlu0 %2965
      %2967 = vrot.lane.b32.xlu0 %v1716, 104
      %v2968 = vpop.permute.xlu0 %2967
      %2969 = vrot.lane.b32.xlu0 %v1721, 104
      %v2970 = vpop.permute.xlu0 %2969
      %v2971 = vsel %vm906, %v2940, 0
      %v2973 = vsel %vm906, %v2942, 0
      %v2975 = vsel %vm906, %v2944, 0
      %v2977 = vsel %vm906, %v2946, 0
      %v2979 = vsel %vm906, %v2948, 0
      %v2981 = vsel %vm906, %v2950, 0
      %v2983 = vsel %vm906, %v2952, 0
      %v2985 = vsel %vm906, %v2954, 0
      %v2987 = vsel %vm906, %v2956, 0
      %v2989 = vsel %vm906, %v2958, 0
      %v2991 = vsel %vm906, %v2960, 0
      %v2993 = vsel %vm906, %v2962, 0
      %v2995 = vsel %vm906, %v2964, 0
      %v2997 = vsel %vm906, %v2966, 0
      %v2999 = vsel %vm906, %v2968, 0
      %v3001 = vsel %vm906, %v2970, 0
      %3003 = vmatprep.subr.mxu0 0.0
      %3004 = vmatpush1.xpose.msra.mxu0 %v2987
      %3005 = vmatprep.subr.mxu0 0.0
      %3006 = vmatpush1.xpose.msra.mxu0 %v2989
      %3007 = vmatprep.subr.mxu0 0.0
      %3008 = vmatpush1.xpose.msra.mxu0 %v2991
      %3009 = vmatprep.subr.mxu0 0.0
      %3010 = vmatpush1.xpose.msra.mxu0 %v2993
      %3011 = vmatprep.subr.mxu0 0.0
      %3012 = vmatpush1.xpose.msra.mxu0 %v2995
      %3013 = vmatprep.subr.mxu0 0.0
      %3014 = vmatpush1.xpose.msra.mxu0 %v2997
      %3015 = vmatprep.subr.mxu0 0.0
      %3016 = vmatpush1.xpose.msra.mxu0 %v2999
      %3017 = vmatprep.subr.mxu0 0.0
      %3018 = vmatpush1.xpose.msra.mxu0 %v3001
      %3019 = vmatprep.subr.mxu0 0.0
      %3020 = vmatpush1.xpose.msra.mxu0 0.0
      %3021 = vmatprep.subr.mxu0 0.0
      %3022 = vmatpush1.xpose.msra.mxu0 0.0
      %3023 = vmatprep.subr.mxu0 0.0
      %3024 = vmatpush1.xpose.msra.mxu0 0.0
      %3025 = vmatprep.subr.mxu0 0.0
      %3026 = vmatpush1.xpose.msra.mxu0 0.0
      %3027 = vmatprep.subr.mxu0 0.0
      %3028 = vmatpush1.xpose.msra.mxu0 0.0
      %3029 = vmatprep.subr.mxu0 0.0
      %3030 = vmatpush1.xpose.msra.mxu0 0.0
      %3031 = vmatprep.subr.mxu0 0.0
      %3032 = vmatpush1.xpose.msra.mxu0 0.0
      %3033 = vmatprep.subr.mxu0 0.0
      %3034 = vmatpush1.xpose.msra.mxu0 0.0
      %3035 = vmatprep.subr.mxu0 0.0
      %3036 = vmatpush1.xpose.msra.mxu0 0.0
      %3037 = vmatprep.subr.mxu0 0.0
      %3038 = vmatpush1.xpose.msra.mxu0 0.0
      %3039 = vmatprep.subr.mxu0 0.0
      %3040 = vmatpush1.xpose.msra.mxu0 0.0
      %3041 = vmatprep.subr.mxu0 0.0
      %3042 = vmatpush1.xpose.msra.mxu0 0.0
      %3043 = vmatprep.subr.mxu0 0.0
      %3044 = vmatpush1.xpose.msra.mxu0 0.0
      %3045 = vmatprep.subr.mxu0 0.0
      %3046 = vmatpush1.xpose.msra.mxu0 0.0
      %3047 = vmatprep.subr.mxu0 0.0
      %3048 = vmatpush1.xpose.msra.mxu0 0.0
      %3049 = vmatprep.subr.mxu0 0.0
      %3050 = vmatpush1.xpose.msra.mxu0 0.0
      %3051 = vmatprep.subr.mxu0 0.0
      %3052 = vmatpush1.xpose.msra.mxu0 0.0
      %3053 = vmatprep.subr.mxu0 0.0
      %3054 = vmatpush1.xpose.msra.mxu0 0.0
      %3055 = vmatprep.subr.mxu0 0.0
      %3056 = vmatpush1.xpose.msra.mxu0 0.0
      %3057 = vmatprep.subr.mxu0 0.0
      %3058 = vmatpush1.xpose.msra.mxu0 0.0
      %3059 = vmatprep.subr.mxu0 0.0
      %3060 = vmatpush1.xpose.msra.mxu0 0.0
      %3061 = vmatprep.subr.mxu0 0.0
      %3062 = vmatpush1.xpose.msra.mxu0 0.0
      %3063 = vmatprep.subr.mxu0 0.0
      %3064 = vmatpush1.xpose.msra.mxu0 0.0
      %3065 = vmatprep.subr.mxu0 0.0
      %3066 = vmatpush1.xpose.msra.mxu0 0.0
      %3067 = vmatprep.mubr.f32.mxu0 0.0
      %3068 = vmatmul.mubr.f32.gmra.mrb[0].mxu0 %v2971
      %v3069 = vpop.f32.mrb[0].mxu0
      %v3070 = vadd.f32 0.0, %v3069
      %v3071 = vpop.f32.mrb[0].mxu0
      %3072 = vmatprep.mubr.f32.mxu0 0.0
      %3073 = vmatmul.mubr.f32.gmra.mrb[0].mxu0 %v2973
      %v3074 = vpop.f32.mrb[0].mxu0
      %v3075 = vadd.f32 0.0, %v3074
      %v3076 = vpop.f32.mrb[0].mxu0
      %3077 = vmatprep.mubr.f32.mxu0 0.0
      %3078 = vmatmul.mubr.f32.gmra.mrb[0].mxu0 %v2975
      %v3079 = vpop.f32.mrb[0].mxu0
      %v3080 = vadd.f32 0.0, %v3079
      %v3081 = vpop.f32.mrb[0].mxu0
      %3082 = vmatprep.mubr.f32.mxu0 0.0
      %3083 = vmatmul.mubr.f32.gmra.mrb[0].mxu0 %v2977
      %v3084 = vpop.f32.mrb[0].mxu0
      %v3085 = vadd.f32 0.0, %v3084
      %v3086 = vpop.f32.mrb[0].mxu0
      %3087 = vmatprep.mubr.f32.mxu0 0.0
      %3088 = vmatmul.mubr.f32.gmra.mrb[0].mxu0 %v2979
      %v3089 = vpop.f32.mrb[0].mxu0
      %v3090 = vadd.f32 0.0, %v3089
      %v3091 = vpop.f32.mrb[0].mxu0
      %3092 = vmatprep.mubr.f32.mxu0 0.0
      %3093 = vmatmul.mubr.f32.gmra.mrb[0].mxu0 %v2981
      %v3094 = vpop.f32.mrb[0].mxu0
      %v3095 = vadd.f32 0.0, %v3094
      %v3096 = vpop.f32.mrb[0].mxu0
      %3097 = vmatprep.mubr.f32.mxu0 0.0
      %3098 = vmatmul.mubr.f32.gmra.mrb[0].mxu0 %v2983
      %v3099 = vpop.f32.mrb[0].mxu0
      %v3100 = vadd.f32 0.0, %v3099
      %v3101 = vpop.f32.mrb[0].mxu0
      %3102 = vmatprep.mubr.f32.mxu0 0.0
      %3103 = vmatmul.mubr.f32.gmra.mrb[0].mxu0 %v2985
      %v3104 = vpop.f32.mrb[0].mxu0
      %v3105 = vadd.f32 0.0, %v3104
      %v3106 = vpop.f32.mrb[0].mxu0
      %3107 = vdwg.mxu0
      %v3108 = vsel %vm1877, %v3070, -inf
      %3109 = vmax.xlane.f32.xlu0 %v3108
      %v3110 = vpop.xlane.xlu0 %3109
      %v3111 = vsel %vm1877, %v3075, -inf
      %3112 = vmax.xlane.f32.xlu0 %v3111
      %v3113 = vpop.xlane.xlu0 %3112
      %v3114 = vsel %vm1877, %v3080, -inf
      %3115 = vmax.xlane.f32.xlu0 %v3114
      %v3116 = vpop.xlane.xlu0 %3115
      %v3117 = vsel %vm1877, %v3085, -inf
      %3118 = vmax.xlane.f32.xlu0 %v3117
      %v3119 = vpop.xlane.xlu0 %3118
      %v3120 = vsel %vm1877, %v3090, -inf
      %3121 = vmax.xlane.f32.xlu0 %v3120
      %v3122 = vpop.xlane.xlu0 %3121
      %v3123 = vsel %vm1877, %v3095, -inf
      %3124 = vmax.xlane.f32.xlu0 %v3123
      %v3125 = vpop.xlane.xlu0 %3124
      %v3126 = vsel %vm1877, %v3100, -inf
      %3127 = vmax.xlane.f32.xlu0 %v3126
      %v3128 = vpop.xlane.xlu0 %3127
      %v3129 = vsel %vm1877, %v3105, -inf
      %3130 = vmax.xlane.f32.xlu0 %v3129
      %v3131 = vpop.xlane.xlu0 %3130
      %v3132 = vsub.f32 %v3070, %v3110
      %v3133 = vsub.f32 %v3075, %v3113
      %v3134 = vsub.f32 %v3080, %v3116
      %v3135 = vsub.f32 %v3085, %v3119
      %v3136 = vsub.f32 %v3090, %v3122
      %v3137 = vsub.f32 %v3095, %v3125
      %v3138 = vsub.f32 %v3100, %v3128
      %v3139 = vsub.f32 %v3105, %v3131
      %v3140 = vmul.f32 %v3132, 1.442695
      %v3141 = vpow.pop %v3140
      %v3142 = vmul.f32 %v3133, 1.442695
      %v3143 = vpow.pop %v3142
      %v3144 = vmul.f32 %v3134, 1.442695
      %v3145 = vpow.pop %v3144
      %v3146 = vmul.f32 %v3135, 1.442695
      %v3147 = vpow.pop %v3146
      %v3148 = vmul.f32 %v3136, 1.442695
      %v3149 = vpow.pop %v3148
      %v3150 = vmul.f32 %v3137, 1.442695
      %v3151 = vpow.pop %v3150
      %v3152 = vmul.f32 %v3138, 1.442695
      %v3153 = vpow.pop %v3152
      %v3154 = vmul.f32 %v3139, 1.442695
      %v3155 = vpow.pop %v3154
      %v3156 = vsel %vm1877, %v3141, 0.0
      %3157 = vadd.xlane.f32.xlu0 %v3156
      %v3158 = vpop.xlane.xlu0 %3157
      %v3159 = vsel %vm1877, %v3143, 0.0
      %3160 = vadd.xlane.f32.xlu0 %v3159
      %v3161 = vpop.xlane.xlu0 %3160
      %v3162 = vsel %vm1877, %v3145, 0.0
      %3163 = vadd.xlane.f32.xlu0 %v3162
      %v3164 = vpop.xlane.xlu0 %3163
      %v3165 = vsel %vm1877, %v3147, 0.0
      %3166 = vadd.xlane.f32.xlu0 %v3165
      %v3167 = vpop.xlane.xlu0 %3166
      %v3168 = vsel %vm1877, %v3149, 0.0
      %3169 = vadd.xlane.f32.xlu0 %v3168
      %v3170 = vpop.xlane.xlu0 %3169
      %v3171 = vsel %vm1877, %v3151, 0.0
      %3172 = vadd.xlane.f32.xlu0 %v3171
      %v3173 = vpop.xlane.xlu0 %3172
      %v3174 = vsel %vm1877, %v3153, 0.0
      %3175 = vadd.xlane.f32.xlu0 %v3174
      %v3176 = vpop.xlane.xlu0 %3175
      %v3177 = vsel %vm1877, %v3155, 0.0
      %3178 = vadd.xlane.f32.xlu0 %v3177
      %v3179 = vpop.xlane.xlu0 %3178
      %3180 = vrot.lane.b32.xlu0 %v1686, 72
      %v3181 = vpop.permute.xlu0 %3180
      %3182 = vrot.lane.b32.xlu0 %v1691, 72
      %v3183 = vpop.permute.xlu0 %3182
      %3184 = vrot.lane.b32.xlu0 %v1696, 72
      %v3185 = vpop.permute.xlu0 %3184
      %3186 = vrot.lane.b32.xlu0 %v1701, 72
      %v3187 = vpop.permute.xlu0 %3186
      %3188 = vrot.lane.b32.xlu0 %v1706, 72
      %v3189 = vpop.permute.xlu0 %3188
      %3190 = vrot.lane.b32.xlu0 %v1711, 72
      %v3191 = vpop.permute.xlu0 %3190
      %3192 = vrot.lane.b32.xlu0 %v1716, 72
      %v3193 = vpop.permute.xlu0 %3192
      %3194 = vrot.lane.b32.xlu0 %v1721, 72
      %v3195 = vpop.permute.xlu0 %3194
      %v3205 = vsel %vm1877, %v3141, 0
      %v3208 = vsel %vm1877, %v3143, 0
      %v3211 = vsel %vm1877, %v3145, 0
      %v3214 = vsel %vm1877, %v3147, 0
      %v3217 = vsel %vm1877, %v3149, 0
      %v3220 = vsel %vm1877, %v3151, 0
      %v3223 = vsel %vm1877, %v3153, 0
      %v3226 = vsel %vm1877, %v3155, 0
      %3228 = vmatprep.subr.mxu0 0.0
      %3229 = vmatpush1.msra.mxu0 %v3181
      %3230 = vmatprep.subr.mxu0 0.0
      %3231 = vmatpush1.msra.mxu0 %v3183
      %3232 = vmatprep.subr.mxu0 0.0
      %3233 = vmatpush1.msra.mxu0 %v3185
      %3234 = vmatprep.subr.mxu0 0.0
      %3235 = vmatpush1.msra.mxu0 %v3187
      %3236 = vmatprep.subr.mxu0 0.0
      %3237 = vmatpush1.msra.mxu0 %v3189
      %3238 = vmatprep.subr.mxu0 0.0
      %3239 = vmatpush1.msra.mxu0 %v3191
      %3240 = vmatprep.subr.mxu0 0.0
      %3241 = vmatpush1.msra.mxu0 %v3193
      %3242 = vmatprep.subr.mxu0 0.0
      %3243 = vmatpush1.msra.mxu0 %v3195
      %3244 = vmatprep.subr.mxu0 0.0
      %3245 = vmatpush1.msra.mxu0 0.0
      %3246 = vmatprep.subr.mxu0 0.0
      %3247 = vmatpush1.msra.mxu0 0.0
      %3248 = vmatprep.subr.mxu0 0.0
      %3249 = vmatpush1.msra.mxu0 0.0
      %3250 = vmatprep.subr.mxu0 0.0
      %3251 = vmatpush1.msra.mxu0 0.0
      %3252 = vmatprep.subr.mxu0 0.0
      %3253 = vmatpush1.msra.mxu0 0.0
      %3254 = vmatprep.subr.mxu0 0.0
      %3255 = vmatpush1.msra.mxu0 0.0
      %3256 = vmatprep.subr.mxu0 0.0
      %3257 = vmatpush1.msra.mxu0 0.0
      %3258 = vmatprep.subr.mxu0 0.0
      %3259 = vmatpush1.msra.mxu0 0.0
      %3260 = vmatprep.subr.mxu0 0.0
      %3261 = vmatpush1.msra.mxu0 0.0
      %3262 = vmatprep.subr.mxu0 0.0
      %3263 = vmatpush1.msra.mxu0 0.0
      %3264 = vmatprep.subr.mxu0 0.0
      %3265 = vmatpush1.msra.mxu0 0.0
      %3266 = vmatprep.subr.mxu0 0.0
      %3267 = vmatpush1.msra.mxu0 0.0
      %3268 = vmatprep.subr.mxu0 0.0
      %3269 = vmatpush1.msra.mxu0 0.0
      %3270 = vmatprep.subr.mxu0 0.0
      %3271 = vmatpush1.msra.mxu0 0.0
      %3272 = vmatprep.subr.mxu0 0.0
      %3273 = vmatpush1.msra.mxu0 0.0
      %3274 = vmatprep.subr.mxu0 0.0
      %3275 = vmatpush1.msra.mxu0 0.0
      %3276 = vmatprep.subr.mxu0 0.0
      %3277 = vmatpush1.msra.mxu0 0.0
      %3278 = vmatprep.subr.mxu0 0.0
      %3279 = vmatpush1.msra.mxu0 0.0
      %3280 = vmatprep.subr.mxu0 0.0
      %3281 = vmatpush1.msra.mxu0 0.0
      %3282 = vmatprep.subr.mxu0 0.0
      %3283 = vmatpush1.msra.mxu0 0.0
      %3284 = vmatprep.subr.mxu0 0.0
      %3285 = vmatpush1.msra.mxu0 0.0
      %3286 = vmatprep.subr.mxu0 0.0
      %3287 = vmatpush1.msra.mxu0 0.0
      %3288 = vmatprep.subr.mxu0 0.0
      %3289 = vmatpush1.msra.mxu0 0.0
      %3290 = vmatprep.subr.mxu0 0.0
      %3291 = vmatpush1.msra.mxu0 0.0
      %3292 = vmatprep.mubr.f32.mxu0 0.0
      %3293 = vmatmul.mubr.f32.gmra.mrb[0].mxu0 %v3205
      %v3294 = vpop.f32.mrb[0].mxu0
      %v3295 = vadd.f32 0.0, %v3294
      %v3296 = vpop.f32.mrb[0].mxu0
      %3297 = vmatprep.mubr.f32.mxu0 0.0
      %3298 = vmatmul.mubr.f32.gmra.mrb[0].mxu0 %v3208
      %v3299 = vpop.f32.mrb[0].mxu0
      %v3300 = vadd.f32 0.0, %v3299
      %v3301 = vpop.f32.mrb[0].mxu0
      %3302 = vmatprep.mubr.f32.mxu0 0.0
      %3303 = vmatmul.mubr.f32.gmra.mrb[0].mxu0 %v3211
      %v3304 = vpop.f32.mrb[0].mxu0
      %v3305 = vadd.f32 0.0, %v3304
      %v3306 = vpop.f32.mrb[0].mxu0
      %3307 = vmatprep.mubr.f32.mxu0 0.0
      %3308 = vmatmul.mubr.f32.gmra.mrb[0].mxu0 %v3214
      %v3309 = vpop.f32.mrb[0].mxu0
      %v3310 = vadd.f32 0.0, %v3309
      %v3311 = vpop.f32.mrb[0].mxu0
      %3312 = vmatprep.mubr.f32.mxu0 0.0
      %3313 = vmatmul.mubr.f32.gmra.mrb[0].mxu0 %v3217
      %v3314 = vpop.f32.mrb[0].mxu0
      %v3315 = vadd.f32 0.0, %v3314
      %v3316 = vpop.f32.mrb[0].mxu0
      %3317 = vmatprep.mubr.f32.mxu0 0.0
      %3318 = vmatmul.mubr.f32.gmra.mrb[0].mxu0 %v3220
      %v3319 = vpop.f32.mrb[0].mxu0
      %v3320 = vadd.f32 0.0, %v3319
      %v3321 = vpop.f32.mrb[0].mxu0
      %3322 = vmatprep.mubr.f32.mxu0 0.0
      %3323 = vmatmul.mubr.f32.gmra.mrb[0].mxu0 %v3223
      %v3324 = vpop.f32.mrb[0].mxu0
      %v3325 = vadd.f32 0.0, %v3324
      %v3326 = vpop.f32.mrb[0].mxu0
      %3327 = vmatprep.mubr.f32.mxu0 0.0
      %3328 = vmatmul.mubr.f32.gmra.mrb[0].mxu0 %v3226
      %v3329 = vpop.f32.mrb[0].mxu0
      %v3330 = vadd.f32 0.0, %v3329
      %v3331 = vpop.f32.mrb[0].mxu0
      %3332 = vdwg.mxu0
      %v3333 = vrcp.pop %v3158
      %v3334 = vrcp.pop %v3161
      %v3335 = vrcp.pop %v3164
      %v3336 = vrcp.pop %v3167
      %v3337 = vrcp.pop %v3170
      %v3338 = vrcp.pop %v3173
      %v3339 = vrcp.pop %v3176
      %v3340 = vrcp.pop %v3179
      %v3341 = vmul.f32 %v3295, %v3333
      %v3342 = vmul.f32 %v3300, %v3334
      %v3343 = vmul.f32 %v3305, %v3335
      %v3344 = vmul.f32 %v3310, %v3336
      %v3345 = vmul.f32 %v3315, %v3337
      %v3346 = vmul.f32 %v3320, %v3338
      %v3347 = vmul.f32 %v3325, %v3339
      %v3348 = vmul.f32 %v3330, %v3340
      %3357 = vrot.lane.b32.xlu0 %v2521, 8
      %v3358 = vpop.permute.xlu0 %3357
      %3359 = vrot.lane.b32.xlu0 %v2522, 8
      %v3360 = vpop.permute.xlu0 %3359
      %3361 = vrot.lane.b32.xlu0 %v2523, 8
      %v3362 = vpop.permute.xlu0 %3361
      %3363 = vrot.lane.b32.xlu0 %v2524, 8
      %v3364 = vpop.permute.xlu0 %3363
      %3365 = vrot.lane.b32.xlu0 %v2525, 8
      %v3366 = vpop.permute.xlu0 %3365
      %3367 = vrot.lane.b32.xlu0 %v2526, 8
      %v3368 = vpop.permute.xlu0 %3367
      %3369 = vrot.lane.b32.xlu0 %v2527, 8
      %v3370 = vpop.permute.xlu0 %3369
      %3371 = vrot.lane.b32.xlu0 %v2528, 8
      %v3372 = vpop.permute.xlu0 %3371
      %3389 = vrot.lane.b32.xlu0 %v2931, 16
      %v3390 = vpop.permute.xlu0 %3389
      %3391 = vrot.lane.b32.xlu0 %v2932, 16
      %v3392 = vpop.permute.xlu0 %3391
      %3393 = vrot.lane.b32.xlu0 %v2933, 16
      %v3394 = vpop.permute.xlu0 %3393
      %3395 = vrot.lane.b32.xlu0 %v2934, 16
      %v3396 = vpop.permute.xlu0 %3395
      %3397 = vrot.lane.b32.xlu0 %v2935, 16
      %v3398 = vpop.permute.xlu0 %3397
      %3399 = vrot.lane.b32.xlu0 %v2936, 16
      %v3400 = vpop.permute.xlu0 %3399
      %3401 = vrot.lane.b32.xlu0 %v2937, 16
      %v3402 = vpop.permute.xlu0 %3401
      %3403 = vrot.lane.b32.xlu0 %v2938, 16
      %v3404 = vpop.permute.xlu0 %3403
      %3421 = vrot.lane.b32.xlu0 %v3341, 24
      %v3422 = vpop.permute.xlu0 %3421
      %3423 = vrot.lane.b32.xlu0 %v3342, 24
      %v3424 = vpop.permute.xlu0 %3423
      %3425 = vrot.lane.b32.xlu0 %v3343, 24
      %v3426 = vpop.permute.xlu0 %3425
      %3427 = vrot.lane.b32.xlu0 %v3344, 24
      %v3428 = vpop.permute.xlu0 %3427
      %3429 = vrot.lane.b32.xlu0 %v3345, 24
      %v3430 = vpop.permute.xlu0 %3429
      %3431 = vrot.lane.b32.xlu0 %v3346, 24
      %v3432 = vpop.permute.xlu0 %3431
      %3433 = vrot.lane.b32.xlu0 %v3347, 24
      %v3434 = vpop.permute.xlu0 %3433
      %3435 = vrot.lane.b32.xlu0 %v3348, 24
      %v3436 = vpop.permute.xlu0 %3435
      %v3445 = vsel %vm906, %v2111, %v3358
      %v3446 = vsel %vm906, %v2112, %v3360
      %v3447 = vsel %vm906, %v2113, %v3362
      %v3448 = vsel %vm906, %v2114, %v3364
      %v3449 = vsel %vm906, %v2115, %v3366
      %v3450 = vsel %vm906, %v2116, %v3368
      %v3451 = vsel %vm906, %v2117, %v3370
      %v3452 = vsel %vm906, %v2118, %v3372
      %vm3453 = vcmask 130048
      %v3454 = vsel %vm3453, %v3445, %v3390
      %v3455 = vsel %vm3453, %v3446, %v3392
      %v3456 = vsel %vm3453, %v3447, %v3394
      %v3457 = vsel %vm3453, %v3448, %v3396
      %v3458 = vsel %vm3453, %v3449, %v3398
      %v3459 = vsel %vm3453, %v3450, %v3400
      %v3460 = vsel %vm3453, %v3451, %v3402
      %v3461 = vsel %vm3453, %v3452, %v3404
      %vm3462 = vcmask 195584
      %v3463 = vsel %vm3462, %v3454, %v3422
      %v3464 = vsel %vm3462, %v3455, %v3424
      %v3465 = vsel %vm3462, %v3456, %v3426
      %v3466 = vsel %vm3462, %v3457, %v3428
      %v3467 = vsel %vm3462, %v3458, %v3430
      %v3468 = vsel %vm3462, %v3459, %v3432
      %v3469 = vsel %vm3462, %v3460, %v3434
      %v3470 = vsel %vm3462, %v3461, %v3436
      %v3472 = vlaneseq
      %v3473 = vshrl.u32 %v3472, 7
      %v3474 = vsub.s32 0, %v3473
      %v3475 = vrot.slane %v1000, %v3474
      %v3478 = vsel %vm684, %v3463, 0
      %v3481 = vsel %vm684, %v3464, 0
      %v3484 = vsel %vm684, %v3465, 0
      %v3487 = vsel %vm684, %v3466, 0
      %v3490 = vsel %vm684, %v3467, 0
      %v3493 = vsel %vm684, %v3468, 0
      %v3496 = vsel %vm684, %v3469, 0
      %v3499 = vsel %vm684, %v3470, 0
      %3501 = vmatprep.subr.mxu0 0.0
      %3502 = vmatpush1.msra.mxu0 %v996
      %3503 = vmatprep.subr.mxu0 0.0
      %3504 = vmatpush1.msra.mxu0 %v997
      %3505 = vmatprep.subr.mxu0 0.0
      %3506 = vmatpush1.msra.mxu0 %v998
      %3507 = vmatprep.subr.mxu0 0.0
      %3508 = vmatpush1.msra.mxu0 %v999
      %3509 = vmatprep.subr.mxu0 0.0
      %3510 = vmatpush1.msra.mxu0 0.0
      %3511 = vmatprep.subr.mxu0 0.0
      %3512 = vmatpush1.msra.mxu0 0.0
      %3513 = vmatprep.subr.mxu0 0.0
      %3514 = vmatpush1.msra.mxu0 0.0
      %3515 = vmatprep.subr.mxu0 0.0
      %3516 = vmatpush1.msra.mxu0 0.0
      %3517 = vmatprep.subr.mxu0 0.0
      %3518 = vmatpush1.msra.mxu0 0.0
      %3519 = vmatprep.subr.mxu0 0.0
      %3520 = vmatpush1.msra.mxu0 0.0
      %3521 = vmatprep.subr.mxu0 0.0
      %3522 = vmatpush1.msra.mxu0 0.0
      %3523 = vmatprep.subr.mxu0 0.0
      %3524 = vmatpush1.msra.mxu0 0.0
      %3525 = vmatprep.subr.mxu0 0.0
      %3526 = vmatpush1.msra.mxu0 0.0
      %3527 = vmatprep.subr.mxu0 0.0
      %3528 = vmatpush1.msra.mxu0 0.0
      %3529 = vmatprep.subr.mxu0 0.0
      %3530 = vmatpush1.msra.mxu0 0.0
      %3531 = vmatprep.subr.mxu0 0.0
      %3532 = vmatpush1.msra.mxu0 0.0
      %3533 = vmatprep.subr.mxu0 0.0
      %3534 = vmatpush1.msra.mxu0 0.0
      %3535 = vmatprep.subr.mxu0 0.0
      %3536 = vmatpush1.msra.mxu0 0.0
      %3537 = vmatprep.subr.mxu0 0.0
      %3538 = vmatpush1.msra.mxu0 0.0
      %3539 = vmatprep.subr.mxu0 0.0
      %3540 = vmatpush1.msra.mxu0 0.0
      %3541 = vmatprep.subr.mxu0 0.0
      %3542 = vmatpush1.msra.mxu0 0.0
      %3543 = vmatprep.subr.mxu0 0.0
      %3544 = vmatpush1.msra.mxu0 0.0
      %3545 = vmatprep.subr.mxu0 0.0
      %3546 = vmatpush1.msra.mxu0 0.0
      %3547 = vmatprep.subr.mxu0 0.0
      %3548 = vmatpush1.msra.mxu0 0.0
      %3549 = vmatprep.subr.mxu0 0.0
      %3550 = vmatpush1.msra.mxu0 0.0
      %3551 = vmatprep.subr.mxu0 0.0
      %3552 = vmatpush1.msra.mxu0 0.0
      %3553 = vmatprep.subr.mxu0 0.0
      %3554 = vmatpush1.msra.mxu0 0.0
      %3555 = vmatprep.subr.mxu0 0.0
      %3556 = vmatpush1.msra.mxu0 0.0
      %3557 = vmatprep.subr.mxu0 0.0
      %3558 = vmatpush1.msra.mxu0 0.0
      %3559 = vmatprep.subr.mxu0 0.0
      %3560 = vmatpush1.msra.mxu0 0.0
      %3561 = vmatprep.subr.mxu0 0.0
      %3562 = vmatpush1.msra.mxu0 0.0
      %3563 = vmatprep.subr.mxu0 0.0
      %3564 = vmatpush1.msra.mxu0 0.0
      %3565 = vmatprep.mubr.f32.mxu0 0.0
      %3566 = vmatmul.mubr.f32.gmra.mrb[0].mxu0 %v3478
      %v3567 = vpop.f32.mrb[0].mxu0
      %v3568 = vadd.f32 %v3475, %v3567
      %v3569 = vpop.f32.mrb[0].mxu0
      %3570 = vmatprep.mubr.f32.mxu0 0.0
      %3571 = vmatmul.mubr.f32.gmra.mrb[0].mxu0 %v3481
      %v3572 = vpop.f32.mrb[0].mxu0
      %v3573 = vadd.f32 %v3475, %v3572
      %v3574 = vpop.f32.mrb[0].mxu0
      %3575 = vmatprep.mubr.f32.mxu0 0.0
      %3576 = vmatmul.mubr.f32.gmra.mrb[0].mxu0 %v3484
      %v3577 = vpop.f32.mrb[0].mxu0
      %v3578 = vadd.f32 %v3475, %v3577
      %v3579 = vpop.f32.mrb[0].mxu0
      %3580 = vmatprep.mubr.f32.mxu0 0.0
      %3581 = vmatmul.mubr.f32.gmra.mrb[0].mxu0 %v3487
      %v3582 = vpop.f32.mrb[0].mxu0
      %v3583 = vadd.f32 %v3475, %v3582
      %v3584 = vpop.f32.mrb[0].mxu0
      %3585 = vmatprep.mubr.f32.mxu0 0.0
      %3586 = vmatmul.mubr.f32.gmra.mrb[0].mxu0 %v3490
      %v3587 = vpop.f32.mrb[0].mxu0
      %v3588 = vadd.f32 %v3475, %v3587
      %v3589 = vpop.f32.mrb[0].mxu0
      %3590 = vmatprep.mubr.f32.mxu0 0.0
      %3591 = vmatmul.mubr.f32.gmra.mrb[0].mxu0 %v3493
      %v3592 = vpop.f32.mrb[0].mxu0
      %v3593 = vadd.f32 %v3475, %v3592
      %v3594 = vpop.f32.mrb[0].mxu0
      %3595 = vmatprep.mubr.f32.mxu0 0.0
      %3596 = vmatmul.mubr.f32.gmra.mrb[0].mxu0 %v3496
      %v3597 = vpop.f32.mrb[0].mxu0
      %v3598 = vadd.f32 %v3475, %v3597
      %v3599 = vpop.f32.mrb[0].mxu0
      %3600 = vmatprep.mubr.f32.mxu0 0.0
      %3601 = vmatmul.mubr.f32.gmra.mrb[0].mxu0 %v3499
      %v3602 = vpop.f32.mrb[0].mxu0
      %v3603 = vadd.f32 %v3475, %v3602
      %v3604 = vpop.f32.mrb[0].mxu0
      %3605 = vdwg.mxu0
      %v3614 = vadd.f32 %v1390, %v1588
      %v3615 = vadd.f32 %v1391, %v1590
      %v3616 = vadd.f32 %v1392, %v1592
      %v3617 = vadd.f32 %v1393, %v1594
      %v3618 = vadd.f32 %v1394, %v1596
      %v3619 = vadd.f32 %v1395, %v1598
      %v3620 = vadd.f32 %v1396, %v1600
      %v3621 = vadd.f32 %v1397, %v1602
      %v3622 = vmul.f32 %v3614, 0.5
      %v3623 = vmul.f32 %v3615, 0.5
      %v3624 = vmul.f32 %v3616, 0.5
      %v3625 = vmul.f32 %v3617, 0.5
      %v3626 = vmul.f32 %v3618, 0.5
      %v3627 = vmul.f32 %v3619, 0.5
      %v3628 = vmul.f32 %v3620, 0.5
      %v3629 = vmul.f32 %v3621, 0.5
      %v3630 = vadd.f32 %v3568, %v3622
      %v3631 = vadd.f32 %v3573, %v3623
      %v3632 = vadd.f32 %v3578, %v3624
      %v3633 = vadd.f32 %v3583, %v3625
      %v3634 = vadd.f32 %v3588, %v3626
      %v3635 = vadd.f32 %v3593, %v3627
      %v3636 = vadd.f32 %v3598, %v3628
      %v3637 = vadd.f32 %v3603, %v3629
      %v3638 = vadd.f32 %v3630, %v596
      %v3639 = vadd.f32 %v3631, %v597
      %v3640 = vadd.f32 %v3632, %v598
      %v3641 = vadd.f32 %v3633, %v599
      %v3642 = vadd.f32 %v3634, %v600
      %v3643 = vadd.f32 %v3635, %v601
      %v3644 = vadd.f32 %v3636, %v602
      %v3645 = vadd.f32 %v3637, %v603
      %3646 = vst.msk [vmem:[%s595] sm:$0xff] %vm684, %v3638
      %3647 = vst.msk [vmem:[%s595 + $0x8] sm:$0xff] %vm684, %v3639
      %3648 = vst.msk [vmem:[%s595 + $0x10] sm:$0xff] %vm684, %v3640
      %3649 = vst.msk [vmem:[%s595 + $0x18] sm:$0xff] %vm684, %v3641
      %3650 = vst.msk [vmem:[%s595 + $0x20] sm:$0xff] %vm684, %v3642
      %3651 = vst.msk [vmem:[%s595 + $0x28] sm:$0xff] %vm684, %v3643
      %3652 = vst.msk [vmem:[%s595 + $0x30] sm:$0xff] %vm684, %v3644
      %3653 = vst.msk [vmem:[%s595 + $0x38] sm:$0xff] %vm684, %v3645
      %v3654 = vadd.f32 %v3630, %v604
      %v3655 = vadd.f32 %v3631, %v605
      %v3656 = vadd.f32 %v3632, %v606
      %v3657 = vadd.f32 %v3633, %v607
      %v3658 = vadd.f32 %v3634, %v608
      %v3659 = vadd.f32 %v3635, %v609
      %v3660 = vadd.f32 %v3636, %v610
      %v3661 = vadd.f32 %v3637, %v611
      %3670 = vrot.lane.b32.xlu0 %v3654, 32
      %v3671 = vpop.permute.xlu0 %3670
      %3672 = vrot.lane.b32.xlu0 %v3655, 32
      %v3673 = vpop.permute.xlu0 %3672
      %3674 = vrot.lane.b32.xlu0 %v3656, 32
      %v3675 = vpop.permute.xlu0 %3674
      %3676 = vrot.lane.b32.xlu0 %v3657, 32
      %v3677 = vpop.permute.xlu0 %3676
      %3678 = vrot.lane.b32.xlu0 %v3658, 32
      %v3679 = vpop.permute.xlu0 %3678
      %3680 = vrot.lane.b32.xlu0 %v3659, 32
      %v3681 = vpop.permute.xlu0 %3680
      %3682 = vrot.lane.b32.xlu0 %v3660, 32
      %v3683 = vpop.permute.xlu0 %3682
      %3684 = vrot.lane.b32.xlu0 %v3661, 32
      %v3685 = vpop.permute.xlu0 %3684
      %vm3694 = vcmask 523520
      %3695 = vst.msk [vmem:[%s595] sm:$0xff] %vm3694, %v3671
      %3696 = vst.msk [vmem:[%s595 + $0x8] sm:$0xff] %vm3694, %v3673
      %3697 = vst.msk [vmem:[%s595 + $0x10] sm:$0xff] %vm3694, %v3675
      %3698 = vst.msk [vmem:[%s595 + $0x18] sm:$0xff] %vm3694, %v3677
      %3699 = vst.msk [vmem:[%s595 + $0x20] sm:$0xff] %vm3694, %v3679
      %3700 = vst.msk [vmem:[%s595 + $0x28] sm:$0xff] %vm3694, %v3681
      %3701 = vst.msk [vmem:[%s595 + $0x30] sm:$0xff] %vm3694, %v3683
      %3702 = vst.msk [vmem:[%s595 + $0x38] sm:$0xff] %vm3694, %v3685
      %v3703 = vld [vmem:[%s9] sm:$0xff]
      %v3704 = vld [vmem:[%s9 + $0x8] sm:$0xff]
      %v3705 = vld [vmem:[%s9 + $0x10] sm:$0xff]
      %v3706 = vld [vmem:[%s9 + $0x18] sm:$0xff]
      %v3707 = vld [vmem:[%s10] sm:$0xff]
      %v3708 = vld [vmem:[%s10 + $0x8] sm:$0xff]
      %v3709 = vld [vmem:[%s10 + $0x10] sm:$0xff]
      %v3710 = vld [vmem:[%s10 + $0x18] sm:$0xff]
      %v3711 = vld [vmem:[%s11] sm:$0x1]
      %v3712 = vlaneseq
      %v3713 = vshrl.u32 %v3712, 7
      %v3714 = vsub.s32 1, %v3713
      %v3715 = vrot.slane %v985, %v3714
      %v3716 = vmul.f32 %v612, %v3715
      %v3717 = vmul.f32 %v613, %v3715
      %v3718 = vmul.f32 %v614, %v3715
      %v3719 = vmul.f32 %v615, %v3715
      %v3720 = vmul.f32 %v616, %v3715
      %v3721 = vmul.f32 %v617, %v3715
      %v3722 = vmul.f32 %v618, %v3715
      %v3723 = vmul.f32 %v619, %v3715
      %v3724 = vmul.f32 %v620, %v3715
      %v3725 = vmul.f32 %v621, %v3715
      %v3726 = vmul.f32 %v622, %v3715
      %v3727 = vmul.f32 %v623, %v3715
      %v3728 = vmul.f32 %v624, %v3715
      %v3729 = vmul.f32 %v625, %v3715
      %v3730 = vmul.f32 %v626, %v3715
      %v3731 = vmul.f32 %v627, %v3715
      %v3732 = vmul.f32 %v628, %v3715
      %v3733 = vmul.f32 %v629, %v3715
      %v3734 = vmul.f32 %v630, %v3715
      %v3735 = vmul.f32 %v631, %v3715
      %v3736 = vmul.f32 %v632, %v3715
      %v3737 = vmul.f32 %v633, %v3715
      %v3738 = vmul.f32 %v634, %v3715
      %v3739 = vmul.f32 %v635, %v3715
      %v3740 = vmul.f32 %v636, %v3715
      %v3741 = vmul.f32 %v637, %v3715
      %v3742 = vmul.f32 %v638, %v3715
      %v3743 = vmul.f32 %v639, %v3715
      %v3744 = vmul.f32 %v640, %v3715
      %v3745 = vmul.f32 %v641, %v3715
      %v3746 = vmul.f32 %v642, %v3715
      %v3747 = vmul.f32 %v643, %v3715
      %v3748 = vadd.f32 %v3716, %v612
      %v3749 = vadd.f32 %v3717, %v613
      %v3750 = vadd.f32 %v3718, %v614
      %v3751 = vadd.f32 %v3719, %v615
      %v3752 = vadd.f32 %v3720, %v616
      %v3753 = vadd.f32 %v3721, %v617
      %v3754 = vadd.f32 %v3722, %v618
      %v3755 = vadd.f32 %v3723, %v619
      %v3756 = vadd.f32 %v3724, %v620
      %v3757 = vadd.f32 %v3725, %v621
      %v3758 = vadd.f32 %v3726, %v622
      %v3759 = vadd.f32 %v3727, %v623
      %v3760 = vadd.f32 %v3728, %v624
      %v3761 = vadd.f32 %v3729, %v625
      %v3762 = vadd.f32 %v3730, %v626
      %v3763 = vadd.f32 %v3731, %v627
      %v3764 = vadd.f32 %v3732, %v628
      %v3765 = vadd.f32 %v3733, %v629
      %v3766 = vadd.f32 %v3734, %v630
      %v3767 = vadd.f32 %v3735, %v631
      %v3768 = vadd.f32 %v3736, %v632
      %v3769 = vadd.f32 %v3737, %v633
      %v3770 = vadd.f32 %v3738, %v634
      %v3771 = vadd.f32 %v3739, %v635
      %v3772 = vadd.f32 %v3740, %v636
      %v3773 = vadd.f32 %v3741, %v637
      %v3774 = vadd.f32 %v3742, %v638
      %v3775 = vadd.f32 %v3743, %v639
      %v3776 = vadd.f32 %v3744, %v640
      %v3777 = vadd.f32 %v3745, %v641
      %v3778 = vadd.f32 %v3746, %v642
      %v3779 = vadd.f32 %v3747, %v643
      %v3780 = vmul.f32 %v644, %v3715
      %v3781 = vmul.f32 %v645, %v3715
      %v3782 = vmul.f32 %v646, %v3715
      %v3783 = vmul.f32 %v647, %v3715
      %v3784 = vmul.f32 %v648, %v3715
      %v3785 = vmul.f32 %v649, %v3715
      %v3786 = vmul.f32 %v650, %v3715
      %v3787 = vmul.f32 %v651, %v3715
      %v3788 = vmul.f32 %v652, %v3715
      %v3789 = vmul.f32 %v653, %v3715
      %v3790 = vmul.f32 %v654, %v3715
      %v3791 = vmul.f32 %v655, %v3715
      %v3792 = vmul.f32 %v656, %v3715
      %v3793 = vmul.f32 %v657, %v3715
      %v3794 = vmul.f32 %v658, %v3715
      %v3795 = vmul.f32 %v659, %v3715
      %v3796 = vmul.f32 %v660, %v3715
      %v3797 = vmul.f32 %v661, %v3715
      %v3798 = vmul.f32 %v662, %v3715
      %v3799 = vmul.f32 %v663, %v3715
      %v3800 = vmul.f32 %v664, %v3715
      %v3801 = vmul.f32 %v665, %v3715
      %v3802 = vmul.f32 %v666, %v3715
      %v3803 = vmul.f32 %v667, %v3715
      %v3804 = vmul.f32 %v668, %v3715
      %v3805 = vmul.f32 %v669, %v3715
      %v3806 = vmul.f32 %v670, %v3715
      %v3807 = vmul.f32 %v671, %v3715
      %v3808 = vmul.f32 %v672, %v3715
      %v3809 = vmul.f32 %v673, %v3715
      %v3810 = vmul.f32 %v674, %v3715
      %v3811 = vmul.f32 %v675, %v3715
      %v3812 = vadd.f32 %v3780, %v644
      %v3813 = vadd.f32 %v3781, %v645
      %v3814 = vadd.f32 %v3782, %v646
      %v3815 = vadd.f32 %v3783, %v647
      %v3816 = vadd.f32 %v3784, %v648
      %v3817 = vadd.f32 %v3785, %v649
      %v3818 = vadd.f32 %v3786, %v650
      %v3819 = vadd.f32 %v3787, %v651
      %v3820 = vadd.f32 %v3788, %v652
      %v3821 = vadd.f32 %v3789, %v653
      %v3822 = vadd.f32 %v3790, %v654
      %v3823 = vadd.f32 %v3791, %v655
      %v3824 = vadd.f32 %v3792, %v656
      %v3825 = vadd.f32 %v3793, %v657
      %v3826 = vadd.f32 %v3794, %v658
      %v3827 = vadd.f32 %v3795, %v659
      %v3828 = vadd.f32 %v3796, %v660
      %v3829 = vadd.f32 %v3797, %v661
      %v3830 = vadd.f32 %v3798, %v662
      %v3831 = vadd.f32 %v3799, %v663
      %v3832 = vadd.f32 %v3800, %v664
      %v3833 = vadd.f32 %v3801, %v665
      %v3834 = vadd.f32 %v3802, %v666
      %v3835 = vadd.f32 %v3803, %v667
      %v3836 = vadd.f32 %v3804, %v668
      %v3837 = vadd.f32 %v3805, %v669
      %v3838 = vadd.f32 %v3806, %v670
      %v3839 = vadd.f32 %v3807, %v671
      %v3840 = vadd.f32 %v3808, %v672
      %v3841 = vadd.f32 %v3809, %v673
      %v3842 = vadd.f32 %v3810, %v674
      %v3843 = vadd.f32 %v3811, %v675
      %v3845 = vsel %vm684, %v3812, 0
      %v3848 = vsel %vm684, %v3813, 0
      %v3851 = vsel %vm684, %v3814, 0
      %v3854 = vsel %vm684, %v3815, 0
      %v3857 = vsel %vm684, %v3816, 0
      %v3860 = vsel %vm684, %v3817, 0
      %v3863 = vsel %vm684, %v3818, 0
      %v3866 = vsel %vm684, %v3819, 0
      %v3869 = vsel %vm684, %v3820, 0
      %v3872 = vsel %vm684, %v3821, 0
      %v3875 = vsel %vm684, %v3822, 0
      %v3878 = vsel %vm684, %v3823, 0
      %v3881 = vsel %vm684, %v3824, 0
      %v3884 = vsel %vm684, %v3825, 0
      %v3887 = vsel %vm684, %v3826, 0
      %v3890 = vsel %vm684, %v3827, 0
      %v3893 = vsel %vm684, %v3828, 0
      %v3896 = vsel %vm684, %v3829, 0
      %v3899 = vsel %vm684, %v3830, 0
      %v3902 = vsel %vm684, %v3831, 0
      %v3905 = vsel %vm684, %v3832, 0
      %v3908 = vsel %vm684, %v3833, 0
      %v3911 = vsel %vm684, %v3834, 0
      %v3914 = vsel %vm684, %v3835, 0
      %v3917 = vsel %vm684, %v3836, 0
      %v3920 = vsel %vm684, %v3837, 0
      %v3923 = vsel %vm684, %v3838, 0
      %v3926 = vsel %vm684, %v3839, 0
      %v3929 = vsel %vm684, %v3840, 0
      %v3932 = vsel %vm684, %v3841, 0
      %v3935 = vsel %vm684, %v3842, 0
      %v3938 = vsel %vm684, %v3843, 0
      %3940 = vmatprep.subr.mxu0 0.0
      %3941 = vmatpush1.msra.mxu0 %v3707
      %3942 = vmatprep.subr.mxu0 0.0
      %3943 = vmatpush1.msra.mxu0 %v3708
      %3944 = vmatprep.subr.mxu0 0.0
      %3945 = vmatpush1.msra.mxu0 %v3709
      %3946 = vmatprep.subr.mxu0 0.0
      %3947 = vmatpush1.msra.mxu0 %v3710
      %3948 = vmatprep.subr.mxu0 0.0
      %3949 = vmatpush1.msra.mxu0 0.0
      %3950 = vmatprep.subr.mxu0 0.0
      %3951 = vmatpush1.msra.mxu0 0.0
      %3952 = vmatprep.subr.mxu0 0.0
      %3953 = vmatpush1.msra.mxu0 0.0
      %3954 = vmatprep.subr.mxu0 0.0
      %3955 = vmatpush1.msra.mxu0 0.0
      %3956 = vmatprep.subr.mxu0 0.0
      %3957 = vmatpush1.msra.mxu0 0.0
      %3958 = vmatprep.subr.mxu0 0.0
      %3959 = vmatpush1.msra.mxu0 0.0
      %3960 = vmatprep.subr.mxu0 0.0
      %3961 = vmatpush1.msra.mxu0 0.0
      %3962 = vmatprep.subr.mxu0 0.0
      %3963 = vmatpush1.msra.mxu0 0.0
      %3964 = vmatprep.subr.mxu0 0.0
      %3965 = vmatpush1.msra.mxu0 0.0
      %3966 = vmatprep.subr.mxu0 0.0
      %3967 = vmatpush1.msra.mxu0 0.0
      %3968 = vmatprep.subr.mxu0 0.0
      %3969 = vmatpush1.msra.mxu0 0.0
      %3970 = vmatprep.subr.mxu0 0.0
      %3971 = vmatpush1.msra.mxu0 0.0
      %3972 = vmatprep.subr.mxu0 0.0
      %3973 = vmatpush1.msra.mxu0 0.0
      %3974 = vmatprep.subr.mxu0 0.0
      %3975 = vmatpush1.msra.mxu0 0.0
      %3976 = vmatprep.subr.mxu0 0.0
      %3977 = vmatpush1.msra.mxu0 0.0
      %3978 = vmatprep.subr.mxu0 0.0
      %3979 = vmatpush1.msra.mxu0 0.0
      %3980 = vmatprep.subr.mxu0 0.0
      %3981 = vmatpush1.msra.mxu0 0.0
      %3982 = vmatprep.subr.mxu0 0.0
      %3983 = vmatpush1.msra.mxu0 0.0
      %3984 = vmatprep.subr.mxu0 0.0
      %3985 = vmatpush1.msra.mxu0 0.0
      %3986 = vmatprep.subr.mxu0 0.0
      %3987 = vmatpush1.msra.mxu0 0.0
      %3988 = vmatprep.subr.mxu0 0.0
      %3989 = vmatpush1.msra.mxu0 0.0
      %3990 = vmatprep.subr.mxu0 0.0
      %3991 = vmatpush1.msra.mxu0 0.0
      %3992 = vmatprep.subr.mxu0 0.0
      %3993 = vmatpush1.msra.mxu0 0.0
      %3994 = vmatprep.subr.mxu0 0.0
      %3995 = vmatpush1.msra.mxu0 0.0
      %3996 = vmatprep.subr.mxu0 0.0
      %3997 = vmatpush1.msra.mxu0 0.0
      %3998 = vmatprep.subr.mxu0 0.0
      %3999 = vmatpush1.msra.mxu0 0.0
      %4000 = vmatprep.subr.mxu0 0.0
      %4001 = vmatpush1.msra.mxu0 0.0
      %4002 = vmatprep.subr.mxu0 0.0
      %4003 = vmatpush1.msra.mxu0 0.0
      %4004 = vmatprep.mubr.f32.mxu0 0.0
      %4005 = vmatmul.mubr.f32.gmra.mrb[0].mxu0 %v3845
      %v4006 = vpop.f32.mrb[0].mxu0
      %v4007 = vadd.f32 0.0, %v4006
      %v4008 = vpop.f32.mrb[0].mxu0
      %4009 = vmatprep.mubr.f32.mxu0 0.0
      %4010 = vmatmul.mubr.f32.gmra.mrb[0].mxu0 %v3848
      %v4011 = vpop.f32.mrb[0].mxu0
      %v4012 = vadd.f32 0.0, %v4011
      %v4013 = vpop.f32.mrb[0].mxu0
      %4014 = vmatprep.mubr.f32.mxu0 0.0
      %4015 = vmatmul.mubr.f32.gmra.mrb[0].mxu0 %v3851
      %v4016 = vpop.f32.mrb[0].mxu0
      %v4017 = vadd.f32 0.0, %v4016
      %v4018 = vpop.f32.mrb[0].mxu0
      %4019 = vmatprep.mubr.f32.mxu0 0.0
      %4020 = vmatmul.mubr.f32.gmra.mrb[0].mxu0 %v3854
      %v4021 = vpop.f32.mrb[0].mxu0
      %v4022 = vadd.f32 0.0, %v4021
      %v4023 = vpop.f32.mrb[0].mxu0
      %4024 = vmatprep.mubr.f32.mxu0 0.0
      %4025 = vmatmul.mubr.f32.gmra.mrb[0].mxu0 %v3857
      %v4026 = vpop.f32.mrb[0].mxu0
      %v4027 = vadd.f32 0.0, %v4026
      %v4028 = vpop.f32.mrb[0].mxu0
      %4029 = vmatprep.mubr.f32.mxu0 0.0
      %4030 = vmatmul.mubr.f32.gmra.mrb[0].mxu0 %v3860
      %v4031 = vpop.f32.mrb[0].mxu0
      %v4032 = vadd.f32 0.0, %v4031
      %v4033 = vpop.f32.mrb[0].mxu0
      %4034 = vmatprep.mubr.f32.mxu0 0.0
      %4035 = vmatmul.mubr.f32.gmra.mrb[0].mxu0 %v3863
      %v4036 = vpop.f32.mrb[0].mxu0
      %v4037 = vadd.f32 0.0, %v4036
      %v4038 = vpop.f32.mrb[0].mxu0
      %4039 = vmatprep.mubr.f32.mxu0 0.0
      %4040 = vmatmul.mubr.f32.gmra.mrb[0].mxu0 %v3866
      %v4041 = vpop.f32.mrb[0].mxu0
      %v4042 = vadd.f32 0.0, %v4041
      %v4043 = vpop.f32.mrb[0].mxu0
      %4044 = vmatprep.mubr.f32.mxu0 0.0
      %4045 = vmatmul.mubr.f32.gmra.mrb[0].mxu0 %v3869
      %v4046 = vpop.f32.mrb[0].mxu0
      %v4047 = vadd.f32 0.0, %v4046
      %v4048 = vpop.f32.mrb[0].mxu0
      %4049 = vmatprep.mubr.f32.mxu0 0.0
      %4050 = vmatmul.mubr.f32.gmra.mrb[0].mxu0 %v3872
      %v4051 = vpop.f32.mrb[0].mxu0
      %v4052 = vadd.f32 0.0, %v4051
      %v4053 = vpop.f32.mrb[0].mxu0
      %4054 = vmatprep.mubr.f32.mxu0 0.0
      %4055 = vmatmul.mubr.f32.gmra.mrb[0].mxu0 %v3875
      %v4056 = vpop.f32.mrb[0].mxu0
      %v4057 = vadd.f32 0.0, %v4056
      %v4058 = vpop.f32.mrb[0].mxu0
      %4059 = vmatprep.mubr.f32.mxu0 0.0
      %4060 = vmatmul.mubr.f32.gmra.mrb[0].mxu0 %v3878
      %v4061 = vpop.f32.mrb[0].mxu0
      %v4062 = vadd.f32 0.0, %v4061
      %v4063 = vpop.f32.mrb[0].mxu0
      %4064 = vmatprep.mubr.f32.mxu0 0.0
      %4065 = vmatmul.mubr.f32.gmra.mrb[0].mxu0 %v3881
      %v4066 = vpop.f32.mrb[0].mxu0
      %v4067 = vadd.f32 0.0, %v4066
      %v4068 = vpop.f32.mrb[0].mxu0
      %4069 = vmatprep.mubr.f32.mxu0 0.0
      %4070 = vmatmul.mubr.f32.gmra.mrb[0].mxu0 %v3884
      %v4071 = vpop.f32.mrb[0].mxu0
      %v4072 = vadd.f32 0.0, %v4071
      %v4073 = vpop.f32.mrb[0].mxu0
      %4074 = vmatprep.mubr.f32.mxu0 0.0
      %4075 = vmatmul.mubr.f32.gmra.mrb[0].mxu0 %v3887
      %v4076 = vpop.f32.mrb[0].mxu0
      %v4077 = vadd.f32 0.0, %v4076
      %v4078 = vpop.f32.mrb[0].mxu0
      %4079 = vmatprep.mubr.f32.mxu0 0.0
      %4080 = vmatmul.mubr.f32.gmra.mrb[0].mxu0 %v3890
      %v4081 = vpop.f32.mrb[0].mxu0
      %v4082 = vadd.f32 0.0, %v4081
      %v4083 = vpop.f32.mrb[0].mxu0
      %4084 = vmatprep.mubr.f32.mxu0 0.0
      %4085 = vmatmul.mubr.f32.gmra.mrb[0].mxu0 %v3893
      %v4086 = vpop.f32.mrb[0].mxu0
      %v4087 = vadd.f32 0.0, %v4086
      %v4088 = vpop.f32.mrb[0].mxu0
      %4089 = vmatprep.mubr.f32.mxu0 0.0
      %4090 = vmatmul.mubr.f32.gmra.mrb[0].mxu0 %v3896
      %v4091 = vpop.f32.mrb[0].mxu0
      %v4092 = vadd.f32 0.0, %v4091
      %v4093 = vpop.f32.mrb[0].mxu0
      %4094 = vmatprep.mubr.f32.mxu0 0.0
      %4095 = vmatmul.mubr.f32.gmra.mrb[0].mxu0 %v3899
      %v4096 = vpop.f32.mrb[0].mxu0
      %v4097 = vadd.f32 0.0, %v4096
      %v4098 = vpop.f32.mrb[0].mxu0
      %4099 = vmatprep.mubr.f32.mxu0 0.0
      %4100 = vmatmul.mubr.f32.gmra.mrb[0].mxu0 %v3902
      %v4101 = vpop.f32.mrb[0].mxu0
      %v4102 = vadd.f32 0.0, %v4101
      %v4103 = vpop.f32.mrb[0].mxu0
      %4104 = vmatprep.mubr.f32.mxu0 0.0
      %4105 = vmatmul.mubr.f32.gmra.mrb[0].mxu0 %v3905
      %v4106 = vpop.f32.mrb[0].mxu0
      %v4107 = vadd.f32 0.0, %v4106
      %v4108 = vpop.f32.mrb[0].mxu0
      %4109 = vmatprep.mubr.f32.mxu0 0.0
      %4110 = vmatmul.mubr.f32.gmra.mrb[0].mxu0 %v3908
      %v4111 = vpop.f32.mrb[0].mxu0
      %v4112 = vadd.f32 0.0, %v4111
      %v4113 = vpop.f32.mrb[0].mxu0
      %4114 = vmatprep.mubr.f32.mxu0 0.0
      %4115 = vmatmul.mubr.f32.gmra.mrb[0].mxu0 %v3911
      %v4116 = vpop.f32.mrb[0].mxu0
      %v4117 = vadd.f32 0.0, %v4116
      %v4118 = vpop.f32.mrb[0].mxu0
      %4119 = vmatprep.mubr.f32.mxu0 0.0
      %4120 = vmatmul.mubr.f32.gmra.mrb[0].mxu0 %v3914
      %v4121 = vpop.f32.mrb[0].mxu0
      %v4122 = vadd.f32 0.0, %v4121
      %v4123 = vpop.f32.mrb[0].mxu0
      %4124 = vmatprep.mubr.f32.mxu0 0.0
      %4125 = vmatmul.mubr.f32.gmra.mrb[0].mxu0 %v3917
      %v4126 = vpop.f32.mrb[0].mxu0
      %v4127 = vadd.f32 0.0, %v4126
      %v4128 = vpop.f32.mrb[0].mxu0
      %4129 = vmatprep.mubr.f32.mxu0 0.0
      %4130 = vmatmul.mubr.f32.gmra.mrb[0].mxu0 %v3920
      %v4131 = vpop.f32.mrb[0].mxu0
      %v4132 = vadd.f32 0.0, %v4131
      %v4133 = vpop.f32.mrb[0].mxu0
      %4134 = vmatprep.mubr.f32.mxu0 0.0
      %4135 = vmatmul.mubr.f32.gmra.mrb[0].mxu0 %v3923
      %v4136 = vpop.f32.mrb[0].mxu0
      %v4137 = vadd.f32 0.0, %v4136
      %v4138 = vpop.f32.mrb[0].mxu0
      %4139 = vmatprep.mubr.f32.mxu0 0.0
      %4140 = vmatmul.mubr.f32.gmra.mrb[0].mxu0 %v3926
      %v4141 = vpop.f32.mrb[0].mxu0
      %v4142 = vadd.f32 0.0, %v4141
      %v4143 = vpop.f32.mrb[0].mxu0
      %4144 = vmatprep.mubr.f32.mxu0 0.0
      %4145 = vmatmul.mubr.f32.gmra.mrb[0].mxu0 %v3929
      %v4146 = vpop.f32.mrb[0].mxu0
      %v4147 = vadd.f32 0.0, %v4146
      %v4148 = vpop.f32.mrb[0].mxu0
      %4149 = vmatprep.mubr.f32.mxu0 0.0
      %4150 = vmatmul.mubr.f32.gmra.mrb[0].mxu0 %v3932
      %v4151 = vpop.f32.mrb[0].mxu0
      %v4152 = vadd.f32 0.0, %v4151
      %v4153 = vpop.f32.mrb[0].mxu0
      %4154 = vmatprep.mubr.f32.mxu0 0.0
      %4155 = vmatmul.mubr.f32.gmra.mrb[0].mxu0 %v3935
      %v4156 = vpop.f32.mrb[0].mxu0
      %v4157 = vadd.f32 0.0, %v4156
      %v4158 = vpop.f32.mrb[0].mxu0
      %4159 = vmatprep.mubr.f32.mxu0 0.0
      %4160 = vmatmul.mubr.f32.gmra.mrb[0].mxu0 %v3938
      %v4161 = vpop.f32.mrb[0].mxu0
      %v4162 = vadd.f32 0.0, %v4161
      %v4163 = vpop.f32.mrb[0].mxu0
      %4164 = vdwg.mxu0
      %v4166 = vsel %vm684, %v3748, 0
      %v4169 = vsel %vm684, %v3749, 0
      %v4172 = vsel %vm684, %v3750, 0
      %v4175 = vsel %vm684, %v3751, 0
      %v4178 = vsel %vm684, %v3752, 0
      %v4181 = vsel %vm684, %v3753, 0
      %v4184 = vsel %vm684, %v3754, 0
      %v4187 = vsel %vm684, %v3755, 0
      %v4190 = vsel %vm684, %v3756, 0
      %v4193 = vsel %vm684, %v3757, 0
      %v4196 = vsel %vm684, %v3758, 0
      %v4199 = vsel %vm684, %v3759, 0
      %v4202 = vsel %vm684, %v3760, 0
      %v4205 = vsel %vm684, %v3761, 0
      %v4208 = vsel %vm684, %v3762, 0
      %v4211 = vsel %vm684, %v3763, 0
      %v4214 = vsel %vm684, %v3764, 0
      %v4217 = vsel %vm684, %v3765, 0
      %v4220 = vsel %vm684, %v3766, 0
      %v4223 = vsel %vm684, %v3767, 0
      %v4226 = vsel %vm684, %v3768, 0
      %v4229 = vsel %vm684, %v3769, 0
      %v4232 = vsel %vm684, %v3770, 0
      %v4235 = vsel %vm684, %v3771, 0
      %v4238 = vsel %vm684, %v3772, 0
      %v4241 = vsel %vm684, %v3773, 0
      %v4244 = vsel %vm684, %v3774, 0
      %v4247 = vsel %vm684, %v3775, 0
      %v4250 = vsel %vm684, %v3776, 0
      %v4253 = vsel %vm684, %v3777, 0
      %v4256 = vsel %vm684, %v3778, 0
      %v4259 = vsel %vm684, %v3779, 0
      %4261 = vmatprep.subr.mxu0 0.0
      %4262 = vmatpush1.msra.mxu0 %v3703
      %4263 = vmatprep.subr.mxu0 0.0
      %4264 = vmatpush1.msra.mxu0 %v3704
      %4265 = vmatprep.subr.mxu0 0.0
      %4266 = vmatpush1.msra.mxu0 %v3705
      %4267 = vmatprep.subr.mxu0 0.0
      %4268 = vmatpush1.msra.mxu0 %v3706
      %4269 = vmatprep.subr.mxu0 0.0
      %4270 = vmatpush1.msra.mxu0 0.0
      %4271 = vmatprep.subr.mxu0 0.0
      %4272 = vmatpush1.msra.mxu0 0.0
      %4273 = vmatprep.subr.mxu0 0.0
      %4274 = vmatpush1.msra.mxu0 0.0
      %4275 = vmatprep.subr.mxu0 0.0
      %4276 = vmatpush1.msra.mxu0 0.0
      %4277 = vmatprep.subr.mxu0 0.0
      %4278 = vmatpush1.msra.mxu0 0.0
      %4279 = vmatprep.subr.mxu0 0.0
      %4280 = vmatpush1.msra.mxu0 0.0
      %4281 = vmatprep.subr.mxu0 0.0
      %4282 = vmatpush1.msra.mxu0 0.0
      %4283 = vmatprep.subr.mxu0 0.0
      %4284 = vmatpush1.msra.mxu0 0.0
      %4285 = vmatprep.subr.mxu0 0.0
      %4286 = vmatpush1.msra.mxu0 0.0
      %4287 = vmatprep.subr.mxu0 0.0
      %4288 = vmatpush1.msra.mxu0 0.0
      %4289 = vmatprep.subr.mxu0 0.0
      %4290 = vmatpush1.msra.mxu0 0.0
      %4291 = vmatprep.subr.mxu0 0.0
      %4292 = vmatpush1.msra.mxu0 0.0
      %4293 = vmatprep.subr.mxu0 0.0
      %4294 = vmatpush1.msra.mxu0 0.0
      %4295 = vmatprep.subr.mxu0 0.0
      %4296 = vmatpush1.msra.mxu0 0.0
      %4297 = vmatprep.subr.mxu0 0.0
      %4298 = vmatpush1.msra.mxu0 0.0
      %4299 = vmatprep.subr.mxu0 0.0
      %4300 = vmatpush1.msra.mxu0 0.0
      %4301 = vmatprep.subr.mxu0 0.0
      %4302 = vmatpush1.msra.mxu0 0.0
      %4303 = vmatprep.subr.mxu0 0.0
      %4304 = vmatpush1.msra.mxu0 0.0
      %4305 = vmatprep.subr.mxu0 0.0
      %4306 = vmatpush1.msra.mxu0 0.0
      %4307 = vmatprep.subr.mxu0 0.0
      %4308 = vmatpush1.msra.mxu0 0.0
      %4309 = vmatprep.subr.mxu0 0.0
      %4310 = vmatpush1.msra.mxu0 0.0
      %4311 = vmatprep.subr.mxu0 0.0
      %4312 = vmatpush1.msra.mxu0 0.0
      %4313 = vmatprep.subr.mxu0 0.0
      %4314 = vmatpush1.msra.mxu0 0.0
      %4315 = vmatprep.subr.mxu0 0.0
      %4316 = vmatpush1.msra.mxu0 0.0
      %4317 = vmatprep.subr.mxu0 0.0
      %4318 = vmatpush1.msra.mxu0 0.0
      %4319 = vmatprep.subr.mxu0 0.0
      %4320 = vmatpush1.msra.mxu0 0.0
      %4321 = vmatprep.subr.mxu0 0.0
      %4322 = vmatpush1.msra.mxu0 0.0
      %4323 = vmatprep.subr.mxu0 0.0
      %4324 = vmatpush1.msra.mxu0 0.0
      %4325 = vmatprep.mubr.f32.mxu0 0.0
      %4326 = vmatmul.mubr.f32.gmra.mrb[0].mxu0 %v4166
      %v4327 = vpop.f32.mrb[0].mxu0
      %v4328 = vadd.f32 %v4007, %v4327
      %v4329 = vpop.f32.mrb[0].mxu0
      %4330 = vmatprep.mubr.f32.mxu0 0.0
      %4331 = vmatmul.mubr.f32.gmra.mrb[0].mxu0 %v4169
      %v4332 = vpop.f32.mrb[0].mxu0
      %v4333 = vadd.f32 %v4012, %v4332
      %v4334 = vpop.f32.mrb[0].mxu0
      %4335 = vmatprep.mubr.f32.mxu0 0.0
      %4336 = vmatmul.mubr.f32.gmra.mrb[0].mxu0 %v4172
      %v4337 = vpop.f32.mrb[0].mxu0
      %v4338 = vadd.f32 %v4017, %v4337
      %v4339 = vpop.f32.mrb[0].mxu0
      %4340 = vmatprep.mubr.f32.mxu0 0.0
      %4341 = vmatmul.mubr.f32.gmra.mrb[0].mxu0 %v4175
      %v4342 = vpop.f32.mrb[0].mxu0
      %v4343 = vadd.f32 %v4022, %v4342
      %v4344 = vpop.f32.mrb[0].mxu0
      %4345 = vmatprep.mubr.f32.mxu0 0.0
      %4346 = vmatmul.mubr.f32.gmra.mrb[0].mxu0 %v4178
      %v4347 = vpop.f32.mrb[0].mxu0
      %v4348 = vadd.f32 %v4027, %v4347
      %v4349 = vpop.f32.mrb[0].mxu0
      %4350 = vmatprep.mubr.f32.mxu0 0.0
      %4351 = vmatmul.mubr.f32.gmra.mrb[0].mxu0 %v4181
      %v4352 = vpop.f32.mrb[0].mxu0
      %v4353 = vadd.f32 %v4032, %v4352
      %v4354 = vpop.f32.mrb[0].mxu0
      %4355 = vmatprep.mubr.f32.mxu0 0.0
      %4356 = vmatmul.mubr.f32.gmra.mrb[0].mxu0 %v4184
      %v4357 = vpop.f32.mrb[0].mxu0
      %v4358 = vadd.f32 %v4037, %v4357
      %v4359 = vpop.f32.mrb[0].mxu0
      %4360 = vmatprep.mubr.f32.mxu0 0.0
      %4361 = vmatmul.mubr.f32.gmra.mrb[0].mxu0 %v4187
      %v4362 = vpop.f32.mrb[0].mxu0
      %v4363 = vadd.f32 %v4042, %v4362
      %v4364 = vpop.f32.mrb[0].mxu0
      %4365 = vmatprep.mubr.f32.mxu0 0.0
      %4366 = vmatmul.mubr.f32.gmra.mrb[0].mxu0 %v4190
      %v4367 = vpop.f32.mrb[0].mxu0
      %v4368 = vadd.f32 %v4047, %v4367
      %v4369 = vpop.f32.mrb[0].mxu0
      %4370 = vmatprep.mubr.f32.mxu0 0.0
      %4371 = vmatmul.mubr.f32.gmra.mrb[0].mxu0 %v4193
      %v4372 = vpop.f32.mrb[0].mxu0
      %v4373 = vadd.f32 %v4052, %v4372
      %v4374 = vpop.f32.mrb[0].mxu0
      %4375 = vmatprep.mubr.f32.mxu0 0.0
      %4376 = vmatmul.mubr.f32.gmra.mrb[0].mxu0 %v4196
      %v4377 = vpop.f32.mrb[0].mxu0
      %v4378 = vadd.f32 %v4057, %v4377
      %v4379 = vpop.f32.mrb[0].mxu0
      %4380 = vmatprep.mubr.f32.mxu0 0.0
      %4381 = vmatmul.mubr.f32.gmra.mrb[0].mxu0 %v4199
      %v4382 = vpop.f32.mrb[0].mxu0
      %v4383 = vadd.f32 %v4062, %v4382
      %v4384 = vpop.f32.mrb[0].mxu0
      %4385 = vmatprep.mubr.f32.mxu0 0.0
      %4386 = vmatmul.mubr.f32.gmra.mrb[0].mxu0 %v4202
      %v4387 = vpop.f32.mrb[0].mxu0
      %v4388 = vadd.f32 %v4067, %v4387
      %v4389 = vpop.f32.mrb[0].mxu0
      %4390 = vmatprep.mubr.f32.mxu0 0.0
      %4391 = vmatmul.mubr.f32.gmra.mrb[0].mxu0 %v4205
      %v4392 = vpop.f32.mrb[0].mxu0
      %v4393 = vadd.f32 %v4072, %v4392
      %v4394 = vpop.f32.mrb[0].mxu0
      %4395 = vmatprep.mubr.f32.mxu0 0.0
      %4396 = vmatmul.mubr.f32.gmra.mrb[0].mxu0 %v4208
      %v4397 = vpop.f32.mrb[0].mxu0
      %v4398 = vadd.f32 %v4077, %v4397
      %v4399 = vpop.f32.mrb[0].mxu0
      %4400 = vmatprep.mubr.f32.mxu0 0.0
      %4401 = vmatmul.mubr.f32.gmra.mrb[0].mxu0 %v4211
      %v4402 = vpop.f32.mrb[0].mxu0
      %v4403 = vadd.f32 %v4082, %v4402
      %v4404 = vpop.f32.mrb[0].mxu0
      %4405 = vmatprep.mubr.f32.mxu0 0.0
      %4406 = vmatmul.mubr.f32.gmra.mrb[0].mxu0 %v4214
      %v4407 = vpop.f32.mrb[0].mxu0
      %v4408 = vadd.f32 %v4087, %v4407
      %v4409 = vpop.f32.mrb[0].mxu0
      %4410 = vmatprep.mubr.f32.mxu0 0.0
      %4411 = vmatmul.mubr.f32.gmra.mrb[0].mxu0 %v4217
      %v4412 = vpop.f32.mrb[0].mxu0
      %v4413 = vadd.f32 %v4092, %v4412
      %v4414 = vpop.f32.mrb[0].mxu0
      %4415 = vmatprep.mubr.f32.mxu0 0.0
      %4416 = vmatmul.mubr.f32.gmra.mrb[0].mxu0 %v4220
      %v4417 = vpop.f32.mrb[0].mxu0
      %v4418 = vadd.f32 %v4097, %v4417
      %v4419 = vpop.f32.mrb[0].mxu0
      %4420 = vmatprep.mubr.f32.mxu0 0.0
      %4421 = vmatmul.mubr.f32.gmra.mrb[0].mxu0 %v4223
      %v4422 = vpop.f32.mrb[0].mxu0
      %v4423 = vadd.f32 %v4102, %v4422
      %v4424 = vpop.f32.mrb[0].mxu0
      %4425 = vmatprep.mubr.f32.mxu0 0.0
      %4426 = vmatmul.mubr.f32.gmra.mrb[0].mxu0 %v4226
      %v4427 = vpop.f32.mrb[0].mxu0
      %v4428 = vadd.f32 %v4107, %v4427
      %v4429 = vpop.f32.mrb[0].mxu0
      %4430 = vmatprep.mubr.f32.mxu0 0.0
      %4431 = vmatmul.mubr.f32.gmra.mrb[0].mxu0 %v4229
      %v4432 = vpop.f32.mrb[0].mxu0
      %v4433 = vadd.f32 %v4112, %v4432
      %v4434 = vpop.f32.mrb[0].mxu0
      %4435 = vmatprep.mubr.f32.mxu0 0.0
      %4436 = vmatmul.mubr.f32.gmra.mrb[0].mxu0 %v4232
      %v4437 = vpop.f32.mrb[0].mxu0
      %v4438 = vadd.f32 %v4117, %v4437
      %v4439 = vpop.f32.mrb[0].mxu0
      %4440 = vmatprep.mubr.f32.mxu0 0.0
      %4441 = vmatmul.mubr.f32.gmra.mrb[0].mxu0 %v4235
      %v4442 = vpop.f32.mrb[0].mxu0
      %v4443 = vadd.f32 %v4122, %v4442
      %v4444 = vpop.f32.mrb[0].mxu0
      %4445 = vmatprep.mubr.f32.mxu0 0.0
      %4446 = vmatmul.mubr.f32.gmra.mrb[0].mxu0 %v4238
      %v4447 = vpop.f32.mrb[0].mxu0
      %v4448 = vadd.f32 %v4127, %v4447
      %v4449 = vpop.f32.mrb[0].mxu0
      %4450 = vmatprep.mubr.f32.mxu0 0.0
      %4451 = vmatmul.mubr.f32.gmra.mrb[0].mxu0 %v4241
      %v4452 = vpop.f32.mrb[0].mxu0
      %v4453 = vadd.f32 %v4132, %v4452
      %v4454 = vpop.f32.mrb[0].mxu0
      %4455 = vmatprep.mubr.f32.mxu0 0.0
      %4456 = vmatmul.mubr.f32.gmra.mrb[0].mxu0 %v4244
      %v4457 = vpop.f32.mrb[0].mxu0
      %v4458 = vadd.f32 %v4137, %v4457
      %v4459 = vpop.f32.mrb[0].mxu0
      %4460 = vmatprep.mubr.f32.mxu0 0.0
      %4461 = vmatmul.mubr.f32.gmra.mrb[0].mxu0 %v4247
      %v4462 = vpop.f32.mrb[0].mxu0
      %v4463 = vadd.f32 %v4142, %v4462
      %v4464 = vpop.f32.mrb[0].mxu0
      %4465 = vmatprep.mubr.f32.mxu0 0.0
      %4466 = vmatmul.mubr.f32.gmra.mrb[0].mxu0 %v4250
      %v4467 = vpop.f32.mrb[0].mxu0
      %v4468 = vadd.f32 %v4147, %v4467
      %v4469 = vpop.f32.mrb[0].mxu0
      %4470 = vmatprep.mubr.f32.mxu0 0.0
      %4471 = vmatmul.mubr.f32.gmra.mrb[0].mxu0 %v4253
      %v4472 = vpop.f32.mrb[0].mxu0
      %v4473 = vadd.f32 %v4152, %v4472
      %v4474 = vpop.f32.mrb[0].mxu0
      %4475 = vmatprep.mubr.f32.mxu0 0.0
      %4476 = vmatmul.mubr.f32.gmra.mrb[0].mxu0 %v4256
      %v4477 = vpop.f32.mrb[0].mxu0
      %v4478 = vadd.f32 %v4157, %v4477
      %v4479 = vpop.f32.mrb[0].mxu0
      %4480 = vmatprep.mubr.f32.mxu0 0.0
      %4481 = vmatmul.mubr.f32.gmra.mrb[0].mxu0 %v4259
      %v4482 = vpop.f32.mrb[0].mxu0
      %v4483 = vadd.f32 %v4162, %v4482
      %v4484 = vpop.f32.mrb[0].mxu0
      %4485 = vdwg.mxu0
      %v4487 = vlaneseq
      %v4488 = vshrl.u32 %v4487, 7
      %v4489 = vsub.s32 0, %v4488
      %v4490 = vrot.slane %v3711, %v4489
      %v4492 = vadd.f32 %v4328, %v4490
      %v4493 = vadd.f32 %v4333, %v4490
      %v4494 = vadd.f32 %v4338, %v4490
      %v4495 = vadd.f32 %v4343, %v4490
      %v4496 = vadd.f32 %v4348, %v4490
      %v4497 = vadd.f32 %v4353, %v4490
      %v4498 = vadd.f32 %v4358, %v4490
      %v4499 = vadd.f32 %v4363, %v4490
      %v4500 = vadd.f32 %v4368, %v4490
      %v4501 = vadd.f32 %v4373, %v4490
      %v4502 = vadd.f32 %v4378, %v4490
      %v4503 = vadd.f32 %v4383, %v4490
      %v4504 = vadd.f32 %v4388, %v4490
      %v4505 = vadd.f32 %v4393, %v4490
      %v4506 = vadd.f32 %v4398, %v4490
      %v4507 = vadd.f32 %v4403, %v4490
      %v4508 = vadd.f32 %v4408, %v4490
      %v4509 = vadd.f32 %v4413, %v4490
      %v4510 = vadd.f32 %v4418, %v4490
      %v4511 = vadd.f32 %v4423, %v4490
      %v4512 = vadd.f32 %v4428, %v4490
      %v4513 = vadd.f32 %v4433, %v4490
      %v4514 = vadd.f32 %v4438, %v4490
      %v4515 = vadd.f32 %v4443, %v4490
      %v4516 = vadd.f32 %v4448, %v4490
      %v4517 = vadd.f32 %v4453, %v4490
      %v4518 = vadd.f32 %v4458, %v4490
      %v4519 = vadd.f32 %v4463, %v4490
      %v4520 = vadd.f32 %v4468, %v4490
      %v4521 = vadd.f32 %v4473, %v4490
      %v4522 = vadd.f32 %v4478, %v4490
      %v4523 = vadd.f32 %v4483, %v4490
      %v4524 = vmul.f32 %v4492, %v4492
      %v4525 = vmul.f32 %v4493, %v4493
      %v4526 = vmul.f32 %v4494, %v4494
      %v4527 = vmul.f32 %v4495, %v4495
      %v4528 = vmul.f32 %v4496, %v4496
      %v4529 = vmul.f32 %v4497, %v4497
      %v4530 = vmul.f32 %v4498, %v4498
      %v4531 = vmul.f32 %v4499, %v4499
      %v4532 = vmul.f32 %v4500, %v4500
      %v4533 = vmul.f32 %v4501, %v4501
      %v4534 = vmul.f32 %v4502, %v4502
      %v4535 = vmul.f32 %v4503, %v4503
      %v4536 = vmul.f32 %v4504, %v4504
      %v4537 = vmul.f32 %v4505, %v4505
      %v4538 = vmul.f32 %v4506, %v4506
      %v4539 = vmul.f32 %v4507, %v4507
      %v4540 = vmul.f32 %v4508, %v4508
      %v4541 = vmul.f32 %v4509, %v4509
      %v4542 = vmul.f32 %v4510, %v4510
      %v4543 = vmul.f32 %v4511, %v4511
      %v4544 = vmul.f32 %v4512, %v4512
      %v4545 = vmul.f32 %v4513, %v4513
      %v4546 = vmul.f32 %v4514, %v4514
      %v4547 = vmul.f32 %v4515, %v4515
      %v4548 = vmul.f32 %v4516, %v4516
      %v4549 = vmul.f32 %v4517, %v4517
      %v4550 = vmul.f32 %v4518, %v4518
      %v4551 = vmul.f32 %v4519, %v4519
      %v4552 = vmul.f32 %v4520, %v4520
      %v4553 = vmul.f32 %v4521, %v4521
      %v4554 = vmul.f32 %v4522, %v4522
      %v4555 = vmul.f32 %v4523, %v4523
      %v4556 = vmul.f32 %v4492, %v4524
      %v4557 = vmul.f32 %v4493, %v4525
      %v4558 = vmul.f32 %v4494, %v4526
      %v4559 = vmul.f32 %v4495, %v4527
      %v4560 = vmul.f32 %v4496, %v4528
      %v4561 = vmul.f32 %v4497, %v4529
      %v4562 = vmul.f32 %v4498, %v4530
      %v4563 = vmul.f32 %v4499, %v4531
      %v4564 = vmul.f32 %v4500, %v4532
      %v4565 = vmul.f32 %v4501, %v4533
      %v4566 = vmul.f32 %v4502, %v4534
      %v4567 = vmul.f32 %v4503, %v4535
      %v4568 = vmul.f32 %v4504, %v4536
      %v4569 = vmul.f32 %v4505, %v4537
      %v4570 = vmul.f32 %v4506, %v4538
      %v4571 = vmul.f32 %v4507, %v4539
      %v4572 = vmul.f32 %v4508, %v4540
      %v4573 = vmul.f32 %v4509, %v4541
      %v4574 = vmul.f32 %v4510, %v4542
      %v4575 = vmul.f32 %v4511, %v4543
      %v4576 = vmul.f32 %v4512, %v4544
      %v4577 = vmul.f32 %v4513, %v4545
      %v4578 = vmul.f32 %v4514, %v4546
      %v4579 = vmul.f32 %v4515, %v4547
      %v4580 = vmul.f32 %v4516, %v4548
      %v4581 = vmul.f32 %v4517, %v4549
      %v4582 = vmul.f32 %v4518, %v4550
      %v4583 = vmul.f32 %v4519, %v4551
      %v4584 = vmul.f32 %v4520, %v4552
      %v4585 = vmul.f32 %v4521, %v4553
      %v4586 = vmul.f32 %v4522, %v4554
      %v4587 = vmul.f32 %v4523, %v4555
      %v4588 = vmul.f32 %v4556, 0.044715
      %v4589 = vmul.f32 %v4557, 0.044715
      %v4590 = vmul.f32 %v4558, 0.044715
      %v4591 = vmul.f32 %v4559, 0.044715
      %v4592 = vmul.f32 %v4560, 0.044715
      %v4593 = vmul.f32 %v4561, 0.044715
      %v4594 = vmul.f32 %v4562, 0.044715
      %v4595 = vmul.f32 %v4563, 0.044715
      %v4596 = vmul.f32 %v4564, 0.044715
      %v4597 = vmul.f32 %v4565, 0.044715
      %v4598 = vmul.f32 %v4566, 0.044715
      %v4599 = vmul.f32 %v4567, 0.044715
      %v4600 = vmul.f32 %v4568, 0.044715
      %v4601 = vmul.f32 %v4569, 0.044715
      %v4602 = vmul.f32 %v4570, 0.044715
      %v4603 = vmul.f32 %v4571, 0.044715
      %v4604 = vmul.f32 %v4572, 0.044715
      %v4605 = vmul.f32 %v4573, 0.044715
      %v4606 = vmul.f32 %v4574, 0.044715
      %v4607 = vmul.f32 %v4575, 0.044715
      %v4608 = vmul.f32 %v4576, 0.044715
      %v4609 = vmul.f32 %v4577, 0.044715
      %v4610 = vmul.f32 %v4578, 0.044715
      %v4611 = vmul.f32 %v4579, 0.044715
      %v4612 = vmul.f32 %v4580, 0.044715
      %v4613 = vmul.f32 %v4581, 0.044715
      %v4614 = vmul.f32 %v4582, 0.044715
      %v4615 = vmul.f32 %v4583, 0.044715
      %v4616 = vmul.f32 %v4584, 0.044715
      %v4617 = vmul.f32 %v4585, 0.044715
      %v4618 = vmul.f32 %v4586, 0.044715
      %v4619 = vmul.f32 %v4587, 0.044715
      %v4620 = vadd.f32 %v4492, %v4588
      %v4621 = vadd.f32 %v4493, %v4589
      %v4622 = vadd.f32 %v4494, %v4590
      %v4623 = vadd.f32 %v4495, %v4591
      %v4624 = vadd.f32 %v4496, %v4592
      %v4625 = vadd.f32 %v4497, %v4593
      %v4626 = vadd.f32 %v4498, %v4594
      %v4627 = vadd.f32 %v4499, %v4595
      %v4628 = vadd.f32 %v4500, %v4596
      %v4629 = vadd.f32 %v4501, %v4597
      %v4630 = vadd.f32 %v4502, %v4598
      %v4631 = vadd.f32 %v4503, %v4599
      %v4632 = vadd.f32 %v4504, %v4600
      %v4633 = vadd.f32 %v4505, %v4601
      %v4634 = vadd.f32 %v4506, %v4602
      %v4635 = vadd.f32 %v4507, %v4603
      %v4636 = vadd.f32 %v4508, %v4604
      %v4637 = vadd.f32 %v4509, %v4605
      %v4638 = vadd.f32 %v4510, %v4606
      %v4639 = vadd.f32 %v4511, %v4607
      %v4640 = vadd.f32 %v4512, %v4608
      %v4641 = vadd.f32 %v4513, %v4609
      %v4642 = vadd.f32 %v4514, %v4610
      %v4643 = vadd.f32 %v4515, %v4611
      %v4644 = vadd.f32 %v4516, %v4612
      %v4645 = vadd.f32 %v4517, %v4613
      %v4646 = vadd.f32 %v4518, %v4614
      %v4647 = vadd.f32 %v4519, %v4615
      %v4648 = vadd.f32 %v4520, %v4616
      %v4649 = vadd.f32 %v4521, %v4617
      %v4650 = vadd.f32 %v4522, %v4618
      %v4651 = vadd.f32 %v4523, %v4619
      %v4652 = vmul.f32 %v4620, 0.7978846
      %v4653 = vmul.f32 %v4621, 0.7978846
      %v4654 = vmul.f32 %v4622, 0.7978846
      %v4655 = vmul.f32 %v4623, 0.7978846
      %v4656 = vmul.f32 %v4624, 0.7978846
      %v4657 = vmul.f32 %v4625, 0.7978846
      %v4658 = vmul.f32 %v4626, 0.7978846
      %v4659 = vmul.f32 %v4627, 0.7978846
      %v4660 = vmul.f32 %v4628, 0.7978846
      %v4661 = vmul.f32 %v4629, 0.7978846
      %v4662 = vmul.f32 %v4630, 0.7978846
      %v4663 = vmul.f32 %v4631, 0.7978846
      %v4664 = vmul.f32 %v4632, 0.7978846
      %v4665 = vmul.f32 %v4633, 0.7978846
      %v4666 = vmul.f32 %v4634, 0.7978846
      %v4667 = vmul.f32 %v4635, 0.7978846
      %v4668 = vmul.f32 %v4636, 0.7978846
      %v4669 = vmul.f32 %v4637, 0.7978846
      %v4670 = vmul.f32 %v4638, 0.7978846
      %v4671 = vmul.f32 %v4639, 0.7978846
      %v4672 = vmul.f32 %v4640, 0.7978846
      %v4673 = vmul.f32 %v4641, 0.7978846
      %v4674 = vmul.f32 %v4642, 0.7978846
      %v4675 = vmul.f32 %v4643, 0.7978846
      %v4676 = vmul.f32 %v4644, 0.7978846
      %v4677 = vmul.f32 %v4645, 0.7978846
      %v4678 = vmul.f32 %v4646, 0.7978846
      %v4679 = vmul.f32 %v4647, 0.7978846
      %v4680 = vmul.f32 %v4648, 0.7978846
      %v4681 = vmul.f32 %v4649, 0.7978846
      %v4682 = vmul.f32 %v4650, 0.7978846
      %v4683 = vmul.f32 %v4651, 0.7978846
      %v4684 = vtanh.pop %v4652
      %v4685 = vtanh.pop %v4653
      %v4686 = vtanh.pop %v4654
      %v4687 = vtanh.pop %v4655
      %v4688 = vtanh.pop %v4656
      %v4689 = vtanh.pop %v4657
      %v4690 = vtanh.pop %v4658
      %v4691 = vtanh.pop %v4659
      %v4692 = vtanh.pop %v4660
      %v4693 = vtanh.pop %v4661
      %v4694 = vtanh.pop %v4662
      %v4695 = vtanh.pop %v4663
      %v4696 = vtanh.pop %v4664
      %v4697 = vtanh.pop %v4665
      %v4698 = vtanh.pop %v4666
      %v4699 = vtanh.pop %v4667
      %v4700 = vtanh.pop %v4668
      %v4701 = vtanh.pop %v4669
      %v4702 = vtanh.pop %v4670
      %v4703 = vtanh.pop %v4671
      %v4704 = vtanh.pop %v4672
      %v4705 = vtanh.pop %v4673
      %v4706 = vtanh.pop %v4674
      %v4707 = vtanh.pop %v4675
      %v4708 = vtanh.pop %v4676
      %v4709 = vtanh.pop %v4677
      %v4710 = vtanh.pop %v4678
      %v4711 = vtanh.pop %v4679
      %v4712 = vtanh.pop %v4680
      %v4713 = vtanh.pop %v4681
      %v4714 = vtanh.pop %v4682
      %v4715 = vtanh.pop %v4683
      %v4716 = vadd.f32 %v4684, 1.0
      %v4717 = vadd.f32 %v4685, 1.0
      %v4718 = vadd.f32 %v4686, 1.0
      %v4719 = vadd.f32 %v4687, 1.0
      %v4720 = vadd.f32 %v4688, 1.0
      %v4721 = vadd.f32 %v4689, 1.0
      %v4722 = vadd.f32 %v4690, 1.0
      %v4723 = vadd.f32 %v4691, 1.0
      %v4724 = vadd.f32 %v4692, 1.0
      %v4725 = vadd.f32 %v4693, 1.0
      %v4726 = vadd.f32 %v4694, 1.0
      %v4727 = vadd.f32 %v4695, 1.0
      %v4728 = vadd.f32 %v4696, 1.0
      %v4729 = vadd.f32 %v4697, 1.0
      %v4730 = vadd.f32 %v4698, 1.0
      %v4731 = vadd.f32 %v4699, 1.0
      %v4732 = vadd.f32 %v4700, 1.0
      %v4733 = vadd.f32 %v4701, 1.0
      %v4734 = vadd.f32 %v4702, 1.0
      %v4735 = vadd.f32 %v4703, 1.0
      %v4736 = vadd.f32 %v4704, 1.0
      %v4737 = vadd.f32 %v4705, 1.0
      %v4738 = vadd.f32 %v4706, 1.0
      %v4739 = vadd.f32 %v4707, 1.0
      %v4740 = vadd.f32 %v4708, 1.0
      %v4741 = vadd.f32 %v4709, 1.0
      %v4742 = vadd.f32 %v4710, 1.0
      %v4743 = vadd.f32 %v4711, 1.0
      %v4744 = vadd.f32 %v4712, 1.0
      %v4745 = vadd.f32 %v4713, 1.0
      %v4746 = vadd.f32 %v4714, 1.0
      %v4747 = vadd.f32 %v4715, 1.0
      %v4748 = vmul.f32 %v4716, 0.5
      %v4749 = vmul.f32 %v4717, 0.5
      %v4750 = vmul.f32 %v4718, 0.5
      %v4751 = vmul.f32 %v4719, 0.5
      %v4752 = vmul.f32 %v4720, 0.5
      %v4753 = vmul.f32 %v4721, 0.5
      %v4754 = vmul.f32 %v4722, 0.5
      %v4755 = vmul.f32 %v4723, 0.5
      %v4756 = vmul.f32 %v4724, 0.5
      %v4757 = vmul.f32 %v4725, 0.5
      %v4758 = vmul.f32 %v4726, 0.5
      %v4759 = vmul.f32 %v4727, 0.5
      %v4760 = vmul.f32 %v4728, 0.5
      %v4761 = vmul.f32 %v4729, 0.5
      %v4762 = vmul.f32 %v4730, 0.5
      %v4763 = vmul.f32 %v4731, 0.5
      %v4764 = vmul.f32 %v4732, 0.5
      %v4765 = vmul.f32 %v4733, 0.5
      %v4766 = vmul.f32 %v4734, 0.5
      %v4767 = vmul.f32 %v4735, 0.5
      %v4768 = vmul.f32 %v4736, 0.5
      %v4769 = vmul.f32 %v4737, 0.5
      %v4770 = vmul.f32 %v4738, 0.5
      %v4771 = vmul.f32 %v4739, 0.5
      %v4772 = vmul.f32 %v4740, 0.5
      %v4773 = vmul.f32 %v4741, 0.5
      %v4774 = vmul.f32 %v4742, 0.5
      %v4775 = vmul.f32 %v4743, 0.5
      %v4776 = vmul.f32 %v4744, 0.5
      %v4777 = vmul.f32 %v4745, 0.5
      %v4778 = vmul.f32 %v4746, 0.5
      %v4779 = vmul.f32 %v4747, 0.5
      %v4780 = vmul.f32 %v4492, %v4748
      %v4781 = vmul.f32 %v4493, %v4749
      %v4782 = vmul.f32 %v4494, %v4750
      %v4783 = vmul.f32 %v4495, %v4751
      %v4784 = vmul.f32 %v4496, %v4752
      %v4785 = vmul.f32 %v4497, %v4753
      %v4786 = vmul.f32 %v4498, %v4754
      %v4787 = vmul.f32 %v4499, %v4755
      %v4788 = vmul.f32 %v4500, %v4756
      %v4789 = vmul.f32 %v4501, %v4757
      %v4790 = vmul.f32 %v4502, %v4758
      %v4791 = vmul.f32 %v4503, %v4759
      %v4792 = vmul.f32 %v4504, %v4760
      %v4793 = vmul.f32 %v4505, %v4761
      %v4794 = vmul.f32 %v4506, %v4762
      %v4795 = vmul.f32 %v4507, %v4763
      %v4796 = vmul.f32 %v4508, %v4764
      %v4797 = vmul.f32 %v4509, %v4765
      %v4798 = vmul.f32 %v4510, %v4766
      %v4799 = vmul.f32 %v4511, %v4767
      %v4800 = vmul.f32 %v4512, %v4768
      %v4801 = vmul.f32 %v4513, %v4769
      %v4802 = vmul.f32 %v4514, %v4770
      %v4803 = vmul.f32 %v4515, %v4771
      %v4804 = vmul.f32 %v4516, %v4772
      %v4805 = vmul.f32 %v4517, %v4773
      %v4806 = vmul.f32 %v4518, %v4774
      %v4807 = vmul.f32 %v4519, %v4775
      %v4808 = vmul.f32 %v4520, %v4776
      %v4809 = vmul.f32 %v4521, %v4777
      %v4810 = vmul.f32 %v4522, %v4778
      %v4811 = vmul.f32 %v4523, %v4779
      %v4812 = vadd.f32 %v4780, %v3748
      %v4813 = vadd.f32 %v4781, %v3749
      %v4814 = vadd.f32 %v4782, %v3750
      %v4815 = vadd.f32 %v4783, %v3751
      %v4816 = vadd.f32 %v4784, %v3752
      %v4817 = vadd.f32 %v4785, %v3753
      %v4818 = vadd.f32 %v4786, %v3754
      %v4819 = vadd.f32 %v4787, %v3755
      %v4820 = vadd.f32 %v4788, %v3756
      %v4821 = vadd.f32 %v4789, %v3757
      %v4822 = vadd.f32 %v4790, %v3758
      %v4823 = vadd.f32 %v4791, %v3759
      %v4824 = vadd.f32 %v4792, %v3760
      %v4825 = vadd.f32 %v4793, %v3761
      %v4826 = vadd.f32 %v4794, %v3762
      %v4827 = vadd.f32 %v4795, %v3763
      %v4828 = vadd.f32 %v4796, %v3764
      %v4829 = vadd.f32 %v4797, %v3765
      %v4830 = vadd.f32 %v4798, %v3766
      %v4831 = vadd.f32 %v4799, %v3767
      %v4832 = vadd.f32 %v4800, %v3768
      %v4833 = vadd.f32 %v4801, %v3769
      %v4834 = vadd.f32 %v4802, %v3770
      %v4835 = vadd.f32 %v4803, %v3771
      %v4836 = vadd.f32 %v4804, %v3772
      %v4837 = vadd.f32 %v4805, %v3773
      %v4838 = vadd.f32 %v4806, %v3774
      %v4839 = vadd.f32 %v4807, %v3775
      %v4840 = vadd.f32 %v4808, %v3776
      %v4841 = vadd.f32 %v4809, %v3777
      %v4842 = vadd.f32 %v4810, %v3778
      %v4843 = vadd.f32 %v4811, %v3779
      %4844 = vrot.lane.b32.xlu0 %v3812, 32
      %v4845 = vpop.permute.xlu0 %4844
      %4846 = vrot.lane.b32.xlu0 %v3813, 32
      %v4847 = vpop.permute.xlu0 %4846
      %4848 = vrot.lane.b32.xlu0 %v3814, 32
      %v4849 = vpop.permute.xlu0 %4848
      %4850 = vrot.lane.b32.xlu0 %v3815, 32
      %v4851 = vpop.permute.xlu0 %4850
      %4852 = vrot.lane.b32.xlu0 %v3816, 32
      %v4853 = vpop.permute.xlu0 %4852
      %4854 = vrot.lane.b32.xlu0 %v3817, 32
      %v4855 = vpop.permute.xlu0 %4854
      %4856 = vrot.lane.b32.xlu0 %v3818, 32
      %v4857 = vpop.permute.xlu0 %4856
      %4858 = vrot.lane.b32.xlu0 %v3819, 32
      %v4859 = vpop.permute.xlu0 %4858
      %4860 = vrot.lane.b32.xlu0 %v3820, 32
      %v4861 = vpop.permute.xlu0 %4860
      %4862 = vrot.lane.b32.xlu0 %v3821, 32
      %v4863 = vpop.permute.xlu0 %4862
      %4864 = vrot.lane.b32.xlu0 %v3822, 32
      %v4865 = vpop.permute.xlu0 %4864
      %4866 = vrot.lane.b32.xlu0 %v3823, 32
      %v4867 = vpop.permute.xlu0 %4866
      %4868 = vrot.lane.b32.xlu0 %v3824, 32
      %v4869 = vpop.permute.xlu0 %4868
      %4870 = vrot.lane.b32.xlu0 %v3825, 32
      %v4871 = vpop.permute.xlu0 %4870
      %4872 = vrot.lane.b32.xlu0 %v3826, 32
      %v4873 = vpop.permute.xlu0 %4872
      %4874 = vrot.lane.b32.xlu0 %v3827, 32
      %v4875 = vpop.permute.xlu0 %4874
      %4876 = vrot.lane.b32.xlu0 %v3828, 32
      %v4877 = vpop.permute.xlu0 %4876
      %4878 = vrot.lane.b32.xlu0 %v3829, 32
      %v4879 = vpop.permute.xlu0 %4878
      %4880 = vrot.lane.b32.xlu0 %v3830, 32
      %v4881 = vpop.permute.xlu0 %4880
      %4882 = vrot.lane.b32.xlu0 %v3831, 32
      %v4883 = vpop.permute.xlu0 %4882
      %4884 = vrot.lane.b32.xlu0 %v3832, 32
      %v4885 = vpop.permute.xlu0 %4884
      %4886 = vrot.lane.b32.xlu0 %v3833, 32
      %v4887 = vpop.permute.xlu0 %4886
      %4888 = vrot.lane.b32.xlu0 %v3834, 32
      %v4889 = vpop.permute.xlu0 %4888
      %4890 = vrot.lane.b32.xlu0 %v3835, 32
      %v4891 = vpop.permute.xlu0 %4890
      %4892 = vrot.lane.b32.xlu0 %v3836, 32
      %v4893 = vpop.permute.xlu0 %4892
      %4894 = vrot.lane.b32.xlu0 %v3837, 32
      %v4895 = vpop.permute.xlu0 %4894
      %4896 = vrot.lane.b32.xlu0 %v3838, 32
      %v4897 = vpop.permute.xlu0 %4896
      %4898 = vrot.lane.b32.xlu0 %v3839, 32
      %v4899 = vpop.permute.xlu0 %4898
      %4900 = vrot.lane.b32.xlu0 %v3840, 32
      %v4901 = vpop.permute.xlu0 %4900
      %4902 = vrot.lane.b32.xlu0 %v3841, 32
      %v4903 = vpop.permute.xlu0 %4902
      %4904 = vrot.lane.b32.xlu0 %v3842, 32
      %v4905 = vpop.permute.xlu0 %4904
      %4906 = vrot.lane.b32.xlu0 %v3843, 32
      %v4907 = vpop.permute.xlu0 %4906
      %v4940 = vadd.f32 %v4780, %v4845
      %v4941 = vadd.f32 %v4781, %v4847
      %v4942 = vadd.f32 %v4782, %v4849
      %v4943 = vadd.f32 %v4783, %v4851
      %v4944 = vadd.f32 %v4784, %v4853
      %v4945 = vadd.f32 %v4785, %v4855
      %v4946 = vadd.f32 %v4786, %v4857
      %v4947 = vadd.f32 %v4787, %v4859
      %v4948 = vadd.f32 %v4788, %v4861
      %v4949 = vadd.f32 %v4789, %v4863
      %v4950 = vadd.f32 %v4790, %v4865
      %v4951 = vadd.f32 %v4791, %v4867
      %v4952 = vadd.f32 %v4792, %v4869
      %v4953 = vadd.f32 %v4793, %v4871
      %v4954 = vadd.f32 %v4794, %v4873
      %v4955 = vadd.f32 %v4795, %v4875
      %v4956 = vadd.f32 %v4796, %v4877
      %v4957 = vadd.f32 %v4797, %v4879
      %v4958 = vadd.f32 %v4798, %v4881
      %v4959 = vadd.f32 %v4799, %v4883
      %v4960 = vadd.f32 %v4800, %v4885
      %v4961 = vadd.f32 %v4801, %v4887
      %v4962 = vadd.f32 %v4802, %v4889
      %v4963 = vadd.f32 %v4803, %v4891
      %v4964 = vadd.f32 %v4804, %v4893
      %v4965 = vadd.f32 %v4805, %v4895
      %v4966 = vadd.f32 %v4806, %v4897
      %v4967 = vadd.f32 %v4807, %v4899
      %v4968 = vadd.f32 %v4808, %v4901
      %v4969 = vadd.f32 %v4809, %v4903
      %v4970 = vadd.f32 %v4810, %v4905
      %v4971 = vadd.f32 %v4811, %v4907
      %v4973 = vsel %vm684, %v4812, 0
      %v4976 = vsel %vm684, %v4813, 0
      %v4979 = vsel %vm684, %v4814, 0
      %v4982 = vsel %vm684, %v4815, 0
      %v4985 = vsel %vm684, %v4816, 0
      %v4988 = vsel %vm684, %v4817, 0
      %v4991 = vsel %vm684, %v4818, 0
      %v4994 = vsel %vm684, %v4819, 0
      %v4997 = vsel %vm684, %v4820, 0
      %v5000 = vsel %vm684, %v4821, 0
      %v5003 = vsel %vm684, %v4822, 0
      %v5006 = vsel %vm684, %v4823, 0
      %v5009 = vsel %vm684, %v4824, 0
      %v5012 = vsel %vm684, %v4825, 0
      %v5015 = vsel %vm684, %v4826, 0
      %v5018 = vsel %vm684, %v4827, 0
      %v5021 = vsel %vm684, %v4828, 0
      %v5024 = vsel %vm684, %v4829, 0
      %v5027 = vsel %vm684, %v4830, 0
      %v5030 = vsel %vm684, %v4831, 0
      %v5033 = vsel %vm684, %v4832, 0
      %v5036 = vsel %vm684, %v4833, 0
      %v5039 = vsel %vm684, %v4834, 0
      %v5042 = vsel %vm684, %v4835, 0
      %v5045 = vsel %vm684, %v4836, 0
      %v5048 = vsel %vm684, %v4837, 0
      %v5051 = vsel %vm684, %v4838, 0
      %v5054 = vsel %vm684, %v4839, 0
      %v5057 = vsel %vm684, %v4840, 0
      %v5060 = vsel %vm684, %v4841, 0
      %v5063 = vsel %vm684, %v4842, 0
      %v5066 = vsel %vm684, %v4843, 0
      %5068 = vmatprep.subr.mxu0 0.0
      %5069 = vmatpush1.msra.mxu0 %v986
      %5070 = vmatprep.subr.mxu0 0.0
      %5071 = vmatpush1.msra.mxu0 %v987
      %5072 = vmatprep.subr.mxu0 0.0
      %5073 = vmatpush1.msra.mxu0 %v988
      %5074 = vmatprep.subr.mxu0 0.0
      %5075 = vmatpush1.msra.mxu0 %v989
      %5076 = vmatprep.subr.mxu0 0.0
      %5077 = vmatpush1.msra.mxu0 0.0
      %5078 = vmatprep.subr.mxu0 0.0
      %5079 = vmatpush1.msra.mxu0 0.0
      %5080 = vmatprep.subr.mxu0 0.0
      %5081 = vmatpush1.msra.mxu0 0.0
      %5082 = vmatprep.subr.mxu0 0.0
      %5083 = vmatpush1.msra.mxu0 0.0
      %5084 = vmatprep.subr.mxu0 0.0
      %5085 = vmatpush1.msra.mxu0 0.0
      %5086 = vmatprep.subr.mxu0 0.0
      %5087 = vmatpush1.msra.mxu0 0.0
      %5088 = vmatprep.subr.mxu0 0.0
      %5089 = vmatpush1.msra.mxu0 0.0
      %5090 = vmatprep.subr.mxu0 0.0
      %5091 = vmatpush1.msra.mxu0 0.0
      %5092 = vmatprep.subr.mxu0 0.0
      %5093 = vmatpush1.msra.mxu0 0.0
      %5094 = vmatprep.subr.mxu0 0.0
      %5095 = vmatpush1.msra.mxu0 0.0
      %5096 = vmatprep.subr.mxu0 0.0
      %5097 = vmatpush1.msra.mxu0 0.0
      %5098 = vmatprep.subr.mxu0 0.0
      %5099 = vmatpush1.msra.mxu0 0.0
      %5100 = vmatprep.subr.mxu0 0.0
      %5101 = vmatpush1.msra.mxu0 0.0
      %5102 = vmatprep.subr.mxu0 0.0
      %5103 = vmatpush1.msra.mxu0 0.0
      %5104 = vmatprep.subr.mxu0 0.0
      %5105 = vmatpush1.msra.mxu0 0.0
      %5106 = vmatprep.subr.mxu0 0.0
      %5107 = vmatpush1.msra.mxu0 0.0
      %5108 = vmatprep.subr.mxu0 0.0
      %5109 = vmatpush1.msra.mxu0 0.0
      %5110 = vmatprep.subr.mxu0 0.0
      %5111 = vmatpush1.msra.mxu0 0.0
      %5112 = vmatprep.subr.mxu0 0.0
      %5113 = vmatpush1.msra.mxu0 0.0
      %5114 = vmatprep.subr.mxu0 0.0
      %5115 = vmatpush1.msra.mxu0 0.0
      %5116 = vmatprep.subr.mxu0 0.0
      %5117 = vmatpush1.msra.mxu0 0.0
      %5118 = vmatprep.subr.mxu0 0.0
      %5119 = vmatpush1.msra.mxu0 0.0
      %5120 = vmatprep.subr.mxu0 0.0
      %5121 = vmatpush1.msra.mxu0 0.0
      %5122 = vmatprep.subr.mxu0 0.0
      %5123 = vmatpush1.msra.mxu0 0.0
      %5124 = vmatprep.subr.mxu0 0.0
      %5125 = vmatpush1.msra.mxu0 0.0
      %5126 = vmatprep.subr.mxu0 0.0
      %5127 = vmatpush1.msra.mxu0 0.0
      %5128 = vmatprep.subr.mxu0 0.0
      %5129 = vmatpush1.msra.mxu0 0.0
      %5130 = vmatprep.subr.mxu0 0.0
      %5131 = vmatpush1.msra.mxu0 0.0
      %5132 = vmatprep.mubr.f32.mxu0 0.0
      %5133 = vmatmul.mubr.f32.gmra.mrb[0].mxu0 %v4973
      %v5134 = vpop.f32.mrb[0].mxu0
      %v5135 = vadd.f32 %v1434, %v5134
      %v5136 = vpop.f32.mrb[0].mxu0
      %5137 = vmatprep.mubr.f32.mxu0 0.0
      %5138 = vmatmul.mubr.f32.gmra.mrb[0].mxu0 %v4976
      %v5139 = vpop.f32.mrb[0].mxu0
      %v5140 = vadd.f32 %v1434, %v5139
      %v5141 = vpop.f32.mrb[0].mxu0
      %5142 = vmatprep.mubr.f32.mxu0 0.0
      %5143 = vmatmul.mubr.f32.gmra.mrb[0].mxu0 %v4979
      %v5144 = vpop.f32.mrb[0].mxu0
      %v5145 = vadd.f32 %v1434, %v5144
      %v5146 = vpop.f32.mrb[0].mxu0
      %5147 = vmatprep.mubr.f32.mxu0 0.0
      %5148 = vmatmul.mubr.f32.gmra.mrb[0].mxu0 %v4982
      %v5149 = vpop.f32.mrb[0].mxu0
      %v5150 = vadd.f32 %v1434, %v5149
      %v5151 = vpop.f32.mrb[0].mxu0
      %5152 = vmatprep.mubr.f32.mxu0 0.0
      %5153 = vmatmul.mubr.f32.gmra.mrb[0].mxu0 %v4985
      %v5154 = vpop.f32.mrb[0].mxu0
      %v5155 = vadd.f32 %v1434, %v5154
      %v5156 = vpop.f32.mrb[0].mxu0
      %5157 = vmatprep.mubr.f32.mxu0 0.0
      %5158 = vmatmul.mubr.f32.gmra.mrb[0].mxu0 %v4988
      %v5159 = vpop.f32.mrb[0].mxu0
      %v5160 = vadd.f32 %v1434, %v5159
      %v5161 = vpop.f32.mrb[0].mxu0
      %5162 = vmatprep.mubr.f32.mxu0 0.0
      %5163 = vmatmul.mubr.f32.gmra.mrb[0].mxu0 %v4991
      %v5164 = vpop.f32.mrb[0].mxu0
      %v5165 = vadd.f32 %v1434, %v5164
      %v5166 = vpop.f32.mrb[0].mxu0
      %5167 = vmatprep.mubr.f32.mxu0 0.0
      %5168 = vmatmul.mubr.f32.gmra.mrb[0].mxu0 %v4994
      %v5169 = vpop.f32.mrb[0].mxu0
      %v5170 = vadd.f32 %v1434, %v5169
      %v5171 = vpop.f32.mrb[0].mxu0
      %5172 = vmatprep.mubr.f32.mxu0 0.0
      %5173 = vmatmul.mubr.f32.gmra.mrb[0].mxu0 %v4997
      %v5174 = vpop.f32.mrb[0].mxu0
      %v5175 = vadd.f32 %v1434, %v5174
      %v5176 = vpop.f32.mrb[0].mxu0
      %5177 = vmatprep.mubr.f32.mxu0 0.0
      %5178 = vmatmul.mubr.f32.gmra.mrb[0].mxu0 %v5000
      %v5179 = vpop.f32.mrb[0].mxu0
      %v5180 = vadd.f32 %v1434, %v5179
      %v5181 = vpop.f32.mrb[0].mxu0
      %5182 = vmatprep.mubr.f32.mxu0 0.0
      %5183 = vmatmul.mubr.f32.gmra.mrb[0].mxu0 %v5003
      %v5184 = vpop.f32.mrb[0].mxu0
      %v5185 = vadd.f32 %v1434, %v5184
      %v5186 = vpop.f32.mrb[0].mxu0
      %5187 = vmatprep.mubr.f32.mxu0 0.0
      %5188 = vmatmul.mubr.f32.gmra.mrb[0].mxu0 %v5006
      %v5189 = vpop.f32.mrb[0].mxu0
      %v5190 = vadd.f32 %v1434, %v5189
      %v5191 = vpop.f32.mrb[0].mxu0
      %5192 = vmatprep.mubr.f32.mxu0 0.0
      %5193 = vmatmul.mubr.f32.gmra.mrb[0].mxu0 %v5009
      %v5194 = vpop.f32.mrb[0].mxu0
      %v5195 = vadd.f32 %v1434, %v5194
      %v5196 = vpop.f32.mrb[0].mxu0
      %5197 = vmatprep.mubr.f32.mxu0 0.0
      %5198 = vmatmul.mubr.f32.gmra.mrb[0].mxu0 %v5012
      %v5199 = vpop.f32.mrb[0].mxu0
      %v5200 = vadd.f32 %v1434, %v5199
      %v5201 = vpop.f32.mrb[0].mxu0
      %5202 = vmatprep.mubr.f32.mxu0 0.0
      %5203 = vmatmul.mubr.f32.gmra.mrb[0].mxu0 %v5015
      %v5204 = vpop.f32.mrb[0].mxu0
      %v5205 = vadd.f32 %v1434, %v5204
      %v5206 = vpop.f32.mrb[0].mxu0
      %5207 = vmatprep.mubr.f32.mxu0 0.0
      %5208 = vmatmul.mubr.f32.gmra.mrb[0].mxu0 %v5018
      %v5209 = vpop.f32.mrb[0].mxu0
      %v5210 = vadd.f32 %v1434, %v5209
      %v5211 = vpop.f32.mrb[0].mxu0
      %5212 = vmatprep.mubr.f32.mxu0 0.0
      %5213 = vmatmul.mubr.f32.gmra.mrb[0].mxu0 %v5021
      %v5214 = vpop.f32.mrb[0].mxu0
      %v5215 = vadd.f32 %v1434, %v5214
      %v5216 = vpop.f32.mrb[0].mxu0
      %5217 = vmatprep.mubr.f32.mxu0 0.0
      %5218 = vmatmul.mubr.f32.gmra.mrb[0].mxu0 %v5024
      %v5219 = vpop.f32.mrb[0].mxu0
      %v5220 = vadd.f32 %v1434, %v5219
      %v5221 = vpop.f32.mrb[0].mxu0
      %5222 = vmatprep.mubr.f32.mxu0 0.0
      %5223 = vmatmul.mubr.f32.gmra.mrb[0].mxu0 %v5027
      %v5224 = vpop.f32.mrb[0].mxu0
      %v5225 = vadd.f32 %v1434, %v5224
      %v5226 = vpop.f32.mrb[0].mxu0
      %5227 = vmatprep.mubr.f32.mxu0 0.0
      %5228 = vmatmul.mubr.f32.gmra.mrb[0].mxu0 %v5030
      %v5229 = vpop.f32.mrb[0].mxu0
      %v5230 = vadd.f32 %v1434, %v5229
      %v5231 = vpop.f32.mrb[0].mxu0
      %5232 = vmatprep.mubr.f32.mxu0 0.0
      %5233 = vmatmul.mubr.f32.gmra.mrb[0].mxu0 %v5033
      %v5234 = vpop.f32.mrb[0].mxu0
      %v5235 = vadd.f32 %v1434, %v5234
      %v5236 = vpop.f32.mrb[0].mxu0
      %5237 = vmatprep.mubr.f32.mxu0 0.0
      %5238 = vmatmul.mubr.f32.gmra.mrb[0].mxu0 %v5036
      %v5239 = vpop.f32.mrb[0].mxu0
      %v5240 = vadd.f32 %v1434, %v5239
      %v5241 = vpop.f32.mrb[0].mxu0
      %5242 = vmatprep.mubr.f32.mxu0 0.0
      %5243 = vmatmul.mubr.f32.gmra.mrb[0].mxu0 %v5039
      %v5244 = vpop.f32.mrb[0].mxu0
      %v5245 = vadd.f32 %v1434, %v5244
      %v5246 = vpop.f32.mrb[0].mxu0
      %5247 = vmatprep.mubr.f32.mxu0 0.0
      %5248 = vmatmul.mubr.f32.gmra.mrb[0].mxu0 %v5042
      %v5249 = vpop.f32.mrb[0].mxu0
      %v5250 = vadd.f32 %v1434, %v5249
      %v5251 = vpop.f32.mrb[0].mxu0
      %5252 = vmatprep.mubr.f32.mxu0 0.0
      %5253 = vmatmul.mubr.f32.gmra.mrb[0].mxu0 %v5045
      %v5254 = vpop.f32.mrb[0].mxu0
      %v5255 = vadd.f32 %v1434, %v5254
      %v5256 = vpop.f32.mrb[0].mxu0
      %5257 = vmatprep.mubr.f32.mxu0 0.0
      %5258 = vmatmul.mubr.f32.gmra.mrb[0].mxu0 %v5048
      %v5259 = vpop.f32.mrb[0].mxu0
      %v5260 = vadd.f32 %v1434, %v5259
      %v5261 = vpop.f32.mrb[0].mxu0
      %5262 = vmatprep.mubr.f32.mxu0 0.0
      %5263 = vmatmul.mubr.f32.gmra.mrb[0].mxu0 %v5051
      %v5264 = vpop.f32.mrb[0].mxu0
      %v5265 = vadd.f32 %v1434, %v5264
      %v5266 = vpop.f32.mrb[0].mxu0
      %5267 = vmatprep.mubr.f32.mxu0 0.0
      %5268 = vmatmul.mubr.f32.gmra.mrb[0].mxu0 %v5054
      %v5269 = vpop.f32.mrb[0].mxu0
      %v5270 = vadd.f32 %v1434, %v5269
      %v5271 = vpop.f32.mrb[0].mxu0
      %5272 = vmatprep.mubr.f32.mxu0 0.0
      %5273 = vmatmul.mubr.f32.gmra.mrb[0].mxu0 %v5057
      %v5274 = vpop.f32.mrb[0].mxu0
      %v5275 = vadd.f32 %v1434, %v5274
      %v5276 = vpop.f32.mrb[0].mxu0
      %5277 = vmatprep.mubr.f32.mxu0 0.0
      %5278 = vmatmul.mubr.f32.gmra.mrb[0].mxu0 %v5060
      %v5279 = vpop.f32.mrb[0].mxu0
      %v5280 = vadd.f32 %v1434, %v5279
      %v5281 = vpop.f32.mrb[0].mxu0
      %5282 = vmatprep.mubr.f32.mxu0 0.0
      %5283 = vmatmul.mubr.f32.gmra.mrb[0].mxu0 %v5063
      %v5284 = vpop.f32.mrb[0].mxu0
      %v5285 = vadd.f32 %v1434, %v5284
      %v5286 = vpop.f32.mrb[0].mxu0
      %5287 = vmatprep.mubr.f32.mxu0 0.0
      %5288 = vmatmul.mubr.f32.gmra.mrb[0].mxu0 %v5066
      %v5289 = vpop.f32.mrb[0].mxu0
      %v5290 = vadd.f32 %v1434, %v5289
      %v5291 = vpop.f32.mrb[0].mxu0
      %5292 = vdwg.mxu0
      %v5293 = vmul.f32 %v5135, 0.35355338
      %v5294 = vmul.f32 %v5140, 0.35355338
      %v5295 = vmul.f32 %v5145, 0.35355338
      %v5296 = vmul.f32 %v5150, 0.35355338
      %v5297 = vmul.f32 %v5155, 0.35355338
      %v5298 = vmul.f32 %v5160, 0.35355338
      %v5299 = vmul.f32 %v5165, 0.35355338
      %v5300 = vmul.f32 %v5170, 0.35355338
      %v5301 = vmul.f32 %v5175, 0.35355338
      %v5302 = vmul.f32 %v5180, 0.35355338
      %v5303 = vmul.f32 %v5185, 0.35355338
      %v5304 = vmul.f32 %v5190, 0.35355338
      %v5305 = vmul.f32 %v5195, 0.35355338
      %v5306 = vmul.f32 %v5200, 0.35355338
      %v5307 = vmul.f32 %v5205, 0.35355338
      %v5308 = vmul.f32 %v5210, 0.35355338
      %v5309 = vmul.f32 %v5215, 0.35355338
      %v5310 = vmul.f32 %v5220, 0.35355338
      %v5311 = vmul.f32 %v5225, 0.35355338
      %v5312 = vmul.f32 %v5230, 0.35355338
      %v5313 = vmul.f32 %v5235, 0.35355338
      %v5314 = vmul.f32 %v5240, 0.35355338
      %v5315 = vmul.f32 %v5245, 0.35355338
      %v5316 = vmul.f32 %v5250, 0.35355338
      %v5317 = vmul.f32 %v5255, 0.35355338
      %v5318 = vmul.f32 %v5260, 0.35355338
      %v5319 = vmul.f32 %v5265, 0.35355338
      %v5320 = vmul.f32 %v5270, 0.35355338
      %v5321 = vmul.f32 %v5275, 0.35355338
      %v5322 = vmul.f32 %v5280, 0.35355338
      %v5323 = vmul.f32 %v5285, 0.35355338
      %v5324 = vmul.f32 %v5290, 0.35355338
      %5357 = vrot.lane.b32.xlu0 %v4940, 96
      %v5358 = vpop.permute.xlu0 %5357
      %5359 = vrot.lane.b32.xlu0 %v4941, 96
      %v5360 = vpop.permute.xlu0 %5359
      %5361 = vrot.lane.b32.xlu0 %v4942, 96
      %v5362 = vpop.permute.xlu0 %5361
      %5363 = vrot.lane.b32.xlu0 %v4943, 96
      %v5364 = vpop.permute.xlu0 %5363
      %5365 = vrot.lane.b32.xlu0 %v4944, 96
      %v5366 = vpop.permute.xlu0 %5365
      %5367 = vrot.lane.b32.xlu0 %v4945, 96
      %v5368 = vpop.permute.xlu0 %5367
      %5369 = vrot.lane.b32.xlu0 %v4946, 96
      %v5370 = vpop.permute.xlu0 %5369
      %5371 = vrot.lane.b32.xlu0 %v4947, 96
      %v5372 = vpop.permute.xlu0 %5371
      %5373 = vrot.lane.b32.xlu0 %v4948, 96
      %v5374 = vpop.permute.xlu0 %5373
      %5375 = vrot.lane.b32.xlu0 %v4949, 96
      %v5376 = vpop.permute.xlu0 %5375
      %5377 = vrot.lane.b32.xlu0 %v4950, 96
      %v5378 = vpop.permute.xlu0 %5377
      %5379 = vrot.lane.b32.xlu0 %v4951, 96
      %v5380 = vpop.permute.xlu0 %5379
      %5381 = vrot.lane.b32.xlu0 %v4952, 96
      %v5382 = vpop.permute.xlu0 %5381
      %5383 = vrot.lane.b32.xlu0 %v4953, 96
      %v5384 = vpop.permute.xlu0 %5383
      %5385 = vrot.lane.b32.xlu0 %v4954, 96
      %v5386 = vpop.permute.xlu0 %5385
      %5387 = vrot.lane.b32.xlu0 %v4955, 96
      %v5388 = vpop.permute.xlu0 %5387
      %5389 = vrot.lane.b32.xlu0 %v4956, 96
      %v5390 = vpop.permute.xlu0 %5389
      %5391 = vrot.lane.b32.xlu0 %v4957, 96
      %v5392 = vpop.permute.xlu0 %5391
      %5393 = vrot.lane.b32.xlu0 %v4958, 96
      %v5394 = vpop.permute.xlu0 %5393
      %5395 = vrot.lane.b32.xlu0 %v4959, 96
      %v5396 = vpop.permute.xlu0 %5395
      %5397 = vrot.lane.b32.xlu0 %v4960, 96
      %v5398 = vpop.permute.xlu0 %5397
      %5399 = vrot.lane.b32.xlu0 %v4961, 96
      %v5400 = vpop.permute.xlu0 %5399
      %5401 = vrot.lane.b32.xlu0 %v4962, 96
      %v5402 = vpop.permute.xlu0 %5401
      %5403 = vrot.lane.b32.xlu0 %v4963, 96
      %v5404 = vpop.permute.xlu0 %5403
      %5405 = vrot.lane.b32.xlu0 %v4964, 96
      %v5406 = vpop.permute.xlu0 %5405
      %5407 = vrot.lane.b32.xlu0 %v4965, 96
      %v5408 = vpop.permute.xlu0 %5407
      %5409 = vrot.lane.b32.xlu0 %v4966, 96
      %v5410 = vpop.permute.xlu0 %5409
      %5411 = vrot.lane.b32.xlu0 %v4967, 96
      %v5412 = vpop.permute.xlu0 %5411
      %5413 = vrot.lane.b32.xlu0 %v4968, 96
      %v5414 = vpop.permute.xlu0 %5413
      %5415 = vrot.lane.b32.xlu0 %v4969, 96
      %v5416 = vpop.permute.xlu0 %5415
      %5417 = vrot.lane.b32.xlu0 %v4970, 96
      %v5418 = vpop.permute.xlu0 %5417
      %5419 = vrot.lane.b32.xlu0 %v4971, 96
      %v5420 = vpop.permute.xlu0 %5419
      %v5421 = vsel %vm684, %v5358, 0
      %v5423 = vsel %vm684, %v5360, 0
      %v5425 = vsel %vm684, %v5362, 0
      %v5427 = vsel %vm684, %v5364, 0
      %v5429 = vsel %vm684, %v5366, 0
      %v5431 = vsel %vm684, %v5368, 0
      %v5433 = vsel %vm684, %v5370, 0
      %v5435 = vsel %vm684, %v5372, 0
      %v5437 = vsel %vm684, %v5374, 0
      %v5439 = vsel %vm684, %v5376, 0
      %v5441 = vsel %vm684, %v5378, 0
      %v5443 = vsel %vm684, %v5380, 0
      %v5445 = vsel %vm684, %v5382, 0
      %v5447 = vsel %vm684, %v5384, 0
      %v5449 = vsel %vm684, %v5386, 0
      %v5451 = vsel %vm684, %v5388, 0
      %v5453 = vsel %vm684, %v5390, 0
      %v5455 = vsel %vm684, %v5392, 0
      %v5457 = vsel %vm684, %v5394, 0
      %v5459 = vsel %vm684, %v5396, 0
      %v5461 = vsel %vm684, %v5398, 0
      %v5463 = vsel %vm684, %v5400, 0
      %v5465 = vsel %vm684, %v5402, 0
      %v5467 = vsel %vm684, %v5404, 0
      %v5469 = vsel %vm684, %v5406, 0
      %v5471 = vsel %vm684, %v5408, 0
      %v5473 = vsel %vm684, %v5410, 0
      %v5475 = vsel %vm684, %v5412, 0
      %v5477 = vsel %vm684, %v5414, 0
      %v5479 = vsel %vm684, %v5416, 0
      %v5481 = vsel %vm684, %v5418, 0
      %v5483 = vsel %vm684, %v5420, 0
      %5485 = vmatprep.subr.mxu0 0.0
      %5486 = vmatpush1.msra.mxu0 %v991
      %5487 = vmatprep.subr.mxu0 0.0
      %5488 = vmatpush1.msra.mxu0 %v992
      %5489 = vmatprep.subr.mxu0 0.0
      %5490 = vmatpush1.msra.mxu0 %v993
      %5491 = vmatprep.subr.mxu0 0.0
      %5492 = vmatpush1.msra.mxu0 %v994
      %5493 = vmatprep.subr.mxu0 0.0
      %5494 = vmatpush1.msra.mxu0 0.0
      %5495 = vmatprep.subr.mxu0 0.0
      %5496 = vmatpush1.msra.mxu0 0.0
      %5497 = vmatprep.subr.mxu0 0.0
      %5498 = vmatpush1.msra.mxu0 0.0
      %5499 = vmatprep.subr.mxu0 0.0
      %5500 = vmatpush1.msra.mxu0 0.0
      %5501 = vmatprep.subr.mxu0 0.0
      %5502 = vmatpush1.msra.mxu0 0.0
      %5503 = vmatprep.subr.mxu0 0.0
      %5504 = vmatpush1.msra.mxu0 0.0
      %5505 = vmatprep.subr.mxu0 0.0
      %5506 = vmatpush1.msra.mxu0 0.0
      %5507 = vmatprep.subr.mxu0 0.0
      %5508 = vmatpush1.msra.mxu0 0.0
      %5509 = vmatprep.subr.mxu0 0.0
      %5510 = vmatpush1.msra.mxu0 0.0
      %5511 = vmatprep.subr.mxu0 0.0
      %5512 = vmatpush1.msra.mxu0 0.0
      %5513 = vmatprep.subr.mxu0 0.0
      %5514 = vmatpush1.msra.mxu0 0.0
      %5515 = vmatprep.subr.mxu0 0.0
      %5516 = vmatpush1.msra.mxu0 0.0
      %5517 = vmatprep.subr.mxu0 0.0
      %5518 = vmatpush1.msra.mxu0 0.0
      %5519 = vmatprep.subr.mxu0 0.0
      %5520 = vmatpush1.msra.mxu0 0.0
      %5521 = vmatprep.subr.mxu0 0.0
      %5522 = vmatpush1.msra.mxu0 0.0
      %5523 = vmatprep.subr.mxu0 0.0
      %5524 = vmatpush1.msra.mxu0 0.0
      %5525 = vmatprep.subr.mxu0 0.0
      %5526 = vmatpush1.msra.mxu0 0.0
      %5527 = vmatprep.subr.mxu0 0.0
      %5528 = vmatpush1.msra.mxu0 0.0
      %5529 = vmatprep.subr.mxu0 0.0
      %5530 = vmatpush1.msra.mxu0 0.0
      %5531 = vmatprep.subr.mxu0 0.0
      %5532 = vmatpush1.msra.mxu0 0.0
      %5533 = vmatprep.subr.mxu0 0.0
      %5534 = vmatpush1.msra.mxu0 0.0
      %5535 = vmatprep.subr.mxu0 0.0
      %5536 = vmatpush1.msra.mxu0 0.0
      %5537 = vmatprep.subr.mxu0 0.0
      %5538 = vmatpush1.msra.mxu0 0.0
      %5539 = vmatprep.subr.mxu0 0.0
      %5540 = vmatpush1.msra.mxu0 0.0
      %5541 = vmatprep.subr.mxu0 0.0
      %5542 = vmatpush1.msra.mxu0 0.0
      %5543 = vmatprep.subr.mxu0 0.0
      %5544 = vmatpush1.msra.mxu0 0.0
      %5545 = vmatprep.subr.mxu0 0.0
      %5546 = vmatpush1.msra.mxu0 0.0
      %5547 = vmatprep.subr.mxu0 0.0
      %5548 = vmatpush1.msra.mxu0 0.0
      %5549 = vmatprep.mubr.f32.mxu0 0.0
      %5550 = vmatmul.mubr.f32.gmra.mrb[0].mxu0 %v5421
      %v5551 = vpop.f32.mrb[0].mxu0
      %v5552 = vadd.f32 %v1577, %v5551
      %v5553 = vpop.f32.mrb[0].mxu0
      %5554 = vmatprep.mubr.f32.mxu0 0.0
      %5555 = vmatmul.mubr.f32.gmra.mrb[0].mxu0 %v5423
      %v5556 = vpop.f32.mrb[0].mxu0
      %v5557 = vadd.f32 %v1577, %v5556
      %v5558 = vpop.f32.mrb[0].mxu0
      %5559 = vmatprep.mubr.f32.mxu0 0.0
      %5560 = vmatmul.mubr.f32.gmra.mrb[0].mxu0 %v5425
      %v5561 = vpop.f32.mrb[0].mxu0
      %v5562 = vadd.f32 %v1577, %v5561
      %v5563 = vpop.f32.mrb[0].mxu0
      %5564 = vmatprep.mubr.f32.mxu0 0.0
      %5565 = vmatmul.mubr.f32.gmra.mrb[0].mxu0 %v5427
      %v5566 = vpop.f32.mrb[0].mxu0
      %v5567 = vadd.f32 %v1577, %v5566
      %v5568 = vpop.f32.mrb[0].mxu0
      %5569 = vmatprep.mubr.f32.mxu0 0.0
      %5570 = vmatmul.mubr.f32.gmra.mrb[0].mxu0 %v5429
      %v5571 = vpop.f32.mrb[0].mxu0
      %v5572 = vadd.f32 %v1577, %v5571
      %v5573 = vpop.f32.mrb[0].mxu0
      %5574 = vmatprep.mubr.f32.mxu0 0.0
      %5575 = vmatmul.mubr.f32.gmra.mrb[0].mxu0 %v5431
      %v5576 = vpop.f32.mrb[0].mxu0
      %v5577 = vadd.f32 %v1577, %v5576
      %v5578 = vpop.f32.mrb[0].mxu0
      %5579 = vmatprep.mubr.f32.mxu0 0.0
      %5580 = vmatmul.mubr.f32.gmra.mrb[0].mxu0 %v5433
      %v5581 = vpop.f32.mrb[0].mxu0
      %v5582 = vadd.f32 %v1577, %v5581
      %v5583 = vpop.f32.mrb[0].mxu0
      %5584 = vmatprep.mubr.f32.mxu0 0.0
      %5585 = vmatmul.mubr.f32.gmra.mrb[0].mxu0 %v5435
      %v5586 = vpop.f32.mrb[0].mxu0
      %v5587 = vadd.f32 %v1577, %v5586
      %v5588 = vpop.f32.mrb[0].mxu0
      %5589 = vmatprep.mubr.f32.mxu0 0.0
      %5590 = vmatmul.mubr.f32.gmra.mrb[0].mxu0 %v5437
      %v5591 = vpop.f32.mrb[0].mxu0
      %v5592 = vadd.f32 %v1577, %v5591
      %v5593 = vpop.f32.mrb[0].mxu0
      %5594 = vmatprep.mubr.f32.mxu0 0.0
      %5595 = vmatmul.mubr.f32.gmra.mrb[0].mxu0 %v5439
      %v5596 = vpop.f32.mrb[0].mxu0
      %v5597 = vadd.f32 %v1577, %v5596
      %v5598 = vpop.f32.mrb[0].mxu0
      %5599 = vmatprep.mubr.f32.mxu0 0.0
      %5600 = vmatmul.mubr.f32.gmra.mrb[0].mxu0 %v5441
      %v5601 = vpop.f32.mrb[0].mxu0
      %v5602 = vadd.f32 %v1577, %v5601
      %v5603 = vpop.f32.mrb[0].mxu0
      %5604 = vmatprep.mubr.f32.mxu0 0.0
      %5605 = vmatmul.mubr.f32.gmra.mrb[0].mxu0 %v5443
      %v5606 = vpop.f32.mrb[0].mxu0
      %v5607 = vadd.f32 %v1577, %v5606
      %v5608 = vpop.f32.mrb[0].mxu0
      %5609 = vmatprep.mubr.f32.mxu0 0.0
      %5610 = vmatmul.mubr.f32.gmra.mrb[0].mxu0 %v5445
      %v5611 = vpop.f32.mrb[0].mxu0
      %v5612 = vadd.f32 %v1577, %v5611
      %v5613 = vpop.f32.mrb[0].mxu0
      %5614 = vmatprep.mubr.f32.mxu0 0.0
      %5615 = vmatmul.mubr.f32.gmra.mrb[0].mxu0 %v5447
      %v5616 = vpop.f32.mrb[0].mxu0
      %v5617 = vadd.f32 %v1577, %v5616
      %v5618 = vpop.f32.mrb[0].mxu0
      %5619 = vmatprep.mubr.f32.mxu0 0.0
      %5620 = vmatmul.mubr.f32.gmra.mrb[0].mxu0 %v5449
      %v5621 = vpop.f32.mrb[0].mxu0
      %v5622 = vadd.f32 %v1577, %v5621
      %v5623 = vpop.f32.mrb[0].mxu0
      %5624 = vmatprep.mubr.f32.mxu0 0.0
      %5625 = vmatmul.mubr.f32.gmra.mrb[0].mxu0 %v5451
      %v5626 = vpop.f32.mrb[0].mxu0
      %v5627 = vadd.f32 %v1577, %v5626
      %v5628 = vpop.f32.mrb[0].mxu0
      %5629 = vmatprep.mubr.f32.mxu0 0.0
      %5630 = vmatmul.mubr.f32.gmra.mrb[0].mxu0 %v5453
      %v5631 = vpop.f32.mrb[0].mxu0
      %v5632 = vadd.f32 %v1577, %v5631
      %v5633 = vpop.f32.mrb[0].mxu0
      %5634 = vmatprep.mubr.f32.mxu0 0.0
      %5635 = vmatmul.mubr.f32.gmra.mrb[0].mxu0 %v5455
      %v5636 = vpop.f32.mrb[0].mxu0
      %v5637 = vadd.f32 %v1577, %v5636
      %v5638 = vpop.f32.mrb[0].mxu0
      %5639 = vmatprep.mubr.f32.mxu0 0.0
      %5640 = vmatmul.mubr.f32.gmra.mrb[0].mxu0 %v5457
      %v5641 = vpop.f32.mrb[0].mxu0
      %v5642 = vadd.f32 %v1577, %v5641
      %v5643 = vpop.f32.mrb[0].mxu0
      %5644 = vmatprep.mubr.f32.mxu0 0.0
      %5645 = vmatmul.mubr.f32.gmra.mrb[0].mxu0 %v5459
      %v5646 = vpop.f32.mrb[0].mxu0
      %v5647 = vadd.f32 %v1577, %v5646
      %v5648 = vpop.f32.mrb[0].mxu0
      %5649 = vmatprep.mubr.f32.mxu0 0.0
      %5650 = vmatmul.mubr.f32.gmra.mrb[0].mxu0 %v5461
      %v5651 = vpop.f32.mrb[0].mxu0
      %v5652 = vadd.f32 %v1577, %v5651
      %v5653 = vpop.f32.mrb[0].mxu0
      %5654 = vmatprep.mubr.f32.mxu0 0.0
      %5655 = vmatmul.mubr.f32.gmra.mrb[0].mxu0 %v5463
      %v5656 = vpop.f32.mrb[0].mxu0
      %v5657 = vadd.f32 %v1577, %v5656
      %v5658 = vpop.f32.mrb[0].mxu0
      %5659 = vmatprep.mubr.f32.mxu0 0.0
      %5660 = vmatmul.mubr.f32.gmra.mrb[0].mxu0 %v5465
      %v5661 = vpop.f32.mrb[0].mxu0
      %v5662 = vadd.f32 %v1577, %v5661
      %v5663 = vpop.f32.mrb[0].mxu0
      %5664 = vmatprep.mubr.f32.mxu0 0.0
      %5665 = vmatmul.mubr.f32.gmra.mrb[0].mxu0 %v5467
      %v5666 = vpop.f32.mrb[0].mxu0
      %v5667 = vadd.f32 %v1577, %v5666
      %v5668 = vpop.f32.mrb[0].mxu0
      %5669 = vmatprep.mubr.f32.mxu0 0.0
      %5670 = vmatmul.mubr.f32.gmra.mrb[0].mxu0 %v5469
      %v5671 = vpop.f32.mrb[0].mxu0
      %v5672 = vadd.f32 %v1577, %v5671
      %v5673 = vpop.f32.mrb[0].mxu0
      %5674 = vmatprep.mubr.f32.mxu0 0.0
      %5675 = vmatmul.mubr.f32.gmra.mrb[0].mxu0 %v5471
      %v5676 = vpop.f32.mrb[0].mxu0
      %v5677 = vadd.f32 %v1577, %v5676
      %v5678 = vpop.f32.mrb[0].mxu0
      %5679 = vmatprep.mubr.f32.mxu0 0.0
      %5680 = vmatmul.mubr.f32.gmra.mrb[0].mxu0 %v5473
      %v5681 = vpop.f32.mrb[0].mxu0
      %v5682 = vadd.f32 %v1577, %v5681
      %v5683 = vpop.f32.mrb[0].mxu0
      %5684 = vmatprep.mubr.f32.mxu0 0.0
      %5685 = vmatmul.mubr.f32.gmra.mrb[0].mxu0 %v5475
      %v5686 = vpop.f32.mrb[0].mxu0
      %v5687 = vadd.f32 %v1577, %v5686
      %v5688 = vpop.f32.mrb[0].mxu0
      %5689 = vmatprep.mubr.f32.mxu0 0.0
      %5690 = vmatmul.mubr.f32.gmra.mrb[0].mxu0 %v5477
      %v5691 = vpop.f32.mrb[0].mxu0
      %v5692 = vadd.f32 %v1577, %v5691
      %v5693 = vpop.f32.mrb[0].mxu0
      %5694 = vmatprep.mubr.f32.mxu0 0.0
      %5695 = vmatmul.mubr.f32.gmra.mrb[0].mxu0 %v5479
      %v5696 = vpop.f32.mrb[0].mxu0
      %v5697 = vadd.f32 %v1577, %v5696
      %v5698 = vpop.f32.mrb[0].mxu0
      %5699 = vmatprep.mubr.f32.mxu0 0.0
      %5700 = vmatmul.mubr.f32.gmra.mrb[0].mxu0 %v5481
      %v5701 = vpop.f32.mrb[0].mxu0
      %v5702 = vadd.f32 %v1577, %v5701
      %v5703 = vpop.f32.mrb[0].mxu0
      %5704 = vmatprep.mubr.f32.mxu0 0.0
      %5705 = vmatmul.mubr.f32.gmra.mrb[0].mxu0 %v5483
      %v5706 = vpop.f32.mrb[0].mxu0
      %v5707 = vadd.f32 %v1577, %v5706
      %v5708 = vpop.f32.mrb[0].mxu0
      %5709 = vdwg.mxu0
      %v5711 = vsel %vm906, %v5293, 0
      %v5714 = vsel %vm906, %v5294, 0
      %v5717 = vsel %vm906, %v5295, 0
      %v5720 = vsel %vm906, %v5296, 0
      %v5723 = vsel %vm906, %v5297, 0
      %v5726 = vsel %vm906, %v5298, 0
      %v5729 = vsel %vm906, %v5299, 0
      %v5732 = vsel %vm906, %v5300, 0
      %v5735 = vsel %vm906, %v5301, 0
      %v5738 = vsel %vm906, %v5302, 0
      %v5741 = vsel %vm906, %v5303, 0
      %v5744 = vsel %vm906, %v5304, 0
      %v5747 = vsel %vm906, %v5305, 0
      %v5750 = vsel %vm906, %v5306, 0
      %v5753 = vsel %vm906, %v5307, 0
      %v5756 = vsel %vm906, %v5308, 0
      %v5759 = vsel %vm906, %v5309, 0
      %v5762 = vsel %vm906, %v5310, 0
      %v5765 = vsel %vm906, %v5311, 0
      %v5768 = vsel %vm906, %v5312, 0
      %v5771 = vsel %vm906, %v5313, 0
      %v5774 = vsel %vm906, %v5314, 0
      %v5777 = vsel %vm906, %v5315, 0
      %v5780 = vsel %vm906, %v5316, 0
      %v5783 = vsel %vm906, %v5317, 0
      %v5786 = vsel %vm906, %v5318, 0
      %v5789 = vsel %vm906, %v5319, 0
      %v5792 = vsel %vm906, %v5320, 0
      %v5795 = vsel %vm906, %v5321, 0
      %v5798 = vsel %vm906, %v5322, 0
      %v5801 = vsel %vm906, %v5323, 0
      %v5804 = vsel %vm906, %v5324, 0
      %v5807 = vsel %vm906, %v5552, 0
      %v5810 = vsel %vm906, %v5557, 0
      %v5813 = vsel %vm906, %v5562, 0
      %v5816 = vsel %vm906, %v5567, 0
      %v5819 = vsel %vm906, %v5572, 0
      %v5822 = vsel %vm906, %v5577, 0
      %v5825 = vsel %vm906, %v5582, 0
      %v5828 = vsel %vm906, %v5587, 0
      %v5831 = vsel %vm906, %v5592, 0
      %v5834 = vsel %vm906, %v5597, 0
      %v5837 = vsel %vm906, %v5602, 0
      %v5840 = vsel %vm906, %v5607, 0
      %v5843 = vsel %vm906, %v5612, 0
      %v5846 = vsel %vm906, %v5617, 0
      %v5849 = vsel %vm906, %v5622, 0
      %v5852 = vsel %vm906, %v5627, 0
      %v5855 = vsel %vm906, %v5632, 0
      %v5858 = vsel %vm906, %v5637, 0
      %v5861 = vsel %vm906, %v5642, 0
      %v5864 = vsel %vm906, %v5647, 0
      %v5867 = vsel %vm906, %v5652, 0
      %v5870 = vsel %vm906, %v5657, 0
      %v5873 = vsel %vm906, %v5662, 0
      %v5876 = vsel %vm906, %v5667, 0
      %v5879 = vsel %vm906, %v5672, 0
      %v5882 = vsel %vm906, %v5677, 0
      %v5885 = vsel %vm906, %v5682, 0
      %v5888 = vsel %vm906, %v5687, 0
      %v5891 = vsel %vm906, %v5692, 0
      %v5894 = vsel %vm906, %v5697, 0
      %v5897 = vsel %vm906, %v5702, 0
      %v5900 = vsel %vm906, %v5707, 0
      %5902 = vmatprep.subr.mxu0 0.0
      %5903 = vmatpush1.xpose.msra.mxu0 %v5807
      %5904 = vmatprep.subr.mxu0 0.0
      %5905 = vmatpush1.xpose.msra.mxu0 %v5810
      %5906 = vmatprep.subr.mxu0 0.0
      %5907 = vmatpush1.xpose.msra.mxu0 %v5813
      %5908 = vmatprep.subr.mxu0 0.0
      %5909 = vmatpush1.xpose.msra.mxu0 %v5816
      %5910 = vmatprep.subr.mxu0 0.0
      %5911 = vmatpush1.xpose.msra.mxu0 %v5819
      %5912 = vmatprep.subr.mxu0 0.0
      %5913 = vmatpush1.xpose.msra.mxu0 %v5822
      %5914 = vmatprep.subr.mxu0 0.0
      %5915 = vmatpush1.xpose.msra.mxu0 %v5825
      %5916 = vmatprep.subr.mxu0 0.0
      %5917 = vmatpush1.xpose.msra.mxu0 %v5828
      %5918 = vmatprep.subr.mxu0 0.0
      %5919 = vmatpush1.xpose.msra.mxu0 %v5831
      %5920 = vmatprep.subr.mxu0 0.0
      %5921 = vmatpush1.xpose.msra.mxu0 %v5834
      %5922 = vmatprep.subr.mxu0 0.0
      %5923 = vmatpush1.xpose.msra.mxu0 %v5837
      %5924 = vmatprep.subr.mxu0 0.0
      %5925 = vmatpush1.xpose.msra.mxu0 %v5840
      %5926 = vmatprep.subr.mxu0 0.0
      %5927 = vmatpush1.xpose.msra.mxu0 %v5843
      %5928 = vmatprep.subr.mxu0 0.0
      %5929 = vmatpush1.xpose.msra.mxu0 %v5846
      %5930 = vmatprep.subr.mxu0 0.0
      %5931 = vmatpush1.xpose.msra.mxu0 %v5849
      %5932 = vmatprep.subr.mxu0 0.0
      %5933 = vmatpush1.xpose.msra.mxu0 %v5852
      %5934 = vmatprep.subr.mxu0 0.0
      %5935 = vmatpush1.xpose.msra.mxu0 %v5855
      %5936 = vmatprep.subr.mxu0 0.0
      %5937 = vmatpush1.xpose.msra.mxu0 %v5858
      %5938 = vmatprep.subr.mxu0 0.0
      %5939 = vmatpush1.xpose.msra.mxu0 %v5861
      %5940 = vmatprep.subr.mxu0 0.0
      %5941 = vmatpush1.xpose.msra.mxu0 %v5864
      %5942 = vmatprep.subr.mxu0 0.0
      %5943 = vmatpush1.xpose.msra.mxu0 %v5867
      %5944 = vmatprep.subr.mxu0 0.0
      %5945 = vmatpush1.xpose.msra.mxu0 %v5870
      %5946 = vmatprep.subr.mxu0 0.0
      %5947 = vmatpush1.xpose.msra.mxu0 %v5873
      %5948 = vmatprep.subr.mxu0 0.0
      %5949 = vmatpush1.xpose.msra.mxu0 %v5876
      %5950 = vmatprep.subr.mxu0 0.0
      %5951 = vmatpush1.xpose.msra.mxu0 %v5879
      %5952 = vmatprep.subr.mxu0 0.0
      %5953 = vmatpush1.xpose.msra.mxu0 %v5882
      %5954 = vmatprep.subr.mxu0 0.0
      %5955 = vmatpush1.xpose.msra.mxu0 %v5885
      %5956 = vmatprep.subr.mxu0 0.0
      %5957 = vmatpush1.xpose.msra.mxu0 %v5888
      %5958 = vmatprep.subr.mxu0 0.0
      %5959 = vmatpush1.xpose.msra.mxu0 %v5891
      %5960 = vmatprep.subr.mxu0 0.0
      %5961 = vmatpush1.xpose.msra.mxu0 %v5894
      %5962 = vmatprep.subr.mxu0 0.0
      %5963 = vmatpush1.xpose.msra.mxu0 %v5897
      %5964 = vmatprep.subr.mxu0 0.0
      %5965 = vmatpush1.xpose.msra.mxu0 %v5900
      %5966 = vmatprep.mubr.f32.mxu0 0.0
      %5967 = vmatmul.mubr.f32.gmra.mrb[0].mxu0 %v5711
      %v5968 = vpop.f32.mrb[0].mxu0
      %v5969 = vadd.f32 0.0, %v5968
      %v5970 = vpop.f32.mrb[0].mxu0
      %v5971 = vadd.f32 0.0, %v5970
      %5972 = vmatprep.mubr.f32.mxu0 0.0
      %5973 = vmatmul.mubr.f32.gmra.mrb[0].mxu0 %v5714
      %v5974 = vpop.f32.mrb[0].mxu0
      %v5975 = vadd.f32 0.0, %v5974
      %v5976 = vpop.f32.mrb[0].mxu0
      %v5977 = vadd.f32 0.0, %v5976
      %5978 = vmatprep.mubr.f32.mxu0 0.0
      %5979 = vmatmul.mubr.f32.gmra.mrb[0].mxu0 %v5717
      %v5980 = vpop.f32.mrb[0].mxu0
      %v5981 = vadd.f32 0.0, %v5980
      %v5982 = vpop.f32.mrb[0].mxu0
      %v5983 = vadd.f32 0.0, %v5982
      %5984 = vmatprep.mubr.f32.mxu0 0.0
      %5985 = vmatmul.mubr.f32.gmra.mrb[0].mxu0 %v5720
      %v5986 = vpop.f32.mrb[0].mxu0
      %v5987 = vadd.f32 0.0, %v5986
      %v5988 = vpop.f32.mrb[0].mxu0
      %v5989 = vadd.f32 0.0, %v5988
      %5990 = vmatprep.mubr.f32.mxu0 0.0
      %5991 = vmatmul.mubr.f32.gmra.mrb[0].mxu0 %v5723
      %v5992 = vpop.f32.mrb[0].mxu0
      %v5993 = vadd.f32 0.0, %v5992
      %v5994 = vpop.f32.mrb[0].mxu0
      %v5995 = vadd.f32 0.0, %v5994
      %5996 = vmatprep.mubr.f32.mxu0 0.0
      %5997 = vmatmul.mubr.f32.gmra.mrb[0].mxu0 %v5726
      %v5998 = vpop.f32.mrb[0].mxu0
      %v5999 = vadd.f32 0.0, %v5998
      %v6000 = vpop.f32.mrb[0].mxu0
      %v6001 = vadd.f32 0.0, %v6000
      %6002 = vmatprep.mubr.f32.mxu0 0.0
      %6003 = vmatmul.mubr.f32.gmra.mrb[0].mxu0 %v5729
      %v6004 = vpop.f32.mrb[0].mxu0
      %v6005 = vadd.f32 0.0, %v6004
      %v6006 = vpop.f32.mrb[0].mxu0
      %v6007 = vadd.f32 0.0, %v6006
      %6008 = vmatprep.mubr.f32.mxu0 0.0
      %6009 = vmatmul.mubr.f32.gmra.mrb[0].mxu0 %v5732
      %v6010 = vpop.f32.mrb[0].mxu0
      %v6011 = vadd.f32 0.0, %v6010
      %v6012 = vpop.f32.mrb[0].mxu0
      %v6013 = vadd.f32 0.0, %v6012
      %6014 = vmatprep.mubr.f32.mxu0 0.0
      %6015 = vmatmul.mubr.f32.gmra.mrb[0].mxu0 %v5735
      %v6016 = vpop.f32.mrb[0].mxu0
      %v6017 = vadd.f32 0.0, %v6016
      %v6018 = vpop.f32.mrb[0].mxu0
      %v6019 = vadd.f32 0.0, %v6018
      %6020 = vmatprep.mubr.f32.mxu0 0.0
      %6021 = vmatmul.mubr.f32.gmra.mrb[0].mxu0 %v5738
      %v6022 = vpop.f32.mrb[0].mxu0
      %v6023 = vadd.f32 0.0, %v6022
      %v6024 = vpop.f32.mrb[0].mxu0
      %v6025 = vadd.f32 0.0, %v6024
      %6026 = vmatprep.mubr.f32.mxu0 0.0
      %6027 = vmatmul.mubr.f32.gmra.mrb[0].mxu0 %v5741
      %v6028 = vpop.f32.mrb[0].mxu0
      %v6029 = vadd.f32 0.0, %v6028
      %v6030 = vpop.f32.mrb[0].mxu0
      %v6031 = vadd.f32 0.0, %v6030
      %6032 = vmatprep.mubr.f32.mxu0 0.0
      %6033 = vmatmul.mubr.f32.gmra.mrb[0].mxu0 %v5744
      %v6034 = vpop.f32.mrb[0].mxu0
      %v6035 = vadd.f32 0.0, %v6034
      %v6036 = vpop.f32.mrb[0].mxu0
      %v6037 = vadd.f32 0.0, %v6036
      %6038 = vmatprep.mubr.f32.mxu0 0.0
      %6039 = vmatmul.mubr.f32.gmra.mrb[0].mxu0 %v5747
      %v6040 = vpop.f32.mrb[0].mxu0
      %v6041 = vadd.f32 0.0, %v6040
      %v6042 = vpop.f32.mrb[0].mxu0
      %v6043 = vadd.f32 0.0, %v6042
      %6044 = vmatprep.mubr.f32.mxu0 0.0
      %6045 = vmatmul.mubr.f32.gmra.mrb[0].mxu0 %v5750
      %v6046 = vpop.f32.mrb[0].mxu0
      %v6047 = vadd.f32 0.0, %v6046
      %v6048 = vpop.f32.mrb[0].mxu0
      %v6049 = vadd.f32 0.0, %v6048
      %6050 = vmatprep.mubr.f32.mxu0 0.0
      %6051 = vmatmul.mubr.f32.gmra.mrb[0].mxu0 %v5753
      %v6052 = vpop.f32.mrb[0].mxu0
      %v6053 = vadd.f32 0.0, %v6052
      %v6054 = vpop.f32.mrb[0].mxu0
      %v6055 = vadd.f32 0.0, %v6054
      %6056 = vmatprep.mubr.f32.mxu0 0.0
      %6057 = vmatmul.mubr.f32.gmra.mrb[0].mxu0 %v5756
      %v6058 = vpop.f32.mrb[0].mxu0
      %v6059 = vadd.f32 0.0, %v6058
      %v6060 = vpop.f32.mrb[0].mxu0
      %v6061 = vadd.f32 0.0, %v6060
      %6062 = vmatprep.mubr.f32.mxu0 0.0
      %6063 = vmatmul.mubr.f32.gmra.mrb[0].mxu0 %v5759
      %v6064 = vpop.f32.mrb[0].mxu0
      %v6065 = vadd.f32 0.0, %v6064
      %v6066 = vpop.f32.mrb[0].mxu0
      %v6067 = vadd.f32 0.0, %v6066
      %6068 = vmatprep.mubr.f32.mxu0 0.0
      %6069 = vmatmul.mubr.f32.gmra.mrb[0].mxu0 %v5762
      %v6070 = vpop.f32.mrb[0].mxu0
      %v6071 = vadd.f32 0.0, %v6070
      %v6072 = vpop.f32.mrb[0].mxu0
      %v6073 = vadd.f32 0.0, %v6072
      %6074 = vmatprep.mubr.f32.mxu0 0.0
      %6075 = vmatmul.mubr.f32.gmra.mrb[0].mxu0 %v5765
      %v6076 = vpop.f32.mrb[0].mxu0
      %v6077 = vadd.f32 0.0, %v6076
      %v6078 = vpop.f32.mrb[0].mxu0
      %v6079 = vadd.f32 0.0, %v6078
      %6080 = vmatprep.mubr.f32.mxu0 0.0
      %6081 = vmatmul.mubr.f32.gmra.mrb[0].mxu0 %v5768
      %v6082 = vpop.f32.mrb[0].mxu0
      %v6083 = vadd.f32 0.0, %v6082
      %v6084 = vpop.f32.mrb[0].mxu0
      %v6085 = vadd.f32 0.0, %v6084
      %6086 = vmatprep.mubr.f32.mxu0 0.0
      %6087 = vmatmul.mubr.f32.gmra.mrb[0].mxu0 %v5771
      %v6088 = vpop.f32.mrb[0].mxu0
      %v6089 = vadd.f32 0.0, %v6088
      %v6090 = vpop.f32.mrb[0].mxu0
      %v6091 = vadd.f32 0.0, %v6090
      %6092 = vmatprep.mubr.f32.mxu0 0.0
      %6093 = vmatmul.mubr.f32.gmra.mrb[0].mxu0 %v5774
      %v6094 = vpop.f32.mrb[0].mxu0
      %v6095 = vadd.f32 0.0, %v6094
      %v6096 = vpop.f32.mrb[0].mxu0
      %v6097 = vadd.f32 0.0, %v6096
      %6098 = vmatprep.mubr.f32.mxu0 0.0
      %6099 = vmatmul.mubr.f32.gmra.mrb[0].mxu0 %v5777
      %v6100 = vpop.f32.mrb[0].mxu0
      %v6101 = vadd.f32 0.0, %v6100
      %v6102 = vpop.f32.mrb[0].mxu0
      %v6103 = vadd.f32 0.0, %v6102
      %6104 = vmatprep.mubr.f32.mxu0 0.0
      %6105 = vmatmul.mubr.f32.gmra.mrb[0].mxu0 %v5780
      %v6106 = vpop.f32.mrb[0].mxu0
      %v6107 = vadd.f32 0.0, %v6106
      %v6108 = vpop.f32.mrb[0].mxu0
      %v6109 = vadd.f32 0.0, %v6108
      %6110 = vmatprep.mubr.f32.mxu0 0.0
      %6111 = vmatmul.mubr.f32.gmra.mrb[0].mxu0 %v5783
      %v6112 = vpop.f32.mrb[0].mxu0
      %v6113 = vadd.f32 0.0, %v6112
      %v6114 = vpop.f32.mrb[0].mxu0
      %v6115 = vadd.f32 0.0, %v6114
      %6116 = vmatprep.mubr.f32.mxu0 0.0
      %6117 = vmatmul.mubr.f32.gmra.mrb[0].mxu0 %v5786
      %v6118 = vpop.f32.mrb[0].mxu0
      %v6119 = vadd.f32 0.0, %v6118
      %v6120 = vpop.f32.mrb[0].mxu0
      %v6121 = vadd.f32 0.0, %v6120
      %6122 = vmatprep.mubr.f32.mxu0 0.0
      %6123 = vmatmul.mubr.f32.gmra.mrb[0].mxu0 %v5789
      %v6124 = vpop.f32.mrb[0].mxu0
      %v6125 = vadd.f32 0.0, %v6124
      %v6126 = vpop.f32.mrb[0].mxu0
      %v6127 = vadd.f32 0.0, %v6126
      %6128 = vmatprep.mubr.f32.mxu0 0.0
      %6129 = vmatmul.mubr.f32.gmra.mrb[0].mxu0 %v5792
      %v6130 = vpop.f32.mrb[0].mxu0
      %v6131 = vadd.f32 0.0, %v6130
      %v6132 = vpop.f32.mrb[0].mxu0
      %v6133 = vadd.f32 0.0, %v6132
      %6134 = vmatprep.mubr.f32.mxu0 0.0
      %6135 = vmatmul.mubr.f32.gmra.mrb[0].mxu0 %v5795
      %v6136 = vpop.f32.mrb[0].mxu0
      %v6137 = vadd.f32 0.0, %v6136
      %v6138 = vpop.f32.mrb[0].mxu0
      %v6139 = vadd.f32 0.0, %v6138
      %6140 = vmatprep.mubr.f32.mxu0 0.0
      %6141 = vmatmul.mubr.f32.gmra.mrb[0].mxu0 %v5798
      %v6142 = vpop.f32.mrb[0].mxu0
      %v6143 = vadd.f32 0.0, %v6142
      %v6144 = vpop.f32.mrb[0].mxu0
      %v6145 = vadd.f32 0.0, %v6144
      %6146 = vmatprep.mubr.f32.mxu0 0.0
      %6147 = vmatmul.mubr.f32.gmra.mrb[0].mxu0 %v5801
      %v6148 = vpop.f32.mrb[0].mxu0
      %v6149 = vadd.f32 0.0, %v6148
      %v6150 = vpop.f32.mrb[0].mxu0
      %v6151 = vadd.f32 0.0, %v6150
      %6152 = vmatprep.mubr.f32.mxu0 0.0
      %6153 = vmatmul.mubr.f32.gmra.mrb[0].mxu0 %v5804
      %v6154 = vpop.f32.mrb[0].mxu0
      %v6155 = vadd.f32 0.0, %v6154
      %v6156 = vpop.f32.mrb[0].mxu0
      %v6157 = vadd.f32 0.0, %v6156
      %6158 = vdwg.mxu0
      %v6159 = vmax.f32 %v5969, %v5971
      %6160 = vmax.xlane.f32.xlu0 %v6159
      %v6161 = vpop.xlane.xlu0 %6160
      %v6162 = vmax.f32 %v5975, %v5977
      %6163 = vmax.xlane.f32.xlu0 %v6162
      %v6164 = vpop.xlane.xlu0 %6163
      %v6165 = vmax.f32 %v5981, %v5983
      %6166 = vmax.xlane.f32.xlu0 %v6165
      %v6167 = vpop.xlane.xlu0 %6166
      %v6168 = vmax.f32 %v5987, %v5989
      %6169 = vmax.xlane.f32.xlu0 %v6168
      %v6170 = vpop.xlane.xlu0 %6169
      %v6171 = vmax.f32 %v5993, %v5995
      %6172 = vmax.xlane.f32.xlu0 %v6171
      %v6173 = vpop.xlane.xlu0 %6172
      %v6174 = vmax.f32 %v5999, %v6001
      %6175 = vmax.xlane.f32.xlu0 %v6174
      %v6176 = vpop.xlane.xlu0 %6175
      %v6177 = vmax.f32 %v6005, %v6007
      %6178 = vmax.xlane.f32.xlu0 %v6177
      %v6179 = vpop.xlane.xlu0 %6178
      %v6180 = vmax.f32 %v6011, %v6013
      %6181 = vmax.xlane.f32.xlu0 %v6180
      %v6182 = vpop.xlane.xlu0 %6181
      %v6183 = vmax.f32 %v6017, %v6019
      %6184 = vmax.xlane.f32.xlu0 %v6183
      %v6185 = vpop.xlane.xlu0 %6184
      %v6186 = vmax.f32 %v6023, %v6025
      %6187 = vmax.xlane.f32.xlu0 %v6186
      %v6188 = vpop.xlane.xlu0 %6187
      %v6189 = vmax.f32 %v6029, %v6031
      %6190 = vmax.xlane.f32.xlu0 %v6189
      %v6191 = vpop.xlane.xlu0 %6190
      %v6192 = vmax.f32 %v6035, %v6037
      %6193 = vmax.xlane.f32.xlu0 %v6192
      %v6194 = vpop.xlane.xlu0 %6193
      %v6195 = vmax.f32 %v6041, %v6043
      %6196 = vmax.xlane.f32.xlu0 %v6195
      %v6197 = vpop.xlane.xlu0 %6196
      %v6198 = vmax.f32 %v6047, %v6049
      %6199 = vmax.xlane.f32.xlu0 %v6198
      %v6200 = vpop.xlane.xlu0 %6199
      %v6201 = vmax.f32 %v6053, %v6055
      %6202 = vmax.xlane.f32.xlu0 %v6201
      %v6203 = vpop.xlane.xlu0 %6202
      %v6204 = vmax.f32 %v6059, %v6061
      %6205 = vmax.xlane.f32.xlu0 %v6204
      %v6206 = vpop.xlane.xlu0 %6205
      %v6207 = vmax.f32 %v6065, %v6067
      %6208 = vmax.xlane.f32.xlu0 %v6207
      %v6209 = vpop.xlane.xlu0 %6208
      %v6210 = vmax.f32 %v6071, %v6073
      %6211 = vmax.xlane.f32.xlu0 %v6210
      %v6212 = vpop.xlane.xlu0 %6211
      %v6213 = vmax.f32 %v6077, %v6079
      %6214 = vmax.xlane.f32.xlu0 %v6213
      %v6215 = vpop.xlane.xlu0 %6214
      %v6216 = vmax.f32 %v6083, %v6085
      %6217 = vmax.xlane.f32.xlu0 %v6216
      %v6218 = vpop.xlane.xlu0 %6217
      %v6219 = vmax.f32 %v6089, %v6091
      %6220 = vmax.xlane.f32.xlu0 %v6219
      %v6221 = vpop.xlane.xlu0 %6220
      %v6222 = vmax.f32 %v6095, %v6097
      %6223 = vmax.xlane.f32.xlu0 %v6222
      %v6224 = vpop.xlane.xlu0 %6223
      %v6225 = vmax.f32 %v6101, %v6103
      %6226 = vmax.xlane.f32.xlu0 %v6225
      %v6227 = vpop.xlane.xlu0 %6226
      %v6228 = vmax.f32 %v6107, %v6109
      %6229 = vmax.xlane.f32.xlu0 %v6228
      %v6230 = vpop.xlane.xlu0 %6229
      %v6231 = vmax.f32 %v6113, %v6115
      %6232 = vmax.xlane.f32.xlu0 %v6231
      %v6233 = vpop.xlane.xlu0 %6232
      %v6234 = vmax.f32 %v6119, %v6121
      %6235 = vmax.xlane.f32.xlu0 %v6234
      %v6236 = vpop.xlane.xlu0 %6235
      %v6237 = vmax.f32 %v6125, %v6127
      %6238 = vmax.xlane.f32.xlu0 %v6237
      %v6239 = vpop.xlane.xlu0 %6238
      %v6240 = vmax.f32 %v6131, %v6133
      %6241 = vmax.xlane.f32.xlu0 %v6240
      %v6242 = vpop.xlane.xlu0 %6241
      %v6243 = vmax.f32 %v6137, %v6139
      %6244 = vmax.xlane.f32.xlu0 %v6243
      %v6245 = vpop.xlane.xlu0 %6244
      %v6246 = vmax.f32 %v6143, %v6145
      %6247 = vmax.xlane.f32.xlu0 %v6246
      %v6248 = vpop.xlane.xlu0 %6247
      %v6249 = vmax.f32 %v6149, %v6151
      %6250 = vmax.xlane.f32.xlu0 %v6249
      %v6251 = vpop.xlane.xlu0 %6250
      %v6252 = vmax.f32 %v6155, %v6157
      %6253 = vmax.xlane.f32.xlu0 %v6252
      %v6254 = vpop.xlane.xlu0 %6253
      %v6255 = vsub.f32 %v5969, %v6161
      %v6256 = vsub.f32 %v5971, %v6161
      %v6257 = vsub.f32 %v5975, %v6164
      %v6258 = vsub.f32 %v5977, %v6164
      %v6259 = vsub.f32 %v5981, %v6167
      %v6260 = vsub.f32 %v5983, %v6167
      %v6261 = vsub.f32 %v5987, %v6170
      %v6262 = vsub.f32 %v5989, %v6170
      %v6263 = vsub.f32 %v5993, %v6173
      %v6264 = vsub.f32 %v5995, %v6173
      %v6265 = vsub.f32 %v5999, %v6176
      %v6266 = vsub.f32 %v6001, %v6176
      %v6267 = vsub.f32 %v6005, %v6179
      %v6268 = vsub.f32 %v6007, %v6179
      %v6269 = vsub.f32 %v6011, %v6182
      %v6270 = vsub.f32 %v6013, %v6182
      %v6271 = vsub.f32 %v6017, %v6185
      %v6272 = vsub.f32 %v6019, %v6185
      %v6273 = vsub.f32 %v6023, %v6188
      %v6274 = vsub.f32 %v6025, %v6188
      %v6275 = vsub.f32 %v6029, %v6191
      %v6276 = vsub.f32 %v6031, %v6191
      %v6277 = vsub.f32 %v6035, %v6194
      %v6278 = vsub.f32 %v6037, %v6194
      %v6279 = vsub.f32 %v6041, %v6197
      %v6280 = vsub.f32 %v6043, %v6197
      %v6281 = vsub.f32 %v6047, %v6200
      %v6282 = vsub.f32 %v6049, %v6200
      %v6283 = vsub.f32 %v6053, %v6203
      %v6284 = vsub.f32 %v6055, %v6203
      %v6285 = vsub.f32 %v6059, %v6206
      %v6286 = vsub.f32 %v6061, %v6206
      %v6287 = vsub.f32 %v6065, %v6209
      %v6288 = vsub.f32 %v6067, %v6209
      %v6289 = vsub.f32 %v6071, %v6212
      %v6290 = vsub.f32 %v6073, %v6212
      %v6291 = vsub.f32 %v6077, %v6215
      %v6292 = vsub.f32 %v6079, %v6215
      %v6293 = vsub.f32 %v6083, %v6218
      %v6294 = vsub.f32 %v6085, %v6218
      %v6295 = vsub.f32 %v6089, %v6221
      %v6296 = vsub.f32 %v6091, %v6221
      %v6297 = vsub.f32 %v6095, %v6224
      %v6298 = vsub.f32 %v6097, %v6224
      %v6299 = vsub.f32 %v6101, %v6227
      %v6300 = vsub.f32 %v6103, %v6227
      %v6301 = vsub.f32 %v6107, %v6230
      %v6302 = vsub.f32 %v6109, %v6230
      %v6303 = vsub.f32 %v6113, %v6233
      %v6304 = vsub.f32 %v6115, %v6233
      %v6305 = vsub.f32 %v6119, %v6236
      %v6306 = vsub.f32 %v6121, %v6236
      %v6307 = vsub.f32 %v6125, %v6239
      %v6308 = vsub.f32 %v6127, %v6239
      %v6309 = vsub.f32 %v6131, %v6242
      %v6310 = vsub.f32 %v6133, %v6242
      %v6311 = vsub.f32 %v6137, %v6245
      %v6312 = vsub.f32 %v6139, %v6245
      %v6313 = vsub.f32 %v6143, %v6248
      %v6314 = vsub.f32 %v6145, %v6248
      %v6315 = vsub.f32 %v6149, %v6251
      %v6316 = vsub.f32 %v6151, %v6251
      %v6317 = vsub.f32 %v6155, %v6254
      %v6318 = vsub.f32 %v6157, %v6254
      %v6319 = vmul.f32 %v6255, 1.442695
      %v6320 = vpow.pop %v6319
      %v6321 = vmul.f32 %v6256, 1.442695
      %v6322 = vpow.pop %v6321
      %v6323 = vmul.f32 %v6257, 1.442695
      %v6324 = vpow.pop %v6323
      %v6325 = vmul.f32 %v6258, 1.442695
      %v6326 = vpow.pop %v6325
      %v6327 = vmul.f32 %v6259, 1.442695
      %v6328 = vpow.pop %v6327
      %v6329 = vmul.f32 %v6260, 1.442695
      %v6330 = vpow.pop %v6329
      %v6331 = vmul.f32 %v6261, 1.442695
      %v6332 = vpow.pop %v6331
      %v6333 = vmul.f32 %v6262, 1.442695
      %v6334 = vpow.pop %v6333
      %v6335 = vmul.f32 %v6263, 1.442695
      %v6336 = vpow.pop %v6335
      %v6337 = vmul.f32 %v6264, 1.442695
      %v6338 = vpow.pop %v6337
      %v6339 = vmul.f32 %v6265, 1.442695
      %v6340 = vpow.pop %v6339
      %v6341 = vmul.f32 %v6266, 1.442695
      %v6342 = vpow.pop %v6341
      %v6343 = vmul.f32 %v6267, 1.442695
      %v6344 = vpow.pop %v6343
      %v6345 = vmul.f32 %v6268, 1.442695
      %v6346 = vpow.pop %v6345
      %v6347 = vmul.f32 %v6269, 1.442695
      %v6348 = vpow.pop %v6347
      %v6349 = vmul.f32 %v6270, 1.442695
      %v6350 = vpow.pop %v6349
      %v6351 = vmul.f32 %v6271, 1.442695
      %v6352 = vpow.pop %v6351
      %v6353 = vmul.f32 %v6272, 1.442695
      %v6354 = vpow.pop %v6353
      %v6355 = vmul.f32 %v6273, 1.442695
      %v6356 = vpow.pop %v6355
      %v6357 = vmul.f32 %v6274, 1.442695
      %v6358 = vpow.pop %v6357
      %v6359 = vmul.f32 %v6275, 1.442695
      %v6360 = vpow.pop %v6359
      %v6361 = vmul.f32 %v6276, 1.442695
      %v6362 = vpow.pop %v6361
      %v6363 = vmul.f32 %v6277, 1.442695
      %v6364 = vpow.pop %v6363
      %v6365 = vmul.f32 %v6278, 1.442695
      %v6366 = vpow.pop %v6365
      %v6367 = vmul.f32 %v6279, 1.442695
      %v6368 = vpow.pop %v6367
      %v6369 = vmul.f32 %v6280, 1.442695
      %v6370 = vpow.pop %v6369
      %v6371 = vmul.f32 %v6281, 1.442695
      %v6372 = vpow.pop %v6371
      %v6373 = vmul.f32 %v6282, 1.442695
      %v6374 = vpow.pop %v6373
      %v6375 = vmul.f32 %v6283, 1.442695
      %v6376 = vpow.pop %v6375
      %v6377 = vmul.f32 %v6284, 1.442695
      %v6378 = vpow.pop %v6377
      %v6379 = vmul.f32 %v6285, 1.442695
      %v6380 = vpow.pop %v6379
      %v6381 = vmul.f32 %v6286, 1.442695
      %v6382 = vpow.pop %v6381
      %v6383 = vmul.f32 %v6287, 1.442695
      %v6384 = vpow.pop %v6383
      %v6385 = vmul.f32 %v6288, 1.442695
      %v6386 = vpow.pop %v6385
      %v6387 = vmul.f32 %v6289, 1.442695
      %v6388 = vpow.pop %v6387
      %v6389 = vmul.f32 %v6290, 1.442695
      %v6390 = vpow.pop %v6389
      %v6391 = vmul.f32 %v6291, 1.442695
      %v6392 = vpow.pop %v6391
      %v6393 = vmul.f32 %v6292, 1.442695
      %v6394 = vpow.pop %v6393
      %v6395 = vmul.f32 %v6293, 1.442695
      %v6396 = vpow.pop %v6395
      %v6397 = vmul.f32 %v6294, 1.442695
      %v6398 = vpow.pop %v6397
      %v6399 = vmul.f32 %v6295, 1.442695
      %v6400 = vpow.pop %v6399
      %v6401 = vmul.f32 %v6296, 1.442695
      %v6402 = vpow.pop %v6401
      %v6403 = vmul.f32 %v6297, 1.442695
      %v6404 = vpow.pop %v6403
      %v6405 = vmul.f32 %v6298, 1.442695
      %v6406 = vpow.pop %v6405
      %v6407 = vmul.f32 %v6299, 1.442695
      %v6408 = vpow.pop %v6407
      %v6409 = vmul.f32 %v6300, 1.442695
      %v6410 = vpow.pop %v6409
      %v6411 = vmul.f32 %v6301, 1.442695
      %v6412 = vpow.pop %v6411
      %v6413 = vmul.f32 %v6302, 1.442695
      %v6414 = vpow.pop %v6413
      %v6415 = vmul.f32 %v6303, 1.442695
      %v6416 = vpow.pop %v6415
      %v6417 = vmul.f32 %v6304, 1.442695
      %v6418 = vpow.pop %v6417
      %v6419 = vmul.f32 %v6305, 1.442695
      %v6420 = vpow.pop %v6419
      %v6421 = vmul.f32 %v6306, 1.442695
      %v6422 = vpow.pop %v6421
      %v6423 = vmul.f32 %v6307, 1.442695
      %v6424 = vpow.pop %v6423
      %v6425 = vmul.f32 %v6308, 1.442695
      %v6426 = vpow.pop %v6425
      %v6427 = vmul.f32 %v6309, 1.442695
      %v6428 = vpow.pop %v6427
      %v6429 = vmul.f32 %v6310, 1.442695
      %v6430 = vpow.pop %v6429
      %v6431 = vmul.f32 %v6311, 1.442695
      %v6432 = vpow.pop %v6431
      %v6433 = vmul.f32 %v6312, 1.442695
      %v6434 = vpow.pop %v6433
      %v6435 = vmul.f32 %v6313, 1.442695
      %v6436 = vpow.pop %v6435
      %v6437 = vmul.f32 %v6314, 1.442695
      %v6438 = vpow.pop %v6437
      %v6439 = vmul.f32 %v6315, 1.442695
      %v6440 = vpow.pop %v6439
      %v6441 = vmul.f32 %v6316, 1.442695
      %v6442 = vpow.pop %v6441
      %v6443 = vmul.f32 %v6317, 1.442695
      %v6444 = vpow.pop %v6443
      %v6445 = vmul.f32 %v6318, 1.442695
      %v6446 = vpow.pop %v6445
      %v6447 = vadd.f32 %v6320, %v6322
      %6448 = vadd.xlane.f32.xlu0 %v6447
      %v6449 = vpop.xlane.xlu0 %6448
      %v6450 = vadd.f32 %v6324, %v6326
      %6451 = vadd.xlane.f32.xlu0 %v6450
      %v6452 = vpop.xlane.xlu0 %6451
      %v6453 = vadd.f32 %v6328, %v6330
      %6454 = vadd.xlane.f32.xlu0 %v6453
      %v6455 = vpop.xlane.xlu0 %6454
      %v6456 = vadd.f32 %v6332, %v6334
      %6457 = vadd.xlane.f32.xlu0 %v6456
      %v6458 = vpop.xlane.xlu0 %6457
      %v6459 = vadd.f32 %v6336, %v6338
      %6460 = vadd.xlane.f32.xlu0 %v6459
      %v6461 = vpop.xlane.xlu0 %6460
      %v6462 = vadd.f32 %v6340, %v6342
      %6463 = vadd.xlane.f32.xlu0 %v6462
      %v6464 = vpop.xlane.xlu0 %6463
      %v6465 = vadd.f32 %v6344, %v6346
      %6466 = vadd.xlane.f32.xlu0 %v6465
      %v6467 = vpop.xlane.xlu0 %6466
      %v6468 = vadd.f32 %v6348, %v6350
      %6469 = vadd.xlane.f32.xlu0 %v6468
      %v6470 = vpop.xlane.xlu0 %6469
      %v6471 = vadd.f32 %v6352, %v6354
      %6472 = vadd.xlane.f32.xlu0 %v6471
      %v6473 = vpop.xlane.xlu0 %6472
      %v6474 = vadd.f32 %v6356, %v6358
      %6475 = vadd.xlane.f32.xlu0 %v6474
      %v6476 = vpop.xlane.xlu0 %6475
      %v6477 = vadd.f32 %v6360, %v6362
      %6478 = vadd.xlane.f32.xlu0 %v6477
      %v6479 = vpop.xlane.xlu0 %6478
      %v6480 = vadd.f32 %v6364, %v6366
      %6481 = vadd.xlane.f32.xlu0 %v6480
      %v6482 = vpop.xlane.xlu0 %6481
      %v6483 = vadd.f32 %v6368, %v6370
      %6484 = vadd.xlane.f32.xlu0 %v6483
      %v6485 = vpop.xlane.xlu0 %6484
      %v6486 = vadd.f32 %v6372, %v6374
      %6487 = vadd.xlane.f32.xlu0 %v6486
      %v6488 = vpop.xlane.xlu0 %6487
      %v6489 = vadd.f32 %v6376, %v6378
      %6490 = vadd.xlane.f32.xlu0 %v6489
      %v6491 = vpop.xlane.xlu0 %6490
      %v6492 = vadd.f32 %v6380, %v6382
      %6493 = vadd.xlane.f32.xlu0 %v6492
      %v6494 = vpop.xlane.xlu0 %6493
      %v6495 = vadd.f32 %v6384, %v6386
      %6496 = vadd.xlane.f32.xlu0 %v6495
      %v6497 = vpop.xlane.xlu0 %6496
      %v6498 = vadd.f32 %v6388, %v6390
      %6499 = vadd.xlane.f32.xlu0 %v6498
      %v6500 = vpop.xlane.xlu0 %6499
      %v6501 = vadd.f32 %v6392, %v6394
      %6502 = vadd.xlane.f32.xlu0 %v6501
      %v6503 = vpop.xlane.xlu0 %6502
      %v6504 = vadd.f32 %v6396, %v6398
      %6505 = vadd.xlane.f32.xlu0 %v6504
      %v6506 = vpop.xlane.xlu0 %6505
      %v6507 = vadd.f32 %v6400, %v6402
      %6508 = vadd.xlane.f32.xlu0 %v6507
      %v6509 = vpop.xlane.xlu0 %6508
      %v6510 = vadd.f32 %v6404, %v6406
      %6511 = vadd.xlane.f32.xlu0 %v6510
      %v6512 = vpop.xlane.xlu0 %6511
      %v6513 = vadd.f32 %v6408, %v6410
      %6514 = vadd.xlane.f32.xlu0 %v6513
      %v6515 = vpop.xlane.xlu0 %6514
      %v6516 = vadd.f32 %v6412, %v6414
      %6517 = vadd.xlane.f32.xlu0 %v6516
      %v6518 = vpop.xlane.xlu0 %6517
      %v6519 = vadd.f32 %v6416, %v6418
      %6520 = vadd.xlane.f32.xlu0 %v6519
      %v6521 = vpop.xlane.xlu0 %6520
      %v6522 = vadd.f32 %v6420, %v6422
      %6523 = vadd.xlane.f32.xlu0 %v6522
      %v6524 = vpop.xlane.xlu0 %6523
      %v6525 = vadd.f32 %v6424, %v6426
      %6526 = vadd.xlane.f32.xlu0 %v6525
      %v6527 = vpop.xlane.xlu0 %6526
      %v6528 = vadd.f32 %v6428, %v6430
      %6529 = vadd.xlane.f32.xlu0 %v6528
      %v6530 = vpop.xlane.xlu0 %6529
      %v6531 = vadd.f32 %v6432, %v6434
      %6532 = vadd.xlane.f32.xlu0 %v6531
      %v6533 = vpop.xlane.xlu0 %6532
      %v6534 = vadd.f32 %v6436, %v6438
      %6535 = vadd.xlane.f32.xlu0 %v6534
      %v6536 = vpop.xlane.xlu0 %6535
      %v6537 = vadd.f32 %v6440, %v6442
      %6538 = vadd.xlane.f32.xlu0 %v6537
      %v6539 = vpop.xlane.xlu0 %6538
      %v6540 = vadd.f32 %v6444, %v6446
      %6541 = vadd.xlane.f32.xlu0 %v6540
      %v6542 = vpop.xlane.xlu0 %6541
      %6543 = vrot.lane.b32.xlu0 %v5552, 96
      %v6544 = vpop.permute.xlu0 %6543
      %6545 = vrot.lane.b32.xlu0 %v5557, 96
      %v6546 = vpop.permute.xlu0 %6545
      %6547 = vrot.lane.b32.xlu0 %v5562, 96
      %v6548 = vpop.permute.xlu0 %6547
      %6549 = vrot.lane.b32.xlu0 %v5567, 96
      %v6550 = vpop.permute.xlu0 %6549
      %6551 = vrot.lane.b32.xlu0 %v5572, 96
      %v6552 = vpop.permute.xlu0 %6551
      %6553 = vrot.lane.b32.xlu0 %v5577, 96
      %v6554 = vpop.permute.xlu0 %6553
      %6555 = vrot.lane.b32.xlu0 %v5582, 96
      %v6556 = vpop.permute.xlu0 %6555
      %6557 = vrot.lane.b32.xlu0 %v5587, 96
      %v6558 = vpop.permute.xlu0 %6557
      %6559 = vrot.lane.b32.xlu0 %v5592, 96
      %v6560 = vpop.permute.xlu0 %6559
      %6561 = vrot.lane.b32.xlu0 %v5597, 96
      %v6562 = vpop.permute.xlu0 %6561
      %6563 = vrot.lane.b32.xlu0 %v5602, 96
      %v6564 = vpop.permute.xlu0 %6563
      %6565 = vrot.lane.b32.xlu0 %v5607, 96
      %v6566 = vpop.permute.xlu0 %6565
      %6567 = vrot.lane.b32.xlu0 %v5612, 96
      %v6568 = vpop.permute.xlu0 %6567
      %6569 = vrot.lane.b32.xlu0 %v5617, 96
      %v6570 = vpop.permute.xlu0 %6569
      %6571 = vrot.lane.b32.xlu0 %v5622, 96
      %v6572 = vpop.permute.xlu0 %6571
      %6573 = vrot.lane.b32.xlu0 %v5627, 96
      %v6574 = vpop.permute.xlu0 %6573
      %6575 = vrot.lane.b32.xlu0 %v5632, 96
      %v6576 = vpop.permute.xlu0 %6575
      %6577 = vrot.lane.b32.xlu0 %v5637, 96
      %v6578 = vpop.permute.xlu0 %6577
      %6579 = vrot.lane.b32.xlu0 %v5642, 96
      %v6580 = vpop.permute.xlu0 %6579
      %6581 = vrot.lane.b32.xlu0 %v5647, 96
      %v6582 = vpop.permute.xlu0 %6581
      %6583 = vrot.lane.b32.xlu0 %v5652, 96
      %v6584 = vpop.permute.xlu0 %6583
      %6585 = vrot.lane.b32.xlu0 %v5657, 96
      %v6586 = vpop.permute.xlu0 %6585
      %6587 = vrot.lane.b32.xlu0 %v5662, 96
      %v6588 = vpop.permute.xlu0 %6587
      %6589 = vrot.lane.b32.xlu0 %v5667, 96
      %v6590 = vpop.permute.xlu0 %6589
      %6591 = vrot.lane.b32.xlu0 %v5672, 96
      %v6592 = vpop.permute.xlu0 %6591
      %6593 = vrot.lane.b32.xlu0 %v5677, 96
      %v6594 = vpop.permute.xlu0 %6593
      %6595 = vrot.lane.b32.xlu0 %v5682, 96
      %v6596 = vpop.permute.xlu0 %6595
      %6597 = vrot.lane.b32.xlu0 %v5687, 96
      %v6598 = vpop.permute.xlu0 %6597
      %6599 = vrot.lane.b32.xlu0 %v5692, 96
      %v6600 = vpop.permute.xlu0 %6599
      %6601 = vrot.lane.b32.xlu0 %v5697, 96
      %v6602 = vpop.permute.xlu0 %6601
      %6603 = vrot.lane.b32.xlu0 %v5702, 96
      %v6604 = vpop.permute.xlu0 %6603
      %6605 = vrot.lane.b32.xlu0 %v5707, 96
      %v6606 = vpop.permute.xlu0 %6605
      %6639 = vmatprep.subr.mxu0 0.0
      %6640 = vmatpush1.msra.mxu0 %v6544
      %6641 = vmatprep.subr.mxu0 0.0
      %6642 = vmatpush1.msra.mxu0 %v6546
      %6643 = vmatprep.subr.mxu0 0.0
      %6644 = vmatpush1.msra.mxu0 %v6548
      %6645 = vmatprep.subr.mxu0 0.0
      %6646 = vmatpush1.msra.mxu0 %v6550
      %6647 = vmatprep.subr.mxu0 0.0
      %6648 = vmatpush1.msra.mxu0 %v6552
      %6649 = vmatprep.subr.mxu0 0.0
      %6650 = vmatpush1.msra.mxu0 %v6554
      %6651 = vmatprep.subr.mxu0 0.0
      %6652 = vmatpush1.msra.mxu0 %v6556
      %6653 = vmatprep.subr.mxu0 0.0
      %6654 = vmatpush1.msra.mxu0 %v6558
      %6655 = vmatprep.subr.mxu0 0.0
      %6656 = vmatpush1.msra.mxu0 %v6560
      %6657 = vmatprep.subr.mxu0 0.0
      %6658 = vmatpush1.msra.mxu0 %v6562
      %6659 = vmatprep.subr.mxu0 0.0
      %6660 = vmatpush1.msra.mxu0 %v6564
      %6661 = vmatprep.subr.mxu0 0.0
      %6662 = vmatpush1.msra.mxu0 %v6566
      %6663 = vmatprep.subr.mxu0 0.0
      %6664 = vmatpush1.msra.mxu0 %v6568
      %6665 = vmatprep.subr.mxu0 0.0
      %6666 = vmatpush1.msra.mxu0 %v6570
      %6667 = vmatprep.subr.mxu0 0.0
      %6668 = vmatpush1.msra.mxu0 %v6572
      %6669 = vmatprep.subr.mxu0 0.0
      %6670 = vmatpush1.msra.mxu0 %v6574
      %6671 = vmatprep.subr.mxu0 0.0
      %6672 = vmatpush1.msra.mxu0 %v6576
      %6673 = vmatprep.subr.mxu0 0.0
      %6674 = vmatpush1.msra.mxu0 %v6578
      %6675 = vmatprep.subr.mxu0 0.0
      %6676 = vmatpush1.msra.mxu0 %v6580
      %6677 = vmatprep.subr.mxu0 0.0
      %6678 = vmatpush1.msra.mxu0 %v6582
      %6679 = vmatprep.subr.mxu0 0.0
      %6680 = vmatpush1.msra.mxu0 %v6584
      %6681 = vmatprep.subr.mxu0 0.0
      %6682 = vmatpush1.msra.mxu0 %v6586
      %6683 = vmatprep.subr.mxu0 0.0
      %6684 = vmatpush1.msra.mxu0 %v6588
      %6685 = vmatprep.subr.mxu0 0.0
      %6686 = vmatpush1.msra.mxu0 %v6590
      %6687 = vmatprep.subr.mxu0 0.0
      %6688 = vmatpush1.msra.mxu0 %v6592
      %6689 = vmatprep.subr.mxu0 0.0
      %6690 = vmatpush1.msra.mxu0 %v6594
      %6691 = vmatprep.subr.mxu0 0.0
      %6692 = vmatpush1.msra.mxu0 %v6596
      %6693 = vmatprep.subr.mxu0 0.0
      %6694 = vmatpush1.msra.mxu0 %v6598
      %6695 = vmatprep.subr.mxu0 0.0
      %6696 = vmatpush1.msra.mxu0 %v6600
      %6697 = vmatprep.subr.mxu0 0.0
      %6698 = vmatpush1.msra.mxu0 %v6602
      %6699 = vmatprep.subr.mxu0 0.0
      %6700 = vmatpush1.msra.mxu0 %v6604
      %6701 = vmatprep.subr.mxu0 0.0
      %6702 = vmatpush1.msra.mxu0 %v6606
      %6703 = vmatprep.mubr.f32.mxu0 %v6322
      %6704 = vmatmul.mubr.f32.gmra.mrb[0].mxu0 %v6320
      %v6705 = vpop.f32.mrb[0].mxu0
      %v6706 = vadd.f32 0.0, %v6705
      %v6707 = vpop.f32.mrb[0].mxu0
      %6708 = vmatprep.mubr.f32.mxu0 %v6326
      %6709 = vmatmul.mubr.f32.gmra.mrb[0].mxu0 %v6324
      %v6710 = vpop.f32.mrb[0].mxu0
      %v6711 = vadd.f32 0.0, %v6710
      %v6712 = vpop.f32.mrb[0].mxu0
      %6713 = vmatprep.mubr.f32.mxu0 %v6330
      %6714 = vmatmul.mubr.f32.gmra.mrb[0].mxu0 %v6328
      %v6715 = vpop.f32.mrb[0].mxu0
      %v6716 = vadd.f32 0.0, %v6715
      %v6717 = vpop.f32.mrb[0].mxu0
      %6718 = vmatprep.mubr.f32.mxu0 %v6334
      %6719 = vmatmul.mubr.f32.gmra.mrb[0].mxu0 %v6332
      %v6720 = vpop.f32.mrb[0].mxu0
      %v6721 = vadd.f32 0.0, %v6720
      %v6722 = vpop.f32.mrb[0].mxu0
      %6723 = vmatprep.mubr.f32.mxu0 %v6338
      %6724 = vmatmul.mubr.f32.gmra.mrb[0].mxu0 %v6336
      %v6725 = vpop.f32.mrb[0].mxu0
      %v6726 = vadd.f32 0.0, %v6725
      %v6727 = vpop.f32.mrb[0].mxu0
      %6728 = vmatprep.mubr.f32.mxu0 %v6342
      %6729 = vmatmul.mubr.f32.gmra.mrb[0].mxu0 %v6340
      %v6730 = vpop.f32.mrb[0].mxu0
      %v6731 = vadd.f32 0.0, %v6730
      %v6732 = vpop.f32.mrb[0].mxu0
      %6733 = vmatprep.mubr.f32.mxu0 %v6346
      %6734 = vmatmul.mubr.f32.gmra.mrb[0].mxu0 %v6344
      %v6735 = vpop.f32.mrb[0].mxu0
      %v6736 = vadd.f32 0.0, %v6735
      %v6737 = vpop.f32.mrb[0].mxu0
      %6738 = vmatprep.mubr.f32.mxu0 %v6350
      %6739 = vmatmul.mubr.f32.gmra.mrb[0].mxu0 %v6348
      %v6740 = vpop.f32.mrb[0].mxu0
      %v6741 = vadd.f32 0.0, %v6740
      %v6742 = vpop.f32.mrb[0].mxu0
      %6743 = vmatprep.mubr.f32.mxu0 %v6354
      %6744 = vmatmul.mubr.f32.gmra.mrb[0].mxu0 %v6352
      %v6745 = vpop.f32.mrb[0].mxu0
      %v6746 = vadd.f32 0.0, %v6745
      %v6747 = vpop.f32.mrb[0].mxu0
      %6748 = vmatprep.mubr.f32.mxu0 %v6358
      %6749 = vmatmul.mubr.f32.gmra.mrb[0].mxu0 %v6356
      %v6750 = vpop.f32.mrb[0].mxu0
      %v6751 = vadd.f32 0.0, %v6750
      %v6752 = vpop.f32.mrb[0].mxu0
      %6753 = vmatprep.mubr.f32.mxu0 %v6362
      %6754 = vmatmul.mubr.f32.gmra.mrb[0].mxu0 %v6360
      %v6755 = vpop.f32.mrb[0].mxu0
      %v6756 = vadd.f32 0.0, %v6755
      %v6757 = vpop.f32.mrb[0].mxu0
      %6758 = vmatprep.mubr.f32.mxu0 %v6366
      %6759 = vmatmul.mubr.f32.gmra.mrb[0].mxu0 %v6364
      %v6760 = vpop.f32.mrb[0].mxu0
      %v6761 = vadd.f32 0.0, %v6760
      %v6762 = vpop.f32.mrb[0].mxu0
      %6763 = vmatprep.mubr.f32.mxu0 %v6370
      %6764 = vmatmul.mubr.f32.gmra.mrb[0].mxu0 %v6368
      %v6765 = vpop.f32.mrb[0].mxu0
      %v6766 = vadd.f32 0.0, %v6765
      %v6767 = vpop.f32.mrb[0].mxu0
      %6768 = vmatprep.mubr.f32.mxu0 %v6374
      %6769 = vmatmul.mubr.f32.gmra.mrb[0].mxu0 %v6372
      %v6770 = vpop.f32.mrb[0].mxu0
      %v6771 = vadd.f32 0.0, %v6770
      %v6772 = vpop.f32.mrb[0].mxu0
      %6773 = vmatprep.mubr.f32.mxu0 %v6378
      %6774 = vmatmul.mubr.f32.gmra.mrb[0].mxu0 %v6376
      %v6775 = vpop.f32.mrb[0].mxu0
      %v6776 = vadd.f32 0.0, %v6775
      %v6777 = vpop.f32.mrb[0].mxu0
      %6778 = vmatprep.mubr.f32.mxu0 %v6382
      %6779 = vmatmul.mubr.f32.gmra.mrb[0].mxu0 %v6380
      %v6780 = vpop.f32.mrb[0].mxu0
      %v6781 = vadd.f32 0.0, %v6780
      %v6782 = vpop.f32.mrb[0].mxu0
      %6783 = vmatprep.mubr.f32.mxu0 %v6386
      %6784 = vmatmul.mubr.f32.gmra.mrb[0].mxu0 %v6384
      %v6785 = vpop.f32.mrb[0].mxu0
      %v6786 = vadd.f32 0.0, %v6785
      %v6787 = vpop.f32.mrb[0].mxu0
      %6788 = vmatprep.mubr.f32.mxu0 %v6390
      %6789 = vmatmul.mubr.f32.gmra.mrb[0].mxu0 %v6388
      %v6790 = vpop.f32.mrb[0].mxu0
      %v6791 = vadd.f32 0.0, %v6790
      %v6792 = vpop.f32.mrb[0].mxu0
      %6793 = vmatprep.mubr.f32.mxu0 %v6394
      %6794 = vmatmul.mubr.f32.gmra.mrb[0].mxu0 %v6392
      %v6795 = vpop.f32.mrb[0].mxu0
      %v6796 = vadd.f32 0.0, %v6795
      %v6797 = vpop.f32.mrb[0].mxu0
      %6798 = vmatprep.mubr.f32.mxu0 %v6398
      %6799 = vmatmul.mubr.f32.gmra.mrb[0].mxu0 %v6396
      %v6800 = vpop.f32.mrb[0].mxu0
      %v6801 = vadd.f32 0.0, %v6800
      %v6802 = vpop.f32.mrb[0].mxu0
      %6803 = vmatprep.mubr.f32.mxu0 %v6402
      %6804 = vmatmul.mubr.f32.gmra.mrb[0].mxu0 %v6400
      %v6805 = vpop.f32.mrb[0].mxu0
      %v6806 = vadd.f32 0.0, %v6805
      %v6807 = vpop.f32.mrb[0].mxu0
      %6808 = vmatprep.mubr.f32.mxu0 %v6406
      %6809 = vmatmul.mubr.f32.gmra.mrb[0].mxu0 %v6404
      %v6810 = vpop.f32.mrb[0].mxu0
      %v6811 = vadd.f32 0.0, %v6810
      %v6812 = vpop.f32.mrb[0].mxu0
      %6813 = vmatprep.mubr.f32.mxu0 %v6410
      %6814 = vmatmul.mubr.f32.gmra.mrb[0].mxu0 %v6408
      %v6815 = vpop.f32.mrb[0].mxu0
      %v6816 = vadd.f32 0.0, %v6815
      %v6817 = vpop.f32.mrb[0].mxu0
      %6818 = vmatprep.mubr.f32.mxu0 %v6414
      %6819 = vmatmul.mubr.f32.gmra.mrb[0].mxu0 %v6412
      %v6820 = vpop.f32.mrb[0].mxu0
      %v6821 = vadd.f32 0.0, %v6820
      %v6822 = vpop.f32.mrb[0].mxu0
      %6823 = vmatprep.mubr.f32.mxu0 %v6418
      %6824 = vmatmul.mubr.f32.gmra.mrb[0].mxu0 %v6416
      %v6825 = vpop.f32.mrb[0].mxu0
      %v6826 = vadd.f32 0.0, %v6825
      %v6827 = vpop.f32.mrb[0].mxu0
      %6828 = vmatprep.mubr.f32.mxu0 %v6422
      %6829 = vmatmul.mubr.f32.gmra.mrb[0].mxu0 %v6420
      %v6830 = vpop.f32.mrb[0].mxu0
      %v6831 = vadd.f32 0.0, %v6830
      %v6832 = vpop.f32.mrb[0].mxu0
      %6833 = vmatprep.mubr.f32.mxu0 %v6426
      %6834 = vmatmul.mubr.f32.gmra.mrb[0].mxu0 %v6424
      %v6835 = vpop.f32.mrb[0].mxu0
      %v6836 = vadd.f32 0.0, %v6835
      %v6837 = vpop.f32.mrb[0].mxu0
      %6838 = vmatprep.mubr.f32.mxu0 %v6430
      %6839 = vmatmul.mubr.f32.gmra.mrb[0].mxu0 %v6428
      %v6840 = vpop.f32.mrb[0].mxu0
      %v6841 = vadd.f32 0.0, %v6840
      %v6842 = vpop.f32.mrb[0].mxu0
      %6843 = vmatprep.mubr.f32.mxu0 %v6434
      %6844 = vmatmul.mubr.f32.gmra.mrb[0].mxu0 %v6432
      %v6845 = vpop.f32.mrb[0].mxu0
      %v6846 = vadd.f32 0.0, %v6845
      %v6847 = vpop.f32.mrb[0].mxu0
      %6848 = vmatprep.mubr.f32.mxu0 %v6438
      %6849 = vmatmul.mubr.f32.gmra.mrb[0].mxu0 %v6436
      %v6850 = vpop.f32.mrb[0].mxu0
      %v6851 = vadd.f32 0.0, %v6850
      %v6852 = vpop.f32.mrb[0].mxu0
      %6853 = vmatprep.mubr.f32.mxu0 %v6442
      %6854 = vmatmul.mubr.f32.gmra.mrb[0].mxu0 %v6440
      %v6855 = vpop.f32.mrb[0].mxu0
      %v6856 = vadd.f32 0.0, %v6855
      %v6857 = vpop.f32.mrb[0].mxu0
      %6858 = vmatprep.mubr.f32.mxu0 %v6446
      %6859 = vmatmul.mubr.f32.gmra.mrb[0].mxu0 %v6444
      %v6860 = vpop.f32.mrb[0].mxu0
      %v6861 = vadd.f32 0.0, %v6860
      %v6862 = vpop.f32.mrb[0].mxu0
      %6863 = vdwg.mxu0
      %v6864 = vrcp.pop %v6449
      %v6865 = vrcp.pop %v6452
      %v6866 = vrcp.pop %v6455
      %v6867 = vrcp.pop %v6458
      %v6868 = vrcp.pop %v6461
      %v6869 = vrcp.pop %v6464
      %v6870 = vrcp.pop %v6467
      %v6871 = vrcp.pop %v6470
      %v6872 = vrcp.pop %v6473
      %v6873 = vrcp.pop %v6476
      %v6874 = vrcp.pop %v6479
      %v6875 = vrcp.pop %v6482
      %v6876 = vrcp.pop %v6485
      %v6877 = vrcp.pop %v6488
      %v6878 = vrcp.pop %v6491
      %v6879 = vrcp.pop %v6494
      %v6880 = vrcp.pop %v6497
      %v6881 = vrcp.pop %v6500
      %v6882 = vrcp.pop %v6503
      %v6883 = vrcp.pop %v6506
      %v6884 = vrcp.pop %v6509
      %v6885 = vrcp.pop %v6512
      %v6886 = vrcp.pop %v6515
      %v6887 = vrcp.pop %v6518
      %v6888 = vrcp.pop %v6521
      %v6889 = vrcp.pop %v6524
      %v6890 = vrcp.pop %v6527
      %v6891 = vrcp.pop %v6530
      %v6892 = vrcp.pop %v6533
      %v6893 = vrcp.pop %v6536
      %v6894 = vrcp.pop %v6539
      %v6895 = vrcp.pop %v6542
      %v6896 = vmul.f32 %v6706, %v6864
      %v6897 = vmul.f32 %v6711, %v6865
      %v6898 = vmul.f32 %v6716, %v6866
      %v6899 = vmul.f32 %v6721, %v6867
      %v6900 = vmul.f32 %v6726, %v6868
      %v6901 = vmul.f32 %v6731, %v6869
      %v6902 = vmul.f32 %v6736, %v6870
      %v6903 = vmul.f32 %v6741, %v6871
      %v6904 = vmul.f32 %v6746, %v6872
      %v6905 = vmul.f32 %v6751, %v6873
      %v6906 = vmul.f32 %v6756, %v6874
      %v6907 = vmul.f32 %v6761, %v6875
      %v6908 = vmul.f32 %v6766, %v6876
      %v6909 = vmul.f32 %v6771, %v6877
      %v6910 = vmul.f32 %v6776, %v6878
      %v6911 = vmul.f32 %v6781, %v6879
      %v6912 = vmul.f32 %v6786, %v6880
      %v6913 = vmul.f32 %v6791, %v6881
      %v6914 = vmul.f32 %v6796, %v6882
      %v6915 = vmul.f32 %v6801, %v6883
      %v6916 = vmul.f32 %v6806, %v6884
      %v6917 = vmul.f32 %v6811, %v6885
      %v6918 = vmul.f32 %v6816, %v6886
      %v6919 = vmul.f32 %v6821, %v6887
      %v6920 = vmul.f32 %v6826, %v6888
      %v6921 = vmul.f32 %v6831, %v6889
      %v6922 = vmul.f32 %v6836, %v6890
      %v6923 = vmul.f32 %v6841, %v6891
      %v6924 = vmul.f32 %v6846, %v6892
      %v6925 = vmul.f32 %v6851, %v6893
      %v6926 = vmul.f32 %v6856, %v6894
      %v6927 = vmul.f32 %v6861, %v6895
      %6928 = vrot.lane.b32.xlu0 %v5293, 120
      %v6929 = vpop.permute.xlu0 %6928
      %6930 = vrot.lane.b32.xlu0 %v5294, 120
      %v6931 = vpop.permute.xlu0 %6930
      %6932 = vrot.lane.b32.xlu0 %v5295, 120
      %v6933 = vpop.permute.xlu0 %6932
      %6934 = vrot.lane.b32.xlu0 %v5296, 120
      %v6935 = vpop.permute.xlu0 %6934
      %6936 = vrot.lane.b32.xlu0 %v5297, 120
      %v6937 = vpop.permute.xlu0 %6936
      %6938 = vrot.lane.b32.xlu0 %v5298, 120
      %v6939 = vpop.permute.xlu0 %6938
      %6940 = vrot.lane.b32.xlu0 %v5299, 120
      %v6941 = vpop.permute.xlu0 %6940
      %6942 = vrot.lane.b32.xlu0 %v5300, 120
      %v6943 = vpop.permute.xlu0 %6942
      %6944 = vrot.lane.b32.xlu0 %v5301, 120
      %v6945 = vpop.permute.xlu0 %6944
      %6946 = vrot.lane.b32.xlu0 %v5302, 120
      %v6947 = vpop.permute.xlu0 %6946
      %6948 = vrot.lane.b32.xlu0 %v5303, 120
      %v6949 = vpop.permute.xlu0 %6948
      %6950 = vrot.lane.b32.xlu0 %v5304, 120
      %v6951 = vpop.permute.xlu0 %6950
      %6952 = vrot.lane.b32.xlu0 %v5305, 120
      %v6953 = vpop.permute.xlu0 %6952
      %6954 = vrot.lane.b32.xlu0 %v5306, 120
      %v6955 = vpop.permute.xlu0 %6954
      %6956 = vrot.lane.b32.xlu0 %v5307, 120
      %v6957 = vpop.permute.xlu0 %6956
      %6958 = vrot.lane.b32.xlu0 %v5308, 120
      %v6959 = vpop.permute.xlu0 %6958
      %6960 = vrot.lane.b32.xlu0 %v5309, 120
      %v6961 = vpop.permute.xlu0 %6960
      %6962 = vrot.lane.b32.xlu0 %v5310, 120
      %v6963 = vpop.permute.xlu0 %6962
      %6964 = vrot.lane.b32.xlu0 %v5311, 120
      %v6965 = vpop.permute.xlu0 %6964
      %6966 = vrot.lane.b32.xlu0 %v5312, 120
      %v6967 = vpop.permute.xlu0 %6966
      %6968 = vrot.lane.b32.xlu0 %v5313, 120
      %v6969 = vpop.permute.xlu0 %6968
      %6970 = vrot.lane.b32.xlu0 %v5314, 120
      %v6971 = vpop.permute.xlu0 %6970
      %6972 = vrot.lane.b32.xlu0 %v5315, 120
      %v6973 = vpop.permute.xlu0 %6972
      %6974 = vrot.lane.b32.xlu0 %v5316, 120
      %v6975 = vpop.permute.xlu0 %6974
      %6976 = vrot.lane.b32.xlu0 %v5317, 120
      %v6977 = vpop.permute.xlu0 %6976
      %6978 = vrot.lane.b32.xlu0 %v5318, 120
      %v6979 = vpop.permute.xlu0 %6978
      %6980 = vrot.lane.b32.xlu0 %v5319, 120
      %v6981 = vpop.permute.xlu0 %6980
      %6982 = vrot.lane.b32.xlu0 %v5320, 120
      %v6983 = vpop.permute.xlu0 %6982
      %6984 = vrot.lane.b32.xlu0 %v5321, 120
      %v6985 = vpop.permute.xlu0 %6984
      %6986 = vrot.lane.b32.xlu0 %v5322, 120
      %v6987 = vpop.permute.xlu0 %6986
      %6988 = vrot.lane.b32.xlu0 %v5323, 120
      %v6989 = vpop.permute.xlu0 %6988
      %6990 = vrot.lane.b32.xlu0 %v5324, 120
      %v6991 = vpop.permute.xlu0 %6990
      %6992 = vrot.lane.b32.xlu0 %v5552, 120
      %v6993 = vpop.permute.xlu0 %6992
      %6994 = vrot.lane.b32.xlu0 %v5557, 120
      %v6995 = vpop.permute.xlu0 %6994
      %6996 = vrot.lane.b32.xlu0 %v5562, 120
      %v6997 = vpop.permute.xlu0 %6996
      %6998 = vrot.lane.b32.xlu0 %v5567, 120
      %v6999 = vpop.permute.xlu0 %6998
      %7000 = vrot.lane.b32.xlu0 %v5572, 120
      %v7001 = vpop.permute.xlu0 %7000
      %7002 = vrot.lane.b32.xlu0 %v5577, 120
      %v7003 = vpop.permute.xlu0 %7002
      %7004 = vrot.lane.b32.xlu0 %v5582, 120
      %v7005 = vpop.permute.xlu0 %7004
      %7006 = vrot.lane.b32.xlu0 %v5587, 120
      %v7007 = vpop.permute.xlu0 %7006
      %7008 = vrot.lane.b32.xlu0 %v5592, 120
      %v7009 = vpop.permute.xlu0 %7008
      %7010 = vrot.lane.b32.xlu0 %v5597, 120
      %v7011 = vpop.permute.xlu0 %7010
      %7012 = vrot.lane.b32.xlu0 %v5602, 120
      %v7013 = vpop.permute.xlu0 %7012
      %7014 = vrot.lane.b32.xlu0 %v5607, 120
      %v7015 = vpop.permute.xlu0 %7014
      %7016 = vrot.lane.b32.xlu0 %v5612, 120
      %v7017 = vpop.permute.xlu0 %7016
      %7018 = vrot.lane.b32.xlu0 %v5617, 120
      %v7019 = vpop.permute.xlu0 %7018
      %7020 = vrot.lane.b32.xlu0 %v5622, 120
      %v7021 = vpop.permute.xlu0 %7020
      %7022 = vrot.lane.b32.xlu0 %v5627, 120
      %v7023 = vpop.permute.xlu0 %7022
      %7024 = vrot.lane.b32.xlu0 %v5632, 120
      %v7025 = vpop.permute.xlu0 %7024
      %7026 = vrot.lane.b32.xlu0 %v5637, 120
      %v7027 = vpop.permute.xlu0 %7026
      %7028 = vrot.lane.b32.xlu0 %v5642, 120
      %v7029 = vpop.permute.xlu0 %7028
      %7030 = vrot.lane.b32.xlu0 %v5647, 120
      %v7031 = vpop.permute.xlu0 %7030
      %7032 = vrot.lane.b32.xlu0 %v5652, 120
      %v7033 = vpop.permute.xlu0 %7032
      %7034 = vrot.lane.b32.xlu0 %v5657, 120
      %v7035 = vpop.permute.xlu0 %7034
      %7036 = vrot.lane.b32.xlu0 %v5662, 120
      %v7037 = vpop.permute.xlu0 %7036
      %7038 = vrot.lane.b32.xlu0 %v5667, 120
      %v7039 = vpop.permute.xlu0 %7038
      %7040 = vrot.lane.b32.xlu0 %v5672, 120
      %v7041 = vpop.permute.xlu0 %7040
      %7042 = vrot.lane.b32.xlu0 %v5677, 120
      %v7043 = vpop.permute.xlu0 %7042
      %7044 = vrot.lane.b32.xlu0 %v5682, 120
      %v7045 = vpop.permute.xlu0 %7044
      %7046 = vrot.lane.b32.xlu0 %v5687, 120
      %v7047 = vpop.permute.xlu0 %7046
      %7048 = vrot.lane.b32.xlu0 %v5692, 120
      %v7049 = vpop.permute.xlu0 %7048
      %7050 = vrot.lane.b32.xlu0 %v5697, 120
      %v7051 = vpop.permute.xlu0 %7050
      %7052 = vrot.lane.b32.xlu0 %v5702, 120
      %v7053 = vpop.permute.xlu0 %7052
      %7054 = vrot.lane.b32.xlu0 %v5707, 120
      %v7055 = vpop.permute.xlu0 %7054
      %v7056 = vsel %vm906, %v6929, 0
      %v7058 = vsel %vm906, %v6931, 0
      %v7060 = vsel %vm906, %v6933, 0
      %v7062 = vsel %vm906, %v6935, 0
      %v7064 = vsel %vm906, %v6937, 0
      %v7066 = vsel %vm906, %v6939, 0
      %v7068 = vsel %vm906, %v6941, 0
      %v7070 = vsel %vm906, %v6943, 0
      %v7072 = vsel %vm906, %v6945, 0
      %v7074 = vsel %vm906, %v6947, 0
      %v7076 = vsel %vm906, %v6949, 0
      %v7078 = vsel %vm906, %v6951, 0
      %v7080 = vsel %vm906, %v6953, 0
      %v7082 = vsel %vm906, %v6955, 0
      %v7084 = vsel %vm906, %v6957, 0
      %v7086 = vsel %vm906, %v6959, 0
      %v7088 = vsel %vm906, %v6961, 0
      %v7090 = vsel %vm906, %v6963, 0
      %v7092 = vsel %vm906, %v6965, 0
      %v7094 = vsel %vm906, %v6967, 0
      %v7096 = vsel %vm906, %v6969, 0
      %v7098 = vsel %vm906, %v6971, 0
      %v7100 = vsel %vm906, %v6973, 0
      %v7102 = vsel %vm906, %v6975, 0
      %v7104 = vsel %vm906, %v6977, 0
      %v7106 = vsel %vm906, %v6979, 0
      %v7108 = vsel %vm906, %v6981, 0
      %v7110 = vsel %vm906, %v6983, 0
      %v7112 = vsel %vm906, %v6985, 0
      %v7114 = vsel %vm906, %v6987, 0
      %v7116 = vsel %vm906, %v6989, 0
      %v7118 = vsel %vm906, %v6991, 0
      %v7120 = vsel %vm906, %v6993, 0
      %v7122 = vsel %vm906, %v6995, 0
      %v7124 = vsel %vm906, %v6997, 0
      %v7126 = vsel %vm906, %v6999, 0
      %v7128 = vsel %vm906, %v7001, 0
      %v7130 = vsel %vm906, %v7003, 0
      %v7132 = vsel %vm906, %v7005, 0
      %v7134 = vsel %vm906, %v7007, 0
      %v7136 = vsel %vm906, %v7009, 0
      %v7138 = vsel %vm906, %v7011, 0
      %v7140 = vsel %vm906, %v7013, 0
      %v7142 = vsel %vm906, %v7015, 0
      %v7144 = vsel %vm906, %v7017, 0
      %v7146 = vsel %vm906, %v7019, 0
      %v7148 = vsel %vm906, %v7021, 0
      %v7150 = vsel %vm906, %v7023, 0
      %v7152 = vsel %vm906, %v7025, 0
      %v7154 = vsel %vm906, %v7027, 0
      %v7156 = vsel %vm906, %v7029, 0
      %v7158 = vsel %vm906, %v7031, 0
      %v7160 = vsel %vm906, %v7033, 0
      %v7162 = vsel %vm906, %v7035, 0
      %v7164 = vsel %vm906, %v7037, 0
      %v7166 = vsel %vm906, %v7039, 0
      %v7168 = vsel %vm906, %v7041, 0
      %v7170 = vsel %vm906, %v7043, 0
      %v7172 = vsel %vm906, %v7045, 0
      %v7174 = vsel %vm906, %v7047, 0
      %v7176 = vsel %vm906, %v7049, 0
      %v7178 = vsel %vm906, %v7051, 0
      %v7180 = vsel %vm906, %v7053, 0
      %v7182 = vsel %vm906, %v7055, 0
      %7184 = vmatprep.subr.mxu0 0.0
      %7185 = vmatpush1.xpose.msra.mxu0 %v7120
      %7186 = vmatprep.subr.mxu0 0.0
      %7187 = vmatpush1.xpose.msra.mxu0 %v7122
      %7188 = vmatprep.subr.mxu0 0.0
      %7189 = vmatpush1.xpose.msra.mxu0 %v7124
      %7190 = vmatprep.subr.mxu0 0.0
      %7191 = vmatpush1.xpose.msra.mxu0 %v7126
      %7192 = vmatprep.subr.mxu0 0.0
      %7193 = vmatpush1.xpose.msra.mxu0 %v7128
      %7194 = vmatprep.subr.mxu0 0.0
      %7195 = vmatpush1.xpose.msra.mxu0 %v7130
      %7196 = vmatprep.subr.mxu0 0.0
      %7197 = vmatpush1.xpose.msra.mxu0 %v7132
      %7198 = vmatprep.subr.mxu0 0.0
      %7199 = vmatpush1.xpose.msra.mxu0 %v7134
      %7200 = vmatprep.subr.mxu0 0.0
      %7201 = vmatpush1.xpose.msra.mxu0 %v7136
      %7202 = vmatprep.subr.mxu0 0.0
      %7203 = vmatpush1.xpose.msra.mxu0 %v7138
      %7204 = vmatprep.subr.mxu0 0.0
      %7205 = vmatpush1.xpose.msra.mxu0 %v7140
      %7206 = vmatprep.subr.mxu0 0.0
      %7207 = vmatpush1.xpose.msra.mxu0 %v7142
      %7208 = vmatprep.subr.mxu0 0.0
      %7209 = vmatpush1.xpose.msra.mxu0 %v7144
      %7210 = vmatprep.subr.mxu0 0.0
      %7211 = vmatpush1.xpose.msra.mxu0 %v7146
      %7212 = vmatprep.subr.mxu0 0.0
      %7213 = vmatpush1.xpose.msra.mxu0 %v7148
      %7214 = vmatprep.subr.mxu0 0.0
      %7215 = vmatpush1.xpose.msra.mxu0 %v7150
      %7216 = vmatprep.subr.mxu0 0.0
      %7217 = vmatpush1.xpose.msra.mxu0 %v7152
      %7218 = vmatprep.subr.mxu0 0.0
      %7219 = vmatpush1.xpose.msra.mxu0 %v7154
      %7220 = vmatprep.subr.mxu0 0.0
      %7221 = vmatpush1.xpose.msra.mxu0 %v7156
      %7222 = vmatprep.subr.mxu0 0.0
      %7223 = vmatpush1.xpose.msra.mxu0 %v7158
      %7224 = vmatprep.subr.mxu0 0.0
      %7225 = vmatpush1.xpose.msra.mxu0 %v7160
      %7226 = vmatprep.subr.mxu0 0.0
      %7227 = vmatpush1.xpose.msra.mxu0 %v7162
      %7228 = vmatprep.subr.mxu0 0.0
      %7229 = vmatpush1.xpose.msra.mxu0 %v7164
      %7230 = vmatprep.subr.mxu0 0.0
      %7231 = vmatpush1.xpose.msra.mxu0 %v7166
      %7232 = vmatprep.subr.mxu0 0.0
      %7233 = vmatpush1.xpose.msra.mxu0 %v7168
      %7234 = vmatprep.subr.mxu0 0.0
      %7235 = vmatpush1.xpose.msra.mxu0 %v7170
      %7236 = vmatprep.subr.mxu0 0.0
      %7237 = vmatpush1.xpose.msra.mxu0 %v7172
      %7238 = vmatprep.subr.mxu0 0.0
      %7239 = vmatpush1.xpose.msra.mxu0 %v7174
      %7240 = vmatprep.subr.mxu0 0.0
      %7241 = vmatpush1.xpose.msra.mxu0 %v7176
      %7242 = vmatprep.subr.mxu0 0.0
      %7243 = vmatpush1.xpose.msra.mxu0 %v7178
      %7244 = vmatprep.subr.mxu0 0.0
      %7245 = vmatpush1.xpose.msra.mxu0 %v7180
      %7246 = vmatprep.subr.mxu0 0.0
      %7247 = vmatpush1.xpose.msra.mxu0 %v7182
      %7248 = vmatprep.mubr.f32.mxu0 0.0
      %7249 = vmatmul.mubr.f32.gmra.mrb[0].mxu0 %v7056
      %v7250 = vpop.f32.mrb[0].mxu0
      %v7251 = vadd.f32 0.0, %v7250
      %v7252 = vpop.f32.mrb[0].mxu0
      %v7253 = vadd.f32 0.0, %v7252
      %7254 = vmatprep.mubr.f32.mxu0 0.0
      %7255 = vmatmul.mubr.f32.gmra.mrb[0].mxu0 %v7058
      %v7256 = vpop.f32.mrb[0].mxu0
      %v7257 = vadd.f32 0.0, %v7256
      %v7258 = vpop.f32.mrb[0].mxu0
      %v7259 = vadd.f32 0.0, %v7258
      %7260 = vmatprep.mubr.f32.mxu0 0.0
      %7261 = vmatmul.mubr.f32.gmra.mrb[0].mxu0 %v7060
      %v7262 = vpop.f32.mrb[0].mxu0
      %v7263 = vadd.f32 0.0, %v7262
      %v7264 = vpop.f32.mrb[0].mxu0
      %v7265 = vadd.f32 0.0, %v7264
      %7266 = vmatprep.mubr.f32.mxu0 0.0
      %7267 = vmatmul.mubr.f32.gmra.mrb[0].mxu0 %v7062
      %v7268 = vpop.f32.mrb[0].mxu0
      %v7269 = vadd.f32 0.0, %v7268
      %v7270 = vpop.f32.mrb[0].mxu0
      %v7271 = vadd.f32 0.0, %v7270
      %7272 = vmatprep.mubr.f32.mxu0 0.0
      %7273 = vmatmul.mubr.f32.gmra.mrb[0].mxu0 %v7064
      %v7274 = vpop.f32.mrb[0].mxu0
      %v7275 = vadd.f32 0.0, %v7274
      %v7276 = vpop.f32.mrb[0].mxu0
      %v7277 = vadd.f32 0.0, %v7276
      %7278 = vmatprep.mubr.f32.mxu0 0.0
      %7279 = vmatmul.mubr.f32.gmra.mrb[0].mxu0 %v7066
      %v7280 = vpop.f32.mrb[0].mxu0
      %v7281 = vadd.f32 0.0, %v7280
      %v7282 = vpop.f32.mrb[0].mxu0
      %v7283 = vadd.f32 0.0, %v7282
      %7284 = vmatprep.mubr.f32.mxu0 0.0
      %7285 = vmatmul.mubr.f32.gmra.mrb[0].mxu0 %v7068
      %v7286 = vpop.f32.mrb[0].mxu0
      %v7287 = vadd.f32 0.0, %v7286
      %v7288 = vpop.f32.mrb[0].mxu0
      %v7289 = vadd.f32 0.0, %v7288
      %7290 = vmatprep.mubr.f32.mxu0 0.0
      %7291 = vmatmul.mubr.f32.gmra.mrb[0].mxu0 %v7070
      %v7292 = vpop.f32.mrb[0].mxu0
      %v7293 = vadd.f32 0.0, %v7292
      %v7294 = vpop.f32.mrb[0].mxu0
      %v7295 = vadd.f32 0.0, %v7294
      %7296 = vmatprep.mubr.f32.mxu0 0.0
      %7297 = vmatmul.mubr.f32.gmra.mrb[0].mxu0 %v7072
      %v7298 = vpop.f32.mrb[0].mxu0
      %v7299 = vadd.f32 0.0, %v7298
      %v7300 = vpop.f32.mrb[0].mxu0
      %v7301 = vadd.f32 0.0, %v7300
      %7302 = vmatprep.mubr.f32.mxu0 0.0
      %7303 = vmatmul.mubr.f32.gmra.mrb[0].mxu0 %v7074
      %v7304 = vpop.f32.mrb[0].mxu0
      %v7305 = vadd.f32 0.0, %v7304
      %v7306 = vpop.f32.mrb[0].mxu0
      %v7307 = vadd.f32 0.0, %v7306
      %7308 = vmatprep.mubr.f32.mxu0 0.0
      %7309 = vmatmul.mubr.f32.gmra.mrb[0].mxu0 %v7076
      %v7310 = vpop.f32.mrb[0].mxu0
      %v7311 = vadd.f32 0.0, %v7310
      %v7312 = vpop.f32.mrb[0].mxu0
      %v7313 = vadd.f32 0.0, %v7312
      %7314 = vmatprep.mubr.f32.mxu0 0.0
      %7315 = vmatmul.mubr.f32.gmra.mrb[0].mxu0 %v7078
      %v7316 = vpop.f32.mrb[0].mxu0
      %v7317 = vadd.f32 0.0, %v7316
      %v7318 = vpop.f32.mrb[0].mxu0
      %v7319 = vadd.f32 0.0, %v7318
      %7320 = vmatprep.mubr.f32.mxu0 0.0
      %7321 = vmatmul.mubr.f32.gmra.mrb[0].mxu0 %v7080
      %v7322 = vpop.f32.mrb[0].mxu0
      %v7323 = vadd.f32 0.0, %v7322
      %v7324 = vpop.f32.mrb[0].mxu0
      %v7325 = vadd.f32 0.0, %v7324
      %7326 = vmatprep.mubr.f32.mxu0 0.0
      %7327 = vmatmul.mubr.f32.gmra.mrb[0].mxu0 %v7082
      %v7328 = vpop.f32.mrb[0].mxu0
      %v7329 = vadd.f32 0.0, %v7328
      %v7330 = vpop.f32.mrb[0].mxu0
      %v7331 = vadd.f32 0.0, %v7330
      %7332 = vmatprep.mubr.f32.mxu0 0.0
      %7333 = vmatmul.mubr.f32.gmra.mrb[0].mxu0 %v7084
      %v7334 = vpop.f32.mrb[0].mxu0
      %v7335 = vadd.f32 0.0, %v7334
      %v7336 = vpop.f32.mrb[0].mxu0
      %v7337 = vadd.f32 0.0, %v7336
      %7338 = vmatprep.mubr.f32.mxu0 0.0
      %7339 = vmatmul.mubr.f32.gmra.mrb[0].mxu0 %v7086
      %v7340 = vpop.f32.mrb[0].mxu0
      %v7341 = vadd.f32 0.0, %v7340
      %v7342 = vpop.f32.mrb[0].mxu0
      %v7343 = vadd.f32 0.0, %v7342
      %7344 = vmatprep.mubr.f32.mxu0 0.0
      %7345 = vmatmul.mubr.f32.gmra.mrb[0].mxu0 %v7088
      %v7346 = vpop.f32.mrb[0].mxu0
      %v7347 = vadd.f32 0.0, %v7346
      %v7348 = vpop.f32.mrb[0].mxu0
      %v7349 = vadd.f32 0.0, %v7348
      %7350 = vmatprep.mubr.f32.mxu0 0.0
      %7351 = vmatmul.mubr.f32.gmra.mrb[0].mxu0 %v7090
      %v7352 = vpop.f32.mrb[0].mxu0
      %v7353 = vadd.f32 0.0, %v7352
      %v7354 = vpop.f32.mrb[0].mxu0
      %v7355 = vadd.f32 0.0, %v7354
      %7356 = vmatprep.mubr.f32.mxu0 0.0
      %7357 = vmatmul.mubr.f32.gmra.mrb[0].mxu0 %v7092
      %v7358 = vpop.f32.mrb[0].mxu0
      %v7359 = vadd.f32 0.0, %v7358
      %v7360 = vpop.f32.mrb[0].mxu0
      %v7361 = vadd.f32 0.0, %v7360
      %7362 = vmatprep.mubr.f32.mxu0 0.0
      %7363 = vmatmul.mubr.f32.gmra.mrb[0].mxu0 %v7094
      %v7364 = vpop.f32.mrb[0].mxu0
      %v7365 = vadd.f32 0.0, %v7364
      %v7366 = vpop.f32.mrb[0].mxu0
      %v7367 = vadd.f32 0.0, %v7366
      %7368 = vmatprep.mubr.f32.mxu0 0.0
      %7369 = vmatmul.mubr.f32.gmra.mrb[0].mxu0 %v7096
      %v7370 = vpop.f32.mrb[0].mxu0
      %v7371 = vadd.f32 0.0, %v7370
      %v7372 = vpop.f32.mrb[0].mxu0
      %v7373 = vadd.f32 0.0, %v7372
      %7374 = vmatprep.mubr.f32.mxu0 0.0
      %7375 = vmatmul.mubr.f32.gmra.mrb[0].mxu0 %v7098
      %v7376 = vpop.f32.mrb[0].mxu0
      %v7377 = vadd.f32 0.0, %v7376
      %v7378 = vpop.f32.mrb[0].mxu0
      %v7379 = vadd.f32 0.0, %v7378
      %7380 = vmatprep.mubr.f32.mxu0 0.0
      %7381 = vmatmul.mubr.f32.gmra.mrb[0].mxu0 %v7100
      %v7382 = vpop.f32.mrb[0].mxu0
      %v7383 = vadd.f32 0.0, %v7382
      %v7384 = vpop.f32.mrb[0].mxu0
      %v7385 = vadd.f32 0.0, %v7384
      %7386 = vmatprep.mubr.f32.mxu0 0.0
      %7387 = vmatmul.mubr.f32.gmra.mrb[0].mxu0 %v7102
      %v7388 = vpop.f32.mrb[0].mxu0
      %v7389 = vadd.f32 0.0, %v7388
      %v7390 = vpop.f32.mrb[0].mxu0
      %v7391 = vadd.f32 0.0, %v7390
      %7392 = vmatprep.mubr.f32.mxu0 0.0
      %7393 = vmatmul.mubr.f32.gmra.mrb[0].mxu0 %v7104
      %v7394 = vpop.f32.mrb[0].mxu0
      %v7395 = vadd.f32 0.0, %v7394
      %v7396 = vpop.f32.mrb[0].mxu0
      %v7397 = vadd.f32 0.0, %v7396
      %7398 = vmatprep.mubr.f32.mxu0 0.0
      %7399 = vmatmul.mubr.f32.gmra.mrb[0].mxu0 %v7106
      %v7400 = vpop.f32.mrb[0].mxu0
      %v7401 = vadd.f32 0.0, %v7400
      %v7402 = vpop.f32.mrb[0].mxu0
      %v7403 = vadd.f32 0.0, %v7402
      %7404 = vmatprep.mubr.f32.mxu0 0.0
      %7405 = vmatmul.mubr.f32.gmra.mrb[0].mxu0 %v7108
      %v7406 = vpop.f32.mrb[0].mxu0
      %v7407 = vadd.f32 0.0, %v7406
      %v7408 = vpop.f32.mrb[0].mxu0
      %v7409 = vadd.f32 0.0, %v7408
      %7410 = vmatprep.mubr.f32.mxu0 0.0
      %7411 = vmatmul.mubr.f32.gmra.mrb[0].mxu0 %v7110
      %v7412 = vpop.f32.mrb[0].mxu0
      %v7413 = vadd.f32 0.0, %v7412
      %v7414 = vpop.f32.mrb[0].mxu0
      %v7415 = vadd.f32 0.0, %v7414
      %7416 = vmatprep.mubr.f32.mxu0 0.0
      %7417 = vmatmul.mubr.f32.gmra.mrb[0].mxu0 %v7112
      %v7418 = vpop.f32.mrb[0].mxu0
      %v7419 = vadd.f32 0.0, %v7418
      %v7420 = vpop.f32.mrb[0].mxu0
      %v7421 = vadd.f32 0.0, %v7420
      %7422 = vmatprep.mubr.f32.mxu0 0.0
      %7423 = vmatmul.mubr.f32.gmra.mrb[0].mxu0 %v7114
      %v7424 = vpop.f32.mrb[0].mxu0
      %v7425 = vadd.f32 0.0, %v7424
      %v7426 = vpop.f32.mrb[0].mxu0
      %v7427 = vadd.f32 0.0, %v7426
      %7428 = vmatprep.mubr.f32.mxu0 0.0
      %7429 = vmatmul.mubr.f32.gmra.mrb[0].mxu0 %v7116
      %v7430 = vpop.f32.mrb[0].mxu0
      %v7431 = vadd.f32 0.0, %v7430
      %v7432 = vpop.f32.mrb[0].mxu0
      %v7433 = vadd.f32 0.0, %v7432
      %7434 = vmatprep.mubr.f32.mxu0 0.0
      %7435 = vmatmul.mubr.f32.gmra.mrb[0].mxu0 %v7118
      %v7436 = vpop.f32.mrb[0].mxu0
      %v7437 = vadd.f32 0.0, %v7436
      %v7438 = vpop.f32.mrb[0].mxu0
      %v7439 = vadd.f32 0.0, %v7438
      %7440 = vdwg.mxu0
      %v7441 = vmax.f32 %v7251, %v7253
      %7442 = vmax.xlane.f32.xlu0 %v7441
      %v7443 = vpop.xlane.xlu0 %7442
      %v7444 = vmax.f32 %v7257, %v7259
      %7445 = vmax.xlane.f32.xlu0 %v7444
      %v7446 = vpop.xlane.xlu0 %7445
      %v7447 = vmax.f32 %v7263, %v7265
      %7448 = vmax.xlane.f32.xlu0 %v7447
      %v7449 = vpop.xlane.xlu0 %7448
      %v7450 = vmax.f32 %v7269, %v7271
      %7451 = vmax.xlane.f32.xlu0 %v7450
      %v7452 = vpop.xlane.xlu0 %7451
      %v7453 = vmax.f32 %v7275, %v7277
      %7454 = vmax.xlane.f32.xlu0 %v7453
      %v7455 = vpop.xlane.xlu0 %7454
      %v7456 = vmax.f32 %v7281, %v7283
      %7457 = vmax.xlane.f32.xlu0 %v7456
      %v7458 = vpop.xlane.xlu0 %7457
      %v7459 = vmax.f32 %v7287, %v7289
      %7460 = vmax.xlane.f32.xlu0 %v7459
      %v7461 = vpop.xlane.xlu0 %7460
      %v7462 = vmax.f32 %v7293, %v7295
      %7463 = vmax.xlane.f32.xlu0 %v7462
      %v7464 = vpop.xlane.xlu0 %7463
      %v7465 = vmax.f32 %v7299, %v7301
      %7466 = vmax.xlane.f32.xlu0 %v7465
      %v7467 = vpop.xlane.xlu0 %7466
      %v7468 = vmax.f32 %v7305, %v7307
      %7469 = vmax.xlane.f32.xlu0 %v7468
      %v7470 = vpop.xlane.xlu0 %7469
      %v7471 = vmax.f32 %v7311, %v7313
      %7472 = vmax.xlane.f32.xlu0 %v7471
      %v7473 = vpop.xlane.xlu0 %7472
      %v7474 = vmax.f32 %v7317, %v7319
      %7475 = vmax.xlane.f32.xlu0 %v7474
      %v7476 = vpop.xlane.xlu0 %7475
      %v7477 = vmax.f32 %v7323, %v7325
      %7478 = vmax.xlane.f32.xlu0 %v7477
      %v7479 = vpop.xlane.xlu0 %7478
      %v7480 = vmax.f32 %v7329, %v7331
      %7481 = vmax.xlane.f32.xlu0 %v7480
      %v7482 = vpop.xlane.xlu0 %7481
      %v7483 = vmax.f32 %v7335, %v7337
      %7484 = vmax.xlane.f32.xlu0 %v7483
      %v7485 = vpop.xlane.xlu0 %7484
      %v7486 = vmax.f32 %v7341, %v7343
      %7487 = vmax.xlane.f32.xlu0 %v7486
      %v7488 = vpop.xlane.xlu0 %7487
      %v7489 = vmax.f32 %v7347, %v7349
      %7490 = vmax.xlane.f32.xlu0 %v7489
      %v7491 = vpop.xlane.xlu0 %7490
      %v7492 = vmax.f32 %v7353, %v7355
      %7493 = vmax.xlane.f32.xlu0 %v7492
      %v7494 = vpop.xlane.xlu0 %7493
      %v7495 = vmax.f32 %v7359, %v7361
      %7496 = vmax.xlane.f32.xlu0 %v7495
      %v7497 = vpop.xlane.xlu0 %7496
      %v7498 = vmax.f32 %v7365, %v7367
      %7499 = vmax.xlane.f32.xlu0 %v7498
      %v7500 = vpop.xlane.xlu0 %7499
      %v7501 = vmax.f32 %v7371, %v7373
      %7502 = vmax.xlane.f32.xlu0 %v7501
      %v7503 = vpop.xlane.xlu0 %7502
      %v7504 = vmax.f32 %v7377, %v7379
      %7505 = vmax.xlane.f32.xlu0 %v7504
      %v7506 = vpop.xlane.xlu0 %7505
      %v7507 = vmax.f32 %v7383, %v7385
      %7508 = vmax.xlane.f32.xlu0 %v7507
      %v7509 = vpop.xlane.xlu0 %7508
      %v7510 = vmax.f32 %v7389, %v7391
      %7511 = vmax.xlane.f32.xlu0 %v7510
      %v7512 = vpop.xlane.xlu0 %7511
      %v7513 = vmax.f32 %v7395, %v7397
      %7514 = vmax.xlane.f32.xlu0 %v7513
      %v7515 = vpop.xlane.xlu0 %7514
      %v7516 = vmax.f32 %v7401, %v7403
      %7517 = vmax.xlane.f32.xlu0 %v7516
      %v7518 = vpop.xlane.xlu0 %7517
      %v7519 = vmax.f32 %v7407, %v7409
      %7520 = vmax.xlane.f32.xlu0 %v7519
      %v7521 = vpop.xlane.xlu0 %7520
      %v7522 = vmax.f32 %v7413, %v7415
      %7523 = vmax.xlane.f32.xlu0 %v7522
      %v7524 = vpop.xlane.xlu0 %7523
      %v7525 = vmax.f32 %v7419, %v7421
      %7526 = vmax.xlane.f32.xlu0 %v7525
      %v7527 = vpop.xlane.xlu0 %7526
      %v7528 = vmax.f32 %v7425, %v7427
      %7529 = vmax.xlane.f32.xlu0 %v7528
      %v7530 = vpop.xlane.xlu0 %7529
      %v7531 = vmax.f32 %v7431, %v7433
      %7532 = vmax.xlane.f32.xlu0 %v7531
      %v7533 = vpop.xlane.xlu0 %7532
      %v7534 = vmax.f32 %v7437, %v7439
      %7535 = vmax.xlane.f32.xlu0 %v7534
      %v7536 = vpop.xlane.xlu0 %7535
      %v7537 = vsub.f32 %v7251, %v7443
      %v7538 = vsub.f32 %v7253, %v7443
      %v7539 = vsub.f32 %v7257, %v7446
      %v7540 = vsub.f32 %v7259, %v7446
      %v7541 = vsub.f32 %v7263, %v7449
      %v7542 = vsub.f32 %v7265, %v7449
      %v7543 = vsub.f32 %v7269, %v7452
      %v7544 = vsub.f32 %v7271, %v7452
      %v7545 = vsub.f32 %v7275, %v7455
      %v7546 = vsub.f32 %v7277, %v7455
      %v7547 = vsub.f32 %v7281, %v7458
      %v7548 = vsub.f32 %v7283, %v7458
      %v7549 = vsub.f32 %v7287, %v7461
      %v7550 = vsub.f32 %v7289, %v7461
      %v7551 = vsub.f32 %v7293, %v7464
      %v7552 = vsub.f32 %v7295, %v7464
      %v7553 = vsub.f32 %v7299, %v7467
      %v7554 = vsub.f32 %v7301, %v7467
      %v7555 = vsub.f32 %v7305, %v7470
      %v7556 = vsub.f32 %v7307, %v7470
      %v7557 = vsub.f32 %v7311, %v7473
      %v7558 = vsub.f32 %v7313, %v7473
      %v7559 = vsub.f32 %v7317, %v7476
      %v7560 = vsub.f32 %v7319, %v7476
      %v7561 = vsub.f32 %v7323, %v7479
      %v7562 = vsub.f32 %v7325, %v7479
      %v7563 = vsub.f32 %v7329, %v7482
      %v7564 = vsub.f32 %v7331, %v7482
      %v7565 = vsub.f32 %v7335, %v7485
      %v7566 = vsub.f32 %v7337, %v7485
      %v7567 = vsub.f32 %v7341, %v7488
      %v7568 = vsub.f32 %v7343, %v7488
      %v7569 = vsub.f32 %v7347, %v7491
      %v7570 = vsub.f32 %v7349, %v7491
      %v7571 = vsub.f32 %v7353, %v7494
      %v7572 = vsub.f32 %v7355, %v7494
      %v7573 = vsub.f32 %v7359, %v7497
      %v7574 = vsub.f32 %v7361, %v7497
      %v7575 = vsub.f32 %v7365, %v7500
      %v7576 = vsub.f32 %v7367, %v7500
      %v7577 = vsub.f32 %v7371, %v7503
      %v7578 = vsub.f32 %v7373, %v7503
      %v7579 = vsub.f32 %v7377, %v7506
      %v7580 = vsub.f32 %v7379, %v7506
      %v7581 = vsub.f32 %v7383, %v7509
      %v7582 = vsub.f32 %v7385, %v7509
      %v7583 = vsub.f32 %v7389, %v7512
      %v7584 = vsub.f32 %v7391, %v7512
      %v7585 = vsub.f32 %v7395, %v7515
      %v7586 = vsub.f32 %v7397, %v7515
      %v7587 = vsub.f32 %v7401, %v7518
      %v7588 = vsub.f32 %v7403, %v7518
      %v7589 = vsub.f32 %v7407, %v7521
      %v7590 = vsub.f32 %v7409, %v7521
      %v7591 = vsub.f32 %v7413, %v7524
      %v7592 = vsub.f32 %v7415, %v7524
      %v7593 = vsub.f32 %v7419, %v7527
      %v7594 = vsub.f32 %v7421, %v7527
      %v7595 = vsub.f32 %v7425, %v7530
      %v7596 = vsub.f32 %v7427, %v7530
      %v7597 = vsub.f32 %v7431, %v7533
      %v7598 = vsub.f32 %v7433, %v7533
      %v7599 = vsub.f32 %v7437, %v7536
      %v7600 = vsub.f32 %v7439, %v7536
      %v7601 = vmul.f32 %v7537, 1.442695
      %v7602 = vpow.pop %v7601
      %v7603 = vmul.f32 %v7538, 1.442695
      %v7604 = vpow.pop %v7603
      %v7605 = vmul.f32 %v7539, 1.442695
      %v7606 = vpow.pop %v7605
      %v7607 = vmul.f32 %v7540, 1.442695
      %v7608 = vpow.pop %v7607
      %v7609 = vmul.f32 %v7541, 1.442695
      %v7610 = vpow.pop %v7609
      %v7611 = vmul.f32 %v7542, 1.442695
      %v7612 = vpow.pop %v7611
      %v7613 = vmul.f32 %v7543, 1.442695
      %v7614 = vpow.pop %v7613
      %v7615 = vmul.f32 %v7544, 1.442695
      %v7616 = vpow.pop %v7615
      %v7617 = vmul.f32 %v7545, 1.442695
      %v7618 = vpow.pop %v7617
      %v7619 = vmul.f32 %v7546, 1.442695
      %v7620 = vpow.pop %v7619
      %v7621 = vmul.f32 %v7547, 1.442695
      %v7622 = vpow.pop %v7621
      %v7623 = vmul.f32 %v7548, 1.442695
      %v7624 = vpow.pop %v7623
      %v7625 = vmul.f32 %v7549, 1.442695
      %v7626 = vpow.pop %v7625
      %v7627 = vmul.f32 %v7550, 1.442695
      %v7628 = vpow.pop %v7627
      %v7629 = vmul.f32 %v7551, 1.442695
      %v7630 = vpow.pop %v7629
      %v7631 = vmul.f32 %v7552, 1.442695
      %v7632 = vpow.pop %v7631
      %v7633 = vmul.f32 %v7553, 1.442695
      %v7634 = vpow.pop %v7633
      %v7635 = vmul.f32 %v7554, 1.442695
      %v7636 = vpow.pop %v7635
      %v7637 = vmul.f32 %v7555, 1.442695
      %v7638 = vpow.pop %v7637
      %v7639 = vmul.f32 %v7556, 1.442695
      %v7640 = vpow.pop %v7639
      %v7641 = vmul.f32 %v7557, 1.442695
      %v7642 = vpow.pop %v7641
      %v7643 = vmul.f32 %v7558, 1.442695
      %v7644 = vpow.pop %v7643
      %v7645 = vmul.f32 %v7559, 1.442695
      %v7646 = vpow.pop %v7645
      %v7647 = vmul.f32 %v7560, 1.442695
      %v7648 = vpow.pop %v7647
      %v7649 = vmul.f32 %v7561, 1.442695
      %v7650 = vpow.pop %v7649
      %v7651 = vmul.f32 %v7562, 1.442695
      %v7652 = vpow.pop %v7651
      %v7653 = vmul.f32 %v7563, 1.442695
      %v7654 = vpow.pop %v7653
      %v7655 = vmul.f32 %v7564, 1.442695
      %v7656 = vpow.pop %v7655
      %v7657 = vmul.f32 %v7565, 1.442695
      %v7658 = vpow.pop %v7657
      %v7659 = vmul.f32 %v7566, 1.442695
      %v7660 = vpow.pop %v7659
      %v7661 = vmul.f32 %v7567, 1.442695
      %v7662 = vpow.pop %v7661
      %v7663 = vmul.f32 %v7568, 1.442695
      %v7664 = vpow.pop %v7663
      %v7665 = vmul.f32 %v7569, 1.442695
      %v7666 = vpow.pop %v7665
      %v7667 = vmul.f32 %v7570, 1.442695
      %v7668 = vpow.pop %v7667
      %v7669 = vmul.f32 %v7571, 1.442695
      %v7670 = vpow.pop %v7669
      %v7671 = vmul.f32 %v7572, 1.442695
      %v7672 = vpow.pop %v7671
      %v7673 = vmul.f32 %v7573, 1.442695
      %v7674 = vpow.pop %v7673
      %v7675 = vmul.f32 %v7574, 1.442695
      %v7676 = vpow.pop %v7675
      %v7677 = vmul.f32 %v7575, 1.442695
      %v7678 = vpow.pop %v7677
      %v7679 = vmul.f32 %v7576, 1.442695
      %v7680 = vpow.pop %v7679
      %v7681 = vmul.f32 %v7577, 1.442695
      %v7682 = vpow.pop %v7681
      %v7683 = vmul.f32 %v7578, 1.442695
      %v7684 = vpow.pop %v7683
      %v7685 = vmul.f32 %v7579, 1.442695
      %v7686 = vpow.pop %v7685
      %v7687 = vmul.f32 %v7580, 1.442695
      %v7688 = vpow.pop %v7687
      %v7689 = vmul.f32 %v7581, 1.442695
      %v7690 = vpow.pop %v7689
      %v7691 = vmul.f32 %v7582, 1.442695
      %v7692 = vpow.pop %v7691
      %v7693 = vmul.f32 %v7583, 1.442695
      %v7694 = vpow.pop %v7693
      %v7695 = vmul.f32 %v7584, 1.442695
      %v7696 = vpow.pop %v7695
      %v7697 = vmul.f32 %v7585, 1.442695
      %v7698 = vpow.pop %v7697
      %v7699 = vmul.f32 %v7586, 1.442695
      %v7700 = vpow.pop %v7699
      %v7701 = vmul.f32 %v7587, 1.442695
      %v7702 = vpow.pop %v7701
      %v7703 = vmul.f32 %v7588, 1.442695
      %v7704 = vpow.pop %v7703
      %v7705 = vmul.f32 %v7589, 1.442695
      %v7706 = vpow.pop %v7705
      %v7707 = vmul.f32 %v7590, 1.442695
      %v7708 = vpow.pop %v7707
      %v7709 = vmul.f32 %v7591, 1.442695
      %v7710 = vpow.pop %v7709
      %v7711 = vmul.f32 %v7592, 1.442695
      %v7712 = vpow.pop %v7711
      %v7713 = vmul.f32 %v7593, 1.442695
      %v7714 = vpow.pop %v7713
      %v7715 = vmul.f32 %v7594, 1.442695
      %v7716 = vpow.pop %v7715
      %v7717 = vmul.f32 %v7595, 1.442695
      %v7718 = vpow.pop %v7717
      %v7719 = vmul.f32 %v7596, 1.442695
      %v7720 = vpow.pop %v7719
      %v7721 = vmul.f32 %v7597, 1.442695
      %v7722 = vpow.pop %v7721
      %v7723 = vmul.f32 %v7598, 1.442695
      %v7724 = vpow.pop %v7723
      %v7725 = vmul.f32 %v7599, 1.442695
      %v7726 = vpow.pop %v7725
      %v7727 = vmul.f32 %v7600, 1.442695
      %v7728 = vpow.pop %v7727
      %v7729 = vadd.f32 %v7602, %v7604
      %7730 = vadd.xlane.f32.xlu0 %v7729
      %v7731 = vpop.xlane.xlu0 %7730
      %v7732 = vadd.f32 %v7606, %v7608
      %7733 = vadd.xlane.f32.xlu0 %v7732
      %v7734 = vpop.xlane.xlu0 %7733
      %v7735 = vadd.f32 %v7610, %v7612
      %7736 = vadd.xlane.f32.xlu0 %v7735
      %v7737 = vpop.xlane.xlu0 %7736
      %v7738 = vadd.f32 %v7614, %v7616
      %7739 = vadd.xlane.f32.xlu0 %v7738
      %v7740 = vpop.xlane.xlu0 %7739
      %v7741 = vadd.f32 %v7618, %v7620
      %7742 = vadd.xlane.f32.xlu0 %v7741
      %v7743 = vpop.xlane.xlu0 %7742
      %v7744 = vadd.f32 %v7622, %v7624
      %7745 = vadd.xlane.f32.xlu0 %v7744
      %v7746 = vpop.xlane.xlu0 %7745
      %v7747 = vadd.f32 %v7626, %v7628
      %7748 = vadd.xlane.f32.xlu0 %v7747
      %v7749 = vpop.xlane.xlu0 %7748
      %v7750 = vadd.f32 %v7630, %v7632
      %7751 = vadd.xlane.f32.xlu0 %v7750
      %v7752 = vpop.xlane.xlu0 %7751
      %v7753 = vadd.f32 %v7634, %v7636
      %7754 = vadd.xlane.f32.xlu0 %v7753
      %v7755 = vpop.xlane.xlu0 %7754
      %v7756 = vadd.f32 %v7638, %v7640
      %7757 = vadd.xlane.f32.xlu0 %v7756
      %v7758 = vpop.xlane.xlu0 %7757
      %v7759 = vadd.f32 %v7642, %v7644
      %7760 = vadd.xlane.f32.xlu0 %v7759
      %v7761 = vpop.xlane.xlu0 %7760
      %v7762 = vadd.f32 %v7646, %v7648
      %7763 = vadd.xlane.f32.xlu0 %v7762
      %v7764 = vpop.xlane.xlu0 %7763
      %v7765 = vadd.f32 %v7650, %v7652
      %7766 = vadd.xlane.f32.xlu0 %v7765
      %v7767 = vpop.xlane.xlu0 %7766
      %v7768 = vadd.f32 %v7654, %v7656
      %7769 = vadd.xlane.f32.xlu0 %v7768
      %v7770 = vpop.xlane.xlu0 %7769
      %v7771 = vadd.f32 %v7658, %v7660
      %7772 = vadd.xlane.f32.xlu0 %v7771
      %v7773 = vpop.xlane.xlu0 %7772
      %v7774 = vadd.f32 %v7662, %v7664
      %7775 = vadd.xlane.f32.xlu0 %v7774
      %v7776 = vpop.xlane.xlu0 %7775
      %v7777 = vadd.f32 %v7666, %v7668
      %7778 = vadd.xlane.f32.xlu0 %v7777
      %v7779 = vpop.xlane.xlu0 %7778
      %v7780 = vadd.f32 %v7670, %v7672
      %7781 = vadd.xlane.f32.xlu0 %v7780
      %v7782 = vpop.xlane.xlu0 %7781
      %v7783 = vadd.f32 %v7674, %v7676
      %7784 = vadd.xlane.f32.xlu0 %v7783
      %v7785 = vpop.xlane.xlu0 %7784
      %v7786 = vadd.f32 %v7678, %v7680
      %7787 = vadd.xlane.f32.xlu0 %v7786
      %v7788 = vpop.xlane.xlu0 %7787
      %v7789 = vadd.f32 %v7682, %v7684
      %7790 = vadd.xlane.f32.xlu0 %v7789
      %v7791 = vpop.xlane.xlu0 %7790
      %v7792 = vadd.f32 %v7686, %v7688
      %7793 = vadd.xlane.f32.xlu0 %v7792
      %v7794 = vpop.xlane.xlu0 %7793
      %v7795 = vadd.f32 %v7690, %v7692
      %7796 = vadd.xlane.f32.xlu0 %v7795
      %v7797 = vpop.xlane.xlu0 %7796
      %v7798 = vadd.f32 %v7694, %v7696
      %7799 = vadd.xlane.f32.xlu0 %v7798
      %v7800 = vpop.xlane.xlu0 %7799
      %v7801 = vadd.f32 %v7698, %v7700
      %7802 = vadd.xlane.f32.xlu0 %v7801
      %v7803 = vpop.xlane.xlu0 %7802
      %v7804 = vadd.f32 %v7702, %v7704
      %7805 = vadd.xlane.f32.xlu0 %v7804
      %v7806 = vpop.xlane.xlu0 %7805
      %v7807 = vadd.f32 %v7706, %v7708
      %7808 = vadd.xlane.f32.xlu0 %v7807
      %v7809 = vpop.xlane.xlu0 %7808
      %v7810 = vadd.f32 %v7710, %v7712
      %7811 = vadd.xlane.f32.xlu0 %v7810
      %v7812 = vpop.xlane.xlu0 %7811
      %v7813 = vadd.f32 %v7714, %v7716
      %7814 = vadd.xlane.f32.xlu0 %v7813
      %v7815 = vpop.xlane.xlu0 %7814
      %v7816 = vadd.f32 %v7718, %v7720
      %7817 = vadd.xlane.f32.xlu0 %v7816
      %v7818 = vpop.xlane.xlu0 %7817
      %v7819 = vadd.f32 %v7722, %v7724
      %7820 = vadd.xlane.f32.xlu0 %v7819
      %v7821 = vpop.xlane.xlu0 %7820
      %v7822 = vadd.f32 %v7726, %v7728
      %7823 = vadd.xlane.f32.xlu0 %v7822
      %v7824 = vpop.xlane.xlu0 %7823
      %7825 = vrot.lane.b32.xlu0 %v5552, 88
      %v7826 = vpop.permute.xlu0 %7825
      %7827 = vrot.lane.b32.xlu0 %v5557, 88
      %v7828 = vpop.permute.xlu0 %7827
      %7829 = vrot.lane.b32.xlu0 %v5562, 88
      %v7830 = vpop.permute.xlu0 %7829
      %7831 = vrot.lane.b32.xlu0 %v5567, 88
      %v7832 = vpop.permute.xlu0 %7831
      %7833 = vrot.lane.b32.xlu0 %v5572, 88
      %v7834 = vpop.permute.xlu0 %7833
      %7835 = vrot.lane.b32.xlu0 %v5577, 88
      %v7836 = vpop.permute.xlu0 %7835
      %7837 = vrot.lane.b32.xlu0 %v5582, 88
      %v7838 = vpop.permute.xlu0 %7837
      %7839 = vrot.lane.b32.xlu0 %v5587, 88
      %v7840 = vpop.permute.xlu0 %7839
      %7841 = vrot.lane.b32.xlu0 %v5592, 88
      %v7842 = vpop.permute.xlu0 %7841
      %7843 = vrot.lane.b32.xlu0 %v5597, 88
      %v7844 = vpop.permute.xlu0 %7843
      %7845 = vrot.lane.b32.xlu0 %v5602, 88
      %v7846 = vpop.permute.xlu0 %7845
      %7847 = vrot.lane.b32.xlu0 %v5607, 88
      %v7848 = vpop.permute.xlu0 %7847
      %7849 = vrot.lane.b32.xlu0 %v5612, 88
      %v7850 = vpop.permute.xlu0 %7849
      %7851 = vrot.lane.b32.xlu0 %v5617, 88
      %v7852 = vpop.permute.xlu0 %7851
      %7853 = vrot.lane.b32.xlu0 %v5622, 88
      %v7854 = vpop.permute.xlu0 %7853
      %7855 = vrot.lane.b32.xlu0 %v5627, 88
      %v7856 = vpop.permute.xlu0 %7855
      %7857 = vrot.lane.b32.xlu0 %v5632, 88
      %v7858 = vpop.permute.xlu0 %7857
      %7859 = vrot.lane.b32.xlu0 %v5637, 88
      %v7860 = vpop.permute.xlu0 %7859
      %7861 = vrot.lane.b32.xlu0 %v5642, 88
      %v7862 = vpop.permute.xlu0 %7861
      %7863 = vrot.lane.b32.xlu0 %v5647, 88
      %v7864 = vpop.permute.xlu0 %7863
      %7865 = vrot.lane.b32.xlu0 %v5652, 88
      %v7866 = vpop.permute.xlu0 %7865
      %7867 = vrot.lane.b32.xlu0 %v5657, 88
      %v7868 = vpop.permute.xlu0 %7867
      %7869 = vrot.lane.b32.xlu0 %v5662, 88
      %v7870 = vpop.permute.xlu0 %7869
      %7871 = vrot.lane.b32.xlu0 %v5667, 88
      %v7872 = vpop.permute.xlu0 %7871
      %7873 = vrot.lane.b32.xlu0 %v5672, 88
      %v7874 = vpop.permute.xlu0 %7873
      %7875 = vrot.lane.b32.xlu0 %v5677, 88
      %v7876 = vpop.permute.xlu0 %7875
      %7877 = vrot.lane.b32.xlu0 %v5682, 88
      %v7878 = vpop.permute.xlu0 %7877
      %7879 = vrot.lane.b32.xlu0 %v5687, 88
      %v7880 = vpop.permute.xlu0 %7879
      %7881 = vrot.lane.b32.xlu0 %v5692, 88
      %v7882 = vpop.permute.xlu0 %7881
      %7883 = vrot.lane.b32.xlu0 %v5697, 88
      %v7884 = vpop.permute.xlu0 %7883
      %7885 = vrot.lane.b32.xlu0 %v5702, 88
      %v7886 = vpop.permute.xlu0 %7885
      %7887 = vrot.lane.b32.xlu0 %v5707, 88
      %v7888 = vpop.permute.xlu0 %7887
      %7921 = vmatprep.subr.mxu0 0.0
      %7922 = vmatpush1.msra.mxu0 %v7826
      %7923 = vmatprep.subr.mxu0 0.0
      %7924 = vmatpush1.msra.mxu0 %v7828
      %7925 = vmatprep.subr.mxu0 0.0
      %7926 = vmatpush1.msra.mxu0 %v7830
      %7927 = vmatprep.subr.mxu0 0.0
      %7928 = vmatpush1.msra.mxu0 %v7832
      %7929 = vmatprep.subr.mxu0 0.0
      %7930 = vmatpush1.msra.mxu0 %v7834
      %7931 = vmatprep.subr.mxu0 0.0
      %7932 = vmatpush1.msra.mxu0 %v7836
      %7933 = vmatprep.subr.mxu0 0.0
      %7934 = vmatpush1.msra.mxu0 %v7838
      %7935 = vmatprep.subr.mxu0 0.0
      %7936 = vmatpush1.msra.mxu0 %v7840
      %7937 = vmatprep.subr.mxu0 0.0
      %7938 = vmatpush1.msra.mxu0 %v7842
      %7939 = vmatprep.subr.mxu0 0.0
      %7940 = vmatpush1.msra.mxu0 %v7844
      %7941 = vmatprep.subr.mxu0 0.0
      %7942 = vmatpush1.msra.mxu0 %v7846
      %7943 = vmatprep.subr.mxu0 0.0
      %7944 = vmatpush1.msra.mxu0 %v7848
      %7945 = vmatprep.subr.mxu0 0.0
      %7946 = vmatpush1.msra.mxu0 %v7850
      %7947 = vmatprep.subr.mxu0 0.0
      %7948 = vmatpush1.msra.mxu0 %v7852
      %7949 = vmatprep.subr.mxu0 0.0
      %7950 = vmatpush1.msra.mxu0 %v7854
      %7951 = vmatprep.subr.mxu0 0.0
      %7952 = vmatpush1.msra.mxu0 %v7856
      %7953 = vmatprep.subr.mxu0 0.0
      %7954 = vmatpush1.msra.mxu0 %v7858
      %7955 = vmatprep.subr.mxu0 0.0
      %7956 = vmatpush1.msra.mxu0 %v7860
      %7957 = vmatprep.subr.mxu0 0.0
      %7958 = vmatpush1.msra.mxu0 %v7862
      %7959 = vmatprep.subr.mxu0 0.0
      %7960 = vmatpush1.msra.mxu0 %v7864
      %7961 = vmatprep.subr.mxu0 0.0
      %7962 = vmatpush1.msra.mxu0 %v7866
      %7963 = vmatprep.subr.mxu0 0.0
      %7964 = vmatpush1.msra.mxu0 %v7868
      %7965 = vmatprep.subr.mxu0 0.0
      %7966 = vmatpush1.msra.mxu0 %v7870
      %7967 = vmatprep.subr.mxu0 0.0
      %7968 = vmatpush1.msra.mxu0 %v7872
      %7969 = vmatprep.subr.mxu0 0.0
      %7970 = vmatpush1.msra.mxu0 %v7874
      %7971 = vmatprep.subr.mxu0 0.0
      %7972 = vmatpush1.msra.mxu0 %v7876
      %7973 = vmatprep.subr.mxu0 0.0
      %7974 = vmatpush1.msra.mxu0 %v7878
      %7975 = vmatprep.subr.mxu0 0.0
      %7976 = vmatpush1.msra.mxu0 %v7880
      %7977 = vmatprep.subr.mxu0 0.0
      %7978 = vmatpush1.msra.mxu0 %v7882
      %7979 = vmatprep.subr.mxu0 0.0
      %7980 = vmatpush1.msra.mxu0 %v7884
      %7981 = vmatprep.subr.mxu0 0.0
      %7982 = vmatpush1.msra.mxu0 %v7886
      %7983 = vmatprep.subr.mxu0 0.0
      %7984 = vmatpush1.msra.mxu0 %v7888
      %7985 = vmatprep.mubr.f32.mxu0 %v7604
      %7986 = vmatmul.mubr.f32.gmra.mrb[0].mxu0 %v7602
      %v7987 = vpop.f32.mrb[0].mxu0
      %v7988 = vadd.f32 0.0, %v7987
      %v7989 = vpop.f32.mrb[0].mxu0
      %7990 = vmatprep.mubr.f32.mxu0 %v7608
      %7991 = vmatmul.mubr.f32.gmra.mrb[0].mxu0 %v7606
      %v7992 = vpop.f32.mrb[0].mxu0
      %v7993 = vadd.f32 0.0, %v7992
      %v7994 = vpop.f32.mrb[0].mxu0
      %7995 = vmatprep.mubr.f32.mxu0 %v7612
      %7996 = vmatmul.mubr.f32.gmra.mrb[0].mxu0 %v7610
      %v7997 = vpop.f32.mrb[0].mxu0
      %v7998 = vadd.f32 0.0, %v7997
      %v7999 = vpop.f32.mrb[0].mxu0
      %8000 = vmatprep.mubr.f32.mxu0 %v7616
      %8001 = vmatmul.mubr.f32.gmra.mrb[0].mxu0 %v7614
      %v8002 = vpop.f32.mrb[0].mxu0
      %v8003 = vadd.f32 0.0, %v8002
      %v8004 = vpop.f32.mrb[0].mxu0
      %8005 = vmatprep.mubr.f32.mxu0 %v7620
      %8006 = vmatmul.mubr.f32.gmra.mrb[0].mxu0 %v7618
      %v8007 = vpop.f32.mrb[0].mxu0
      %v8008 = vadd.f32 0.0, %v8007
      %v8009 = vpop.f32.mrb[0].mxu0
      %8010 = vmatprep.mubr.f32.mxu0 %v7624
      %8011 = vmatmul.mubr.f32.gmra.mrb[0].mxu0 %v7622
      %v8012 = vpop.f32.mrb[0].mxu0
      %v8013 = vadd.f32 0.0, %v8012
      %v8014 = vpop.f32.mrb[0].mxu0
      %8015 = vmatprep.mubr.f32.mxu0 %v7628
      %8016 = vmatmul.mubr.f32.gmra.mrb[0].mxu0 %v7626
      %v8017 = vpop.f32.mrb[0].mxu0
      %v8018 = vadd.f32 0.0, %v8017
      %v8019 = vpop.f32.mrb[0].mxu0
      %8020 = vmatprep.mubr.f32.mxu0 %v7632
      %8021 = vmatmul.mubr.f32.gmra.mrb[0].mxu0 %v7630
      %v8022 = vpop.f32.mrb[0].mxu0
      %v8023 = vadd.f32 0.0, %v8022
      %v8024 = vpop.f32.mrb[0].mxu0
      %8025 = vmatprep.mubr.f32.mxu0 %v7636
      %8026 = vmatmul.mubr.f32.gmra.mrb[0].mxu0 %v7634
      %v8027 = vpop.f32.mrb[0].mxu0
      %v8028 = vadd.f32 0.0, %v8027
      %v8029 = vpop.f32.mrb[0].mxu0
      %8030 = vmatprep.mubr.f32.mxu0 %v7640
      %8031 = vmatmul.mubr.f32.gmra.mrb[0].mxu0 %v7638
      %v8032 = vpop.f32.mrb[0].mxu0
      %v8033 = vadd.f32 0.0, %v8032
      %v8034 = vpop.f32.mrb[0].mxu0
      %8035 = vmatprep.mubr.f32.mxu0 %v7644
      %8036 = vmatmul.mubr.f32.gmra.mrb[0].mxu0 %v7642
      %v8037 = vpop.f32.mrb[0].mxu0
      %v8038 = vadd.f32 0.0, %v8037
      %v8039 = vpop.f32.mrb[0].mxu0
      %8040 = vmatprep.mubr.f32.mxu0 %v7648
      %8041 = vmatmul.mubr.f32.gmra.mrb[0].mxu0 %v7646
      %v8042 = vpop.f32.mrb[0].mxu0
      %v8043 = vadd.f32 0.0, %v8042
      %v8044 = vpop.f32.mrb[0].mxu0
      %8045 = vmatprep.mubr.f32.mxu0 %v7652
      %8046 = vmatmul.mubr.f32.gmra.mrb[0].mxu0 %v7650
      %v8047 = vpop.f32.mrb[0].mxu0
      %v8048 = vadd.f32 0.0, %v8047
      %v8049 = vpop.f32.mrb[0].mxu0
      %8050 = vmatprep.mubr.f32.mxu0 %v7656
      %8051 = vmatmul.mubr.f32.gmra.mrb[0].mxu0 %v7654
      %v8052 = vpop.f32.mrb[0].mxu0
      %v8053 = vadd.f32 0.0, %v8052
      %v8054 = vpop.f32.mrb[0].mxu0
      %8055 = vmatprep.mubr.f32.mxu0 %v7660
      %8056 = vmatmul.mubr.f32.gmra.mrb[0].mxu0 %v7658
      %v8057 = vpop.f32.mrb[0].mxu0
      %v8058 = vadd.f32 0.0, %v8057
      %v8059 = vpop.f32.mrb[0].mxu0
      %8060 = vmatprep.mubr.f32.mxu0 %v7664
      %8061 = vmatmul.mubr.f32.gmra.mrb[0].mxu0 %v7662
      %v8062 = vpop.f32.mrb[0].mxu0
      %v8063 = vadd.f32 0.0, %v8062
      %v8064 = vpop.f32.mrb[0].mxu0
      %8065 = vmatprep.mubr.f32.mxu0 %v7668
      %8066 = vmatmul.mubr.f32.gmra.mrb[0].mxu0 %v7666
      %v8067 = vpop.f32.mrb[0].mxu0
      %v8068 = vadd.f32 0.0, %v8067
      %v8069 = vpop.f32.mrb[0].mxu0
      %8070 = vmatprep.mubr.f32.mxu0 %v7672
      %8071 = vmatmul.mubr.f32.gmra.mrb[0].mxu0 %v7670
      %v8072 = vpop.f32.mrb[0].mxu0
      %v8073 = vadd.f32 0.0, %v8072
      %v8074 = vpop.f32.mrb[0].mxu0
      %8075 = vmatprep.mubr.f32.mxu0 %v7676
      %8076 = vmatmul.mubr.f32.gmra.mrb[0].mxu0 %v7674
      %v8077 = vpop.f32.mrb[0].mxu0
      %v8078 = vadd.f32 0.0, %v8077
      %v8079 = vpop.f32.mrb[0].mxu0
      %8080 = vmatprep.mubr.f32.mxu0 %v7680
      %8081 = vmatmul.mubr.f32.gmra.mrb[0].mxu0 %v7678
      %v8082 = vpop.f32.mrb[0].mxu0
      %v8083 = vadd.f32 0.0, %v8082
      %v8084 = vpop.f32.mrb[0].mxu0
      %8085 = vmatprep.mubr.f32.mxu0 %v7684
      %8086 = vmatmul.mubr.f32.gmra.mrb[0].mxu0 %v7682
      %v8087 = vpop.f32.mrb[0].mxu0
      %v8088 = vadd.f32 0.0, %v8087
      %v8089 = vpop.f32.mrb[0].mxu0
      %8090 = vmatprep.mubr.f32.mxu0 %v7688
      %8091 = vmatmul.mubr.f32.gmra.mrb[0].mxu0 %v7686
      %v8092 = vpop.f32.mrb[0].mxu0
      %v8093 = vadd.f32 0.0, %v8092
      %v8094 = vpop.f32.mrb[0].mxu0
      %8095 = vmatprep.mubr.f32.mxu0 %v7692
      %8096 = vmatmul.mubr.f32.gmra.mrb[0].mxu0 %v7690
      %v8097 = vpop.f32.mrb[0].mxu0
      %v8098 = vadd.f32 0.0, %v8097
      %v8099 = vpop.f32.mrb[0].mxu0
      %8100 = vmatprep.mubr.f32.mxu0 %v7696
      %8101 = vmatmul.mubr.f32.gmra.mrb[0].mxu0 %v7694
      %v8102 = vpop.f32.mrb[0].mxu0
      %v8103 = vadd.f32 0.0, %v8102
      %v8104 = vpop.f32.mrb[0].mxu0
      %8105 = vmatprep.mubr.f32.mxu0 %v7700
      %8106 = vmatmul.mubr.f32.gmra.mrb[0].mxu0 %v7698
      %v8107 = vpop.f32.mrb[0].mxu0
      %v8108 = vadd.f32 0.0, %v8107
      %v8109 = vpop.f32.mrb[0].mxu0
      %8110 = vmatprep.mubr.f32.mxu0 %v7704
      %8111 = vmatmul.mubr.f32.gmra.mrb[0].mxu0 %v7702
      %v8112 = vpop.f32.mrb[0].mxu0
      %v8113 = vadd.f32 0.0, %v8112
      %v8114 = vpop.f32.mrb[0].mxu0
      %8115 = vmatprep.mubr.f32.mxu0 %v7708
      %8116 = vmatmul.mubr.f32.gmra.mrb[0].mxu0 %v7706
      %v8117 = vpop.f32.mrb[0].mxu0
      %v8118 = vadd.f32 0.0, %v8117
      %v8119 = vpop.f32.mrb[0].mxu0
      %8120 = vmatprep.mubr.f32.mxu0 %v7712
      %8121 = vmatmul.mubr.f32.gmra.mrb[0].mxu0 %v7710
      %v8122 = vpop.f32.mrb[0].mxu0
      %v8123 = vadd.f32 0.0, %v8122
      %v8124 = vpop.f32.mrb[0].mxu0
      %8125 = vmatprep.mubr.f32.mxu0 %v7716
      %8126 = vmatmul.mubr.f32.gmra.mrb[0].mxu0 %v7714
      %v8127 = vpop.f32.mrb[0].mxu0
      %v8128 = vadd.f32 0.0, %v8127
      %v8129 = vpop.f32.mrb[0].mxu0
      %8130 = vmatprep.mubr.f32.mxu0 %v7720
      %8131 = vmatmul.mubr.f32.gmra.mrb[0].mxu0 %v7718
      %v8132 = vpop.f32.mrb[0].mxu0
      %v8133 = vadd.f32 0.0, %v8132
      %v8134 = vpop.f32.mrb[0].mxu0
      %8135 = vmatprep.mubr.f32.mxu0 %v7724
      %8136 = vmatmul.mubr.f32.gmra.mrb[0].mxu0 %v7722
      %v8137 = vpop.f32.mrb[0].mxu0
      %v8138 = vadd.f32 0.0, %v8137
      %v8139 = vpop.f32.mrb[0].mxu0
      %8140 = vmatprep.mubr.f32.mxu0 %v7728
      %8141 = vmatmul.mubr.f32.gmra.mrb[0].mxu0 %v7726
      %v8142 = vpop.f32.mrb[0].mxu0
      %v8143 = vadd.f32 0.0, %v8142
      %v8144 = vpop.f32.mrb[0].mxu0
      %8145 = vdwg.mxu0
      %v8146 = vrcp.pop %v7731
      %v8147 = vrcp.pop %v7734
      %v8148 = vrcp.pop %v7737
      %v8149 = vrcp.pop %v7740
      %v8150 = vrcp.pop %v7743
      %v8151 = vrcp.pop %v7746
      %v8152 = vrcp.pop %v7749
      %v8153 = vrcp.pop %v7752
      %v8154 = vrcp.pop %v7755
      %v8155 = vrcp.pop %v7758
      %v8156 = vrcp.pop %v7761
      %v8157 = vrcp.pop %v7764
      %v8158 = vrcp.pop %v7767
      %v8159 = vrcp.pop %v7770
      %v8160 = vrcp.pop %v7773
      %v8161 = vrcp.pop %v7776
      %v8162 = vrcp.pop %v7779
      %v8163 = vrcp.pop %v7782
      %v8164 = vrcp.pop %v7785
      %v8165 = vrcp.pop %v7788
      %v8166 = vrcp.pop %v7791
      %v8167 = vrcp.pop %v7794
      %v8168 = vrcp.pop %v7797
      %v8169 = vrcp.pop %v7800
      %v8170 = vrcp.pop %v7803
      %v8171 = vrcp.pop %v7806
      %v8172 = vrcp.pop %v7809
      %v8173 = vrcp.pop %v7812
      %v8174 = vrcp.pop %v7815
      %v8175 = vrcp.pop %v7818
      %v8176 = vrcp.pop %v7821
      %v8177 = vrcp.pop %v7824
      %v8178 = vmul.f32 %v7988, %v8146
      %v8179 = vmul.f32 %v7993, %v8147
      %v8180 = vmul.f32 %v7998, %v8148
      %v8181 = vmul.f32 %v8003, %v8149
      %v8182 = vmul.f32 %v8008, %v8150
      %v8183 = vmul.f32 %v8013, %v8151
      %v8184 = vmul.f32 %v8018, %v8152
      %v8185 = vmul.f32 %v8023, %v8153
      %v8186 = vmul.f32 %v8028, %v8154
      %v8187 = vmul.f32 %v8033, %v8155
      %v8188 = vmul.f32 %v8038, %v8156
      %v8189 = vmul.f32 %v8043, %v8157
      %v8190 = vmul.f32 %v8048, %v8158
      %v8191 = vmul.f32 %v8053, %v8159
      %v8192 = vmul.f32 %v8058, %v8160
      %v8193 = vmul.f32 %v8063, %v8161
      %v8194 = vmul.f32 %v8068, %v8162
      %v8195 = vmul.f32 %v8073, %v8163
      %v8196 = vmul.f32 %v8078, %v8164
      %v8197 = vmul.f32 %v8083, %v8165
      %v8198 = vmul.f32 %v8088, %v8166
      %v8199 = vmul.f32 %v8093, %v8167
      %v8200 = vmul.f32 %v8098, %v8168
      %v8201 = vmul.f32 %v8103, %v8169
      %v8202 = vmul.f32 %v8108, %v8170
      %v8203 = vmul.f32 %v8113, %v8171
      %v8204 = vmul.f32 %v8118, %v8172
      %v8205 = vmul.f32 %v8123, %v8173
      %v8206 = vmul.f32 %v8128, %v8174
      %v8207 = vmul.f32 %v8133, %v8175
      %v8208 = vmul.f32 %v8138, %v8176
      %v8209 = vmul.f32 %v8143, %v8177
      %8210 = vrot.lane.b32.xlu0 %v5293, 112
      %v8211 = vpop.permute.xlu0 %8210
      %8212 = vrot.lane.b32.xlu0 %v5294, 112
      %v8213 = vpop.permute.xlu0 %8212
      %8214 = vrot.lane.b32.xlu0 %v5295, 112
      %v8215 = vpop.permute.xlu0 %8214
      %8216 = vrot.lane.b32.xlu0 %v5296, 112
      %v8217 = vpop.permute.xlu0 %8216
      %8218 = vrot.lane.b32.xlu0 %v5297, 112
      %v8219 = vpop.permute.xlu0 %8218
      %8220 = vrot.lane.b32.xlu0 %v5298, 112
      %v8221 = vpop.permute.xlu0 %8220
      %8222 = vrot.lane.b32.xlu0 %v5299, 112
      %v8223 = vpop.permute.xlu0 %8222
      %8224 = vrot.lane.b32.xlu0 %v5300, 112
      %v8225 = vpop.permute.xlu0 %8224
      %8226 = vrot.lane.b32.xlu0 %v5301, 112
      %v8227 = vpop.permute.xlu0 %8226
      %8228 = vrot.lane.b32.xlu0 %v5302, 112
      %v8229 = vpop.permute.xlu0 %8228
      %8230 = vrot.lane.b32.xlu0 %v5303, 112
      %v8231 = vpop.permute.xlu0 %8230
      %8232 = vrot.lane.b32.xlu0 %v5304, 112
      %v8233 = vpop.permute.xlu0 %8232
      %8234 = vrot.lane.b32.xlu0 %v5305, 112
      %v8235 = vpop.permute.xlu0 %8234
      %8236 = vrot.lane.b32.xlu0 %v5306, 112
      %v8237 = vpop.permute.xlu0 %8236
      %8238 = vrot.lane.b32.xlu0 %v5307, 112
      %v8239 = vpop.permute.xlu0 %8238
      %8240 = vrot.lane.b32.xlu0 %v5308, 112
      %v8241 = vpop.permute.xlu0 %8240
      %8242 = vrot.lane.b32.xlu0 %v5309, 112
      %v8243 = vpop.permute.xlu0 %8242
      %8244 = vrot.lane.b32.xlu0 %v5310, 112
      %v8245 = vpop.permute.xlu0 %8244
      %8246 = vrot.lane.b32.xlu0 %v5311, 112
      %v8247 = vpop.permute.xlu0 %8246
      %8248 = vrot.lane.b32.xlu0 %v5312, 112
      %v8249 = vpop.permute.xlu0 %8248
      %8250 = vrot.lane.b32.xlu0 %v5313, 112
      %v8251 = vpop.permute.xlu0 %8250
      %8252 = vrot.lane.b32.xlu0 %v5314, 112
      %v8253 = vpop.permute.xlu0 %8252
      %8254 = vrot.lane.b32.xlu0 %v5315, 112
      %v8255 = vpop.permute.xlu0 %8254
      %8256 = vrot.lane.b32.xlu0 %v5316, 112
      %v8257 = vpop.permute.xlu0 %8256
      %8258 = vrot.lane.b32.xlu0 %v5317, 112
      %v8259 = vpop.permute.xlu0 %8258
      %8260 = vrot.lane.b32.xlu0 %v5318, 112
      %v8261 = vpop.permute.xlu0 %8260
      %8262 = vrot.lane.b32.xlu0 %v5319, 112
      %v8263 = vpop.permute.xlu0 %8262
      %8264 = vrot.lane.b32.xlu0 %v5320, 112
      %v8265 = vpop.permute.xlu0 %8264
      %8266 = vrot.lane.b32.xlu0 %v5321, 112
      %v8267 = vpop.permute.xlu0 %8266
      %8268 = vrot.lane.b32.xlu0 %v5322, 112
      %v8269 = vpop.permute.xlu0 %8268
      %8270 = vrot.lane.b32.xlu0 %v5323, 112
      %v8271 = vpop.permute.xlu0 %8270
      %8272 = vrot.lane.b32.xlu0 %v5324, 112
      %v8273 = vpop.permute.xlu0 %8272
      %8274 = vrot.lane.b32.xlu0 %v5552, 112
      %v8275 = vpop.permute.xlu0 %8274
      %8276 = vrot.lane.b32.xlu0 %v5557, 112
      %v8277 = vpop.permute.xlu0 %8276
      %8278 = vrot.lane.b32.xlu0 %v5562, 112
      %v8279 = vpop.permute.xlu0 %8278
      %8280 = vrot.lane.b32.xlu0 %v5567, 112
      %v8281 = vpop.permute.xlu0 %8280
      %8282 = vrot.lane.b32.xlu0 %v5572, 112
      %v8283 = vpop.permute.xlu0 %8282
      %8284 = vrot.lane.b32.xlu0 %v5577, 112
      %v8285 = vpop.permute.xlu0 %8284
      %8286 = vrot.lane.b32.xlu0 %v5582, 112
      %v8287 = vpop.permute.xlu0 %8286
      %8288 = vrot.lane.b32.xlu0 %v5587, 112
      %v8289 = vpop.permute.xlu0 %8288
      %8290 = vrot.lane.b32.xlu0 %v5592, 112
      %v8291 = vpop.permute.xlu0 %8290
      %8292 = vrot.lane.b32.xlu0 %v5597, 112
      %v8293 = vpop.permute.xlu0 %8292
      %8294 = vrot.lane.b32.xlu0 %v5602, 112
      %v8295 = vpop.permute.xlu0 %8294
      %8296 = vrot.lane.b32.xlu0 %v5607, 112
      %v8297 = vpop.permute.xlu0 %8296
      %8298 = vrot.lane.b32.xlu0 %v5612, 112
      %v8299 = vpop.permute.xlu0 %8298
      %8300 = vrot.lane.b32.xlu0 %v5617, 112
      %v8301 = vpop.permute.xlu0 %8300
      %8302 = vrot.lane.b32.xlu0 %v5622, 112
      %v8303 = vpop.permute.xlu0 %8302
      %8304 = vrot.lane.b32.xlu0 %v5627, 112
      %v8305 = vpop.permute.xlu0 %8304
      %8306 = vrot.lane.b32.xlu0 %v5632, 112
      %v8307 = vpop.permute.xlu0 %8306
      %8308 = vrot.lane.b32.xlu0 %v5637, 112
      %v8309 = vpop.permute.xlu0 %8308
      %8310 = vrot.lane.b32.xlu0 %v5642, 112
      %v8311 = vpop.permute.xlu0 %8310
      %8312 = vrot.lane.b32.xlu0 %v5647, 112
      %v8313 = vpop.permute.xlu0 %8312
      %8314 = vrot.lane.b32.xlu0 %v5652, 112
      %v8315 = vpop.permute.xlu0 %8314
      %8316 = vrot.lane.b32.xlu0 %v5657, 112
      %v8317 = vpop.permute.xlu0 %8316
      %8318 = vrot.lane.b32.xlu0 %v5662, 112
      %v8319 = vpop.permute.xlu0 %8318
      %8320 = vrot.lane.b32.xlu0 %v5667, 112
      %v8321 = vpop.permute.xlu0 %8320
      %8322 = vrot.lane.b32.xlu0 %v5672, 112
      %v8323 = vpop.permute.xlu0 %8322
      %8324 = vrot.lane.b32.xlu0 %v5677, 112
      %v8325 = vpop.permute.xlu0 %8324
      %8326 = vrot.lane.b32.xlu0 %v5682, 112
      %v8327 = vpop.permute.xlu0 %8326
      %8328 = vrot.lane.b32.xlu0 %v5687, 112
      %v8329 = vpop.permute.xlu0 %8328
      %8330 = vrot.lane.b32.xlu0 %v5692, 112
      %v8331 = vpop.permute.xlu0 %8330
      %8332 = vrot.lane.b32.xlu0 %v5697, 112
      %v8333 = vpop.permute.xlu0 %8332
      %8334 = vrot.lane.b32.xlu0 %v5702, 112
      %v8335 = vpop.permute.xlu0 %8334
      %8336 = vrot.lane.b32.xlu0 %v5707, 112
      %v8337 = vpop.permute.xlu0 %8336
      %v8338 = vsel %vm906, %v8211, 0
      %v8340 = vsel %vm906, %v8213, 0
      %v8342 = vsel %vm906, %v8215, 0
      %v8344 = vsel %vm906, %v8217, 0
      %v8346 = vsel %vm906, %v8219, 0
      %v8348 = vsel %vm906, %v8221, 0
      %v8350 = vsel %vm906, %v8223, 0
      %v8352 = vsel %vm906, %v8225, 0
      %v8354 = vsel %vm906, %v8227, 0
      %v8356 = vsel %vm906, %v8229, 0
      %v8358 = vsel %vm906, %v8231, 0
      %v8360 = vsel %vm906, %v8233, 0
      %v8362 = vsel %vm906, %v8235, 0
      %v8364 = vsel %vm906, %v8237, 0
      %v8366 = vsel %vm906, %v8239, 0
      %v8368 = vsel %vm906, %v8241, 0
      %v8370 = vsel %vm906, %v8243, 0
      %v8372 = vsel %vm906, %v8245, 0
      %v8374 = vsel %vm906, %v8247, 0
      %v8376 = vsel %vm906, %v8249, 0
      %v8378 = vsel %vm906, %v8251, 0
      %v8380 = vsel %vm906, %v8253, 0
      %v8382 = vsel %vm906, %v8255, 0
      %v8384 = vsel %vm906, %v8257, 0
      %v8386 = vsel %vm906, %v8259, 0
      %v8388 = vsel %vm906, %v8261, 0
      %v8390 = vsel %vm906, %v8263, 0
      %v8392 = vsel %vm906, %v8265, 0
      %v8394 = vsel %vm906, %v8267, 0
      %v8396 = vsel %vm906, %v8269, 0
      %v8398 = vsel %vm906, %v8271, 0
      %v8400 = vsel %vm906, %v8273, 0
      %v8402 = vsel %vm906, %v8275, 0
      %v8404 = vsel %vm906, %v8277, 0
      %v8406 = vsel %vm906, %v8279, 0
      %v8408 = vsel %vm906, %v8281, 0
      %v8410 = vsel %vm906, %v8283, 0
      %v8412 = vsel %vm906, %v8285, 0
      %v8414 = vsel %vm906, %v8287, 0
      %v8416 = vsel %vm906, %v8289, 0
      %v8418 = vsel %vm906, %v8291, 0
      %v8420 = vsel %vm906, %v8293, 0
      %v8422 = vsel %vm906, %v8295, 0
      %v8424 = vsel %vm906, %v8297, 0
      %v8426 = vsel %vm906, %v8299, 0
      %v8428 = vsel %vm906, %v8301, 0
      %v8430 = vsel %vm906, %v8303, 0
      %v8432 = vsel %vm906, %v8305, 0
      %v8434 = vsel %vm906, %v8307, 0
      %v8436 = vsel %vm906, %v8309, 0
      %v8438 = vsel %vm906, %v8311, 0
      %v8440 = vsel %vm906, %v8313, 0
      %v8442 = vsel %vm906, %v8315, 0
      %v8444 = vsel %vm906, %v8317, 0
      %v8446 = vsel %vm906, %v8319, 0
      %v8448 = vsel %vm906, %v8321, 0
      %v8450 = vsel %vm906, %v8323, 0
      %v8452 = vsel %vm906, %v8325, 0
      %v8454 = vsel %vm906, %v8327, 0
      %v8456 = vsel %vm906, %v8329, 0
      %v8458 = vsel %vm906, %v8331, 0
      %v8460 = vsel %vm906, %v8333, 0
      %v8462 = vsel %vm906, %v8335, 0
      %v8464 = vsel %vm906, %v8337, 0
      %8466 = vmatprep.subr.mxu0 0.0
      %8467 = vmatpush1.xpose.msra.mxu0 %v8402
      %8468 = vmatprep.subr.mxu0 0.0
      %8469 = vmatpush1.xpose.msra.mxu0 %v8404
      %8470 = vmatprep.subr.mxu0 0.0
      %8471 = vmatpush1.xpose.msra.mxu0 %v8406
      %8472 = vmatprep.subr.mxu0 0.0
      %8473 = vmatpush1.xpose.msra.mxu0 %v8408
      %8474 = vmatprep.subr.mxu0 0.0
      %8475 = vmatpush1.xpose.msra.mxu0 %v8410
      %8476 = vmatprep.subr.mxu0 0.0
      %8477 = vmatpush1.xpose.msra.mxu0 %v8412
      %8478 = vmatprep.subr.mxu0 0.0
      %8479 = vmatpush1.xpose.msra.mxu0 %v8414
      %8480 = vmatprep.subr.mxu0 0.0
      %8481 = vmatpush1.xpose.msra.mxu0 %v8416
      %8482 = vmatprep.subr.mxu0 0.0
      %8483 = vmatpush1.xpose.msra.mxu0 %v8418
      %8484 = vmatprep.subr.mxu0 0.0
      %8485 = vmatpush1.xpose.msra.mxu0 %v8420
      %8486 = vmatprep.subr.mxu0 0.0
      %8487 = vmatpush1.xpose.msra.mxu0 %v8422
      %8488 = vmatprep.subr.mxu0 0.0
      %8489 = vmatpush1.xpose.msra.mxu0 %v8424
      %8490 = vmatprep.subr.mxu0 0.0
      %8491 = vmatpush1.xpose.msra.mxu0 %v8426
      %8492 = vmatprep.subr.mxu0 0.0
      %8493 = vmatpush1.xpose.msra.mxu0 %v8428
      %8494 = vmatprep.subr.mxu0 0.0
      %8495 = vmatpush1.xpose.msra.mxu0 %v8430
      %8496 = vmatprep.subr.mxu0 0.0
      %8497 = vmatpush1.xpose.msra.mxu0 %v8432
      %8498 = vmatprep.subr.mxu0 0.0
      %8499 = vmatpush1.xpose.msra.mxu0 %v8434
      %8500 = vmatprep.subr.mxu0 0.0
      %8501 = vmatpush1.xpose.msra.mxu0 %v8436
      %8502 = vmatprep.subr.mxu0 0.0
      %8503 = vmatpush1.xpose.msra.mxu0 %v8438
      %8504 = vmatprep.subr.mxu0 0.0
      %8505 = vmatpush1.xpose.msra.mxu0 %v8440
      %8506 = vmatprep.subr.mxu0 0.0
      %8507 = vmatpush1.xpose.msra.mxu0 %v8442
      %8508 = vmatprep.subr.mxu0 0.0
      %8509 = vmatpush1.xpose.msra.mxu0 %v8444
      %8510 = vmatprep.subr.mxu0 0.0
      %8511 = vmatpush1.xpose.msra.mxu0 %v8446
      %8512 = vmatprep.subr.mxu0 0.0
      %8513 = vmatpush1.xpose.msra.mxu0 %v8448
      %8514 = vmatprep.subr.mxu0 0.0
      %8515 = vmatpush1.xpose.msra.mxu0 %v8450
      %8516 = vmatprep.subr.mxu0 0.0
      %8517 = vmatpush1.xpose.msra.mxu0 %v8452
      %8518 = vmatprep.subr.mxu0 0.0
      %8519 = vmatpush1.xpose.msra.mxu0 %v8454
      %8520 = vmatprep.subr.mxu0 0.0
      %8521 = vmatpush1.xpose.msra.mxu0 %v8456
      %8522 = vmatprep.subr.mxu0 0.0
      %8523 = vmatpush1.xpose.msra.mxu0 %v8458
      %8524 = vmatprep.subr.mxu0 0.0
      %8525 = vmatpush1.xpose.msra.mxu0 %v8460
      %8526 = vmatprep.subr.mxu0 0.0
      %8527 = vmatpush1.xpose.msra.mxu0 %v8462
      %8528 = vmatprep.subr.mxu0 0.0
      %8529 = vmatpush1.xpose.msra.mxu0 %v8464
      %8530 = vmatprep.mubr.f32.mxu0 0.0
      %8531 = vmatmul.mubr.f32.gmra.mrb[0].mxu0 %v8338
      %v8532 = vpop.f32.mrb[0].mxu0
      %v8533 = vadd.f32 0.0, %v8532
      %v8534 = vpop.f32.mrb[0].mxu0
      %v8535 = vadd.f32 0.0, %v8534
      %8536 = vmatprep.mubr.f32.mxu0 0.0
      %8537 = vmatmul.mubr.f32.gmra.mrb[0].mxu0 %v8340
      %v8538 = vpop.f32.mrb[0].mxu0
      %v8539 = vadd.f32 0.0, %v8538
      %v8540 = vpop.f32.mrb[0].mxu0
      %v8541 = vadd.f32 0.0, %v8540
      %8542 = vmatprep.mubr.f32.mxu0 0.0
      %8543 = vmatmul.mubr.f32.gmra.mrb[0].mxu0 %v8342
      %v8544 = vpop.f32.mrb[0].mxu0
      %v8545 = vadd.f32 0.0, %v8544
      %v8546 = vpop.f32.mrb[0].mxu0
      %v8547 = vadd.f32 0.0, %v8546
      %8548 = vmatprep.mubr.f32.mxu0 0.0
      %8549 = vmatmul.mubr.f32.gmra.mrb[0].mxu0 %v8344
      %v8550 = vpop.f32.mrb[0].mxu0
      %v8551 = vadd.f32 0.0, %v8550
      %v8552 = vpop.f32.mrb[0].mxu0
      %v8553 = vadd.f32 0.0, %v8552
      %8554 = vmatprep.mubr.f32.mxu0 0.0
      %8555 = vmatmul.mubr.f32.gmra.mrb[0].mxu0 %v8346
      %v8556 = vpop.f32.mrb[0].mxu0
      %v8557 = vadd.f32 0.0, %v8556
      %v8558 = vpop.f32.mrb[0].mxu0
      %v8559 = vadd.f32 0.0, %v8558
      %8560 = vmatprep.mubr.f32.mxu0 0.0
      %8561 = vmatmul.mubr.f32.gmra.mrb[0].mxu0 %v8348
      %v8562 = vpop.f32.mrb[0].mxu0
      %v8563 = vadd.f32 0.0, %v8562
      %v8564 = vpop.f32.mrb[0].mxu0
      %v8565 = vadd.f32 0.0, %v8564
      %8566 = vmatprep.mubr.f32.mxu0 0.0
      %8567 = vmatmul.mubr.f32.gmra.mrb[0].mxu0 %v8350
      %v8568 = vpop.f32.mrb[0].mxu0
      %v8569 = vadd.f32 0.0, %v8568
      %v8570 = vpop.f32.mrb[0].mxu0
      %v8571 = vadd.f32 0.0, %v8570
      %8572 = vmatprep.mubr.f32.mxu0 0.0
      %8573 = vmatmul.mubr.f32.gmra.mrb[0].mxu0 %v8352
      %v8574 = vpop.f32.mrb[0].mxu0
      %v8575 = vadd.f32 0.0, %v8574
      %v8576 = vpop.f32.mrb[0].mxu0
      %v8577 = vadd.f32 0.0, %v8576
      %8578 = vmatprep.mubr.f32.mxu0 0.0
      %8579 = vmatmul.mubr.f32.gmra.mrb[0].mxu0 %v8354
      %v8580 = vpop.f32.mrb[0].mxu0
      %v8581 = vadd.f32 0.0, %v8580
      %v8582 = vpop.f32.mrb[0].mxu0
      %v8583 = vadd.f32 0.0, %v8582
      %8584 = vmatprep.mubr.f32.mxu0 0.0
      %8585 = vmatmul.mubr.f32.gmra.mrb[0].mxu0 %v8356
      %v8586 = vpop.f32.mrb[0].mxu0
      %v8587 = vadd.f32 0.0, %v8586
      %v8588 = vpop.f32.mrb[0].mxu0
      %v8589 = vadd.f32 0.0, %v8588
      %8590 = vmatprep.mubr.f32.mxu0 0.0
      %8591 = vmatmul.mubr.f32.gmra.mrb[0].mxu0 %v8358
      %v8592 = vpop.f32.mrb[0].mxu0
      %v8593 = vadd.f32 0.0, %v8592
      %v8594 = vpop.f32.mrb[0].mxu0
      %v8595 = vadd.f32 0.0, %v8594
      %8596 = vmatprep.mubr.f32.mxu0 0.0
      %8597 = vmatmul.mubr.f32.gmra.mrb[0].mxu0 %v8360
      %v8598 = vpop.f32.mrb[0].mxu0
      %v8599 = vadd.f32 0.0, %v8598
      %v8600 = vpop.f32.mrb[0].mxu0
      %v8601 = vadd.f32 0.0, %v8600
      %8602 = vmatprep.mubr.f32.mxu0 0.0
      %8603 = vmatmul.mubr.f32.gmra.mrb[0].mxu0 %v8362
      %v8604 = vpop.f32.mrb[0].mxu0
      %v8605 = vadd.f32 0.0, %v8604
      %v8606 = vpop.f32.mrb[0].mxu0
      %v8607 = vadd.f32 0.0, %v8606
      %8608 = vmatprep.mubr.f32.mxu0 0.0
      %8609 = vmatmul.mubr.f32.gmra.mrb[0].mxu0 %v8364
      %v8610 = vpop.f32.mrb[0].mxu0
      %v8611 = vadd.f32 0.0, %v8610
      %v8612 = vpop.f32.mrb[0].mxu0
      %v8613 = vadd.f32 0.0, %v8612
      %8614 = vmatprep.mubr.f32.mxu0 0.0
      %8615 = vmatmul.mubr.f32.gmra.mrb[0].mxu0 %v8366
      %v8616 = vpop.f32.mrb[0].mxu0
      %v8617 = vadd.f32 0.0, %v8616
      %v8618 = vpop.f32.mrb[0].mxu0
      %v8619 = vadd.f32 0.0, %v8618
      %8620 = vmatprep.mubr.f32.mxu0 0.0
      %8621 = vmatmul.mubr.f32.gmra.mrb[0].mxu0 %v8368
      %v8622 = vpop.f32.mrb[0].mxu0
      %v8623 = vadd.f32 0.0, %v8622
      %v8624 = vpop.f32.mrb[0].mxu0
      %v8625 = vadd.f32 0.0, %v8624
      %8626 = vmatprep.mubr.f32.mxu0 0.0
      %8627 = vmatmul.mubr.f32.gmra.mrb[0].mxu0 %v8370
      %v8628 = vpop.f32.mrb[0].mxu0
      %v8629 = vadd.f32 0.0, %v8628
      %v8630 = vpop.f32.mrb[0].mxu0
      %v8631 = vadd.f32 0.0, %v8630
      %8632 = vmatprep.mubr.f32.mxu0 0.0
      %8633 = vmatmul.mubr.f32.gmra.mrb[0].mxu0 %v8372
      %v8634 = vpop.f32.mrb[0].mxu0
      %v8635 = vadd.f32 0.0, %v8634
      %v8636 = vpop.f32.mrb[0].mxu0
      %v8637 = vadd.f32 0.0, %v8636
      %8638 = vmatprep.mubr.f32.mxu0 0.0
      %8639 = vmatmul.mubr.f32.gmra.mrb[0].mxu0 %v8374
      %v8640 = vpop.f32.mrb[0].mxu0
      %v8641 = vadd.f32 0.0, %v8640
      %v8642 = vpop.f32.mrb[0].mxu0
      %v8643 = vadd.f32 0.0, %v8642
      %8644 = vmatprep.mubr.f32.mxu0 0.0
      %8645 = vmatmul.mubr.f32.gmra.mrb[0].mxu0 %v8376
      %v8646 = vpop.f32.mrb[0].mxu0
      %v8647 = vadd.f32 0.0, %v8646
      %v8648 = vpop.f32.mrb[0].mxu0
      %v8649 = vadd.f32 0.0, %v8648
      %8650 = vmatprep.mubr.f32.mxu0 0.0
      %8651 = vmatmul.mubr.f32.gmra.mrb[0].mxu0 %v8378
      %v8652 = vpop.f32.mrb[0].mxu0
      %v8653 = vadd.f32 0.0, %v8652
      %v8654 = vpop.f32.mrb[0].mxu0
      %v8655 = vadd.f32 0.0, %v8654
      %8656 = vmatprep.mubr.f32.mxu0 0.0
      %8657 = vmatmul.mubr.f32.gmra.mrb[0].mxu0 %v8380
      %v8658 = vpop.f32.mrb[0].mxu0
      %v8659 = vadd.f32 0.0, %v8658
      %v8660 = vpop.f32.mrb[0].mxu0
      %v8661 = vadd.f32 0.0, %v8660
      %8662 = vmatprep.mubr.f32.mxu0 0.0
      %8663 = vmatmul.mubr.f32.gmra.mrb[0].mxu0 %v8382
      %v8664 = vpop.f32.mrb[0].mxu0
      %v8665 = vadd.f32 0.0, %v8664
      %v8666 = vpop.f32.mrb[0].mxu0
      %v8667 = vadd.f32 0.0, %v8666
      %8668 = vmatprep.mubr.f32.mxu0 0.0
      %8669 = vmatmul.mubr.f32.gmra.mrb[0].mxu0 %v8384
      %v8670 = vpop.f32.mrb[0].mxu0
      %v8671 = vadd.f32 0.0, %v8670
      %v8672 = vpop.f32.mrb[0].mxu0
      %v8673 = vadd.f32 0.0, %v8672
      %8674 = vmatprep.mubr.f32.mxu0 0.0
      %8675 = vmatmul.mubr.f32.gmra.mrb[0].mxu0 %v8386
      %v8676 = vpop.f32.mrb[0].mxu0
      %v8677 = vadd.f32 0.0, %v8676
      %v8678 = vpop.f32.mrb[0].mxu0
      %v8679 = vadd.f32 0.0, %v8678
      %8680 = vmatprep.mubr.f32.mxu0 0.0
      %8681 = vmatmul.mubr.f32.gmra.mrb[0].mxu0 %v8388
      %v8682 = vpop.f32.mrb[0].mxu0
      %v8683 = vadd.f32 0.0, %v8682
      %v8684 = vpop.f32.mrb[0].mxu0
      %v8685 = vadd.f32 0.0, %v8684
      %8686 = vmatprep.mubr.f32.mxu0 0.0
      %8687 = vmatmul.mubr.f32.gmra.mrb[0].mxu0 %v8390
      %v8688 = vpop.f32.mrb[0].mxu0
      %v8689 = vadd.f32 0.0, %v8688
      %v8690 = vpop.f32.mrb[0].mxu0
      %v8691 = vadd.f32 0.0, %v8690
      %8692 = vmatprep.mubr.f32.mxu0 0.0
      %8693 = vmatmul.mubr.f32.gmra.mrb[0].mxu0 %v8392
      %v8694 = vpop.f32.mrb[0].mxu0
      %v8695 = vadd.f32 0.0, %v8694
      %v8696 = vpop.f32.mrb[0].mxu0
      %v8697 = vadd.f32 0.0, %v8696
      %8698 = vmatprep.mubr.f32.mxu0 0.0
      %8699 = vmatmul.mubr.f32.gmra.mrb[0].mxu0 %v8394
      %v8700 = vpop.f32.mrb[0].mxu0
      %v8701 = vadd.f32 0.0, %v8700
      %v8702 = vpop.f32.mrb[0].mxu0
      %v8703 = vadd.f32 0.0, %v8702
      %8704 = vmatprep.mubr.f32.mxu0 0.0
      %8705 = vmatmul.mubr.f32.gmra.mrb[0].mxu0 %v8396
      %v8706 = vpop.f32.mrb[0].mxu0
      %v8707 = vadd.f32 0.0, %v8706
      %v8708 = vpop.f32.mrb[0].mxu0
      %v8709 = vadd.f32 0.0, %v8708
      %8710 = vmatprep.mubr.f32.mxu0 0.0
      %8711 = vmatmul.mubr.f32.gmra.mrb[0].mxu0 %v8398
      %v8712 = vpop.f32.mrb[0].mxu0
      %v8713 = vadd.f32 0.0, %v8712
      %v8714 = vpop.f32.mrb[0].mxu0
      %v8715 = vadd.f32 0.0, %v8714
      %8716 = vmatprep.mubr.f32.mxu0 0.0
      %8717 = vmatmul.mubr.f32.gmra.mrb[0].mxu0 %v8400
      %v8718 = vpop.f32.mrb[0].mxu0
      %v8719 = vadd.f32 0.0, %v8718
      %v8720 = vpop.f32.mrb[0].mxu0
      %v8721 = vadd.f32 0.0, %v8720
      %8722 = vdwg.mxu0
      %v8723 = vmax.f32 %v8533, %v8535
      %8724 = vmax.xlane.f32.xlu0 %v8723
      %v8725 = vpop.xlane.xlu0 %8724
      %v8726 = vmax.f32 %v8539, %v8541
      %8727 = vmax.xlane.f32.xlu0 %v8726
      %v8728 = vpop.xlane.xlu0 %8727
      %v8729 = vmax.f32 %v8545, %v8547
      %8730 = vmax.xlane.f32.xlu0 %v8729
      %v8731 = vpop.xlane.xlu0 %8730
      %v8732 = vmax.f32 %v8551, %v8553
      %8733 = vmax.xlane.f32.xlu0 %v8732
      %v8734 = vpop.xlane.xlu0 %8733
      %v8735 = vmax.f32 %v8557, %v8559
      %8736 = vmax.xlane.f32.xlu0 %v8735
      %v8737 = vpop.xlane.xlu0 %8736
      %v8738 = vmax.f32 %v8563, %v8565
      %8739 = vmax.xlane.f32.xlu0 %v8738
      %v8740 = vpop.xlane.xlu0 %8739
      %v8741 = vmax.f32 %v8569, %v8571
      %8742 = vmax.xlane.f32.xlu0 %v8741
      %v8743 = vpop.xlane.xlu0 %8742
      %v8744 = vmax.f32 %v8575, %v8577
      %8745 = vmax.xlane.f32.xlu0 %v8744
      %v8746 = vpop.xlane.xlu0 %8745
      %v8747 = vmax.f32 %v8581, %v8583
      %8748 = vmax.xlane.f32.xlu0 %v8747
      %v8749 = vpop.xlane.xlu0 %8748
      %v8750 = vmax.f32 %v8587, %v8589
      %8751 = vmax.xlane.f32.xlu0 %v8750
      %v8752 = vpop.xlane.xlu0 %8751
      %v8753 = vmax.f32 %v8593, %v8595
      %8754 = vmax.xlane.f32.xlu0 %v8753
      %v8755 = vpop.xlane.xlu0 %8754
      %v8756 = vmax.f32 %v8599, %v8601
      %8757 = vmax.xlane.f32.xlu0 %v8756
      %v8758 = vpop.xlane.xlu0 %8757
      %v8759 = vmax.f32 %v8605, %v8607
      %8760 = vmax.xlane.f32.xlu0 %v8759
      %v8761 = vpop.xlane.xlu0 %8760
      %v8762 = vmax.f32 %v8611, %v8613
      %8763 = vmax.xlane.f32.xlu0 %v8762
      %v8764 = vpop.xlane.xlu0 %8763
      %v8765 = vmax.f32 %v8617, %v8619
      %8766 = vmax.xlane.f32.xlu0 %v8765
      %v8767 = vpop.xlane.xlu0 %8766
      %v8768 = vmax.f32 %v8623, %v8625
      %8769 = vmax.xlane.f32.xlu0 %v8768
      %v8770 = vpop.xlane.xlu0 %8769
      %v8771 = vmax.f32 %v8629, %v8631
      %8772 = vmax.xlane.f32.xlu0 %v8771
      %v8773 = vpop.xlane.xlu0 %8772
      %v8774 = vmax.f32 %v8635, %v8637
      %8775 = vmax.xlane.f32.xlu0 %v8774
      %v8776 = vpop.xlane.xlu0 %8775
      %v8777 = vmax.f32 %v8641, %v8643
      %8778 = vmax.xlane.f32.xlu0 %v8777
      %v8779 = vpop.xlane.xlu0 %8778
      %v8780 = vmax.f32 %v8647, %v8649
      %8781 = vmax.xlane.f32.xlu0 %v8780
      %v8782 = vpop.xlane.xlu0 %8781
      %v8783 = vmax.f32 %v8653, %v8655
      %8784 = vmax.xlane.f32.xlu0 %v8783
      %v8785 = vpop.xlane.xlu0 %8784
      %v8786 = vmax.f32 %v8659, %v8661
      %8787 = vmax.xlane.f32.xlu0 %v8786
      %v8788 = vpop.xlane.xlu0 %8787
      %v8789 = vmax.f32 %v8665, %v8667
      %8790 = vmax.xlane.f32.xlu0 %v8789
      %v8791 = vpop.xlane.xlu0 %8790
      %v8792 = vmax.f32 %v8671, %v8673
      %8793 = vmax.xlane.f32.xlu0 %v8792
      %v8794 = vpop.xlane.xlu0 %8793
      %v8795 = vmax.f32 %v8677, %v8679
      %8796 = vmax.xlane.f32.xlu0 %v8795
      %v8797 = vpop.xlane.xlu0 %8796
      %v8798 = vmax.f32 %v8683, %v8685
      %8799 = vmax.xlane.f32.xlu0 %v8798
      %v8800 = vpop.xlane.xlu0 %8799
      %v8801 = vmax.f32 %v8689, %v8691
      %8802 = vmax.xlane.f32.xlu0 %v8801
      %v8803 = vpop.xlane.xlu0 %8802
      %v8804 = vmax.f32 %v8695, %v8697
      %8805 = vmax.xlane.f32.xlu0 %v8804
      %v8806 = vpop.xlane.xlu0 %8805
      %v8807 = vmax.f32 %v8701, %v8703
      %8808 = vmax.xlane.f32.xlu0 %v8807
      %v8809 = vpop.xlane.xlu0 %8808
      %v8810 = vmax.f32 %v8707, %v8709
      %8811 = vmax.xlane.f32.xlu0 %v8810
      %v8812 = vpop.xlane.xlu0 %8811
      %v8813 = vmax.f32 %v8713, %v8715
      %8814 = vmax.xlane.f32.xlu0 %v8813
      %v8815 = vpop.xlane.xlu0 %8814
      %v8816 = vmax.f32 %v8719, %v8721
      %8817 = vmax.xlane.f32.xlu0 %v8816
      %v8818 = vpop.xlane.xlu0 %8817
      %v8819 = vsub.f32 %v8533, %v8725
      %v8820 = vsub.f32 %v8535, %v8725
      %v8821 = vsub.f32 %v8539, %v8728
      %v8822 = vsub.f32 %v8541, %v8728
      %v8823 = vsub.f32 %v8545, %v8731
      %v8824 = vsub.f32 %v8547, %v8731
      %v8825 = vsub.f32 %v8551, %v8734
      %v8826 = vsub.f32 %v8553, %v8734
      %v8827 = vsub.f32 %v8557, %v8737
      %v8828 = vsub.f32 %v8559, %v8737
      %v8829 = vsub.f32 %v8563, %v8740
      %v8830 = vsub.f32 %v8565, %v8740
      %v8831 = vsub.f32 %v8569, %v8743
      %v8832 = vsub.f32 %v8571, %v8743
      %v8833 = vsub.f32 %v8575, %v8746
      %v8834 = vsub.f32 %v8577, %v8746
      %v8835 = vsub.f32 %v8581, %v8749
      %v8836 = vsub.f32 %v8583, %v8749
      %v8837 = vsub.f32 %v8587, %v8752
      %v8838 = vsub.f32 %v8589, %v8752
      %v8839 = vsub.f32 %v8593, %v8755
      %v8840 = vsub.f32 %v8595, %v8755
      %v8841 = vsub.f32 %v8599, %v8758
      %v8842 = vsub.f32 %v8601, %v8758
      %v8843 = vsub.f32 %v8605, %v8761
      %v8844 = vsub.f32 %v8607, %v8761
      %v8845 = vsub.f32 %v8611, %v8764
      %v8846 = vsub.f32 %v8613, %v8764
      %v8847 = vsub.f32 %v8617, %v8767
      %v8848 = vsub.f32 %v8619, %v8767
      %v8849 = vsub.f32 %v8623, %v8770
      %v8850 = vsub.f32 %v8625, %v8770
      %v8851 = vsub.f32 %v8629, %v8773
      %v8852 = vsub.f32 %v8631, %v8773
      %v8853 = vsub.f32 %v8635, %v8776
      %v8854 = vsub.f32 %v8637, %v8776
      %v8855 = vsub.f32 %v8641, %v8779
      %v8856 = vsub.f32 %v8643, %v8779
      %v8857 = vsub.f32 %v8647, %v8782
      %v8858 = vsub.f32 %v8649, %v8782
      %v8859 = vsub.f32 %v8653, %v8785
      %v8860 = vsub.f32 %v8655, %v8785
      %v8861 = vsub.f32 %v8659, %v8788
      %v8862 = vsub.f32 %v8661, %v8788
      %v8863 = vsub.f32 %v8665, %v8791
      %v8864 = vsub.f32 %v8667, %v8791
      %v8865 = vsub.f32 %v8671, %v8794
      %v8866 = vsub.f32 %v8673, %v8794
      %v8867 = vsub.f32 %v8677, %v8797
      %v8868 = vsub.f32 %v8679, %v8797
      %v8869 = vsub.f32 %v8683, %v8800
      %v8870 = vsub.f32 %v8685, %v8800
      %v8871 = vsub.f32 %v8689, %v8803
      %v8872 = vsub.f32 %v8691, %v8803
      %v8873 = vsub.f32 %v8695, %v8806
      %v8874 = vsub.f32 %v8697, %v8806
      %v8875 = vsub.f32 %v8701, %v8809
      %v8876 = vsub.f32 %v8703, %v8809
      %v8877 = vsub.f32 %v8707, %v8812
      %v8878 = vsub.f32 %v8709, %v8812
      %v8879 = vsub.f32 %v8713, %v8815
      %v8880 = vsub.f32 %v8715, %v8815
      %v8881 = vsub.f32 %v8719, %v8818
      %v8882 = vsub.f32 %v8721, %v8818
      %v8883 = vmul.f32 %v8819, 1.442695
      %v8884 = vpow.pop %v8883
      %v8885 = vmul.f32 %v8820, 1.442695
      %v8886 = vpow.pop %v8885
      %v8887 = vmul.f32 %v8821, 1.442695
      %v8888 = vpow.pop %v8887
      %v8889 = vmul.f32 %v8822, 1.442695
      %v8890 = vpow.pop %v8889
      %v8891 = vmul.f32 %v8823, 1.442695
      %v8892 = vpow.pop %v8891
      %v8893 = vmul.f32 %v8824, 1.442695
      %v8894 = vpow.pop %v8893
      %v8895 = vmul.f32 %v8825, 1.442695
      %v8896 = vpow.pop %v8895
      %v8897 = vmul.f32 %v8826, 1.442695
      %v8898 = vpow.pop %v8897
      %v8899 = vmul.f32 %v8827, 1.442695
      %v8900 = vpow.pop %v8899
      %v8901 = vmul.f32 %v8828, 1.442695
      %v8902 = vpow.pop %v8901
      %v8903 = vmul.f32 %v8829, 1.442695
      %v8904 = vpow.pop %v8903
      %v8905 = vmul.f32 %v8830, 1.442695
      %v8906 = vpow.pop %v8905
      %v8907 = vmul.f32 %v8831, 1.442695
      %v8908 = vpow.pop %v8907
      %v8909 = vmul.f32 %v8832, 1.442695
      %v8910 = vpow.pop %v8909
      %v8911 = vmul.f32 %v8833, 1.442695
      %v8912 = vpow.pop %v8911
      %v8913 = vmul.f32 %v8834, 1.442695
      %v8914 = vpow.pop %v8913
      %v8915 = vmul.f32 %v8835, 1.442695
      %v8916 = vpow.pop %v8915
      %v8917 = vmul.f32 %v8836, 1.442695
      %v8918 = vpow.pop %v8917
      %v8919 = vmul.f32 %v8837, 1.442695
      %v8920 = vpow.pop %v8919
      %v8921 = vmul.f32 %v8838, 1.442695
      %v8922 = vpow.pop %v8921
      %v8923 = vmul.f32 %v8839, 1.442695
      %v8924 = vpow.pop %v8923
      %v8925 = vmul.f32 %v8840, 1.442695
      %v8926 = vpow.pop %v8925
      %v8927 = vmul.f32 %v8841, 1.442695
      %v8928 = vpow.pop %v8927
      %v8929 = vmul.f32 %v8842, 1.442695
      %v8930 = vpow.pop %v8929
      %v8931 = vmul.f32 %v8843, 1.442695
      %v8932 = vpow.pop %v8931
      %v8933 = vmul.f32 %v8844, 1.442695
      %v8934 = vpow.pop %v8933
      %v8935 = vmul.f32 %v8845, 1.442695
      %v8936 = vpow.pop %v8935
      %v8937 = vmul.f32 %v8846, 1.442695
      %v8938 = vpow.pop %v8937
      %v8939 = vmul.f32 %v8847, 1.442695
      %v8940 = vpow.pop %v8939
      %v8941 = vmul.f32 %v8848, 1.442695
      %v8942 = vpow.pop %v8941
      %v8943 = vmul.f32 %v8849, 1.442695
      %v8944 = vpow.pop %v8943
      %v8945 = vmul.f32 %v8850, 1.442695
      %v8946 = vpow.pop %v8945
      %v8947 = vmul.f32 %v8851, 1.442695
      %v8948 = vpow.pop %v8947
      %v8949 = vmul.f32 %v8852, 1.442695
      %v8950 = vpow.pop %v8949
      %v8951 = vmul.f32 %v8853, 1.442695
      %v8952 = vpow.pop %v8951
      %v8953 = vmul.f32 %v8854, 1.442695
      %v8954 = vpow.pop %v8953
      %v8955 = vmul.f32 %v8855, 1.442695
      %v8956 = vpow.pop %v8955
      %v8957 = vmul.f32 %v8856, 1.442695
      %v8958 = vpow.pop %v8957
      %v8959 = vmul.f32 %v8857, 1.442695
      %v8960 = vpow.pop %v8959
      %v8961 = vmul.f32 %v8858, 1.442695
      %v8962 = vpow.pop %v8961
      %v8963 = vmul.f32 %v8859, 1.442695
      %v8964 = vpow.pop %v8963
      %v8965 = vmul.f32 %v8860, 1.442695
      %v8966 = vpow.pop %v8965
      %v8967 = vmul.f32 %v8861, 1.442695
      %v8968 = vpow.pop %v8967
      %v8969 = vmul.f32 %v8862, 1.442695
      %v8970 = vpow.pop %v8969
      %v8971 = vmul.f32 %v8863, 1.442695
      %v8972 = vpow.pop %v8971
      %v8973 = vmul.f32 %v8864, 1.442695
      %v8974 = vpow.pop %v8973
      %v8975 = vmul.f32 %v8865, 1.442695
      %v8976 = vpow.pop %v8975
      %v8977 = vmul.f32 %v8866, 1.442695
      %v8978 = vpow.pop %v8977
      %v8979 = vmul.f32 %v8867, 1.442695
      %v8980 = vpow.pop %v8979
      %v8981 = vmul.f32 %v8868, 1.442695
      %v8982 = vpow.pop %v8981
      %v8983 = vmul.f32 %v8869, 1.442695
      %v8984 = vpow.pop %v8983
      %v8985 = vmul.f32 %v8870, 1.442695
      %v8986 = vpow.pop %v8985
      %v8987 = vmul.f32 %v8871, 1.442695
      %v8988 = vpow.pop %v8987
      %v8989 = vmul.f32 %v8872, 1.442695
      %v8990 = vpow.pop %v8989
      %v8991 = vmul.f32 %v8873, 1.442695
      %v8992 = vpow.pop %v8991
      %v8993 = vmul.f32 %v8874, 1.442695
      %v8994 = vpow.pop %v8993
      %v8995 = vmul.f32 %v8875, 1.442695
      %v8996 = vpow.pop %v8995
      %v8997 = vmul.f32 %v8876, 1.442695
      %v8998 = vpow.pop %v8997
      %v8999 = vmul.f32 %v8877, 1.442695
      %v9000 = vpow.pop %v8999
      %v9001 = vmul.f32 %v8878, 1.442695
      %v9002 = vpow.pop %v9001
      %v9003 = vmul.f32 %v8879, 1.442695
      %v9004 = vpow.pop %v9003
      %v9005 = vmul.f32 %v8880, 1.442695
      %v9006 = vpow.pop %v9005
      %v9007 = vmul.f32 %v8881, 1.442695
      %v9008 = vpow.pop %v9007
      %v9009 = vmul.f32 %v8882, 1.442695
      %v9010 = vpow.pop %v9009
      %v9011 = vadd.f32 %v8884, %v8886
      %9012 = vadd.xlane.f32.xlu0 %v9011
      %v9013 = vpop.xlane.xlu0 %9012
      %v9014 = vadd.f32 %v8888, %v8890
      %9015 = vadd.xlane.f32.xlu0 %v9014
      %v9016 = vpop.xlane.xlu0 %9015
      %v9017 = vadd.f32 %v8892, %v8894
      %9018 = vadd.xlane.f32.xlu0 %v9017
      %v9019 = vpop.xlane.xlu0 %9018
      %v9020 = vadd.f32 %v8896, %v8898
      %9021 = vadd.xlane.f32.xlu0 %v9020
      %v9022 = vpop.xlane.xlu0 %9021
      %v9023 = vadd.f32 %v8900, %v8902
      %9024 = vadd.xlane.f32.xlu0 %v9023
      %v9025 = vpop.xlane.xlu0 %9024
      %v9026 = vadd.f32 %v8904, %v8906
      %9027 = vadd.xlane.f32.xlu0 %v9026
      %v9028 = vpop.xlane.xlu0 %9027
      %v9029 = vadd.f32 %v8908, %v8910
      %9030 = vadd.xlane.f32.xlu0 %v9029
      %v9031 = vpop.xlane.xlu0 %9030
      %v9032 = vadd.f32 %v8912, %v8914
      %9033 = vadd.xlane.f32.xlu0 %v9032
      %v9034 = vpop.xlane.xlu0 %9033
      %v9035 = vadd.f32 %v8916, %v8918
      %9036 = vadd.xlane.f32.xlu0 %v9035
      %v9037 = vpop.xlane.xlu0 %9036
      %v9038 = vadd.f32 %v8920, %v8922
      %9039 = vadd.xlane.f32.xlu0 %v9038
      %v9040 = vpop.xlane.xlu0 %9039
      %v9041 = vadd.f32 %v8924, %v8926
      %9042 = vadd.xlane.f32.xlu0 %v9041
      %v9043 = vpop.xlane.xlu0 %9042
      %v9044 = vadd.f32 %v8928, %v8930
      %9045 = vadd.xlane.f32.xlu0 %v9044
      %v9046 = vpop.xlane.xlu0 %9045
      %v9047 = vadd.f32 %v8932, %v8934
      %9048 = vadd.xlane.f32.xlu0 %v9047
      %v9049 = vpop.xlane.xlu0 %9048
      %v9050 = vadd.f32 %v8936, %v8938
      %9051 = vadd.xlane.f32.xlu0 %v9050
      %v9052 = vpop.xlane.xlu0 %9051
      %v9053 = vadd.f32 %v8940, %v8942
      %9054 = vadd.xlane.f32.xlu0 %v9053
      %v9055 = vpop.xlane.xlu0 %9054
      %v9056 = vadd.f32 %v8944, %v8946
      %9057 = vadd.xlane.f32.xlu0 %v9056
      %v9058 = vpop.xlane.xlu0 %9057
      %v9059 = vadd.f32 %v8948, %v8950
      %9060 = vadd.xlane.f32.xlu0 %v9059
      %v9061 = vpop.xlane.xlu0 %9060
      %v9062 = vadd.f32 %v8952, %v8954
      %9063 = vadd.xlane.f32.xlu0 %v9062
      %v9064 = vpop.xlane.xlu0 %9063
      %v9065 = vadd.f32 %v8956, %v8958
      %9066 = vadd.xlane.f32.xlu0 %v9065
      %v9067 = vpop.xlane.xlu0 %9066
      %v9068 = vadd.f32 %v8960, %v8962
      %9069 = vadd.xlane.f32.xlu0 %v9068
      %v9070 = vpop.xlane.xlu0 %9069
      %v9071 = vadd.f32 %v8964, %v8966
      %9072 = vadd.xlane.f32.xlu0 %v9071
      %v9073 = vpop.xlane.xlu0 %9072
      %v9074 = vadd.f32 %v8968, %v8970
      %9075 = vadd.xlane.f32.xlu0 %v9074
      %v9076 = vpop.xlane.xlu0 %9075
      %v9077 = vadd.f32 %v8972, %v8974
      %9078 = vadd.xlane.f32.xlu0 %v9077
      %v9079 = vpop.xlane.xlu0 %9078
      %v9080 = vadd.f32 %v8976, %v8978
      %9081 = vadd.xlane.f32.xlu0 %v9080
      %v9082 = vpop.xlane.xlu0 %9081
      %v9083 = vadd.f32 %v8980, %v8982
      %9084 = vadd.xlane.f32.xlu0 %v9083
      %v9085 = vpop.xlane.xlu0 %9084
      %v9086 = vadd.f32 %v8984, %v8986
      %9087 = vadd.xlane.f32.xlu0 %v9086
      %v9088 = vpop.xlane.xlu0 %9087
      %v9089 = vadd.f32 %v8988, %v8990
      %9090 = vadd.xlane.f32.xlu0 %v9089
      %v9091 = vpop.xlane.xlu0 %9090
      %v9092 = vadd.f32 %v8992, %v8994
      %9093 = vadd.xlane.f32.xlu0 %v9092
      %v9094 = vpop.xlane.xlu0 %9093
      %v9095 = vadd.f32 %v8996, %v8998
      %9096 = vadd.xlane.f32.xlu0 %v9095
      %v9097 = vpop.xlane.xlu0 %9096
      %v9098 = vadd.f32 %v9000, %v9002
      %9099 = vadd.xlane.f32.xlu0 %v9098
      %v9100 = vpop.xlane.xlu0 %9099
      %v9101 = vadd.f32 %v9004, %v9006
      %9102 = vadd.xlane.f32.xlu0 %v9101
      %v9103 = vpop.xlane.xlu0 %9102
      %v9104 = vadd.f32 %v9008, %v9010
      %9105 = vadd.xlane.f32.xlu0 %v9104
      %v9106 = vpop.xlane.xlu0 %9105
      %9107 = vrot.lane.b32.xlu0 %v5552, 80
      %v9108 = vpop.permute.xlu0 %9107
      %9109 = vrot.lane.b32.xlu0 %v5557, 80
      %v9110 = vpop.permute.xlu0 %9109
      %9111 = vrot.lane.b32.xlu0 %v5562, 80
      %v9112 = vpop.permute.xlu0 %9111
      %9113 = vrot.lane.b32.xlu0 %v5567, 80
      %v9114 = vpop.permute.xlu0 %9113
      %9115 = vrot.lane.b32.xlu0 %v5572, 80
      %v9116 = vpop.permute.xlu0 %9115
      %9117 = vrot.lane.b32.xlu0 %v5577, 80
      %v9118 = vpop.permute.xlu0 %9117
      %9119 = vrot.lane.b32.xlu0 %v5582, 80
      %v9120 = vpop.permute.xlu0 %9119
      %9121 = vrot.lane.b32.xlu0 %v5587, 80
      %v9122 = vpop.permute.xlu0 %9121
      %9123 = vrot.lane.b32.xlu0 %v5592, 80
      %v9124 = vpop.permute.xlu0 %9123
      %9125 = vrot.lane.b32.xlu0 %v5597, 80
      %v9126 = vpop.permute.xlu0 %9125
      %9127 = vrot.lane.b32.xlu0 %v5602, 80
      %v9128 = vpop.permute.xlu0 %9127
      %9129 = vrot.lane.b32.xlu0 %v5607, 80
      %v9130 = vpop.permute.xlu0 %9129
      %9131 = vrot.lane.b32.xlu0 %v5612, 80
      %v9132 = vpop.permute.xlu0 %9131
      %9133 = vrot.lane.b32.xlu0 %v5617, 80
      %v9134 = vpop.permute.xlu0 %9133
      %9135 = vrot.lane.b32.xlu0 %v5622, 80
      %v9136 = vpop.permute.xlu0 %9135
      %9137 = vrot.lane.b32.xlu0 %v5627, 80
      %v9138 = vpop.permute.xlu0 %9137
      %9139 = vrot.lane.b32.xlu0 %v5632, 80
      %v9140 = vpop.permute.xlu0 %9139
      %9141 = vrot.lane.b32.xlu0 %v5637, 80
      %v9142 = vpop.permute.xlu0 %9141
      %9143 = vrot.lane.b32.xlu0 %v5642, 80
      %v9144 = vpop.permute.xlu0 %9143
      %9145 = vrot.lane.b32.xlu0 %v5647, 80
      %v9146 = vpop.permute.xlu0 %9145
      %9147 = vrot.lane.b32.xlu0 %v5652, 80
      %v9148 = vpop.permute.xlu0 %9147
      %9149 = vrot.lane.b32.xlu0 %v5657, 80
      %v9150 = vpop.permute.xlu0 %9149
      %9151 = vrot.lane.b32.xlu0 %v5662, 80
      %v9152 = vpop.permute.xlu0 %9151
      %9153 = vrot.lane.b32.xlu0 %v5667, 80
      %v9154 = vpop.permute.xlu0 %9153
      %9155 = vrot.lane.b32.xlu0 %v5672, 80
      %v9156 = vpop.permute.xlu0 %9155
      %9157 = vrot.lane.b32.xlu0 %v5677, 80
      %v9158 = vpop.permute.xlu0 %9157
      %9159 = vrot.lane.b32.xlu0 %v5682, 80
      %v9160 = vpop.permute.xlu0 %9159
      %9161 = vrot.lane.b32.xlu0 %v5687, 80
      %v9162 = vpop.permute.xlu0 %9161
      %9163 = vrot.lane.b32.xlu0 %v5692, 80
      %v9164 = vpop.permute.xlu0 %9163
      %9165 = vrot.lane.b32.xlu0 %v5697, 80
      %v9166 = vpop.permute.xlu0 %9165
      %9167 = vrot.lane.b32.xlu0 %v5702, 80
      %v9168 = vpop.permute.xlu0 %9167
      %9169 = vrot.lane.b32.xlu0 %v5707, 80
      %v9170 = vpop.permute.xlu0 %9169
      %9203 = vmatprep.subr.mxu0 0.0
      %9204 = vmatpush1.msra.mxu0 %v9108
      %9205 = vmatprep.subr.mxu0 0.0
      %9206 = vmatpush1.msra.mxu0 %v9110
      %9207 = vmatprep.subr.mxu0 0.0
      %9208 = vmatpush1.msra.mxu0 %v9112
      %9209 = vmatprep.subr.mxu0 0.0
      %9210 = vmatpush1.msra.mxu0 %v9114
      %9211 = vmatprep.subr.mxu0 0.0
      %9212 = vmatpush1.msra.mxu0 %v9116
      %9213 = vmatprep.subr.mxu0 0.0
      %9214 = vmatpush1.msra.mxu0 %v9118
      %9215 = vmatprep.subr.mxu0 0.0
      %9216 = vmatpush1.msra.mxu0 %v9120
      %9217 = vmatprep.subr.mxu0 0.0
      %9218 = vmatpush1.msra.mxu0 %v9122
      %9219 = vmatprep.subr.mxu0 0.0
      %9220 = vmatpush1.msra.mxu0 %v9124
      %9221 = vmatprep.subr.mxu0 0.0
      %9222 = vmatpush1.msra.mxu0 %v9126
      %9223 = vmatprep.subr.mxu0 0.0
      %9224 = vmatpush1.msra.mxu0 %v9128
      %9225 = vmatprep.subr.mxu0 0.0
      %9226 = vmatpush1.msra.mxu0 %v9130
      %9227 = vmatprep.subr.mxu0 0.0
      %9228 = vmatpush1.msra.mxu0 %v9132
      %9229 = vmatprep.subr.mxu0 0.0
      %9230 = vmatpush1.msra.mxu0 %v9134
      %9231 = vmatprep.subr.mxu0 0.0
      %9232 = vmatpush1.msra.mxu0 %v9136
      %9233 = vmatprep.subr.mxu0 0.0
      %9234 = vmatpush1.msra.mxu0 %v9138
      %9235 = vmatprep.subr.mxu0 0.0
      %9236 = vmatpush1.msra.mxu0 %v9140
      %9237 = vmatprep.subr.mxu0 0.0
      %9238 = vmatpush1.msra.mxu0 %v9142
      %9239 = vmatprep.subr.mxu0 0.0
      %9240 = vmatpush1.msra.mxu0 %v9144
      %9241 = vmatprep.subr.mxu0 0.0
      %9242 = vmatpush1.msra.mxu0 %v9146
      %9243 = vmatprep.subr.mxu0 0.0
      %9244 = vmatpush1.msra.mxu0 %v9148
      %9245 = vmatprep.subr.mxu0 0.0
      %9246 = vmatpush1.msra.mxu0 %v9150
      %9247 = vmatprep.subr.mxu0 0.0
      %9248 = vmatpush1.msra.mxu0 %v9152
      %9249 = vmatprep.subr.mxu0 0.0
      %9250 = vmatpush1.msra.mxu0 %v9154
      %9251 = vmatprep.subr.mxu0 0.0
      %9252 = vmatpush1.msra.mxu0 %v9156
      %9253 = vmatprep.subr.mxu0 0.0
      %9254 = vmatpush1.msra.mxu0 %v9158
      %9255 = vmatprep.subr.mxu0 0.0
      %9256 = vmatpush1.msra.mxu0 %v9160
      %9257 = vmatprep.subr.mxu0 0.0
      %9258 = vmatpush1.msra.mxu0 %v9162
      %9259 = vmatprep.subr.mxu0 0.0
      %9260 = vmatpush1.msra.mxu0 %v9164
      %9261 = vmatprep.subr.mxu0 0.0
      %9262 = vmatpush1.msra.mxu0 %v9166
      %9263 = vmatprep.subr.mxu0 0.0
      %9264 = vmatpush1.msra.mxu0 %v9168
      %9265 = vmatprep.subr.mxu0 0.0
      %9266 = vmatpush1.msra.mxu0 %v9170
      %9267 = vmatprep.mubr.f32.mxu0 %v8886
      %9268 = vmatmul.mubr.f32.gmra.mrb[0].mxu0 %v8884
      %v9269 = vpop.f32.mrb[0].mxu0
      %v9270 = vadd.f32 0.0, %v9269
      %v9271 = vpop.f32.mrb[0].mxu0
      %9272 = vmatprep.mubr.f32.mxu0 %v8890
      %9273 = vmatmul.mubr.f32.gmra.mrb[0].mxu0 %v8888
      %v9274 = vpop.f32.mrb[0].mxu0
      %v9275 = vadd.f32 0.0, %v9274
      %v9276 = vpop.f32.mrb[0].mxu0
      %9277 = vmatprep.mubr.f32.mxu0 %v8894
      %9278 = vmatmul.mubr.f32.gmra.mrb[0].mxu0 %v8892
      %v9279 = vpop.f32.mrb[0].mxu0
      %v9280 = vadd.f32 0.0, %v9279
      %v9281 = vpop.f32.mrb[0].mxu0
      %9282 = vmatprep.mubr.f32.mxu0 %v8898
      %9283 = vmatmul.mubr.f32.gmra.mrb[0].mxu0 %v8896
      %v9284 = vpop.f32.mrb[0].mxu0
      %v9285 = vadd.f32 0.0, %v9284
      %v9286 = vpop.f32.mrb[0].mxu0
      %9287 = vmatprep.mubr.f32.mxu0 %v8902
      %9288 = vmatmul.mubr.f32.gmra.mrb[0].mxu0 %v8900
      %v9289 = vpop.f32.mrb[0].mxu0
      %v9290 = vadd.f32 0.0, %v9289
      %v9291 = vpop.f32.mrb[0].mxu0
      %9292 = vmatprep.mubr.f32.mxu0 %v8906
      %9293 = vmatmul.mubr.f32.gmra.mrb[0].mxu0 %v8904
      %v9294 = vpop.f32.mrb[0].mxu0
      %v9295 = vadd.f32 0.0, %v9294
      %v9296 = vpop.f32.mrb[0].mxu0
      %9297 = vmatprep.mubr.f32.mxu0 %v8910
      %9298 = vmatmul.mubr.f32.gmra.mrb[0].mxu0 %v8908
      %v9299 = vpop.f32.mrb[0].mxu0
      %v9300 = vadd.f32 0.0, %v9299
      %v9301 = vpop.f32.mrb[0].mxu0
      %9302 = vmatprep.mubr.f32.mxu0 %v8914
      %9303 = vmatmul.mubr.f32.gmra.mrb[0].mxu0 %v8912
      %v9304 = vpop.f32.mrb[0].mxu0
      %v9305 = vadd.f32 0.0, %v9304
      %v9306 = vpop.f32.mrb[0].mxu0
      %9307 = vmatprep.mubr.f32.mxu0 %v8918
      %9308 = vmatmul.mubr.f32.gmra.mrb[0].mxu0 %v8916
      %v9309 = vpop.f32.mrb[0].mxu0
      %v9310 = vadd.f32 0.0, %v9309
      %v9311 = vpop.f32.mrb[0].mxu0
      %9312 = vmatprep.mubr.f32.mxu0 %v8922
      %9313 = vmatmul.mubr.f32.gmra.mrb[0].mxu0 %v8920
      %v9314 = vpop.f32.mrb[0].mxu0
      %v9315 = vadd.f32 0.0, %v9314
      %v9316 = vpop.f32.mrb[0].mxu0
      %9317 = vmatprep.mubr.f32.mxu0 %v8926
      %9318 = vmatmul.mubr.f32.gmra.mrb[0].mxu0 %v8924
      %v9319 = vpop.f32.mrb[0].mxu0
      %v9320 = vadd.f32 0.0, %v9319
      %v9321 = vpop.f32.mrb[0].mxu0
      %9322 = vmatprep.mubr.f32.mxu0 %v8930
      %9323 = vmatmul.mubr.f32.gmra.mrb[0].mxu0 %v8928
      %v9324 = vpop.f32.mrb[0].mxu0
      %v9325 = vadd.f32 0.0, %v9324
      %v9326 = vpop.f32.mrb[0].mxu0
      %9327 = vmatprep.mubr.f32.mxu0 %v8934
      %9328 = vmatmul.mubr.f32.gmra.mrb[0].mxu0 %v8932
      %v9329 = vpop.f32.mrb[0].mxu0
      %v9330 = vadd.f32 0.0, %v9329
      %v9331 = vpop.f32.mrb[0].mxu0
      %9332 = vmatprep.mubr.f32.mxu0 %v8938
      %9333 = vmatmul.mubr.f32.gmra.mrb[0].mxu0 %v8936
      %v9334 = vpop.f32.mrb[0].mxu0
      %v9335 = vadd.f32 0.0, %v9334
      %v9336 = vpop.f32.mrb[0].mxu0
      %9337 = vmatprep.mubr.f32.mxu0 %v8942
      %9338 = vmatmul.mubr.f32.gmra.mrb[0].mxu0 %v8940
      %v9339 = vpop.f32.mrb[0].mxu0
      %v9340 = vadd.f32 0.0, %v9339
      %v9341 = vpop.f32.mrb[0].mxu0
      %9342 = vmatprep.mubr.f32.mxu0 %v8946
      %9343 = vmatmul.mubr.f32.gmra.mrb[0].mxu0 %v8944
      %v9344 = vpop.f32.mrb[0].mxu0
      %v9345 = vadd.f32 0.0, %v9344
      %v9346 = vpop.f32.mrb[0].mxu0
      %9347 = vmatprep.mubr.f32.mxu0 %v8950
      %9348 = vmatmul.mubr.f32.gmra.mrb[0].mxu0 %v8948
      %v9349 = vpop.f32.mrb[0].mxu0
      %v9350 = vadd.f32 0.0, %v9349
      %v9351 = vpop.f32.mrb[0].mxu0
      %9352 = vmatprep.mubr.f32.mxu0 %v8954
      %9353 = vmatmul.mubr.f32.gmra.mrb[0].mxu0 %v8952
      %v9354 = vpop.f32.mrb[0].mxu0
      %v9355 = vadd.f32 0.0, %v9354
      %v9356 = vpop.f32.mrb[0].mxu0
      %9357 = vmatprep.mubr.f32.mxu0 %v8958
      %9358 = vmatmul.mubr.f32.gmra.mrb[0].mxu0 %v8956
      %v9359 = vpop.f32.mrb[0].mxu0
      %v9360 = vadd.f32 0.0, %v9359
      %v9361 = vpop.f32.mrb[0].mxu0
      %9362 = vmatprep.mubr.f32.mxu0 %v8962
      %9363 = vmatmul.mubr.f32.gmra.mrb[0].mxu0 %v8960
      %v9364 = vpop.f32.mrb[0].mxu0
      %v9365 = vadd.f32 0.0, %v9364
      %v9366 = vpop.f32.mrb[0].mxu0
      %9367 = vmatprep.mubr.f32.mxu0 %v8966
      %9368 = vmatmul.mubr.f32.gmra.mrb[0].mxu0 %v8964
      %v9369 = vpop.f32.mrb[0].mxu0
      %v9370 = vadd.f32 0.0, %v9369
      %v9371 = vpop.f32.mrb[0].mxu0
      %9372 = vmatprep.mubr.f32.mxu0 %v8970
      %9373 = vmatmul.mubr.f32.gmra.mrb[0].mxu0 %v8968
      %v9374 = vpop.f32.mrb[0].mxu0
      %v9375 = vadd.f32 0.0, %v9374
      %v9376 = vpop.f32.mrb[0].mxu0
      %9377 = vmatprep.mubr.f32.mxu0 %v8974
      %9378 = vmatmul.mubr.f32.gmra.mrb[0].mxu0 %v8972
      %v9379 = vpop.f32.mrb[0].mxu0
      %v9380 = vadd.f32 0.0, %v9379
      %v9381 = vpop.f32.mrb[0].mxu0
      %9382 = vmatprep.mubr.f32.mxu0 %v8978
      %9383 = vmatmul.mubr.f32.gmra.mrb[0].mxu0 %v8976
      %v9384 = vpop.f32.mrb[0].mxu0
      %v9385 = vadd.f32 0.0, %v9384
      %v9386 = vpop.f32.mrb[0].mxu0
      %9387 = vmatprep.mubr.f32.mxu0 %v8982
      %9388 = vmatmul.mubr.f32.gmra.mrb[0].mxu0 %v8980
      %v9389 = vpop.f32.mrb[0].mxu0
      %v9390 = vadd.f32 0.0, %v9389
      %v9391 = vpop.f32.mrb[0].mxu0
      %9392 = vmatprep.mubr.f32.mxu0 %v8986
      %9393 = vmatmul.mubr.f32.gmra.mrb[0].mxu0 %v8984
      %v9394 = vpop.f32.mrb[0].mxu0
      %v9395 = vadd.f32 0.0, %v9394
      %v9396 = vpop.f32.mrb[0].mxu0
      %9397 = vmatprep.mubr.f32.mxu0 %v8990
      %9398 = vmatmul.mubr.f32.gmra.mrb[0].mxu0 %v8988
      %v9399 = vpop.f32.mrb[0].mxu0
      %v9400 = vadd.f32 0.0, %v9399
      %v9401 = vpop.f32.mrb[0].mxu0
      %9402 = vmatprep.mubr.f32.mxu0 %v8994
      %9403 = vmatmul.mubr.f32.gmra.mrb[0].mxu0 %v8992
      %v9404 = vpop.f32.mrb[0].mxu0
      %v9405 = vadd.f32 0.0, %v9404
      %v9406 = vpop.f32.mrb[0].mxu0
      %9407 = vmatprep.mubr.f32.mxu0 %v8998
      %9408 = vmatmul.mubr.f32.gmra.mrb[0].mxu0 %v8996
      %v9409 = vpop.f32.mrb[0].mxu0
      %v9410 = vadd.f32 0.0, %v9409
      %v9411 = vpop.f32.mrb[0].mxu0
      %9412 = vmatprep.mubr.f32.mxu0 %v9002
      %9413 = vmatmul.mubr.f32.gmra.mrb[0].mxu0 %v9000
      %v9414 = vpop.f32.mrb[0].mxu0
      %v9415 = vadd.f32 0.0, %v9414
      %v9416 = vpop.f32.mrb[0].mxu0
      %9417 = vmatprep.mubr.f32.mxu0 %v9006
      %9418 = vmatmul.mubr.f32.gmra.mrb[0].mxu0 %v9004
      %v9419 = vpop.f32.mrb[0].mxu0
      %v9420 = vadd.f32 0.0, %v9419
      %v9421 = vpop.f32.mrb[0].mxu0
      %9422 = vmatprep.mubr.f32.mxu0 %v9010
      %9423 = vmatmul.mubr.f32.gmra.mrb[0].mxu0 %v9008
      %v9424 = vpop.f32.mrb[0].mxu0
      %v9425 = vadd.f32 0.0, %v9424
      %v9426 = vpop.f32.mrb[0].mxu0
      %9427 = vdwg.mxu0
      %v9428 = vrcp.pop %v9013
      %v9429 = vrcp.pop %v9016
      %v9430 = vrcp.pop %v9019
      %v9431 = vrcp.pop %v9022
      %v9432 = vrcp.pop %v9025
      %v9433 = vrcp.pop %v9028
      %v9434 = vrcp.pop %v9031
      %v9435 = vrcp.pop %v9034
      %v9436 = vrcp.pop %v9037
      %v9437 = vrcp.pop %v9040
      %v9438 = vrcp.pop %v9043
      %v9439 = vrcp.pop %v9046
      %v9440 = vrcp.pop %v9049
      %v9441 = vrcp.pop %v9052
      %v9442 = vrcp.pop %v9055
      %v9443 = vrcp.pop %v9058
      %v9444 = vrcp.pop %v9061
      %v9445 = vrcp.pop %v9064
      %v9446 = vrcp.pop %v9067
      %v9447 = vrcp.pop %v9070
      %v9448 = vrcp.pop %v9073
      %v9449 = vrcp.pop %v9076
      %v9450 = vrcp.pop %v9079
      %v9451 = vrcp.pop %v9082
      %v9452 = vrcp.pop %v9085
      %v9453 = vrcp.pop %v9088
      %v9454 = vrcp.pop %v9091
      %v9455 = vrcp.pop %v9094
      %v9456 = vrcp.pop %v9097
      %v9457 = vrcp.pop %v9100
      %v9458 = vrcp.pop %v9103
      %v9459 = vrcp.pop %v9106
      %v9460 = vmul.f32 %v9270, %v9428
      %v9461 = vmul.f32 %v9275, %v9429
      %v9462 = vmul.f32 %v9280, %v9430
      %v9463 = vmul.f32 %v9285, %v9431
      %v9464 = vmul.f32 %v9290, %v9432
      %v9465 = vmul.f32 %v9295, %v9433
      %v9466 = vmul.f32 %v9300, %v9434
      %v9467 = vmul.f32 %v9305, %v9435
      %v9468 = vmul.f32 %v9310, %v9436
      %v9469 = vmul.f32 %v9315, %v9437
      %v9470 = vmul.f32 %v9320, %v9438
      %v9471 = vmul.f32 %v9325, %v9439
      %v9472 = vmul.f32 %v9330, %v9440
      %v9473 = vmul.f32 %v9335, %v9441
      %v9474 = vmul.f32 %v9340, %v9442
      %v9475 = vmul.f32 %v9345, %v9443
      %v9476 = vmul.f32 %v9350, %v9444
      %v9477 = vmul.f32 %v9355, %v9445
      %v9478 = vmul.f32 %v9360, %v9446
      %v9479 = vmul.f32 %v9365, %v9447
      %v9480 = vmul.f32 %v9370, %v9448
      %v9481 = vmul.f32 %v9375, %v9449
      %v9482 = vmul.f32 %v9380, %v9450
      %v9483 = vmul.f32 %v9385, %v9451
      %v9484 = vmul.f32 %v9390, %v9452
      %v9485 = vmul.f32 %v9395, %v9453
      %v9486 = vmul.f32 %v9400, %v9454
      %v9487 = vmul.f32 %v9405, %v9455
      %v9488 = vmul.f32 %v9410, %v9456
      %v9489 = vmul.f32 %v9415, %v9457
      %v9490 = vmul.f32 %v9420, %v9458
      %v9491 = vmul.f32 %v9425, %v9459
      %9492 = vrot.lane.b32.xlu0 %v5293, 104
      %v9493 = vpop.permute.xlu0 %9492
      %9494 = vrot.lane.b32.xlu0 %v5294, 104
      %v9495 = vpop.permute.xlu0 %9494
      %9496 = vrot.lane.b32.xlu0 %v5295, 104
      %v9497 = vpop.permute.xlu0 %9496
      %9498 = vrot.lane.b32.xlu0 %v5296, 104
      %v9499 = vpop.permute.xlu0 %9498
      %9500 = vrot.lane.b32.xlu0 %v5297, 104
      %v9501 = vpop.permute.xlu0 %9500
      %9502 = vrot.lane.b32.xlu0 %v5298, 104
      %v9503 = vpop.permute.xlu0 %9502
      %9504 = vrot.lane.b32.xlu0 %v5299, 104
      %v9505 = vpop.permute.xlu0 %9504
      %9506 = vrot.lane.b32.xlu0 %v5300, 104
      %v9507 = vpop.permute.xlu0 %9506
      %9508 = vrot.lane.b32.xlu0 %v5301, 104
      %v9509 = vpop.permute.xlu0 %9508
      %9510 = vrot.lane.b32.xlu0 %v5302, 104
      %v9511 = vpop.permute.xlu0 %9510
      %9512 = vrot.lane.b32.xlu0 %v5303, 104
      %v9513 = vpop.permute.xlu0 %9512
      %9514 = vrot.lane.b32.xlu0 %v5304, 104
      %v9515 = vpop.permute.xlu0 %9514
      %9516 = vrot.lane.b32.xlu0 %v5305, 104
      %v9517 = vpop.permute.xlu0 %9516
      %9518 = vrot.lane.b32.xlu0 %v5306, 104
      %v9519 = vpop.permute.xlu0 %9518
      %9520 = vrot.lane.b32.xlu0 %v5307, 104
      %v9521 = vpop.permute.xlu0 %9520
      %9522 = vrot.lane.b32.xlu0 %v5308, 104
      %v9523 = vpop.permute.xlu0 %9522
      %9524 = vrot.lane.b32.xlu0 %v5309, 104
      %v9525 = vpop.permute.xlu0 %9524
      %9526 = vrot.lane.b32.xlu0 %v5310, 104
      %v9527 = vpop.permute.xlu0 %9526
      %9528 = vrot.lane.b32.xlu0 %v5311, 104
      %v9529 = vpop.permute.xlu0 %9528
      %9530 = vrot.lane.b32.xlu0 %v5312, 104
      %v9531 = vpop.permute.xlu0 %9530
      %9532 = vrot.lane.b32.xlu0 %v5313, 104
      %v9533 = vpop.permute.xlu0 %9532
      %9534 = vrot.lane.b32.xlu0 %v5314, 104
      %v9535 = vpop.permute.xlu0 %9534
      %9536 = vrot.lane.b32.xlu0 %v5315, 104
      %v9537 = vpop.permute.xlu0 %9536
      %9538 = vrot.lane.b32.xlu0 %v5316, 104
      %v9539 = vpop.permute.xlu0 %9538
      %9540 = vrot.lane.b32.xlu0 %v5317, 104
      %v9541 = vpop.permute.xlu0 %9540
      %9542 = vrot.lane.b32.xlu0 %v5318, 104
      %v9543 = vpop.permute.xlu0 %9542
      %9544 = vrot.lane.b32.xlu0 %v5319, 104
      %v9545 = vpop.permute.xlu0 %9544
      %9546 = vrot.lane.b32.xlu0 %v5320, 104
      %v9547 = vpop.permute.xlu0 %9546
      %9548 = vrot.lane.b32.xlu0 %v5321, 104
      %v9549 = vpop.permute.xlu0 %9548
      %9550 = vrot.lane.b32.xlu0 %v5322, 104
      %v9551 = vpop.permute.xlu0 %9550
      %9552 = vrot.lane.b32.xlu0 %v5323, 104
      %v9553 = vpop.permute.xlu0 %9552
      %9554 = vrot.lane.b32.xlu0 %v5324, 104
      %v9555 = vpop.permute.xlu0 %9554
      %9556 = vrot.lane.b32.xlu0 %v5552, 104
      %v9557 = vpop.permute.xlu0 %9556
      %9558 = vrot.lane.b32.xlu0 %v5557, 104
      %v9559 = vpop.permute.xlu0 %9558
      %9560 = vrot.lane.b32.xlu0 %v5562, 104
      %v9561 = vpop.permute.xlu0 %9560
      %9562 = vrot.lane.b32.xlu0 %v5567, 104
      %v9563 = vpop.permute.xlu0 %9562
      %9564 = vrot.lane.b32.xlu0 %v5572, 104
      %v9565 = vpop.permute.xlu0 %9564
      %9566 = vrot.lane.b32.xlu0 %v5577, 104
      %v9567 = vpop.permute.xlu0 %9566
      %9568 = vrot.lane.b32.xlu0 %v5582, 104
      %v9569 = vpop.permute.xlu0 %9568
      %9570 = vrot.lane.b32.xlu0 %v5587, 104
      %v9571 = vpop.permute.xlu0 %9570
      %9572 = vrot.lane.b32.xlu0 %v5592, 104
      %v9573 = vpop.permute.xlu0 %9572
      %9574 = vrot.lane.b32.xlu0 %v5597, 104
      %v9575 = vpop.permute.xlu0 %9574
      %9576 = vrot.lane.b32.xlu0 %v5602, 104
      %v9577 = vpop.permute.xlu0 %9576
      %9578 = vrot.lane.b32.xlu0 %v5607, 104
      %v9579 = vpop.permute.xlu0 %9578
      %9580 = vrot.lane.b32.xlu0 %v5612, 104
      %v9581 = vpop.permute.xlu0 %9580
      %9582 = vrot.lane.b32.xlu0 %v5617, 104
      %v9583 = vpop.permute.xlu0 %9582
      %9584 = vrot.lane.b32.xlu0 %v5622, 104
      %v9585 = vpop.permute.xlu0 %9584
      %9586 = vrot.lane.b32.xlu0 %v5627, 104
      %v9587 = vpop.permute.xlu0 %9586
      %9588 = vrot.lane.b32.xlu0 %v5632, 104
      %v9589 = vpop.permute.xlu0 %9588
      %9590 = vrot.lane.b32.xlu0 %v5637, 104
      %v9591 = vpop.permute.xlu0 %9590
      %9592 = vrot.lane.b32.xlu0 %v5642, 104
      %v9593 = vpop.permute.xlu0 %9592
      %9594 = vrot.lane.b32.xlu0 %v5647, 104
      %v9595 = vpop.permute.xlu0 %9594
      %9596 = vrot.lane.b32.xlu0 %v5652, 104
      %v9597 = vpop.permute.xlu0 %9596
      %9598 = vrot.lane.b32.xlu0 %v5657, 104
      %v9599 = vpop.permute.xlu0 %9598
      %9600 = vrot.lane.b32.xlu0 %v5662, 104
      %v9601 = vpop.permute.xlu0 %9600
      %9602 = vrot.lane.b32.xlu0 %v5667, 104
      %v9603 = vpop.permute.xlu0 %9602
      %9604 = vrot.lane.b32.xlu0 %v5672, 104
      %v9605 = vpop.permute.xlu0 %9604
      %9606 = vrot.lane.b32.xlu0 %v5677, 104
      %v9607 = vpop.permute.xlu0 %9606
      %9608 = vrot.lane.b32.xlu0 %v5682, 104
      %v9609 = vpop.permute.xlu0 %9608
      %9610 = vrot.lane.b32.xlu0 %v5687, 104
      %v9611 = vpop.permute.xlu0 %9610
      %9612 = vrot.lane.b32.xlu0 %v5692, 104
      %v9613 = vpop.permute.xlu0 %9612
      %9614 = vrot.lane.b32.xlu0 %v5697, 104
      %v9615 = vpop.permute.xlu0 %9614
      %9616 = vrot.lane.b32.xlu0 %v5702, 104
      %v9617 = vpop.permute.xlu0 %9616
      %9618 = vrot.lane.b32.xlu0 %v5707, 104
      %v9619 = vpop.permute.xlu0 %9618
      %v9620 = vsel %vm906, %v9493, 0
      %v9622 = vsel %vm906, %v9495, 0
      %v9624 = vsel %vm906, %v9497, 0
      %v9626 = vsel %vm906, %v9499, 0
      %v9628 = vsel %vm906, %v9501, 0
      %v9630 = vsel %vm906, %v9503, 0
      %v9632 = vsel %vm906, %v9505, 0
      %v9634 = vsel %vm906, %v9507, 0
      %v9636 = vsel %vm906, %v9509, 0
      %v9638 = vsel %vm906, %v9511, 0
      %v9640 = vsel %vm906, %v9513, 0
      %v9642 = vsel %vm906, %v9515, 0
      %v9644 = vsel %vm906, %v9517, 0
      %v9646 = vsel %vm906, %v9519, 0
      %v9648 = vsel %vm906, %v9521, 0
      %v9650 = vsel %vm906, %v9523, 0
      %v9652 = vsel %vm906, %v9525, 0
      %v9654 = vsel %vm906, %v9527, 0
      %v9656 = vsel %vm906, %v9529, 0
      %v9658 = vsel %vm906, %v9531, 0
      %v9660 = vsel %vm906, %v9533, 0
      %v9662 = vsel %vm906, %v9535, 0
      %v9664 = vsel %vm906, %v9537, 0
      %v9666 = vsel %vm906, %v9539, 0
      %v9668 = vsel %vm906, %v9541, 0
      %v9670 = vsel %vm906, %v9543, 0
      %v9672 = vsel %vm906, %v9545, 0
      %v9674 = vsel %vm906, %v9547, 0
      %v9676 = vsel %vm906, %v9549, 0
      %v9678 = vsel %vm906, %v9551, 0
      %v9680 = vsel %vm906, %v9553, 0
      %v9682 = vsel %vm906, %v9555, 0
      %v9684 = vsel %vm906, %v9557, 0
      %v9686 = vsel %vm906, %v9559, 0
      %v9688 = vsel %vm906, %v9561, 0
      %v9690 = vsel %vm906, %v9563, 0
      %v9692 = vsel %vm906, %v9565, 0
      %v9694 = vsel %vm906, %v9567, 0
      %v9696 = vsel %vm906, %v9569, 0
      %v9698 = vsel %vm906, %v9571, 0
      %v9700 = vsel %vm906, %v9573, 0
      %v9702 = vsel %vm906, %v9575, 0
      %v9704 = vsel %vm906, %v9577, 0
      %v9706 = vsel %vm906, %v9579, 0
      %v9708 = vsel %vm906, %v9581, 0
      %v9710 = vsel %vm906, %v9583, 0
      %v9712 = vsel %vm906, %v9585, 0
      %v9714 = vsel %vm906, %v9587, 0
      %v9716 = vsel %vm906, %v9589, 0
      %v9718 = vsel %vm906, %v9591, 0
      %v9720 = vsel %vm906, %v9593, 0
      %v9722 = vsel %vm906, %v9595, 0
      %v9724 = vsel %vm906, %v9597, 0
      %v9726 = vsel %vm906, %v9599, 0
      %v9728 = vsel %vm906, %v9601, 0
      %v9730 = vsel %vm906, %v9603, 0
      %v9732 = vsel %vm906, %v9605, 0
      %v9734 = vsel %vm906, %v9607, 0
      %v9736 = vsel %vm906, %v9609, 0
      %v9738 = vsel %vm906, %v9611, 0
      %v9740 = vsel %vm906, %v9613, 0
      %v9742 = vsel %vm906, %v9615, 0
      %v9744 = vsel %vm906, %v9617, 0
      %v9746 = vsel %vm906, %v9619, 0
      %9748 = vmatprep.subr.mxu0 0.0
      %9749 = vmatpush1.xpose.msra.mxu0 %v9684
      %9750 = vmatprep.subr.mxu0 0.0
      %9751 = vmatpush1.xpose.msra.mxu0 %v9686
      %9752 = vmatprep.subr.mxu0 0.0
      %9753 = vmatpush1.xpose.msra.mxu0 %v9688
      %9754 = vmatprep.subr.mxu0 0.0
      %9755 = vmatpush1.xpose.msra.mxu0 %v9690
      %9756 = vmatprep.subr.mxu0 0.0
      %9757 = vmatpush1.xpose.msra.mxu0 %v9692
      %9758 = vmatprep.subr.mxu0 0.0
      %9759 = vmatpush1.xpose.msra.mxu0 %v9694
      %9760 = vmatprep.subr.mxu0 0.0
      %9761 = vmatpush1.xpose.msra.mxu0 %v9696
      %9762 = vmatprep.subr.mxu0 0.0
      %9763 = vmatpush1.xpose.msra.mxu0 %v9698
      %9764 = vmatprep.subr.mxu0 0.0
      %9765 = vmatpush1.xpose.msra.mxu0 %v9700
      %9766 = vmatprep.subr.mxu0 0.0
      %9767 = vmatpush1.xpose.msra.mxu0 %v9702
      %9768 = vmatprep.subr.mxu0 0.0
      %9769 = vmatpush1.xpose.msra.mxu0 %v9704
      %9770 = vmatprep.subr.mxu0 0.0
      %9771 = vmatpush1.xpose.msra.mxu0 %v9706
      %9772 = vmatprep.subr.mxu0 0.0
      %9773 = vmatpush1.xpose.msra.mxu0 %v9708
      %9774 = vmatprep.subr.mxu0 0.0
      %9775 = vmatpush1.xpose.msra.mxu0 %v9710
      %9776 = vmatprep.subr.mxu0 0.0
      %9777 = vmatpush1.xpose.msra.mxu0 %v9712
      %9778 = vmatprep.subr.mxu0 0.0
      %9779 = vmatpush1.xpose.msra.mxu0 %v9714
      %9780 = vmatprep.subr.mxu0 0.0
      %9781 = vmatpush1.xpose.msra.mxu0 %v9716
      %9782 = vmatprep.subr.mxu0 0.0
      %9783 = vmatpush1.xpose.msra.mxu0 %v9718
      %9784 = vmatprep.subr.mxu0 0.0
      %9785 = vmatpush1.xpose.msra.mxu0 %v9720
      %9786 = vmatprep.subr.mxu0 0.0
      %9787 = vmatpush1.xpose.msra.mxu0 %v9722
      %9788 = vmatprep.subr.mxu0 0.0
      %9789 = vmatpush1.xpose.msra.mxu0 %v9724
      %9790 = vmatprep.subr.mxu0 0.0
      %9791 = vmatpush1.xpose.msra.mxu0 %v9726
      %9792 = vmatprep.subr.mxu0 0.0
      %9793 = vmatpush1.xpose.msra.mxu0 %v9728
      %9794 = vmatprep.subr.mxu0 0.0
      %9795 = vmatpush1.xpose.msra.mxu0 %v9730
      %9796 = vmatprep.subr.mxu0 0.0
      %9797 = vmatpush1.xpose.msra.mxu0 %v9732
      %9798 = vmatprep.subr.mxu0 0.0
      %9799 = vmatpush1.xpose.msra.mxu0 %v9734
      %9800 = vmatprep.subr.mxu0 0.0
      %9801 = vmatpush1.xpose.msra.mxu0 %v9736
      %9802 = vmatprep.subr.mxu0 0.0
      %9803 = vmatpush1.xpose.msra.mxu0 %v9738
      %9804 = vmatprep.subr.mxu0 0.0
      %9805 = vmatpush1.xpose.msra.mxu0 %v9740
      %9806 = vmatprep.subr.mxu0 0.0
      %9807 = vmatpush1.xpose.msra.mxu0 %v9742
      %9808 = vmatprep.subr.mxu0 0.0
      %9809 = vmatpush1.xpose.msra.mxu0 %v9744
      %9810 = vmatprep.subr.mxu0 0.0
      %9811 = vmatpush1.xpose.msra.mxu0 %v9746
      %9812 = vmatprep.mubr.f32.mxu0 0.0
      %9813 = vmatmul.mubr.f32.gmra.mrb[0].mxu0 %v9620
      %v9814 = vpop.f32.mrb[0].mxu0
      %v9815 = vadd.f32 0.0, %v9814
      %v9816 = vpop.f32.mrb[0].mxu0
      %v9817 = vadd.f32 0.0, %v9816
      %9818 = vmatprep.mubr.f32.mxu0 0.0
      %9819 = vmatmul.mubr.f32.gmra.mrb[0].mxu0 %v9622
      %v9820 = vpop.f32.mrb[0].mxu0
      %v9821 = vadd.f32 0.0, %v9820
      %v9822 = vpop.f32.mrb[0].mxu0
      %v9823 = vadd.f32 0.0, %v9822
      %9824 = vmatprep.mubr.f32.mxu0 0.0
      %9825 = vmatmul.mubr.f32.gmra.mrb[0].mxu0 %v9624
      %v9826 = vpop.f32.mrb[0].mxu0
      %v9827 = vadd.f32 0.0, %v9826
      %v9828 = vpop.f32.mrb[0].mxu0
      %v9829 = vadd.f32 0.0, %v9828
      %9830 = vmatprep.mubr.f32.mxu0 0.0
      %9831 = vmatmul.mubr.f32.gmra.mrb[0].mxu0 %v9626
      %v9832 = vpop.f32.mrb[0].mxu0
      %v9833 = vadd.f32 0.0, %v9832
      %v9834 = vpop.f32.mrb[0].mxu0
      %v9835 = vadd.f32 0.0, %v9834
      %9836 = vmatprep.mubr.f32.mxu0 0.0
      %9837 = vmatmul.mubr.f32.gmra.mrb[0].mxu0 %v9628
      %v9838 = vpop.f32.mrb[0].mxu0
      %v9839 = vadd.f32 0.0, %v9838
      %v9840 = vpop.f32.mrb[0].mxu0
      %v9841 = vadd.f32 0.0, %v9840
      %9842 = vmatprep.mubr.f32.mxu0 0.0
      %9843 = vmatmul.mubr.f32.gmra.mrb[0].mxu0 %v9630
      %v9844 = vpop.f32.mrb[0].mxu0
      %v9845 = vadd.f32 0.0, %v9844
      %v9846 = vpop.f32.mrb[0].mxu0
      %v9847 = vadd.f32 0.0, %v9846
      %9848 = vmatprep.mubr.f32.mxu0 0.0
      %9849 = vmatmul.mubr.f32.gmra.mrb[0].mxu0 %v9632
      %v9850 = vpop.f32.mrb[0].mxu0
      %v9851 = vadd.f32 0.0, %v9850
      %v9852 = vpop.f32.mrb[0].mxu0
      %v9853 = vadd.f32 0.0, %v9852
      %9854 = vmatprep.mubr.f32.mxu0 0.0
      %9855 = vmatmul.mubr.f32.gmra.mrb[0].mxu0 %v9634
      %v9856 = vpop.f32.mrb[0].mxu0
      %v9857 = vadd.f32 0.0, %v9856
      %v9858 = vpop.f32.mrb[0].mxu0
      %v9859 = vadd.f32 0.0, %v9858
      %9860 = vmatprep.mubr.f32.mxu0 0.0
      %9861 = vmatmul.mubr.f32.gmra.mrb[0].mxu0 %v9636
      %v9862 = vpop.f32.mrb[0].mxu0
      %v9863 = vadd.f32 0.0, %v9862
      %v9864 = vpop.f32.mrb[0].mxu0
      %v9865 = vadd.f32 0.0, %v9864
      %9866 = vmatprep.mubr.f32.mxu0 0.0
      %9867 = vmatmul.mubr.f32.gmra.mrb[0].mxu0 %v9638
      %v9868 = vpop.f32.mrb[0].mxu0
      %v9869 = vadd.f32 0.0, %v9868
      %v9870 = vpop.f32.mrb[0].mxu0
      %v9871 = vadd.f32 0.0, %v9870
      %9872 = vmatprep.mubr.f32.mxu0 0.0
      %9873 = vmatmul.mubr.f32.gmra.mrb[0].mxu0 %v9640
      %v9874 = vpop.f32.mrb[0].mxu0
      %v9875 = vadd.f32 0.0, %v9874
      %v9876 = vpop.f32.mrb[0].mxu0
      %v9877 = vadd.f32 0.0, %v9876
      %9878 = vmatprep.mubr.f32.mxu0 0.0
      %9879 = vmatmul.mubr.f32.gmra.mrb[0].mxu0 %v9642
      %v9880 = vpop.f32.mrb[0].mxu0
      %v9881 = vadd.f32 0.0, %v9880
      %v9882 = vpop.f32.mrb[0].mxu0
      %v9883 = vadd.f32 0.0, %v9882
      %9884 = vmatprep.mubr.f32.mxu0 0.0
      %9885 = vmatmul.mubr.f32.gmra.mrb[0].mxu0 %v9644
      %v9886 = vpop.f32.mrb[0].mxu0
      %v9887 = vadd.f32 0.0, %v9886
      %v9888 = vpop.f32.mrb[0].mxu0
      %v9889 = vadd.f32 0.0, %v9888
      %9890 = vmatprep.mubr.f32.mxu0 0.0
      %9891 = vmatmul.mubr.f32.gmra.mrb[0].mxu0 %v9646
      %v9892 = vpop.f32.mrb[0].mxu0
      %v9893 = vadd.f32 0.0, %v9892
      %v9894 = vpop.f32.mrb[0].mxu0
      %v9895 = vadd.f32 0.0, %v9894
      %9896 = vmatprep.mubr.f32.mxu0 0.0
      %9897 = vmatmul.mubr.f32.gmra.mrb[0].mxu0 %v9648
      %v9898 = vpop.f32.mrb[0].mxu0
      %v9899 = vadd.f32 0.0, %v9898
      %v9900 = vpop.f32.mrb[0].mxu0
      %v9901 = vadd.f32 0.0, %v9900
      %9902 = vmatprep.mubr.f32.mxu0 0.0
      %9903 = vmatmul.mubr.f32.gmra.mrb[0].mxu0 %v9650
      %v9904 = vpop.f32.mrb[0].mxu0
      %v9905 = vadd.f32 0.0, %v9904
      %v9906 = vpop.f32.mrb[0].mxu0
      %v9907 = vadd.f32 0.0, %v9906
      %9908 = vmatprep.mubr.f32.mxu0 0.0
      %9909 = vmatmul.mubr.f32.gmra.mrb[0].mxu0 %v9652
      %v9910 = vpop.f32.mrb[0].mxu0
      %v9911 = vadd.f32 0.0, %v9910
      %v9912 = vpop.f32.mrb[0].mxu0
      %v9913 = vadd.f32 0.0, %v9912
      %9914 = vmatprep.mubr.f32.mxu0 0.0
      %9915 = vmatmul.mubr.f32.gmra.mrb[0].mxu0 %v9654
      %v9916 = vpop.f32.mrb[0].mxu0
      %v9917 = vadd.f32 0.0, %v9916
      %v9918 = vpop.f32.mrb[0].mxu0
      %v9919 = vadd.f32 0.0, %v9918
      %9920 = vmatprep.mubr.f32.mxu0 0.0
      %9921 = vmatmul.mubr.f32.gmra.mrb[0].mxu0 %v9656
      %v9922 = vpop.f32.mrb[0].mxu0
      %v9923 = vadd.f32 0.0, %v9922
      %v9924 = vpop.f32.mrb[0].mxu0
      %v9925 = vadd.f32 0.0, %v9924
      %9926 = vmatprep.mubr.f32.mxu0 0.0
      %9927 = vmatmul.mubr.f32.gmra.mrb[0].mxu0 %v9658
      %v9928 = vpop.f32.mrb[0].mxu0
      %v9929 = vadd.f32 0.0, %v9928
      %v9930 = vpop.f32.mrb[0].mxu0
      %v9931 = vadd.f32 0.0, %v9930
      %9932 = vmatprep.mubr.f32.mxu0 0.0
      %9933 = vmatmul.mubr.f32.gmra.mrb[0].mxu0 %v9660
      %v9934 = vpop.f32.mrb[0].mxu0
      %v9935 = vadd.f32 0.0, %v9934
      %v9936 = vpop.f32.mrb[0].mxu0
      %v9937 = vadd.f32 0.0, %v9936
      %9938 = vmatprep.mubr.f32.mxu0 0.0
      %9939 = vmatmul.mubr.f32.gmra.mrb[0].mxu0 %v9662
      %v9940 = vpop.f32.mrb[0].mxu0
      %v9941 = vadd.f32 0.0, %v9940
      %v9942 = vpop.f32.mrb[0].mxu0
      %v9943 = vadd.f32 0.0, %v9942
      %9944 = vmatprep.mubr.f32.mxu0 0.0
      %9945 = vmatmul.mubr.f32.gmra.mrb[0].mxu0 %v9664
      %v9946 = vpop.f32.mrb[0].mxu0
      %v9947 = vadd.f32 0.0, %v9946
      %v9948 = vpop.f32.mrb[0].mxu0
      %v9949 = vadd.f32 0.0, %v9948
      %9950 = vmatprep.mubr.f32.mxu0 0.0
      %9951 = vmatmul.mubr.f32.gmra.mrb[0].mxu0 %v9666
      %v9952 = vpop.f32.mrb[0].mxu0
      %v9953 = vadd.f32 0.0, %v9952
      %v9954 = vpop.f32.mrb[0].mxu0
      %v9955 = vadd.f32 0.0, %v9954
      %9956 = vmatprep.mubr.f32.mxu0 0.0
      %9957 = vmatmul.mubr.f32.gmra.mrb[0].mxu0 %v9668
      %v9958 = vpop.f32.mrb[0].mxu0
      %v9959 = vadd.f32 0.0, %v9958
      %v9960 = vpop.f32.mrb[0].mxu0
      %v9961 = vadd.f32 0.0, %v9960
      %9962 = vmatprep.mubr.f32.mxu0 0.0
      %9963 = vmatmul.mubr.f32.gmra.mrb[0].mxu0 %v9670
      %v9964 = vpop.f32.mrb[0].mxu0
      %v9965 = vadd.f32 0.0, %v9964
      %v9966 = vpop.f32.mrb[0].mxu0
      %v9967 = vadd.f32 0.0, %v9966
      %9968 = vmatprep.mubr.f32.mxu0 0.0
      %9969 = vmatmul.mubr.f32.gmra.mrb[0].mxu0 %v9672
      %v9970 = vpop.f32.mrb[0].mxu0
      %v9971 = vadd.f32 0.0, %v9970
      %v9972 = vpop.f32.mrb[0].mxu0
      %v9973 = vadd.f32 0.0, %v9972
      %9974 = vmatprep.mubr.f32.mxu0 0.0
      %9975 = vmatmul.mubr.f32.gmra.mrb[0].mxu0 %v9674
      %v9976 = vpop.f32.mrb[0].mxu0
      %v9977 = vadd.f32 0.0, %v9976
      %v9978 = vpop.f32.mrb[0].mxu0
      %v9979 = vadd.f32 0.0, %v9978
      %9980 = vmatprep.mubr.f32.mxu0 0.0
      %9981 = vmatmul.mubr.f32.gmra.mrb[0].mxu0 %v9676
      %v9982 = vpop.f32.mrb[0].mxu0
      %v9983 = vadd.f32 0.0, %v9982
      %v9984 = vpop.f32.mrb[0].mxu0
      %v9985 = vadd.f32 0.0, %v9984
      %9986 = vmatprep.mubr.f32.mxu0 0.0
      %9987 = vmatmul.mubr.f32.gmra.mrb[0].mxu0 %v9678
      %v9988 = vpop.f32.mrb[0].mxu0
      %v9989 = vadd.f32 0.0, %v9988
      %v9990 = vpop.f32.mrb[0].mxu0
      %v9991 = vadd.f32 0.0, %v9990
      %9992 = vmatprep.mubr.f32.mxu0 0.0
      %9993 = vmatmul.mubr.f32.gmra.mrb[0].mxu0 %v9680
      %v9994 = vpop.f32.mrb[0].mxu0
      %v9995 = vadd.f32 0.0, %v9994
      %v9996 = vpop.f32.mrb[0].mxu0
      %v9997 = vadd.f32 0.0, %v9996
      %9998 = vmatprep.mubr.f32.mxu0 0.0
      %9999 = vmatmul.mubr.f32.gmra.mrb[0].mxu0 %v9682
      %v10000 = vpop.f32.mrb[0].mxu0
      %v10001 = vadd.f32 0.0, %v10000
      %v10002 = vpop.f32.mrb[0].mxu0
      %v10003 = vadd.f32 0.0, %v10002
      %10004 = vdwg.mxu0
      %v10005 = vmax.f32 %v9815, %v9817
      %10006 = vmax.xlane.f32.xlu0 %v10005
      %v10007 = vpop.xlane.xlu0 %10006
      %v10008 = vmax.f32 %v9821, %v9823
      %10009 = vmax.xlane.f32.xlu0 %v10008
      %v10010 = vpop.xlane.xlu0 %10009
      %v10011 = vmax.f32 %v9827, %v9829
      %10012 = vmax.xlane.f32.xlu0 %v10011
      %v10013 = vpop.xlane.xlu0 %10012
      %v10014 = vmax.f32 %v9833, %v9835
      %10015 = vmax.xlane.f32.xlu0 %v10014
      %v10016 = vpop.xlane.xlu0 %10015
      %v10017 = vmax.f32 %v9839, %v9841
      %10018 = vmax.xlane.f32.xlu0 %v10017
      %v10019 = vpop.xlane.xlu0 %10018
      %v10020 = vmax.f32 %v9845, %v9847
      %10021 = vmax.xlane.f32.xlu0 %v10020
      %v10022 = vpop.xlane.xlu0 %10021
      %v10023 = vmax.f32 %v9851, %v9853
      %10024 = vmax.xlane.f32.xlu0 %v10023
      %v10025 = vpop.xlane.xlu0 %10024
      %v10026 = vmax.f32 %v9857, %v9859
      %10027 = vmax.xlane.f32.xlu0 %v10026
      %v10028 = vpop.xlane.xlu0 %10027
      %v10029 = vmax.f32 %v9863, %v9865
      %10030 = vmax.xlane.f32.xlu0 %v10029
      %v10031 = vpop.xlane.xlu0 %10030
      %v10032 = vmax.f32 %v9869, %v9871
      %10033 = vmax.xlane.f32.xlu0 %v10032
      %v10034 = vpop.xlane.xlu0 %10033
      %v10035 = vmax.f32 %v9875, %v9877
      %10036 = vmax.xlane.f32.xlu0 %v10035
      %v10037 = vpop.xlane.xlu0 %10036
      %v10038 = vmax.f32 %v9881, %v9883
      %10039 = vmax.xlane.f32.xlu0 %v10038
      %v10040 = vpop.xlane.xlu0 %10039
      %v10041 = vmax.f32 %v9887, %v9889
      %10042 = vmax.xlane.f32.xlu0 %v10041
      %v10043 = vpop.xlane.xlu0 %10042
      %v10044 = vmax.f32 %v9893, %v9895
      %10045 = vmax.xlane.f32.xlu0 %v10044
      %v10046 = vpop.xlane.xlu0 %10045
      %v10047 = vmax.f32 %v9899, %v9901
      %10048 = vmax.xlane.f32.xlu0 %v10047
      %v10049 = vpop.xlane.xlu0 %10048
      %v10050 = vmax.f32 %v9905, %v9907
      %10051 = vmax.xlane.f32.xlu0 %v10050
      %v10052 = vpop.xlane.xlu0 %10051
      %v10053 = vmax.f32 %v9911, %v9913
      %10054 = vmax.xlane.f32.xlu0 %v10053
      %v10055 = vpop.xlane.xlu0 %10054
      %v10056 = vmax.f32 %v9917, %v9919
      %10057 = vmax.xlane.f32.xlu0 %v10056
      %v10058 = vpop.xlane.xlu0 %10057
      %v10059 = vmax.f32 %v9923, %v9925
      %10060 = vmax.xlane.f32.xlu0 %v10059
      %v10061 = vpop.xlane.xlu0 %10060
      %v10062 = vmax.f32 %v9929, %v9931
      %10063 = vmax.xlane.f32.xlu0 %v10062
      %v10064 = vpop.xlane.xlu0 %10063
      %v10065 = vmax.f32 %v9935, %v9937
      %10066 = vmax.xlane.f32.xlu0 %v10065
      %v10067 = vpop.xlane.xlu0 %10066
      %v10068 = vmax.f32 %v9941, %v9943
      %10069 = vmax.xlane.f32.xlu0 %v10068
      %v10070 = vpop.xlane.xlu0 %10069
      %v10071 = vmax.f32 %v9947, %v9949
      %10072 = vmax.xlane.f32.xlu0 %v10071
      %v10073 = vpop.xlane.xlu0 %10072
      %v10074 = vmax.f32 %v9953, %v9955
      %10075 = vmax.xlane.f32.xlu0 %v10074
      %v10076 = vpop.xlane.xlu0 %10075
      %v10077 = vmax.f32 %v9959, %v9961
      %10078 = vmax.xlane.f32.xlu0 %v10077
      %v10079 = vpop.xlane.xlu0 %10078
      %v10080 = vmax.f32 %v9965, %v9967
      %10081 = vmax.xlane.f32.xlu0 %v10080
      %v10082 = vpop.xlane.xlu0 %10081
      %v10083 = vmax.f32 %v9971, %v9973
      %10084 = vmax.xlane.f32.xlu0 %v10083
      %v10085 = vpop.xlane.xlu0 %10084
      %v10086 = vmax.f32 %v9977, %v9979
      %10087 = vmax.xlane.f32.xlu0 %v10086
      %v10088 = vpop.xlane.xlu0 %10087
      %v10089 = vmax.f32 %v9983, %v9985
      %10090 = vmax.xlane.f32.xlu0 %v10089
      %v10091 = vpop.xlane.xlu0 %10090
      %v10092 = vmax.f32 %v9989, %v9991
      %10093 = vmax.xlane.f32.xlu0 %v10092
      %v10094 = vpop.xlane.xlu0 %10093
      %v10095 = vmax.f32 %v9995, %v9997
      %10096 = vmax.xlane.f32.xlu0 %v10095
      %v10097 = vpop.xlane.xlu0 %10096
      %v10098 = vmax.f32 %v10001, %v10003
      %10099 = vmax.xlane.f32.xlu0 %v10098
      %v10100 = vpop.xlane.xlu0 %10099
      %v10101 = vsub.f32 %v9815, %v10007
      %v10102 = vsub.f32 %v9817, %v10007
      %v10103 = vsub.f32 %v9821, %v10010
      %v10104 = vsub.f32 %v9823, %v10010
      %v10105 = vsub.f32 %v9827, %v10013
      %v10106 = vsub.f32 %v9829, %v10013
      %v10107 = vsub.f32 %v9833, %v10016
      %v10108 = vsub.f32 %v9835, %v10016
      %v10109 = vsub.f32 %v9839, %v10019
      %v10110 = vsub.f32 %v9841, %v10019
      %v10111 = vsub.f32 %v9845, %v10022
      %v10112 = vsub.f32 %v9847, %v10022
      %v10113 = vsub.f32 %v9851, %v10025
      %v10114 = vsub.f32 %v9853, %v10025
      %v10115 = vsub.f32 %v9857, %v10028
      %v10116 = vsub.f32 %v9859, %v10028
      %v10117 = vsub.f32 %v9863, %v10031
      %v10118 = vsub.f32 %v9865, %v10031
      %v10119 = vsub.f32 %v9869, %v10034
      %v10120 = vsub.f32 %v9871, %v10034
      %v10121 = vsub.f32 %v9875, %v10037
      %v10122 = vsub.f32 %v9877, %v10037
      %v10123 = vsub.f32 %v9881, %v10040
      %v10124 = vsub.f32 %v9883, %v10040
      %v10125 = vsub.f32 %v9887, %v10043
      %v10126 = vsub.f32 %v9889, %v10043
      %v10127 = vsub.f32 %v9893, %v10046
      %v10128 = vsub.f32 %v9895, %v10046
      %v10129 = vsub.f32 %v9899, %v10049
      %v10130 = vsub.f32 %v9901, %v10049
      %v10131 = vsub.f32 %v9905, %v10052
      %v10132 = vsub.f32 %v9907, %v10052
      %v10133 = vsub.f32 %v9911, %v10055
      %v10134 = vsub.f32 %v9913, %v10055
      %v10135 = vsub.f32 %v9917, %v10058
      %v10136 = vsub.f32 %v9919, %v10058
      %v10137 = vsub.f32 %v9923, %v10061
      %v10138 = vsub.f32 %v9925, %v10061
      %v10139 = vsub.f32 %v9929, %v10064
      %v10140 = vsub.f32 %v9931, %v10064
      %v10141 = vsub.f32 %v9935, %v10067
      %v10142 = vsub.f32 %v9937, %v10067
      %v10143 = vsub.f32 %v9941, %v10070
      %v10144 = vsub.f32 %v9943, %v10070
      %v10145 = vsub.f32 %v9947, %v10073
      %v10146 = vsub.f32 %v9949, %v10073
      %v10147 = vsub.f32 %v9953, %v10076
      %v10148 = vsub.f32 %v9955, %v10076
      %v10149 = vsub.f32 %v9959, %v10079
      %v10150 = vsub.f32 %v9961, %v10079
      %v10151 = vsub.f32 %v9965, %v10082
      %v10152 = vsub.f32 %v9967, %v10082
      %v10153 = vsub.f32 %v9971, %v10085
      %v10154 = vsub.f32 %v9973, %v10085
      %v10155 = vsub.f32 %v9977, %v10088
      %v10156 = vsub.f32 %v9979, %v10088
      %v10157 = vsub.f32 %v9983, %v10091
      %v10158 = vsub.f32 %v9985, %v10091
      %v10159 = vsub.f32 %v9989, %v10094
      %v10160 = vsub.f32 %v9991, %v10094
      %v10161 = vsub.f32 %v9995, %v10097
      %v10162 = vsub.f32 %v9997, %v10097
      %v10163 = vsub.f32 %v10001, %v10100
      %v10164 = vsub.f32 %v10003, %v10100
      %v10165 = vmul.f32 %v10101, 1.442695
      %v10166 = vpow.pop %v10165
      %v10167 = vmul.f32 %v10102, 1.442695
      %v10168 = vpow.pop %v10167
      %v10169 = vmul.f32 %v10103, 1.442695
      %v10170 = vpow.pop %v10169
      %v10171 = vmul.f32 %v10104, 1.442695
      %v10172 = vpow.pop %v10171
      %v10173 = vmul.f32 %v10105, 1.442695
      %v10174 = vpow.pop %v10173
      %v10175 = vmul.f32 %v10106, 1.442695
      %v10176 = vpow.pop %v10175
      %v10177 = vmul.f32 %v10107, 1.442695
      %v10178 = vpow.pop %v10177
      %v10179 = vmul.f32 %v10108, 1.442695
      %v10180 = vpow.pop %v10179
      %v10181 = vmul.f32 %v10109, 1.442695
      %v10182 = vpow.pop %v10181
      %v10183 = vmul.f32 %v10110, 1.442695
      %v10184 = vpow.pop %v10183
      %v10185 = vmul.f32 %v10111, 1.442695
      %v10186 = vpow.pop %v10185
      %v10187 = vmul.f32 %v10112, 1.442695
      %v10188 = vpow.pop %v10187
      %v10189 = vmul.f32 %v10113, 1.442695
      %v10190 = vpow.pop %v10189
      %v10191 = vmul.f32 %v10114, 1.442695
      %v10192 = vpow.pop %v10191
      %v10193 = vmul.f32 %v10115, 1.442695
      %v10194 = vpow.pop %v10193
      %v10195 = vmul.f32 %v10116, 1.442695
      %v10196 = vpow.pop %v10195
      %v10197 = vmul.f32 %v10117, 1.442695
      %v10198 = vpow.pop %v10197
      %v10199 = vmul.f32 %v10118, 1.442695
      %v10200 = vpow.pop %v10199
      %v10201 = vmul.f32 %v10119, 1.442695
      %v10202 = vpow.pop %v10201
      %v10203 = vmul.f32 %v10120, 1.442695
      %v10204 = vpow.pop %v10203
      %v10205 = vmul.f32 %v10121, 1.442695
      %v10206 = vpow.pop %v10205
      %v10207 = vmul.f32 %v10122, 1.442695
      %v10208 = vpow.pop %v10207
      %v10209 = vmul.f32 %v10123, 1.442695
      %v10210 = vpow.pop %v10209
      %v10211 = vmul.f32 %v10124, 1.442695
      %v10212 = vpow.pop %v10211
      %v10213 = vmul.f32 %v10125, 1.442695
      %v10214 = vpow.pop %v10213
      %v10215 = vmul.f32 %v10126, 1.442695
      %v10216 = vpow.pop %v10215
      %v10217 = vmul.f32 %v10127, 1.442695
      %v10218 = vpow.pop %v10217
      %v10219 = vmul.f32 %v10128, 1.442695
      %v10220 = vpow.pop %v10219
      %v10221 = vmul.f32 %v10129, 1.442695
      %v10222 = vpow.pop %v10221
      %v10223 = vmul.f32 %v10130, 1.442695
      %v10224 = vpow.pop %v10223
      %v10225 = vmul.f32 %v10131, 1.442695
      %v10226 = vpow.pop %v10225
      %v10227 = vmul.f32 %v10132, 1.442695
      %v10228 = vpow.pop %v10227
      %v10229 = vmul.f32 %v10133, 1.442695
      %v10230 = vpow.pop %v10229
      %v10231 = vmul.f32 %v10134, 1.442695
      %v10232 = vpow.pop %v10231
      %v10233 = vmul.f32 %v10135, 1.442695
      %v10234 = vpow.pop %v10233
      %v10235 = vmul.f32 %v10136, 1.442695
      %v10236 = vpow.pop %v10235
      %v10237 = vmul.f32 %v10137, 1.442695
      %v10238 = vpow.pop %v10237
      %v10239 = vmul.f32 %v10138, 1.442695
      %v10240 = vpow.pop %v10239
      %v10241 = vmul.f32 %v10139, 1.442695
      %v10242 = vpow.pop %v10241
      %v10243 = vmul.f32 %v10140, 1.442695
      %v10244 = vpow.pop %v10243
      %v10245 = vmul.f32 %v10141, 1.442695
      %v10246 = vpow.pop %v10245
      %v10247 = vmul.f32 %v10142, 1.442695
      %v10248 = vpow.pop %v10247
      %v10249 = vmul.f32 %v10143, 1.442695
      %v10250 = vpow.pop %v10249
      %v10251 = vmul.f32 %v10144, 1.442695
      %v10252 = vpow.pop %v10251
      %v10253 = vmul.f32 %v10145, 1.442695
      %v10254 = vpow.pop %v10253
      %v10255 = vmul.f32 %v10146, 1.442695
      %v10256 = vpow.pop %v10255
      %v10257 = vmul.f32 %v10147, 1.442695
      %v10258 = vpow.pop %v10257
      %v10259 = vmul.f32 %v10148, 1.442695
      %v10260 = vpow.pop %v10259
      %v10261 = vmul.f32 %v10149, 1.442695
      %v10262 = vpow.pop %v10261
      %v10263 = vmul.f32 %v10150, 1.442695
      %v10264 = vpow.pop %v10263
      %v10265 = vmul.f32 %v10151, 1.442695
      %v10266 = vpow.pop %v10265
      %v10267 = vmul.f32 %v10152, 1.442695
      %v10268 = vpow.pop %v10267
      %v10269 = vmul.f32 %v10153, 1.442695
      %v10270 = vpow.pop %v10269
      %v10271 = vmul.f32 %v10154, 1.442695
      %v10272 = vpow.pop %v10271
      %v10273 = vmul.f32 %v10155, 1.442695
      %v10274 = vpow.pop %v10273
      %v10275 = vmul.f32 %v10156, 1.442695
      %v10276 = vpow.pop %v10275
      %v10277 = vmul.f32 %v10157, 1.442695
      %v10278 = vpow.pop %v10277
      %v10279 = vmul.f32 %v10158, 1.442695
      %v10280 = vpow.pop %v10279
      %v10281 = vmul.f32 %v10159, 1.442695
      %v10282 = vpow.pop %v10281
      %v10283 = vmul.f32 %v10160, 1.442695
      %v10284 = vpow.pop %v10283
      %v10285 = vmul.f32 %v10161, 1.442695
      %v10286 = vpow.pop %v10285
      %v10287 = vmul.f32 %v10162, 1.442695
      %v10288 = vpow.pop %v10287
      %v10289 = vmul.f32 %v10163, 1.442695
      %v10290 = vpow.pop %v10289
      %v10291 = vmul.f32 %v10164, 1.442695
      %v10292 = vpow.pop %v10291
      %v10293 = vadd.f32 %v10166, %v10168
      %10294 = vadd.xlane.f32.xlu0 %v10293
      %v10295 = vpop.xlane.xlu0 %10294
      %v10296 = vadd.f32 %v10170, %v10172
      %10297 = vadd.xlane.f32.xlu0 %v10296
      %v10298 = vpop.xlane.xlu0 %10297
      %v10299 = vadd.f32 %v10174, %v10176
      %10300 = vadd.xlane.f32.xlu0 %v10299
      %v10301 = vpop.xlane.xlu0 %10300
      %v10302 = vadd.f32 %v10178, %v10180
      %10303 = vadd.xlane.f32.xlu0 %v10302
      %v10304 = vpop.xlane.xlu0 %10303
      %v10305 = vadd.f32 %v10182, %v10184
      %10306 = vadd.xlane.f32.xlu0 %v10305
      %v10307 = vpop.xlane.xlu0 %10306
      %v10308 = vadd.f32 %v10186, %v10188
      %10309 = vadd.xlane.f32.xlu0 %v10308
      %v10310 = vpop.xlane.xlu0 %10309
      %v10311 = vadd.f32 %v10190, %v10192
      %10312 = vadd.xlane.f32.xlu0 %v10311
      %v10313 = vpop.xlane.xlu0 %10312
      %v10314 = vadd.f32 %v10194, %v10196
      %10315 = vadd.xlane.f32.xlu0 %v10314
      %v10316 = vpop.xlane.xlu0 %10315
      %v10317 = vadd.f32 %v10198, %v10200
      %10318 = vadd.xlane.f32.xlu0 %v10317
      %v10319 = vpop.xlane.xlu0 %10318
      %v10320 = vadd.f32 %v10202, %v10204
      %10321 = vadd.xlane.f32.xlu0 %v10320
      %v10322 = vpop.xlane.xlu0 %10321
      %v10323 = vadd.f32 %v10206, %v10208
      %10324 = vadd.xlane.f32.xlu0 %v10323
      %v10325 = vpop.xlane.xlu0 %10324
      %v10326 = vadd.f32 %v10210, %v10212
      %10327 = vadd.xlane.f32.xlu0 %v10326
      %v10328 = vpop.xlane.xlu0 %10327
      %v10329 = vadd.f32 %v10214, %v10216
      %10330 = vadd.xlane.f32.xlu0 %v10329
      %v10331 = vpop.xlane.xlu0 %10330
      %v10332 = vadd.f32 %v10218, %v10220
      %10333 = vadd.xlane.f32.xlu0 %v10332
      %v10334 = vpop.xlane.xlu0 %10333
      %v10335 = vadd.f32 %v10222, %v10224
      %10336 = vadd.xlane.f32.xlu0 %v10335
      %v10337 = vpop.xlane.xlu0 %10336
      %v10338 = vadd.f32 %v10226, %v10228
      %10339 = vadd.xlane.f32.xlu0 %v10338
      %v10340 = vpop.xlane.xlu0 %10339
      %v10341 = vadd.f32 %v10230, %v10232
      %10342 = vadd.xlane.f32.xlu0 %v10341
      %v10343 = vpop.xlane.xlu0 %10342
      %v10344 = vadd.f32 %v10234, %v10236
      %10345 = vadd.xlane.f32.xlu0 %v10344
      %v10346 = vpop.xlane.xlu0 %10345
      %v10347 = vadd.f32 %v10238, %v10240
      %10348 = vadd.xlane.f32.xlu0 %v10347
      %v10349 = vpop.xlane.xlu0 %10348
      %v10350 = vadd.f32 %v10242, %v10244
      %10351 = vadd.xlane.f32.xlu0 %v10350
      %v10352 = vpop.xlane.xlu0 %10351
      %v10353 = vadd.f32 %v10246, %v10248
      %10354 = vadd.xlane.f32.xlu0 %v10353
      %v10355 = vpop.xlane.xlu0 %10354
      %v10356 = vadd.f32 %v10250, %v10252
      %10357 = vadd.xlane.f32.xlu0 %v10356
      %v10358 = vpop.xlane.xlu0 %10357
      %v10359 = vadd.f32 %v10254, %v10256
      %10360 = vadd.xlane.f32.xlu0 %v10359
      %v10361 = vpop.xlane.xlu0 %10360
      %v10362 = vadd.f32 %v10258, %v10260
      %10363 = vadd.xlane.f32.xlu0 %v10362
      %v10364 = vpop.xlane.xlu0 %10363
      %v10365 = vadd.f32 %v10262, %v10264
      %10366 = vadd.xlane.f32.xlu0 %v10365
      %v10367 = vpop.xlane.xlu0 %10366
      %v10368 = vadd.f32 %v10266, %v10268
      %10369 = vadd.xlane.f32.xlu0 %v10368
      %v10370 = vpop.xlane.xlu0 %10369
      %v10371 = vadd.f32 %v10270, %v10272
      %10372 = vadd.xlane.f32.xlu0 %v10371
      %v10373 = vpop.xlane.xlu0 %10372
      %v10374 = vadd.f32 %v10274, %v10276
      %10375 = vadd.xlane.f32.xlu0 %v10374
      %v10376 = vpop.xlane.xlu0 %10375
      %v10377 = vadd.f32 %v10278, %v10280
      %10378 = vadd.xlane.f32.xlu0 %v10377
      %v10379 = vpop.xlane.xlu0 %10378
      %v10380 = vadd.f32 %v10282, %v10284
      %10381 = vadd.xlane.f32.xlu0 %v10380
      %v10382 = vpop.xlane.xlu0 %10381
      %v10383 = vadd.f32 %v10286, %v10288
      %10384 = vadd.xlane.f32.xlu0 %v10383
      %v10385 = vpop.xlane.xlu0 %10384
      %v10386 = vadd.f32 %v10290, %v10292
      %10387 = vadd.xlane.f32.xlu0 %v10386
      %v10388 = vpop.xlane.xlu0 %10387
      %10389 = vrot.lane.b32.xlu0 %v5552, 72
      %v10390 = vpop.permute.xlu0 %10389
      %10391 = vrot.lane.b32.xlu0 %v5557, 72
      %v10392 = vpop.permute.xlu0 %10391
      %10393 = vrot.lane.b32.xlu0 %v5562, 72
      %v10394 = vpop.permute.xlu0 %10393
      %10395 = vrot.lane.b32.xlu0 %v5567, 72
      %v10396 = vpop.permute.xlu0 %10395
      %10397 = vrot.lane.b32.xlu0 %v5572, 72
      %v10398 = vpop.permute.xlu0 %10397
      %10399 = vrot.lane.b32.xlu0 %v5577, 72
      %v10400 = vpop.permute.xlu0 %10399
      %10401 = vrot.lane.b32.xlu0 %v5582, 72
      %v10402 = vpop.permute.xlu0 %10401
      %10403 = vrot.lane.b32.xlu0 %v5587, 72
      %v10404 = vpop.permute.xlu0 %10403
      %10405 = vrot.lane.b32.xlu0 %v5592, 72
      %v10406 = vpop.permute.xlu0 %10405
      %10407 = vrot.lane.b32.xlu0 %v5597, 72
      %v10408 = vpop.permute.xlu0 %10407
      %10409 = vrot.lane.b32.xlu0 %v5602, 72
      %v10410 = vpop.permute.xlu0 %10409
      %10411 = vrot.lane.b32.xlu0 %v5607, 72
      %v10412 = vpop.permute.xlu0 %10411
      %10413 = vrot.lane.b32.xlu0 %v5612, 72
      %v10414 = vpop.permute.xlu0 %10413
      %10415 = vrot.lane.b32.xlu0 %v5617, 72
      %v10416 = vpop.permute.xlu0 %10415
      %10417 = vrot.lane.b32.xlu0 %v5622, 72
      %v10418 = vpop.permute.xlu0 %10417
      %10419 = vrot.lane.b32.xlu0 %v5627, 72
      %v10420 = vpop.permute.xlu0 %10419
      %10421 = vrot.lane.b32.xlu0 %v5632, 72
      %v10422 = vpop.permute.xlu0 %10421
      %10423 = vrot.lane.b32.xlu0 %v5637, 72
      %v10424 = vpop.permute.xlu0 %10423
      %10425 = vrot.lane.b32.xlu0 %v5642, 72
      %v10426 = vpop.permute.xlu0 %10425
      %10427 = vrot.lane.b32.xlu0 %v5647, 72
      %v10428 = vpop.permute.xlu0 %10427
      %10429 = vrot.lane.b32.xlu0 %v5652, 72
      %v10430 = vpop.permute.xlu0 %10429
      %10431 = vrot.lane.b32.xlu0 %v5657, 72
      %v10432 = vpop.permute.xlu0 %10431
      %10433 = vrot.lane.b32.xlu0 %v5662, 72
      %v10434 = vpop.permute.xlu0 %10433
      %10435 = vrot.lane.b32.xlu0 %v5667, 72
      %v10436 = vpop.permute.xlu0 %10435
      %10437 = vrot.lane.b32.xlu0 %v5672, 72
      %v10438 = vpop.permute.xlu0 %10437
      %10439 = vrot.lane.b32.xlu0 %v5677, 72
      %v10440 = vpop.permute.xlu0 %10439
      %10441 = vrot.lane.b32.xlu0 %v5682, 72
      %v10442 = vpop.permute.xlu0 %10441
      %10443 = vrot.lane.b32.xlu0 %v5687, 72
      %v10444 = vpop.permute.xlu0 %10443
      %10445 = vrot.lane.b32.xlu0 %v5692, 72
      %v10446 = vpop.permute.xlu0 %10445
      %10447 = vrot.lane.b32.xlu0 %v5697, 72
      %v10448 = vpop.permute.xlu0 %10447
      %10449 = vrot.lane.b32.xlu0 %v5702, 72
      %v10450 = vpop.permute.xlu0 %10449
      %10451 = vrot.lane.b32.xlu0 %v5707, 72
      %v10452 = vpop.permute.xlu0 %10451
      %10485 = vmatprep.subr.mxu0 0.0
      %10486 = vmatpush1.msra.mxu0 %v10390
      %10487 = vmatprep.subr.mxu0 0.0
      %10488 = vmatpush1.msra.mxu0 %v10392
      %10489 = vmatprep.subr.mxu0 0.0
      %10490 = vmatpush1.msra.mxu0 %v10394
      %10491 = vmatprep.subr.mxu0 0.0
      %10492 = vmatpush1.msra.mxu0 %v10396
      %10493 = vmatprep.subr.mxu0 0.0
      %10494 = vmatpush1.msra.mxu0 %v10398
      %10495 = vmatprep.subr.mxu0 0.0
      %10496 = vmatpush1.msra.mxu0 %v10400
      %10497 = vmatprep.subr.mxu0 0.0
      %10498 = vmatpush1.msra.mxu0 %v10402
      %10499 = vmatprep.subr.mxu0 0.0
      %10500 = vmatpush1.msra.mxu0 %v10404
      %10501 = vmatprep.subr.mxu0 0.0
      %10502 = vmatpush1.msra.mxu0 %v10406
      %10503 = vmatprep.subr.mxu0 0.0
      %10504 = vmatpush1.msra.mxu0 %v10408
      %10505 = vmatprep.subr.mxu0 0.0
      %10506 = vmatpush1.msra.mxu0 %v10410
      %10507 = vmatprep.subr.mxu0 0.0
      %10508 = vmatpush1.msra.mxu0 %v10412
      %10509 = vmatprep.subr.mxu0 0.0
      %10510 = vmatpush1.msra.mxu0 %v10414
      %10511 = vmatprep.subr.mxu0 0.0
      %10512 = vmatpush1.msra.mxu0 %v10416
      %10513 = vmatprep.subr.mxu0 0.0
      %10514 = vmatpush1.msra.mxu0 %v10418
      %10515 = vmatprep.subr.mxu0 0.0
      %10516 = vmatpush1.msra.mxu0 %v10420
      %10517 = vmatprep.subr.mxu0 0.0
      %10518 = vmatpush1.msra.mxu0 %v10422
      %10519 = vmatprep.subr.mxu0 0.0
      %10520 = vmatpush1.msra.mxu0 %v10424
      %10521 = vmatprep.subr.mxu0 0.0
      %10522 = vmatpush1.msra.mxu0 %v10426
      %10523 = vmatprep.subr.mxu0 0.0
      %10524 = vmatpush1.msra.mxu0 %v10428
      %10525 = vmatprep.subr.mxu0 0.0
      %10526 = vmatpush1.msra.mxu0 %v10430
      %10527 = vmatprep.subr.mxu0 0.0
      %10528 = vmatpush1.msra.mxu0 %v10432
      %10529 = vmatprep.subr.mxu0 0.0
      %10530 = vmatpush1.msra.mxu0 %v10434
      %10531 = vmatprep.subr.mxu0 0.0
      %10532 = vmatpush1.msra.mxu0 %v10436
      %10533 = vmatprep.subr.mxu0 0.0
      %10534 = vmatpush1.msra.mxu0 %v10438
      %10535 = vmatprep.subr.mxu0 0.0
      %10536 = vmatpush1.msra.mxu0 %v10440
      %10537 = vmatprep.subr.mxu0 0.0
      %10538 = vmatpush1.msra.mxu0 %v10442
      %10539 = vmatprep.subr.mxu0 0.0
      %10540 = vmatpush1.msra.mxu0 %v10444
      %10541 = vmatprep.subr.mxu0 0.0
      %10542 = vmatpush1.msra.mxu0 %v10446
      %10543 = vmatprep.subr.mxu0 0.0
      %10544 = vmatpush1.msra.mxu0 %v10448
      %10545 = vmatprep.subr.mxu0 0.0
      %10546 = vmatpush1.msra.mxu0 %v10450
      %10547 = vmatprep.subr.mxu0 0.0
      %10548 = vmatpush1.msra.mxu0 %v10452
      %10549 = vmatprep.mubr.f32.mxu0 %v10168
      %10550 = vmatmul.mubr.f32.gmra.mrb[0].mxu0 %v10166
      %v10551 = vpop.f32.mrb[0].mxu0
      %v10552 = vadd.f32 0.0, %v10551
      %v10553 = vpop.f32.mrb[0].mxu0
      %10554 = vmatprep.mubr.f32.mxu0 %v10172
      %10555 = vmatmul.mubr.f32.gmra.mrb[0].mxu0 %v10170
      %v10556 = vpop.f32.mrb[0].mxu0
      %v10557 = vadd.f32 0.0, %v10556
      %v10558 = vpop.f32.mrb[0].mxu0
      %10559 = vmatprep.mubr.f32.mxu0 %v10176
      %10560 = vmatmul.mubr.f32.gmra.mrb[0].mxu0 %v10174
      %v10561 = vpop.f32.mrb[0].mxu0
      %v10562 = vadd.f32 0.0, %v10561
      %v10563 = vpop.f32.mrb[0].mxu0
      %10564 = vmatprep.mubr.f32.mxu0 %v10180
      %10565 = vmatmul.mubr.f32.gmra.mrb[0].mxu0 %v10178
      %v10566 = vpop.f32.mrb[0].mxu0
      %v10567 = vadd.f32 0.0, %v10566
      %v10568 = vpop.f32.mrb[0].mxu0
      %10569 = vmatprep.mubr.f32.mxu0 %v10184
      %10570 = vmatmul.mubr.f32.gmra.mrb[0].mxu0 %v10182
      %v10571 = vpop.f32.mrb[0].mxu0
      %v10572 = vadd.f32 0.0, %v10571
      %v10573 = vpop.f32.mrb[0].mxu0
      %10574 = vmatprep.mubr.f32.mxu0 %v10188
      %10575 = vmatmul.mubr.f32.gmra.mrb[0].mxu0 %v10186
      %v10576 = vpop.f32.mrb[0].mxu0
      %v10577 = vadd.f32 0.0, %v10576
      %v10578 = vpop.f32.mrb[0].mxu0
      %10579 = vmatprep.mubr.f32.mxu0 %v10192
      %10580 = vmatmul.mubr.f32.gmra.mrb[0].mxu0 %v10190
      %v10581 = vpop.f32.mrb[0].mxu0
      %v10582 = vadd.f32 0.0, %v10581
      %v10583 = vpop.f32.mrb[0].mxu0
      %10584 = vmatprep.mubr.f32.mxu0 %v10196
      %10585 = vmatmul.mubr.f32.gmra.mrb[0].mxu0 %v10194
      %v10586 = vpop.f32.mrb[0].mxu0
      %v10587 = vadd.f32 0.0, %v10586
      %v10588 = vpop.f32.mrb[0].mxu0
      %10589 = vmatprep.mubr.f32.mxu0 %v10200
      %10590 = vmatmul.mubr.f32.gmra.mrb[0].mxu0 %v10198
      %v10591 = vpop.f32.mrb[0].mxu0
      %v10592 = vadd.f32 0.0, %v10591
      %v10593 = vpop.f32.mrb[0].mxu0
      %10594 = vmatprep.mubr.f32.mxu0 %v10204
      %10595 = vmatmul.mubr.f32.gmra.mrb[0].mxu0 %v10202
      %v10596 = vpop.f32.mrb[0].mxu0
      %v10597 = vadd.f32 0.0, %v10596
      %v10598 = vpop.f32.mrb[0].mxu0
      %10599 = vmatprep.mubr.f32.mxu0 %v10208
      %10600 = vmatmul.mubr.f32.gmra.mrb[0].mxu0 %v10206
      %v10601 = vpop.f32.mrb[0].mxu0
      %v10602 = vadd.f32 0.0, %v10601
      %v10603 = vpop.f32.mrb[0].mxu0
      %10604 = vmatprep.mubr.f32.mxu0 %v10212
      %10605 = vmatmul.mubr.f32.gmra.mrb[0].mxu0 %v10210
      %v10606 = vpop.f32.mrb[0].mxu0
      %v10607 = vadd.f32 0.0, %v10606
      %v10608 = vpop.f32.mrb[0].mxu0
      %10609 = vmatprep.mubr.f32.mxu0 %v10216
      %10610 = vmatmul.mubr.f32.gmra.mrb[0].mxu0 %v10214
      %v10611 = vpop.f32.mrb[0].mxu0
      %v10612 = vadd.f32 0.0, %v10611
      %v10613 = vpop.f32.mrb[0].mxu0
      %10614 = vmatprep.mubr.f32.mxu0 %v10220
      %10615 = vmatmul.mubr.f32.gmra.mrb[0].mxu0 %v10218
      %v10616 = vpop.f32.mrb[0].mxu0
      %v10617 = vadd.f32 0.0, %v10616
      %v10618 = vpop.f32.mrb[0].mxu0
      %10619 = vmatprep.mubr.f32.mxu0 %v10224
      %10620 = vmatmul.mubr.f32.gmra.mrb[0].mxu0 %v10222
      %v10621 = vpop.f32.mrb[0].mxu0
      %v10622 = vadd.f32 0.0, %v10621
      %v10623 = vpop.f32.mrb[0].mxu0
      %10624 = vmatprep.mubr.f32.mxu0 %v10228
      %10625 = vmatmul.mubr.f32.gmra.mrb[0].mxu0 %v10226
      %v10626 = vpop.f32.mrb[0].mxu0
      %v10627 = vadd.f32 0.0, %v10626
      %v10628 = vpop.f32.mrb[0].mxu0
      %10629 = vmatprep.mubr.f32.mxu0 %v10232
      %10630 = vmatmul.mubr.f32.gmra.mrb[0].mxu0 %v10230
      %v10631 = vpop.f32.mrb[0].mxu0
      %v10632 = vadd.f32 0.0, %v10631
      %v10633 = vpop.f32.mrb[0].mxu0
      %10634 = vmatprep.mubr.f32.mxu0 %v10236
      %10635 = vmatmul.mubr.f32.gmra.mrb[0].mxu0 %v10234
      %v10636 = vpop.f32.mrb[0].mxu0
      %v10637 = vadd.f32 0.0, %v10636
      %v10638 = vpop.f32.mrb[0].mxu0
      %10639 = vmatprep.mubr.f32.mxu0 %v10240
      %10640 = vmatmul.mubr.f32.gmra.mrb[0].mxu0 %v10238
      %v10641 = vpop.f32.mrb[0].mxu0
      %v10642 = vadd.f32 0.0, %v10641
      %v10643 = vpop.f32.mrb[0].mxu0
      %10644 = vmatprep.mubr.f32.mxu0 %v10244
      %10645 = vmatmul.mubr.f32.gmra.mrb[0].mxu0 %v10242
      %v10646 = vpop.f32.mrb[0].mxu0
      %v10647 = vadd.f32 0.0, %v10646
      %v10648 = vpop.f32.mrb[0].mxu0
      %10649 = vmatprep.mubr.f32.mxu0 %v10248
      %10650 = vmatmul.mubr.f32.gmra.mrb[0].mxu0 %v10246
      %v10651 = vpop.f32.mrb[0].mxu0
      %v10652 = vadd.f32 0.0, %v10651
      %v10653 = vpop.f32.mrb[0].mxu0
      %10654 = vmatprep.mubr.f32.mxu0 %v10252
      %10655 = vmatmul.mubr.f32.gmra.mrb[0].mxu0 %v10250
      %v10656 = vpop.f32.mrb[0].mxu0
      %v10657 = vadd.f32 0.0, %v10656
      %v10658 = vpop.f32.mrb[0].mxu0
      %10659 = vmatprep.mubr.f32.mxu0 %v10256
      %10660 = vmatmul.mubr.f32.gmra.mrb[0].mxu0 %v10254
      %v10661 = vpop.f32.mrb[0].mxu0
      %v10662 = vadd.f32 0.0, %v10661
      %v10663 = vpop.f32.mrb[0].mxu0
      %10664 = vmatprep.mubr.f32.mxu0 %v10260
      %10665 = vmatmul.mubr.f32.gmra.mrb[0].mxu0 %v10258
      %v10666 = vpop.f32.mrb[0].mxu0
      %v10667 = vadd.f32 0.0, %v10666
      %v10668 = vpop.f32.mrb[0].mxu0
      %10669 = vmatprep.mubr.f32.mxu0 %v10264
      %10670 = vmatmul.mubr.f32.gmra.mrb[0].mxu0 %v10262
      %v10671 = vpop.f32.mrb[0].mxu0
      %v10672 = vadd.f32 0.0, %v10671
      %v10673 = vpop.f32.mrb[0].mxu0
      %10674 = vmatprep.mubr.f32.mxu0 %v10268
      %10675 = vmatmul.mubr.f32.gmra.mrb[0].mxu0 %v10266
      %v10676 = vpop.f32.mrb[0].mxu0
      %v10677 = vadd.f32 0.0, %v10676
      %v10678 = vpop.f32.mrb[0].mxu0
      %10679 = vmatprep.mubr.f32.mxu0 %v10272
      %10680 = vmatmul.mubr.f32.gmra.mrb[0].mxu0 %v10270
      %v10681 = vpop.f32.mrb[0].mxu0
      %v10682 = vadd.f32 0.0, %v10681
      %v10683 = vpop.f32.mrb[0].mxu0
      %10684 = vmatprep.mubr.f32.mxu0 %v10276
      %10685 = vmatmul.mubr.f32.gmra.mrb[0].mxu0 %v10274
      %v10686 = vpop.f32.mrb[0].mxu0
      %v10687 = vadd.f32 0.0, %v10686
      %v10688 = vpop.f32.mrb[0].mxu0
      %10689 = vmatprep.mubr.f32.mxu0 %v10280
      %10690 = vmatmul.mubr.f32.gmra.mrb[0].mxu0 %v10278
      %v10691 = vpop.f32.mrb[0].mxu0
      %v10692 = vadd.f32 0.0, %v10691
      %v10693 = vpop.f32.mrb[0].mxu0
      %10694 = vmatprep.mubr.f32.mxu0 %v10284
      %10695 = vmatmul.mubr.f32.gmra.mrb[0].mxu0 %v10282
      %v10696 = vpop.f32.mrb[0].mxu0
      %v10697 = vadd.f32 0.0, %v10696
      %v10698 = vpop.f32.mrb[0].mxu0
      %10699 = vmatprep.mubr.f32.mxu0 %v10288
      %10700 = vmatmul.mubr.f32.gmra.mrb[0].mxu0 %v10286
      %v10701 = vpop.f32.mrb[0].mxu0
      %v10702 = vadd.f32 0.0, %v10701
      %v10703 = vpop.f32.mrb[0].mxu0
      %10704 = vmatprep.mubr.f32.mxu0 %v10292
      %10705 = vmatmul.mubr.f32.gmra.mrb[0].mxu0 %v10290
      %v10706 = vpop.f32.mrb[0].mxu0
      %v10707 = vadd.f32 0.0, %v10706
      %v10708 = vpop.f32.mrb[0].mxu0
      %10709 = vdwg.mxu0
      %v10710 = vrcp.pop %v10295
      %v10711 = vrcp.pop %v10298
      %v10712 = vrcp.pop %v10301
      %v10713 = vrcp.pop %v10304
      %v10714 = vrcp.pop %v10307
      %v10715 = vrcp.pop %v10310
      %v10716 = vrcp.pop %v10313
      %v10717 = vrcp.pop %v10316
      %v10718 = vrcp.pop %v10319
      %v10719 = vrcp.pop %v10322
      %v10720 = vrcp.pop %v10325
      %v10721 = vrcp.pop %v10328
      %v10722 = vrcp.pop %v10331
      %v10723 = vrcp.pop %v10334
      %v10724 = vrcp.pop %v10337
      %v10725 = vrcp.pop %v10340
      %v10726 = vrcp.pop %v10343
      %v10727 = vrcp.pop %v10346
      %v10728 = vrcp.pop %v10349
      %v10729 = vrcp.pop %v10352
      %v10730 = vrcp.pop %v10355
      %v10731 = vrcp.pop %v10358
      %v10732 = vrcp.pop %v10361
      %v10733 = vrcp.pop %v10364
      %v10734 = vrcp.pop %v10367
      %v10735 = vrcp.pop %v10370
      %v10736 = vrcp.pop %v10373
      %v10737 = vrcp.pop %v10376
      %v10738 = vrcp.pop %v10379
      %v10739 = vrcp.pop %v10382
      %v10740 = vrcp.pop %v10385
      %v10741 = vrcp.pop %v10388
      %v10742 = vmul.f32 %v10552, %v10710
      %v10743 = vmul.f32 %v10557, %v10711
      %v10744 = vmul.f32 %v10562, %v10712
      %v10745 = vmul.f32 %v10567, %v10713
      %v10746 = vmul.f32 %v10572, %v10714
      %v10747 = vmul.f32 %v10577, %v10715
      %v10748 = vmul.f32 %v10582, %v10716
      %v10749 = vmul.f32 %v10587, %v10717
      %v10750 = vmul.f32 %v10592, %v10718
      %v10751 = vmul.f32 %v10597, %v10719
      %v10752 = vmul.f32 %v10602, %v10720
      %v10753 = vmul.f32 %v10607, %v10721
      %v10754 = vmul.f32 %v10612, %v10722
      %v10755 = vmul.f32 %v10617, %v10723
      %v10756 = vmul.f32 %v10622, %v10724
      %v10757 = vmul.f32 %v10627, %v10725
      %v10758 = vmul.f32 %v10632, %v10726
      %v10759 = vmul.f32 %v10637, %v10727
      %v10760 = vmul.f32 %v10642, %v10728
      %v10761 = vmul.f32 %v10647, %v10729
      %v10762 = vmul.f32 %v10652, %v10730
      %v10763 = vmul.f32 %v10657, %v10731
      %v10764 = vmul.f32 %v10662, %v10732
      %v10765 = vmul.f32 %v10667, %v10733
      %v10766 = vmul.f32 %v10672, %v10734
      %v10767 = vmul.f32 %v10677, %v10735
      %v10768 = vmul.f32 %v10682, %v10736
      %v10769 = vmul.f32 %v10687, %v10737
      %v10770 = vmul.f32 %v10692, %v10738
      %v10771 = vmul.f32 %v10697, %v10739
      %v10772 = vmul.f32 %v10702, %v10740
      %v10773 = vmul.f32 %v10707, %v10741
      %10806 = vrot.lane.b32.xlu0 %v8178, 8
      %v10807 = vpop.permute.xlu0 %10806
      %10808 = vrot.lane.b32.xlu0 %v8179, 8
      %v10809 = vpop.permute.xlu0 %10808
      %10810 = vrot.lane.b32.xlu0 %v8180, 8
      %v10811 = vpop.permute.xlu0 %10810
      %10812 = vrot.lane.b32.xlu0 %v8181, 8
      %v10813 = vpop.permute.xlu0 %10812
      %10814 = vrot.lane.b32.xlu0 %v8182, 8
      %v10815 = vpop.permute.xlu0 %10814
      %10816 = vrot.lane.b32.xlu0 %v8183, 8
      %v10817 = vpop.permute.xlu0 %10816
      %10818 = vrot.lane.b32.xlu0 %v8184, 8
      %v10819 = vpop.permute.xlu0 %10818
      %10820 = vrot.lane.b32.xlu0 %v8185, 8
      %v10821 = vpop.permute.xlu0 %10820
      %10822 = vrot.lane.b32.xlu0 %v8186, 8
      %v10823 = vpop.permute.xlu0 %10822
      %10824 = vrot.lane.b32.xlu0 %v8187, 8
      %v10825 = vpop.permute.xlu0 %10824
      %10826 = vrot.lane.b32.xlu0 %v8188, 8
      %v10827 = vpop.permute.xlu0 %10826
      %10828 = vrot.lane.b32.xlu0 %v8189, 8
      %v10829 = vpop.permute.xlu0 %10828
      %10830 = vrot.lane.b32.xlu0 %v8190, 8
      %v10831 = vpop.permute.xlu0 %10830
      %10832 = vrot.lane.b32.xlu0 %v8191, 8
      %v10833 = vpop.permute.xlu0 %10832
      %10834 = vrot.lane.b32.xlu0 %v8192, 8
      %v10835 = vpop.permute.xlu0 %10834
      %10836 = vrot.lane.b32.xlu0 %v8193, 8
      %v10837 = vpop.permute.xlu0 %10836
      %10838 = vrot.lane.b32.xlu0 %v8194, 8
      %v10839 = vpop.permute.xlu0 %10838
      %10840 = vrot.lane.b32.xlu0 %v8195, 8
      %v10841 = vpop.permute.xlu0 %10840
      %10842 = vrot.lane.b32.xlu0 %v8196, 8
      %v10843 = vpop.permute.xlu0 %10842
      %10844 = vrot.lane.b32.xlu0 %v8197, 8
      %v10845 = vpop.permute.xlu0 %10844
      %10846 = vrot.lane.b32.xlu0 %v8198, 8
      %v10847 = vpop.permute.xlu0 %10846
      %10848 = vrot.lane.b32.xlu0 %v8199, 8
      %v10849 = vpop.permute.xlu0 %10848
      %10850 = vrot.lane.b32.xlu0 %v8200, 8
      %v10851 = vpop.permute.xlu0 %10850
      %10852 = vrot.lane.b32.xlu0 %v8201, 8
      %v10853 = vpop.permute.xlu0 %10852
      %10854 = vrot.lane.b32.xlu0 %v8202, 8
      %v10855 = vpop.permute.xlu0 %10854
      %10856 = vrot.lane.b32.xlu0 %v8203, 8
      %v10857 = vpop.permute.xlu0 %10856
      %10858 = vrot.lane.b32.xlu0 %v8204, 8
      %v10859 = vpop.permute.xlu0 %10858
      %10860 = vrot.lane.b32.xlu0 %v8205, 8
      %v10861 = vpop.permute.xlu0 %10860
      %10862 = vrot.lane.b32.xlu0 %v8206, 8
      %v10863 = vpop.permute.xlu0 %10862
      %10864 = vrot.lane.b32.xlu0 %v8207, 8
      %v10865 = vpop.permute.xlu0 %10864
      %10866 = vrot.lane.b32.xlu0 %v8208, 8
      %v10867 = vpop.permute.xlu0 %10866
      %10868 = vrot.lane.b32.xlu0 %v8209, 8
      %v10869 = vpop.permute.xlu0 %10868
      %10934 = vrot.lane.b32.xlu0 %v9460, 16
      %v10935 = vpop.permute.xlu0 %10934
      %10936 = vrot.lane.b32.xlu0 %v9461, 16
      %v10937 = vpop.permute.xlu0 %10936
      %10938 = vrot.lane.b32.xlu0 %v9462, 16
      %v10939 = vpop.permute.xlu0 %10938
      %10940 = vrot.lane.b32.xlu0 %v9463, 16
      %v10941 = vpop.permute.xlu0 %10940
      %10942 = vrot.lane.b32.xlu0 %v9464, 16
      %v10943 = vpop.permute.xlu0 %10942
      %10944 = vrot.lane.b32.xlu0 %v9465, 16
      %v10945 = vpop.permute.xlu0 %10944
      %10946 = vrot.lane.b32.xlu0 %v9466, 16
      %v10947 = vpop.permute.xlu0 %10946
      %10948 = vrot.lane.b32.xlu0 %v9467, 16
      %v10949 = vpop.permute.xlu0 %10948
      %10950 = vrot.lane.b32.xlu0 %v9468, 16
      %v10951 = vpop.permute.xlu0 %10950
      %10952 = vrot.lane.b32.xlu0 %v9469, 16
      %v10953 = vpop.permute.xlu0 %10952
      %10954 = vrot.lane.b32.xlu0 %v9470, 16
      %v10955 = vpop.permute.xlu0 %10954
      %10956 = vrot.lane.b32.xlu0 %v9471, 16
      %v10957 = vpop.permute.xlu0 %10956
      %10958 = vrot.lane.b32.xlu0 %v9472, 16
      %v10959 = vpop.permute.xlu0 %10958
      %10960 = vrot.lane.b32.xlu0 %v9473, 16
      %v10961 = vpop.permute.xlu0 %10960
      %10962 = vrot.lane.b32.xlu0 %v9474, 16
      %v10963 = vpop.permute.xlu0 %10962
      %10964 = vrot.lane.b32.xlu0 %v9475, 16
      %v10965 = vpop.permute.xlu0 %10964
      %10966 = vrot.lane.b32.xlu0 %v9476, 16
      %v10967 = vpop.permute.xlu0 %10966
      %10968 = vrot.lane.b32.xlu0 %v9477, 16
      %v10969 = vpop.permute.xlu0 %10968
      %10970 = vrot.lane.b32.xlu0 %v9478, 16
      %v10971 = vpop.permute.xlu0 %10970
      %10972 = vrot.lane.b32.xlu0 %v9479, 16
      %v10973 = vpop.permute.xlu0 %10972
      %10974 = vrot.lane.b32.xlu0 %v9480, 16
      %v10975 = vpop.permute.xlu0 %10974
      %10976 = vrot.lane.b32.xlu0 %v9481, 16
      %v10977 = vpop.permute.xlu0 %10976
      %10978 = vrot.lane.b32.xlu0 %v9482, 16
      %v10979 = vpop.permute.xlu0 %10978
      %10980 = vrot.lane.b32.xlu0 %v9483, 16
      %v10981 = vpop.permute.xlu0 %10980
      %10982 = vrot.lane.b32.xlu0 %v9484, 16
      %v10983 = vpop.permute.xlu0 %10982
      %10984 = vrot.lane.b32.xlu0 %v9485, 16
      %v10985 = vpop.permute.xlu0 %10984
      %10986 = vrot.lane.b32.xlu0 %v9486, 16
      %v10987 = vpop.permute.xlu0 %10986
      %10988 = vrot.lane.b32.xlu0 %v9487, 16
      %v10989 = vpop.permute.xlu0 %10988
      %10990 = vrot.lane.b32.xlu0 %v9488, 16
      %v10991 = vpop.permute.xlu0 %10990
      %10992 = vrot.lane.b32.xlu0 %v9489, 16
      %v10993 = vpop.permute.xlu0 %10992
      %10994 = vrot.lane.b32.xlu0 %v9490, 16
      %v10995 = vpop.permute.xlu0 %10994
      %10996 = vrot.lane.b32.xlu0 %v9491, 16
      %v10997 = vpop.permute.xlu0 %10996
      %11062 = vrot.lane.b32.xlu0 %v10742, 24
      %v11063 = vpop.permute.xlu0 %11062
      %11064 = vrot.lane.b32.xlu0 %v10743, 24
      %v11065 = vpop.permute.xlu0 %11064
      %11066 = vrot.lane.b32.xlu0 %v10744, 24
      %v11067 = vpop.permute.xlu0 %11066
      %11068 = vrot.lane.b32.xlu0 %v10745, 24
      %v11069 = vpop.permute.xlu0 %11068
      %11070 = vrot.lane.b32.xlu0 %v10746, 24
      %v11071 = vpop.permute.xlu0 %11070
      %11072 = vrot.lane.b32.xlu0 %v10747, 24
      %v11073 = vpop.permute.xlu0 %11072
      %11074 = vrot.lane.b32.xlu0 %v10748, 24
      %v11075 = vpop.permute.xlu0 %11074
      %11076 = vrot.lane.b32.xlu0 %v10749, 24
      %v11077 = vpop.permute.xlu0 %11076
      %11078 = vrot.lane.b32.xlu0 %v10750, 24
      %v11079 = vpop.permute.xlu0 %11078
      %11080 = vrot.lane.b32.xlu0 %v10751, 24
      %v11081 = vpop.permute.xlu0 %11080
      %11082 = vrot.lane.b32.xlu0 %v10752, 24
      %v11083 = vpop.permute.xlu0 %11082
      %11084 = vrot.lane.b32.xlu0 %v10753, 24
      %v11085 = vpop.permute.xlu0 %11084
      %11086 = vrot.lane.b32.xlu0 %v10754, 24
      %v11087 = vpop.permute.xlu0 %11086
      %11088 = vrot.lane.b32.xlu0 %v10755, 24
      %v11089 = vpop.permute.xlu0 %11088
      %11090 = vrot.lane.b32.xlu0 %v10756, 24
      %v11091 = vpop.permute.xlu0 %11090
      %11092 = vrot.lane.b32.xlu0 %v10757, 24
      %v11093 = vpop.permute.xlu0 %11092
      %11094 = vrot.lane.b32.xlu0 %v10758, 24
      %v11095 = vpop.permute.xlu0 %11094
      %11096 = vrot.lane.b32.xlu0 %v10759, 24
      %v11097 = vpop.permute.xlu0 %11096
      %11098 = vrot.lane.b32.xlu0 %v10760, 24
      %v11099 = vpop.permute.xlu0 %11098
      %11100 = vrot.lane.b32.xlu0 %v10761, 24
      %v11101 = vpop.permute.xlu0 %11100
      %11102 = vrot.lane.b32.xlu0 %v10762, 24
      %v11103 = vpop.permute.xlu0 %11102
      %11104 = vrot.lane.b32.xlu0 %v10763, 24
      %v11105 = vpop.permute.xlu0 %11104
      %11106 = vrot.lane.b32.xlu0 %v10764, 24
      %v11107 = vpop.permute.xlu0 %11106
      %11108 = vrot.lane.b32.xlu0 %v10765, 24
      %v11109 = vpop.permute.xlu0 %11108
      %11110 = vrot.lane.b32.xlu0 %v10766, 24
      %v11111 = vpop.permute.xlu0 %11110
      %11112 = vrot.lane.b32.xlu0 %v10767, 24
      %v11113 = vpop.permute.xlu0 %11112
      %11114 = vrot.lane.b32.xlu0 %v10768, 24
      %v11115 = vpop.permute.xlu0 %11114
      %11116 = vrot.lane.b32.xlu0 %v10769, 24
      %v11117 = vpop.permute.xlu0 %11116
      %11118 = vrot.lane.b32.xlu0 %v10770, 24
      %v11119 = vpop.permute.xlu0 %11118
      %11120 = vrot.lane.b32.xlu0 %v10771, 24
      %v11121 = vpop.permute.xlu0 %11120
      %11122 = vrot.lane.b32.xlu0 %v10772, 24
      %v11123 = vpop.permute.xlu0 %11122
      %11124 = vrot.lane.b32.xlu0 %v10773, 24
      %v11125 = vpop.permute.xlu0 %11124
      %v11158 = vsel %vm906, %v6896, %v10807
      %v11159 = vsel %vm906, %v6897, %v10809
      %v11160 = vsel %vm906, %v6898, %v10811
      %v11161 = vsel %vm906, %v6899, %v10813
      %v11162 = vsel %vm906, %v6900, %v10815
      %v11163 = vsel %vm906, %v6901, %v10817
      %v11164 = vsel %vm906, %v6902, %v10819
      %v11165 = vsel %vm906, %v6903, %v10821
      %v11166 = vsel %vm906, %v6904, %v10823
      %v11167 = vsel %vm906, %v6905, %v10825
      %v11168 = vsel %vm906, %v6906, %v10827
      %v11169 = vsel %vm906, %v6907, %v10829
      %v11170 = vsel %vm906, %v6908, %v10831
      %v11171 = vsel %vm906, %v6909, %v10833
      %v11172 = vsel %vm906, %v6910, %v10835
      %v11173 = vsel %vm906, %v6911, %v10837
      %v11174 = vsel %vm906, %v6912, %v10839
      %v11175 = vsel %vm906, %v6913, %v10841
      %v11176 = vsel %vm906, %v6914, %v10843
      %v11177 = vsel %vm906, %v6915, %v10845
      %v11178 = vsel %vm906, %v6916, %v10847
      %v11179 = vsel %vm906, %v6917, %v10849
      %v11180 = vsel %vm906, %v6918, %v10851
      %v11181 = vsel %vm906, %v6919, %v10853
      %v11182 = vsel %vm906, %v6920, %v10855
      %v11183 = vsel %vm906, %v6921, %v10857
      %v11184 = vsel %vm906, %v6922, %v10859
      %v11185 = vsel %vm906, %v6923, %v10861
      %v11186 = vsel %vm906, %v6924, %v10863
      %v11187 = vsel %vm906, %v6925, %v10865
      %v11188 = vsel %vm906, %v6926, %v10867
      %v11189 = vsel %vm906, %v6927, %v10869
      %v11190 = vsel %vm3453, %v11158, %v10935
      %v11191 = vsel %vm3453, %v11159, %v10937
      %v11192 = vsel %vm3453, %v11160, %v10939
      %v11193 = vsel %vm3453, %v11161, %v10941
      %v11194 = vsel %vm3453, %v11162, %v10943
      %v11195 = vsel %vm3453, %v11163, %v10945
      %v11196 = vsel %vm3453, %v11164, %v10947
      %v11197 = vsel %vm3453, %v11165, %v10949
      %v11198 = vsel %vm3453, %v11166, %v10951
      %v11199 = vsel %vm3453, %v11167, %v10953
      %v11200 = vsel %vm3453, %v11168, %v10955
      %v11201 = vsel %vm3453, %v11169, %v10957
      %v11202 = vsel %vm3453, %v11170, %v10959
      %v11203 = vsel %vm3453, %v11171, %v10961
      %v11204 = vsel %vm3453, %v11172, %v10963
      %v11205 = vsel %vm3453, %v11173, %v10965
      %v11206 = vsel %vm3453, %v11174, %v10967
      %v11207 = vsel %vm3453, %v11175, %v10969
      %v11208 = vsel %vm3453, %v11176, %v10971
      %v11209 = vsel %vm3453, %v11177, %v10973
      %v11210 = vsel %vm3453, %v11178, %v10975
      %v11211 = vsel %vm3453, %v11179, %v10977
      %v11212 = vsel %vm3453, %v11180, %v10979
      %v11213 = vsel %vm3453, %v11181, %v10981
      %v11214 = vsel %vm3453, %v11182, %v10983
      %v11215 = vsel %vm3453, %v11183, %v10985
      %v11216 = vsel %vm3453, %v11184, %v10987
      %v11217 = vsel %vm3453, %v11185, %v10989
      %v11218 = vsel %vm3453, %v11186, %v10991
      %v11219 = vsel %vm3453, %v11187, %v10993
      %v11220 = vsel %vm3453, %v11188, %v10995
      %v11221 = vsel %vm3453, %v11189, %v10997
      %v11222 = vsel %vm3462, %v11190, %v11063
      %v11223 = vsel %vm3462, %v11191, %v11065
      %v11224 = vsel %vm3462, %v11192, %v11067
      %v11225 = vsel %vm3462, %v11193, %v11069
      %v11226 = vsel %vm3462, %v11194, %v11071
      %v11227 = vsel %vm3462, %v11195, %v11073
      %v11228 = vsel %vm3462, %v11196, %v11075
      %v11229 = vsel %vm3462, %v11197, %v11077
      %v11230 = vsel %vm3462, %v11198, %v11079
      %v11231 = vsel %vm3462, %v11199, %v11081
      %v11232 = vsel %vm3462, %v11200, %v11083
      %v11233 = vsel %vm3462, %v11201, %v11085
      %v11234 = vsel %vm3462, %v11202, %v11087
      %v11235 = vsel %vm3462, %v11203, %v11089
      %v11236 = vsel %vm3462, %v11204, %v11091
      %v11237 = vsel %vm3462, %v11205, %v11093
      %v11238 = vsel %vm3462, %v11206, %v11095
      %v11239 = vsel %vm3462, %v11207, %v11097
      %v11240 = vsel %vm3462, %v11208, %v11099
      %v11241 = vsel %vm3462, %v11209, %v11101
      %v11242 = vsel %vm3462, %v11210, %v11103
      %v11243 = vsel %vm3462, %v11211, %v11105
      %v11244 = vsel %vm3462, %v11212, %v11107
      %v11245 = vsel %vm3462, %v11213, %v11109
      %v11246 = vsel %vm3462, %v11214, %v11111
      %v11247 = vsel %vm3462, %v11215, %v11113
      %v11248 = vsel %vm3462, %v11216, %v11115
      %v11249 = vsel %vm3462, %v11217, %v11117
      %v11250 = vsel %vm3462, %v11218, %v11119
      %v11251 = vsel %vm3462, %v11219, %v11121
      %v11252 = vsel %vm3462, %v11220, %v11123
      %v11253 = vsel %vm3462, %v11221, %v11125
      %v11255 = vsel %vm684, %v11222, 0
      %v11258 = vsel %vm684, %v11223, 0
      %v11261 = vsel %vm684, %v11224, 0
      %v11264 = vsel %vm684, %v11225, 0
      %v11267 = vsel %vm684, %v11226, 0
      %v11270 = vsel %vm684, %v11227, 0
      %v11273 = vsel %vm684, %v11228, 0
      %v11276 = vsel %vm684, %v11229, 0
      %v11279 = vsel %vm684, %v11230, 0
      %v11282 = vsel %vm684, %v11231, 0
      %v11285 = vsel %vm684, %v11232, 0
      %v11288 = vsel %vm684, %v11233, 0
      %v11291 = vsel %vm684, %v11234, 0
      %v11294 = vsel %vm684, %v11235, 0
      %v11297 = vsel %vm684, %v11236, 0
      %v11300 = vsel %vm684, %v11237, 0
      %v11303 = vsel %vm684, %v11238, 0
      %v11306 = vsel %vm684, %v11239, 0
      %v11309 = vsel %vm684, %v11240, 0
      %v11312 = vsel %vm684, %v11241, 0
      %v11315 = vsel %vm684, %v11242, 0
      %v11318 = vsel %vm684, %v11243, 0
      %v11321 = vsel %vm684, %v11244, 0
      %v11324 = vsel %vm684, %v11245, 0
      %v11327 = vsel %vm684, %v11246, 0
      %v11330 = vsel %vm684, %v11247, 0
      %v11333 = vsel %vm684, %v11248, 0
      %v11336 = vsel %vm684, %v11249, 0
      %v11339 = vsel %vm684, %v11250, 0
      %v11342 = vsel %vm684, %v11251, 0
      %v11345 = vsel %vm684, %v11252, 0
      %v11348 = vsel %vm684, %v11253, 0
      %11350 = vmatprep.subr.mxu0 0.0
      %11351 = vmatpush1.msra.mxu0 %v996
      %11352 = vmatprep.subr.mxu0 0.0
      %11353 = vmatpush1.msra.mxu0 %v997
      %11354 = vmatprep.subr.mxu0 0.0
      %11355 = vmatpush1.msra.mxu0 %v998
      %11356 = vmatprep.subr.mxu0 0.0
      %11357 = vmatpush1.msra.mxu0 %v999
      %11358 = vmatprep.subr.mxu0 0.0
      %11359 = vmatpush1.msra.mxu0 0.0
      %11360 = vmatprep.subr.mxu0 0.0
      %11361 = vmatpush1.msra.mxu0 0.0
      %11362 = vmatprep.subr.mxu0 0.0
      %11363 = vmatpush1.msra.mxu0 0.0
      %11364 = vmatprep.subr.mxu0 0.0
      %11365 = vmatpush1.msra.mxu0 0.0
      %11366 = vmatprep.subr.mxu0 0.0
      %11367 = vmatpush1.msra.mxu0 0.0
      %11368 = vmatprep.subr.mxu0 0.0
      %11369 = vmatpush1.msra.mxu0 0.0
      %11370 = vmatprep.subr.mxu0 0.0
      %11371 = vmatpush1.msra.mxu0 0.0
      %11372 = vmatprep.subr.mxu0 0.0
      %11373 = vmatpush1.msra.mxu0 0.0
      %11374 = vmatprep.subr.mxu0 0.0
      %11375 = vmatpush1.msra.mxu0 0.0
      %11376 = vmatprep.subr.mxu0 0.0
      %11377 = vmatpush1.msra.mxu0 0.0
      %11378 = vmatprep.subr.mxu0 0.0
      %11379 = vmatpush1.msra.mxu0 0.0
      %11380 = vmatprep.subr.mxu0 0.0
      %11381 = vmatpush1.msra.mxu0 0.0
      %11382 = vmatprep.subr.mxu0 0.0
      %11383 = vmatpush1.msra.mxu0 0.0
      %11384 = vmatprep.subr.mxu0 0.0
      %11385 = vmatpush1.msra.mxu0 0.0
      %11386 = vmatprep.subr.mxu0 0.0
      %11387 = vmatpush1.msra.mxu0 0.0
      %11388 = vmatprep.subr.mxu0 0.0
      %11389 = vmatpush1.msra.mxu0 0.0
      %11390 = vmatprep.subr.mxu0 0.0
      %11391 = vmatpush1.msra.mxu0 0.0
      %11392 = vmatprep.subr.mxu0 0.0
      %11393 = vmatpush1.msra.mxu0 0.0
      %11394 = vmatprep.subr.mxu0 0.0
      %11395 = vmatpush1.msra.mxu0 0.0
      %11396 = vmatprep.subr.mxu0 0.0
      %11397 = vmatpush1.msra.mxu0 0.0
      %11398 = vmatprep.subr.mxu0 0.0
      %11399 = vmatpush1.msra.mxu0 0.0
      %11400 = vmatprep.subr.mxu0 0.0
      %11401 = vmatpush1.msra.mxu0 0.0
      %11402 = vmatprep.subr.mxu0 0.0
      %11403 = vmatpush1.msra.mxu0 0.0
      %11404 = vmatprep.subr.mxu0 0.0
      %11405 = vmatpush1.msra.mxu0 0.0
      %11406 = vmatprep.subr.mxu0 0.0
      %11407 = vmatpush1.msra.mxu0 0.0
      %11408 = vmatprep.subr.mxu0 0.0
      %11409 = vmatpush1.msra.mxu0 0.0
      %11410 = vmatprep.subr.mxu0 0.0
      %11411 = vmatpush1.msra.mxu0 0.0
      %11412 = vmatprep.subr.mxu0 0.0
      %11413 = vmatpush1.msra.mxu0 0.0
      %11414 = vmatprep.mubr.f32.mxu0 0.0
      %11415 = vmatmul.mubr.f32.gmra.mrb[0].mxu0 %v11255
      %v11416 = vpop.f32.mrb[0].mxu0
      %v11417 = vadd.f32 %v3475, %v11416
      %v11418 = vpop.f32.mrb[0].mxu0
      %11419 = vmatprep.mubr.f32.mxu0 0.0
      %11420 = vmatmul.mubr.f32.gmra.mrb[0].mxu0 %v11258
      %v11421 = vpop.f32.mrb[0].mxu0
      %v11422 = vadd.f32 %v3475, %v11421
      %v11423 = vpop.f32.mrb[0].mxu0
      %11424 = vmatprep.mubr.f32.mxu0 0.0
      %11425 = vmatmul.mubr.f32.gmra.mrb[0].mxu0 %v11261
      %v11426 = vpop.f32.mrb[0].mxu0
      %v11427 = vadd.f32 %v3475, %v11426
      %v11428 = vpop.f32.mrb[0].mxu0
      %11429 = vmatprep.mubr.f32.mxu0 0.0
      %11430 = vmatmul.mubr.f32.gmra.mrb[0].mxu0 %v11264
      %v11431 = vpop.f32.mrb[0].mxu0
      %v11432 = vadd.f32 %v3475, %v11431
      %v11433 = vpop.f32.mrb[0].mxu0
      %11434 = vmatprep.mubr.f32.mxu0 0.0
      %11435 = vmatmul.mubr.f32.gmra.mrb[0].mxu0 %v11267
      %v11436 = vpop.f32.mrb[0].mxu0
      %v11437 = vadd.f32 %v3475, %v11436
      %v11438 = vpop.f32.mrb[0].mxu0
      %11439 = vmatprep.mubr.f32.mxu0 0.0
      %11440 = vmatmul.mubr.f32.gmra.mrb[0].mxu0 %v11270
      %v11441 = vpop.f32.mrb[0].mxu0
      %v11442 = vadd.f32 %v3475, %v11441
      %v11443 = vpop.f32.mrb[0].mxu0
      %11444 = vmatprep.mubr.f32.mxu0 0.0
      %11445 = vmatmul.mubr.f32.gmra.mrb[0].mxu0 %v11273
      %v11446 = vpop.f32.mrb[0].mxu0
      %v11447 = vadd.f32 %v3475, %v11446
      %v11448 = vpop.f32.mrb[0].mxu0
      %11449 = vmatprep.mubr.f32.mxu0 0.0
      %11450 = vmatmul.mubr.f32.gmra.mrb[0].mxu0 %v11276
      %v11451 = vpop.f32.mrb[0].mxu0
      %v11452 = vadd.f32 %v3475, %v11451
      %v11453 = vpop.f32.mrb[0].mxu0
      %11454 = vmatprep.mubr.f32.mxu0 0.0
      %11455 = vmatmul.mubr.f32.gmra.mrb[0].mxu0 %v11279
      %v11456 = vpop.f32.mrb[0].mxu0
      %v11457 = vadd.f32 %v3475, %v11456
      %v11458 = vpop.f32.mrb[0].mxu0
      %11459 = vmatprep.mubr.f32.mxu0 0.0
      %11460 = vmatmul.mubr.f32.gmra.mrb[0].mxu0 %v11282
      %v11461 = vpop.f32.mrb[0].mxu0
      %v11462 = vadd.f32 %v3475, %v11461
      %v11463 = vpop.f32.mrb[0].mxu0
      %11464 = vmatprep.mubr.f32.mxu0 0.0
      %11465 = vmatmul.mubr.f32.gmra.mrb[0].mxu0 %v11285
      %v11466 = vpop.f32.mrb[0].mxu0
      %v11467 = vadd.f32 %v3475, %v11466
      %v11468 = vpop.f32.mrb[0].mxu0
      %11469 = vmatprep.mubr.f32.mxu0 0.0
      %11470 = vmatmul.mubr.f32.gmra.mrb[0].mxu0 %v11288
      %v11471 = vpop.f32.mrb[0].mxu0
      %v11472 = vadd.f32 %v3475, %v11471
      %v11473 = vpop.f32.mrb[0].mxu0
      %11474 = vmatprep.mubr.f32.mxu0 0.0
      %11475 = vmatmul.mubr.f32.gmra.mrb[0].mxu0 %v11291
      %v11476 = vpop.f32.mrb[0].mxu0
      %v11477 = vadd.f32 %v3475, %v11476
      %v11478 = vpop.f32.mrb[0].mxu0
      %11479 = vmatprep.mubr.f32.mxu0 0.0
      %11480 = vmatmul.mubr.f32.gmra.mrb[0].mxu0 %v11294
      %v11481 = vpop.f32.mrb[0].mxu0
      %v11482 = vadd.f32 %v3475, %v11481
      %v11483 = vpop.f32.mrb[0].mxu0
      %11484 = vmatprep.mubr.f32.mxu0 0.0
      %11485 = vmatmul.mubr.f32.gmra.mrb[0].mxu0 %v11297
      %v11486 = vpop.f32.mrb[0].mxu0
      %v11487 = vadd.f32 %v3475, %v11486
      %v11488 = vpop.f32.mrb[0].mxu0
      %11489 = vmatprep.mubr.f32.mxu0 0.0
      %11490 = vmatmul.mubr.f32.gmra.mrb[0].mxu0 %v11300
      %v11491 = vpop.f32.mrb[0].mxu0
      %v11492 = vadd.f32 %v3475, %v11491
      %v11493 = vpop.f32.mrb[0].mxu0
      %11494 = vmatprep.mubr.f32.mxu0 0.0
      %11495 = vmatmul.mubr.f32.gmra.mrb[0].mxu0 %v11303
      %v11496 = vpop.f32.mrb[0].mxu0
      %v11497 = vadd.f32 %v3475, %v11496
      %v11498 = vpop.f32.mrb[0].mxu0
      %11499 = vmatprep.mubr.f32.mxu0 0.0
      %11500 = vmatmul.mubr.f32.gmra.mrb[0].mxu0 %v11306
      %v11501 = vpop.f32.mrb[0].mxu0
      %v11502 = vadd.f32 %v3475, %v11501
      %v11503 = vpop.f32.mrb[0].mxu0
      %11504 = vmatprep.mubr.f32.mxu0 0.0
      %11505 = vmatmul.mubr.f32.gmra.mrb[0].mxu0 %v11309
      %v11506 = vpop.f32.mrb[0].mxu0
      %v11507 = vadd.f32 %v3475, %v11506
      %v11508 = vpop.f32.mrb[0].mxu0
      %11509 = vmatprep.mubr.f32.mxu0 0.0
      %11510 = vmatmul.mubr.f32.gmra.mrb[0].mxu0 %v11312
      %v11511 = vpop.f32.mrb[0].mxu0
      %v11512 = vadd.f32 %v3475, %v11511
      %v11513 = vpop.f32.mrb[0].mxu0
      %11514 = vmatprep.mubr.f32.mxu0 0.0
      %11515 = vmatmul.mubr.f32.gmra.mrb[0].mxu0 %v11315
      %v11516 = vpop.f32.mrb[0].mxu0
      %v11517 = vadd.f32 %v3475, %v11516
      %v11518 = vpop.f32.mrb[0].mxu0
      %11519 = vmatprep.mubr.f32.mxu0 0.0
      %11520 = vmatmul.mubr.f32.gmra.mrb[0].mxu0 %v11318
      %v11521 = vpop.f32.mrb[0].mxu0
      %v11522 = vadd.f32 %v3475, %v11521
      %v11523 = vpop.f32.mrb[0].mxu0
      %11524 = vmatprep.mubr.f32.mxu0 0.0
      %11525 = vmatmul.mubr.f32.gmra.mrb[0].mxu0 %v11321
      %v11526 = vpop.f32.mrb[0].mxu0
      %v11527 = vadd.f32 %v3475, %v11526
      %v11528 = vpop.f32.mrb[0].mxu0
      %11529 = vmatprep.mubr.f32.mxu0 0.0
      %11530 = vmatmul.mubr.f32.gmra.mrb[0].mxu0 %v11324
      %v11531 = vpop.f32.mrb[0].mxu0
      %v11532 = vadd.f32 %v3475, %v11531
      %v11533 = vpop.f32.mrb[0].mxu0
      %11534 = vmatprep.mubr.f32.mxu0 0.0
      %11535 = vmatmul.mubr.f32.gmra.mrb[0].mxu0 %v11327
      %v11536 = vpop.f32.mrb[0].mxu0
      %v11537 = vadd.f32 %v3475, %v11536
      %v11538 = vpop.f32.mrb[0].mxu0
      %11539 = vmatprep.mubr.f32.mxu0 0.0
      %11540 = vmatmul.mubr.f32.gmra.mrb[0].mxu0 %v11330
      %v11541 = vpop.f32.mrb[0].mxu0
      %v11542 = vadd.f32 %v3475, %v11541
      %v11543 = vpop.f32.mrb[0].mxu0
      %11544 = vmatprep.mubr.f32.mxu0 0.0
      %11545 = vmatmul.mubr.f32.gmra.mrb[0].mxu0 %v11333
      %v11546 = vpop.f32.mrb[0].mxu0
      %v11547 = vadd.f32 %v3475, %v11546
      %v11548 = vpop.f32.mrb[0].mxu0
      %11549 = vmatprep.mubr.f32.mxu0 0.0
      %11550 = vmatmul.mubr.f32.gmra.mrb[0].mxu0 %v11336
      %v11551 = vpop.f32.mrb[0].mxu0
      %v11552 = vadd.f32 %v3475, %v11551
      %v11553 = vpop.f32.mrb[0].mxu0
      %11554 = vmatprep.mubr.f32.mxu0 0.0
      %11555 = vmatmul.mubr.f32.gmra.mrb[0].mxu0 %v11339
      %v11556 = vpop.f32.mrb[0].mxu0
      %v11557 = vadd.f32 %v3475, %v11556
      %v11558 = vpop.f32.mrb[0].mxu0
      %11559 = vmatprep.mubr.f32.mxu0 0.0
      %11560 = vmatmul.mubr.f32.gmra.mrb[0].mxu0 %v11342
      %v11561 = vpop.f32.mrb[0].mxu0
      %v11562 = vadd.f32 %v3475, %v11561
      %v11563 = vpop.f32.mrb[0].mxu0
      %11564 = vmatprep.mubr.f32.mxu0 0.0
      %11565 = vmatmul.mubr.f32.gmra.mrb[0].mxu0 %v11345
      %v11566 = vpop.f32.mrb[0].mxu0
      %v11567 = vadd.f32 %v3475, %v11566
      %v11568 = vpop.f32.mrb[0].mxu0
      %11569 = vmatprep.mubr.f32.mxu0 0.0
      %11570 = vmatmul.mubr.f32.gmra.mrb[0].mxu0 %v11348
      %v11571 = vpop.f32.mrb[0].mxu0
      %v11572 = vadd.f32 %v3475, %v11571
      %v11573 = vpop.f32.mrb[0].mxu0
      %11574 = vdwg.mxu0
      %v11607 = vadd.f32 %v4812, %v5358
      %v11608 = vadd.f32 %v4813, %v5360
      %v11609 = vadd.f32 %v4814, %v5362
      %v11610 = vadd.f32 %v4815, %v5364
      %v11611 = vadd.f32 %v4816, %v5366
      %v11612 = vadd.f32 %v4817, %v5368
      %v11613 = vadd.f32 %v4818, %v5370
      %v11614 = vadd.f32 %v4819, %v5372
      %v11615 = vadd.f32 %v4820, %v5374
      %v11616 = vadd.f32 %v4821, %v5376
      %v11617 = vadd.f32 %v4822, %v5378
      %v11618 = vadd.f32 %v4823, %v5380
      %v11619 = vadd.f32 %v4824, %v5382
      %v11620 = vadd.f32 %v4825, %v5384
      %v11621 = vadd.f32 %v4826, %v5386
      %v11622 = vadd.f32 %v4827, %v5388
      %v11623 = vadd.f32 %v4828, %v5390
      %v11624 = vadd.f32 %v4829, %v5392
      %v11625 = vadd.f32 %v4830, %v5394
      %v11626 = vadd.f32 %v4831, %v5396
      %v11627 = vadd.f32 %v4832, %v5398
      %v11628 = vadd.f32 %v4833, %v5400
      %v11629 = vadd.f32 %v4834, %v5402
      %v11630 = vadd.f32 %v4835, %v5404
      %v11631 = vadd.f32 %v4836, %v5406
      %v11632 = vadd.f32 %v4837, %v5408
      %v11633 = vadd.f32 %v4838, %v5410
      %v11634 = vadd.f32 %v4839, %v5412
      %v11635 = vadd.f32 %v4840, %v5414
      %v11636 = vadd.f32 %v4841, %v5416
      %v11637 = vadd.f32 %v4842, %v5418
      %v11638 = vadd.f32 %v4843, %v5420
      %v11639 = vmul.f32 %v11607, 0.5
      %v11640 = vmul.f32 %v11608, 0.5
      %v11641 = vmul.f32 %v11609, 0.5
      %v11642 = vmul.f32 %v11610, 0.5
      %v11643 = vmul.f32 %v11611, 0.5
      %v11644 = vmul.f32 %v11612, 0.5
      %v11645 = vmul.f32 %v11613, 0.5
      %v11646 = vmul.f32 %v11614, 0.5
      %v11647 = vmul.f32 %v11615, 0.5
      %v11648 = vmul.f32 %v11616, 0.5
      %v11649 = vmul.f32 %v11617, 0.5
      %v11650 = vmul.f32 %v11618, 0.5
      %v11651 = vmul.f32 %v11619, 0.5
      %v11652 = vmul.f32 %v11620, 0.5
      %v11653 = vmul.f32 %v11621, 0.5
      %v11654 = vmul.f32 %v11622, 0.5
      %v11655 = vmul.f32 %v11623, 0.5
      %v11656 = vmul.f32 %v11624, 0.5
      %v11657 = vmul.f32 %v11625, 0.5
      %v11658 = vmul.f32 %v11626, 0.5
      %v11659 = vmul.f32 %v11627, 0.5
      %v11660 = vmul.f32 %v11628, 0.5
      %v11661 = vmul.f32 %v11629, 0.5
      %v11662 = vmul.f32 %v11630, 0.5
      %v11663 = vmul.f32 %v11631, 0.5
      %v11664 = vmul.f32 %v11632, 0.5
      %v11665 = vmul.f32 %v11633, 0.5
      %v11666 = vmul.f32 %v11634, 0.5
      %v11667 = vmul.f32 %v11635, 0.5
      %v11668 = vmul.f32 %v11636, 0.5
      %v11669 = vmul.f32 %v11637, 0.5
      %v11670 = vmul.f32 %v11638, 0.5
      %v11671 = vadd.f32 %v11417, %v11639
      %v11672 = vadd.f32 %v11422, %v11640
      %v11673 = vadd.f32 %v11427, %v11641
      %v11674 = vadd.f32 %v11432, %v11642
      %v11675 = vadd.f32 %v11437, %v11643
      %v11676 = vadd.f32 %v11442, %v11644
      %v11677 = vadd.f32 %v11447, %v11645
      %v11678 = vadd.f32 %v11452, %v11646
      %v11679 = vadd.f32 %v11457, %v11647
      %v11680 = vadd.f32 %v11462, %v11648
      %v11681 = vadd.f32 %v11467, %v11649
      %v11682 = vadd.f32 %v11472, %v11650
      %v11683 = vadd.f32 %v11477, %v11651
      %v11684 = vadd.f32 %v11482, %v11652
      %v11685 = vadd.f32 %v11487, %v11653
      %v11686 = vadd.f32 %v11492, %v11654
      %v11687 = vadd.f32 %v11497, %v11655
      %v11688 = vadd.f32 %v11502, %v11656
      %v11689 = vadd.f32 %v11507, %v11657
      %v11690 = vadd.f32 %v11512, %v11658
      %v11691 = vadd.f32 %v11517, %v11659
      %v11692 = vadd.f32 %v11522, %v11660
      %v11693 = vadd.f32 %v11527, %v11661
      %v11694 = vadd.f32 %v11532, %v11662
      %v11695 = vadd.f32 %v11537, %v11663
      %v11696 = vadd.f32 %v11542, %v11664
      %v11697 = vadd.f32 %v11547, %v11665
      %v11698 = vadd.f32 %v11552, %v11666
      %v11699 = vadd.f32 %v11557, %v11667
      %v11700 = vadd.f32 %v11562, %v11668
      %v11701 = vadd.f32 %v11567, %v11669
      %v11702 = vadd.f32 %v11572, %v11670
      %v11703 = vadd.f32 %v11671, %v612
      %v11704 = vadd.f32 %v11672, %v613
      %v11705 = vadd.f32 %v11673, %v614
      %v11706 = vadd.f32 %v11674, %v615
      %v11707 = vadd.f32 %v11675, %v616
      %v11708 = vadd.f32 %v11676, %v617
      %v11709 = vadd.f32 %v11677, %v618
      %v11710 = vadd.f32 %v11678, %v619
      %v11711 = vadd.f32 %v11679, %v620
      %v11712 = vadd.f32 %v11680, %v621
      %v11713 = vadd.f32 %v11681, %v622
      %v11714 = vadd.f32 %v11682, %v623
      %v11715 = vadd.f32 %v11683, %v624
      %v11716 = vadd.f32 %v11684, %v625
      %v11717 = vadd.f32 %v11685, %v626
      %v11718 = vadd.f32 %v11686, %v627
      %v11719 = vadd.f32 %v11687, %v628
      %v11720 = vadd.f32 %v11688, %v629
      %v11721 = vadd.f32 %v11689, %v630
      %v11722 = vadd.f32 %v11690, %v631
      %v11723 = vadd.f32 %v11691, %v632
      %v11724 = vadd.f32 %v11692, %v633
      %v11725 = vadd.f32 %v11693, %v634
      %v11726 = vadd.f32 %v11694, %v635
      %v11727 = vadd.f32 %v11695, %v636
      %v11728 = vadd.f32 %v11696, %v637
      %v11729 = vadd.f32 %v11697, %v638
      %v11730 = vadd.f32 %v11698, %v639
      %v11731 = vadd.f32 %v11699, %v640
      %v11732 = vadd.f32 %v11700, %v641
      %v11733 = vadd.f32 %v11701, %v642
      %v11734 = vadd.f32 %v11702, %v643
      %11735 = vst.msk [vmem:[%s595 + $0x40] sm:$0xff] %vm684, %v11703
      %11736 = vst.msk [vmem:[%s595 + $0x48] sm:$0xff] %vm684, %v11704
      %11737 = vst.msk [vmem:[%s595 + $0x50] sm:$0xff] %vm684, %v11705
      %11738 = vst.msk [vmem:[%s595 + $0x58] sm:$0xff] %vm684, %v11706
      %11739 = vst.msk [vmem:[%s595 + $0x60] sm:$0xff] %vm684, %v11707
      %11740 = vst.msk [vmem:[%s595 + $0x68] sm:$0xff] %vm684, %v11708
      %11741 = vst.msk [vmem:[%s595 + $0x70] sm:$0xff] %vm684, %v11709
      %11742 = vst.msk [vmem:[%s595 + $0x78] sm:$0xff] %vm684, %v11710
      %11743 = vst.msk [vmem:[%s595 + $0x80] sm:$0xff] %vm684, %v11711
      %11744 = vst.msk [vmem:[%s595 + $0x88] sm:$0xff] %vm684, %v11712
      %11745 = vst.msk [vmem:[%s595 + $0x90] sm:$0xff] %vm684, %v11713
      %11746 = vst.msk [vmem:[%s595 + $0x98] sm:$0xff] %vm684, %v11714
      %11747 = vst.msk [vmem:[%s595 + $0xa0] sm:$0xff] %vm684, %v11715
      %11748 = vst.msk [vmem:[%s595 + $0xa8] sm:$0xff] %vm684, %v11716
      %11749 = vst.msk [vmem:[%s595 + $0xb0] sm:$0xff] %vm684, %v11717
      %11750 = vst.msk [vmem:[%s595 + $0xb8] sm:$0xff] %vm684, %v11718
      %11751 = vst.msk [vmem:[%s595 + $0xc0] sm:$0xff] %vm684, %v11719
      %11752 = vst.msk [vmem:[%s595 + $0xc8] sm:$0xff] %vm684, %v11720
      %11753 = vst.msk [vmem:[%s595 + $0xd0] sm:$0xff] %vm684, %v11721
      %11754 = vst.msk [vmem:[%s595 + $0xd8] sm:$0xff] %vm684, %v11722
      %11755 = vst.msk [vmem:[%s595 + $0xe0] sm:$0xff] %vm684, %v11723
      %11756 = vst.msk [vmem:[%s595 + $0xe8] sm:$0xff] %vm684, %v11724
      %11757 = vst.msk [vmem:[%s595 + $0xf0] sm:$0xff] %vm684, %v11725
      %11758 = vst.msk [vmem:[%s595 + $0xf8] sm:$0xff] %vm684, %v11726
      %11759 = vst.msk [vmem:[%s595 + $0x100] sm:$0xff] %vm684, %v11727
      %11760 = vst.msk [vmem:[%s595 + $0x108] sm:$0xff] %vm684, %v11728
      %11761 = vst.msk [vmem:[%s595 + $0x110] sm:$0xff] %vm684, %v11729
      %11762 = vst.msk [vmem:[%s595 + $0x118] sm:$0xff] %vm684, %v11730
      %11763 = vst.msk [vmem:[%s595 + $0x120] sm:$0xff] %vm684, %v11731
      %11764 = vst.msk [vmem:[%s595 + $0x128] sm:$0xff] %vm684, %v11732
      %11765 = vst.msk [vmem:[%s595 + $0x130] sm:$0xff] %vm684, %v11733
      %11766 = vst.msk [vmem:[%s595 + $0x138] sm:$0xff] %vm684, %v11734
      %v11767 = vadd.f32 %v11671, %v644
      %v11768 = vadd.f32 %v11672, %v645
      %v11769 = vadd.f32 %v11673, %v646
      %v11770 = vadd.f32 %v11674, %v647
      %v11771 = vadd.f32 %v11675, %v648
      %v11772 = vadd.f32 %v11676, %v649
      %v11773 = vadd.f32 %v11677, %v650
      %v11774 = vadd.f32 %v11678, %v651
      %v11775 = vadd.f32 %v11679, %v652
      %v11776 = vadd.f32 %v11680, %v653
      %v11777 = vadd.f32 %v11681, %v654
      %v11778 = vadd.f32 %v11682, %v655
      %v11779 = vadd.f32 %v11683, %v656
      %v11780 = vadd.f32 %v11684, %v657
      %v11781 = vadd.f32 %v11685, %v658
      %v11782 = vadd.f32 %v11686, %v659
      %v11783 = vadd.f32 %v11687, %v660
      %v11784 = vadd.f32 %v11688, %v661
      %v11785 = vadd.f32 %v11689, %v662
      %v11786 = vadd.f32 %v11690, %v663
      %v11787 = vadd.f32 %v11691, %v664
      %v11788 = vadd.f32 %v11692, %v665
      %v11789 = vadd.f32 %v11693, %v666
      %v11790 = vadd.f32 %v11694, %v667
      %v11791 = vadd.f32 %v11695, %v668
      %v11792 = vadd.f32 %v11696, %v669
      %v11793 = vadd.f32 %v11697, %v670
      %v11794 = vadd.f32 %v11698, %v671
      %v11795 = vadd.f32 %v11699, %v672
      %v11796 = vadd.f32 %v11700, %v673
      %v11797 = vadd.f32 %v11701, %v674
      %v11798 = vadd.f32 %v11702, %v675
      %11831 = vrot.lane.b32.xlu0 %v11767, 32
      %v11832 = vpop.permute.xlu0 %11831
      %11833 = vrot.lane.b32.xlu0 %v11768, 32
      %v11834 = vpop.permute.xlu0 %11833
      %11835 = vrot.lane.b32.xlu0 %v11769, 32
      %v11836 = vpop.permute.xlu0 %11835
      %11837 = vrot.lane.b32.xlu0 %v11770, 32
      %v11838 = vpop.permute.xlu0 %11837
      %11839 = vrot.lane.b32.xlu0 %v11771, 32
      %v11840 = vpop.permute.xlu0 %11839
      %11841 = vrot.lane.b32.xlu0 %v11772, 32
      %v11842 = vpop.permute.xlu0 %11841
      %11843 = vrot.lane.b32.xlu0 %v11773, 32
      %v11844 = vpop.permute.xlu0 %11843
      %11845 = vrot.lane.b32.xlu0 %v11774, 32
      %v11846 = vpop.permute.xlu0 %11845
      %11847 = vrot.lane.b32.xlu0 %v11775, 32
      %v11848 = vpop.permute.xlu0 %11847
      %11849 = vrot.lane.b32.xlu0 %v11776, 32
      %v11850 = vpop.permute.xlu0 %11849
      %11851 = vrot.lane.b32.xlu0 %v11777, 32
      %v11852 = vpop.permute.xlu0 %11851
      %11853 = vrot.lane.b32.xlu0 %v11778, 32
      %v11854 = vpop.permute.xlu0 %11853
      %11855 = vrot.lane.b32.xlu0 %v11779, 32
      %v11856 = vpop.permute.xlu0 %11855
      %11857 = vrot.lane.b32.xlu0 %v11780, 32
      %v11858 = vpop.permute.xlu0 %11857
      %11859 = vrot.lane.b32.xlu0 %v11781, 32
      %v11860 = vpop.permute.xlu0 %11859
      %11861 = vrot.lane.b32.xlu0 %v11782, 32
      %v11862 = vpop.permute.xlu0 %11861
      %11863 = vrot.lane.b32.xlu0 %v11783, 32
      %v11864 = vpop.permute.xlu0 %11863
      %11865 = vrot.lane.b32.xlu0 %v11784, 32
      %v11866 = vpop.permute.xlu0 %11865
      %11867 = vrot.lane.b32.xlu0 %v11785, 32
      %v11868 = vpop.permute.xlu0 %11867
      %11869 = vrot.lane.b32.xlu0 %v11786, 32
      %v11870 = vpop.permute.xlu0 %11869
      %11871 = vrot.lane.b32.xlu0 %v11787, 32
      %v11872 = vpop.permute.xlu0 %11871
      %11873 = vrot.lane.b32.xlu0 %v11788, 32
      %v11874 = vpop.permute.xlu0 %11873
      %11875 = vrot.lane.b32.xlu0 %v11789, 32
      %v11876 = vpop.permute.xlu0 %11875
      %11877 = vrot.lane.b32.xlu0 %v11790, 32
      %v11878 = vpop.permute.xlu0 %11877
      %11879 = vrot.lane.b32.xlu0 %v11791, 32
      %v11880 = vpop.permute.xlu0 %11879
      %11881 = vrot.lane.b32.xlu0 %v11792, 32
      %v11882 = vpop.permute.xlu0 %11881
      %11883 = vrot.lane.b32.xlu0 %v11793, 32
      %v11884 = vpop.permute.xlu0 %11883
      %11885 = vrot.lane.b32.xlu0 %v11794, 32
      %v11886 = vpop.permute.xlu0 %11885
      %11887 = vrot.lane.b32.xlu0 %v11795, 32
      %v11888 = vpop.permute.xlu0 %11887
      %11889 = vrot.lane.b32.xlu0 %v11796, 32
      %v11890 = vpop.permute.xlu0 %11889
      %11891 = vrot.lane.b32.xlu0 %v11797, 32
      %v11892 = vpop.permute.xlu0 %11891
      %11893 = vrot.lane.b32.xlu0 %v11798, 32
      %v11894 = vpop.permute.xlu0 %11893
      %11927 = vst.msk [vmem:[%s595 + $0x40] sm:$0xff] %vm3694, %v11832
      %11928 = vst.msk [vmem:[%s595 + $0x48] sm:$0xff] %vm3694, %v11834
      %11929 = vst.msk [vmem:[%s595 + $0x50] sm:$0xff] %vm3694, %v11836
      %11930 = vst.msk [vmem:[%s595 + $0x58] sm:$0xff] %vm3694, %v11838
      %11931 = vst.msk [vmem:[%s595 + $0x60] sm:$0xff] %vm3694, %v11840
      %11932 = vst.msk [vmem:[%s595 + $0x68] sm:$0xff] %vm3694, %v11842
      %11933 = vst.msk [vmem:[%s595 + $0x70] sm:$0xff] %vm3694, %v11844
      %11934 = vst.msk [vmem:[%s595 + $0x78] sm:$0xff] %vm3694, %v11846
      %11935 = vst.msk [vmem:[%s595 + $0x80] sm:$0xff] %vm3694, %v11848
      %11936 = vst.msk [vmem:[%s595 + $0x88] sm:$0xff] %vm3694, %v11850
      %11937 = vst.msk [vmem:[%s595 + $0x90] sm:$0xff] %vm3694, %v11852
      %11938 = vst.msk [vmem:[%s595 + $0x98] sm:$0xff] %vm3694, %v11854
      %11939 = vst.msk [vmem:[%s595 + $0xa0] sm:$0xff] %vm3694, %v11856
      %11940 = vst.msk [vmem:[%s595 + $0xa8] sm:$0xff] %vm3694, %v11858
      %11941 = vst.msk [vmem:[%s595 + $0xb0] sm:$0xff] %vm3694, %v11860
      %11942 = vst.msk [vmem:[%s595 + $0xb8] sm:$0xff] %vm3694, %v11862
      %11943 = vst.msk [vmem:[%s595 + $0xc0] sm:$0xff] %vm3694, %v11864
      %11944 = vst.msk [vmem:[%s595 + $0xc8] sm:$0xff] %vm3694, %v11866
      %11945 = vst.msk [vmem:[%s595 + $0xd0] sm:$0xff] %vm3694, %v11868
      %11946 = vst.msk [vmem:[%s595 + $0xd8] sm:$0xff] %vm3694, %v11870
      %11947 = vst.msk [vmem:[%s595 + $0xe0] sm:$0xff] %vm3694, %v11872
      %11948 = vst.msk [vmem:[%s595 + $0xe8] sm:$0xff] %vm3694, %v11874
      %11949 = vst.msk [vmem:[%s595 + $0xf0] sm:$0xff] %vm3694, %v11876
      %11950 = vst.msk [vmem:[%s595 + $0xf8] sm:$0xff] %vm3694, %v11878
      %11951 = vst.msk [vmem:[%s595 + $0x100] sm:$0xff] %vm3694, %v11880
      %11952 = vst.msk [vmem:[%s595 + $0x108] sm:$0xff] %vm3694, %v11882
      %11953 = vst.msk [vmem:[%s595 + $0x110] sm:$0xff] %vm3694, %v11884
      %11954 = vst.msk [vmem:[%s595 + $0x118] sm:$0xff] %vm3694, %v11886
      %11955 = vst.msk [vmem:[%s595 + $0x120] sm:$0xff] %vm3694, %v11888
      %11956 = vst.msk [vmem:[%s595 + $0x128] sm:$0xff] %vm3694, %v11890
      %11957 = vst.msk [vmem:[%s595 + $0x130] sm:$0xff] %vm3694, %v11892
      %11958 = vst.msk [vmem:[%s595 + $0x138] sm:$0xff] %vm3694, %v11894
      %p11959 = scmp.lt.s32.totalorder %s29, 1
      %s11960 = scalar_select %p11959, %s29, 1
      %s11961 = smul.addr %s11960, 40
      %s11962 = smul.addr %s11961, 8
      %s11963 = scalar_lea.vmem %s18, %s11962
      // Predicated region
      $region93: #{rgbt_layer_forward.1} parent=91 // pred_check
        %p11964 = pneg %p435
      $region94: #{rgbt_layer_forward.1} parent=91 // pred_check_branch
        %11966 = sbr.rel (%p11964) target = $region96
      $region95: #{rgbt_layer_forward.1} parent=91 // pred_region
        _
      $region96: #{rgbt_layer_forward.1} parent=91 // pred_fallthru
        _
    $region92: #{rgbt_layer_forward.1} parent=5 // pred_fallthru
      _
    %p11967 = scmp.le.s32.totalorder 2, %s24
    // Predicated region
    $region97: #{rgbt_layer_forward.1} parent=5 // pred_check
      %p11968 = pneg %p11967
    $region98: #{rgbt_layer_forward.1} parent=5 // pred_check_branch
      %11970 = sbr.rel (%p11968) target = $region100
    $region99: #{rgbt_layer_forward.1} parent=5 // pred_region
      %s11971 = ssub.s32 %s24, 2
      // Predicated region
      $region101: #{rgbt_layer_forward.1} parent=99 // pred_check
        %p11972 = pneg %p441
      $region102: #{rgbt_layer_forward.1} parent=99 // pred_check_branch
        %11974 = sbr.rel (%p11972) target = $region104
      $region103: #{rgbt_layer_forward.1} parent=99 // pred_region
        %p11975 = scmp.lt.s32.totalorder %s30, 1
        %s11976 = scalar_select %p11975, %s30, 1
        %s11977 = smul.addr %s11976, 40
        %s11978 = smul.addr %s11977, 8
        %s11979 = scalar_lea.vmem %s18, %s11978
      $region104: #{rgbt_layer_forward.1} parent=99 // pred_fallthru
        _
    $region100: #{rgbt_layer_forward.1} parent=5 // pred_fallthru
      _
  $region6: #{rgbt_layer_forward.1} parent=0 // loop_footer
    %s28 = sadd.s32 1, %s24
  $region7: #{rgbt_layer_forward.1} parent=0 // loop_footer_branch
    %23 = sbr.rel target = $region3
  $region8: #{rgbt_layer_forward.1} parent=0 // loop_exit
    _

</llo_original>
